<compile_context>
chip_gen: v7x
topology: tpu7x:2x2x1
jax: 0.10.0
libtpu: 0.0.40
codegen_flags: <defaults>
</compile_context>

<pallas_src>
import functools

import jax
import jax.numpy as jnp
from jax.experimental import pallas as pl
from jax.experimental.pallas import tpu as pltpu

EPS = 1e-5

# Static per-layer config: (kernel_size, padding, stride, out_channels).
# Order: branch3x3 layer 1-2, then branch7x7 layer 1-4.
BRANCH3X3_CFG = ((1, 0, 1, 192), (3, 0, 2, 320))
BRANCH7X7_CFG = ((1, 0, 1, 192), (7, 3, 1, 192), (7, 3, 1, 192), (3, 0, 2, 192))
LAYER_CFG = BRANCH3X3_CFG + BRANCH7X7_CFG


# ----------------------------------------------------------------------------
# Kernel-side helpers (traced inside the Pallas kernel)
# ----------------------------------------------------------------------------
def _gather_mat(lout, lin, tap, stride, pad):
    """(lout, lin) 0/1 matrix selecting input row  o*stride + tap - pad.

    Out-of-range rows select nothing -> implicit zero padding, so no jnp.pad
    and no strided/unaligned sublane slices are needed; the gather runs on
    the MXU.
    """
    row = jax.lax.broadcasted_iota(jnp.int32, (lout, lin), 0)
    col = jax.lax.broadcasted_iota(jnp.int32, (lout, lin), 1)
    return (col == row * stride + (tap - pad)).astype(jnp.float32)


def _conv_bn_relu(xs, w_ref, gamma_ref, beta_ref, k, pad, stride):
    """Fused Conv1d(bias=False) + BatchNorm1d(train) + ReLU.

    xs: list (length N) of per-batch-element (L_in, Cin) f32 tiles kept in
    VMEM/vregs; returns the analogous list of (L_out, Cout) tiles.
    """
    lin, _ = xs[0].shape
    lout = (lin + 2 * pad - k) // stride + 1

    if k == 1 and stride == 1 and pad == 0:
        slabs = xs                                            # (lin, cin)
    else:
        gmats = [_gather_mat(lout, lin, t, stride, pad) for t in range(k)]
        slabs = []
        for xn in xs:
            taps = [jnp.dot(g, xn, preferred_element_type=jnp.float32)
                    for g in gmats]
            slabs.append(jnp.concatenate(taps, axis=-1))      # (lout, k*cin)

    w = w_ref[...]                                            # (k*cin, cout)
    accs = [jnp.dot(s, w, preferred_element_type=jnp.float32) for s in slabs]

    # BatchNorm (training semantics): biased batch stats over (N, L) per
    # channel, computed in a single pass (sum + sum of squares).
    cnt = float(len(accs) * lout)
    ssum = accs[0].sum(axis=0, keepdims=True)
    ssq = (accs[0] * accs[0]).sum(axis=0, keepdims=True)
    for a in accs[1:]:
        ssum = ssum + a.sum(axis=0, keepdims=True)
        ssq = ssq + (a * a).sum(axis=0, keepdims=True)
    mean = ssum * (1.0 / cnt)
    var = ssq * (1.0 / cnt) - mean * mean
    scale = gamma_ref[...] * jax.lax.rsqrt(var + EPS)
    shift = beta_ref[...] - mean * scale
    return [jnp.maximum(a * scale + shift, 0.0) for a in accs]


def _avgpool3_s2(xs):
    """AvgPool1d(kernel_size=3, stride=2, padding=0) via one pooling matmul."""
    lin, _ = xs[0].shape
    lout = (lin - 3) // 2 + 1
    pool = (_gather_mat(lout, lin, 0, 2, 0)
            + _gather_mat(lout, lin, 1, 2, 0)
            + _gather_mat(lout, lin, 2, 2, 0)) * (1.0 / 3.0)
    return [jnp.dot(pool, xn, preferred_element_type=jnp.float32) for xn in xs]


# ----------------------------------------------------------------------------
# The fused InceptionD kernel
# ----------------------------------------------------------------------------
def inception_d_kernel(*refs, n_batch):
    x_ref = refs[0]           # (N, L, Cin)
    layer_refs = refs[1:-1]   # 6 layers x (w, gamma, beta)
    o_ref = refs[-1]          # (N, L_out, 320 + 192 + Cin)

    xs = [x_ref[n] for n in range(n_batch)]                   # (L, Cin) tiles

    def run_layer(idx, inp):
        w_ref, g_ref, b_ref = layer_refs[3 * idx: 3 * idx + 3]
        k, pad, stride, _ = LAYER_CFG[idx]
        return _conv_bn_relu(inp, w_ref, g_ref, b_ref, k, pad, stride)

    y3 = run_layer(1, run_layer(0, xs))                       # branch3x3
    y7 = xs
    for idx in (2, 3, 4, 5):                                  # branch7x7
        y7 = run_layer(idx, y7)
    yp = _avgpool3_s2(xs)                                     # branchpool

    # Single lane-dense output slab; channel order == torch.cat(dim=1).
    for n in range(n_batch):
        o_ref[n] = jnp.concatenate([y3[n], y7[n], yp[n]], axis=-1)


# ----------------------------------------------------------------------------
# Wrapper
# ----------------------------------------------------------------------------
def inception_d_forward(x_ncl, params):
    """x_ncl: (N, Cin, L) -> (N, 320 + 192 + Cin, (L - 3)//2 + 1), like PyTorch."""
    x = jnp.transpose(x_ncl, (0, 2, 1)).astype(jnp.float32)   # NCL -> NLC
    n, l, cin = x.shape
    l_out = (l - 3) // 2 + 1
    c_total = 320 + 192 + cin

    flat_inputs = [x]
    for layer in params:                                      # fixed layer order
        k_sz, cin_l, cout_l = layer["w"].shape
        flat_inputs.append(layer["w"].reshape(k_sz * cin_l, cout_l))  # im2col layout
        flat_inputs.append(layer["gamma"].reshape(1, cout_l))
        flat_inputs.append(layer["beta"].reshape(1, cout_l))

    vmem = pl.BlockSpec(memory_space=pltpu.MemorySpace.VMEM)
    out_nlc = pl.pallas_call(
        functools.partial(inception_d_kernel, n_batch=n),
        out_shape=jax.ShapeDtypeStruct((n, l_out, c_total), jnp.float32),
        in_specs=[vmem] * len(flat_inputs),
        out_specs=vmem,
        compiler_params=pltpu.CompilerParams(vmem_limit_bytes=32 * 1024 * 1024),
    )(*flat_inputs)
    return jnp.transpose(out_nlc, (0, 2, 1))                  # back to NCL


# ----------------------------------------------------------------------------
# Parameter construction (deterministic, synthetic; fresh-module BN affine)
# ----------------------------------------------------------------------------
def make_inception_d_params(key, input_channels):
    in_channels = (input_channels, 192,                       # branch3x3
                   input_channels, 192, 192, 192)             # branch7x7
    keys = jax.random.split(key, len(LAYER_CFG))
    params = []
    for kk, cin_l, (k_sz, _, _, cout_l) in zip(keys, in_channels, LAYER_CFG):
        params.append({
            "w": jax.random.normal(kk, (k_sz, cin_l, cout_l), jnp.float32) * 0.1,
            "gamma": jnp.ones((cout_l,), jnp.float32),
            "beta": jnp.zeros((cout_l,), jnp.float32),
        })
    return params


# ----------------------------------------------------------------------------
# Pure-JAX reference (for correctness check)
# ----------------------------------------------------------------------------
def _ref_basic_conv(x_nlc, w_kio, gamma, beta, pad, stride):
    y = jax.lax.conv_general_dilated(
        x_nlc, w_kio, window_strides=(stride,), padding=[(pad, pad)],
        dimension_numbers=("NWC", "WIO", "NWC"),
        precision=jax.lax.Precision.HIGHEST)
    mean = y.mean(axis=(0, 1), keepdims=True)
    var = ((y - mean) ** 2).mean(axis=(0, 1), keepdims=True)
    y = (y - mean) * jax.lax.rsqrt(var + EPS) * gamma + beta
    return jnp.maximum(y, 0.0)


def ref_forward(x_ncl, params):
    x = jnp.transpose(x_ncl, (0, 2, 1)).astype(jnp.float32)
    _, l, _ = x.shape

    def run(xx, idxs):
        for i in idxs:
            _, pad, stride, _ = LAYER_CFG[i]
            p = params[i]
            xx = _ref_basic_conv(xx, p["w"], p["gamma"], p["beta"], pad, stride)
        return xx

    b3 = run(x, (0, 1))
    b7 = run(x, (2, 3, 4, 5))

    l_out = (l - 3) // 2 + 1
    starts = jnp.arange(l_out) * 2
    pooled = (x[:, starts] + x[:, starts + 1] + x[:, starts + 2]) / 3.0

    out = jnp.concatenate([b3, b7, pooled], axis=-1)
    return jnp.transpose(out, (0, 2, 1))


# ----------------------------------------------------------------------------
if __name__ == "__main__":
    key = jax.random.PRNGKey(0)
    k_x, k_p = jax.random.split(key)

    N, C_IN, L = 2, 128, 16
    x = jax.random.normal(k_x, (N, C_IN, L), jnp.float32)     # NCL, like PyTorch
    params = make_inception_d_params(k_p, C_IN)

    out = jax.jit(inception_d_forward)(x, params)
    out = jax.block_until_ready(out)

    l_out = (L - 3) // 2 + 1
    assert out.shape == (N, 320 + 192 + C_IN, l_out), out.shape

    ref = ref_forward(x, params)
    max_err = float(jnp.max(jnp.abs(out - ref)))
    assert jnp.allclose(out, ref, rtol=2e-2, atol=2e-2), max_err

    print("KERNEL_OK")
</pallas_src>

<mosaic_0001>
module attributes {stable_mosaic.version = 11 : i64} {
  func.func @inception_d_kernel(%arg0: memref<2x16x128xf32, #tpu.memory_space<vmem>>, %arg1: memref<128x192xf32, #tpu.memory_space<vmem>>, %arg2: memref<1x192xf32, #tpu.memory_space<vmem>>, %arg3: memref<1x192xf32, #tpu.memory_space<vmem>>, %arg4: memref<576x320xf32, #tpu.memory_space<vmem>>, %arg5: memref<1x320xf32, #tpu.memory_space<vmem>>, %arg6: memref<1x320xf32, #tpu.memory_space<vmem>>, %arg7: memref<128x192xf32, #tpu.memory_space<vmem>>, %arg8: memref<1x192xf32, #tpu.memory_space<vmem>>, %arg9: memref<1x192xf32, #tpu.memory_space<vmem>>, %arg10: memref<1344x192xf32, #tpu.memory_space<vmem>>, %arg11: memref<1x192xf32, #tpu.memory_space<vmem>>, %arg12: memref<1x192xf32, #tpu.memory_space<vmem>>, %arg13: memref<1344x192xf32, #tpu.memory_space<vmem>>, %arg14: memref<1x192xf32, #tpu.memory_space<vmem>>, %arg15: memref<1x192xf32, #tpu.memory_space<vmem>>, %arg16: memref<576x192xf32, #tpu.memory_space<vmem>>, %arg17: memref<1x192xf32, #tpu.memory_space<vmem>>, %arg18: memref<1x192xf32, #tpu.memory_space<vmem>>, %arg19: memref<2x7x640xf32, #tpu.memory_space<vmem>>) attributes {dimension_semantics = [], scalar_prefetch = 0 : i64, scratch_operands = 0 : i64, tpu.core_type = #tpu.core_type<tc>} {
    %c0 = arith.constant 0 : index
    %c0_0 = arith.constant 0 : index
    %c0_1 = arith.constant 0 : index
    %0 = vector.load %arg0[%c0, %c0_0, %c0_1] : memref<2x16x128xf32, #tpu.memory_space<vmem>>, vector<1x16x128xf32>
    %1 = vector.shape_cast %0 : vector<1x16x128xf32> to vector<16x128xf32>
    %c1 = arith.constant 1 : index
    %c0_2 = arith.constant 0 : index
    %c0_3 = arith.constant 0 : index
    %2 = vector.load %arg0[%c1, %c0_2, %c0_3] : memref<2x16x128xf32, #tpu.memory_space<vmem>>, vector<1x16x128xf32>
    %3 = vector.shape_cast %2 : vector<1x16x128xf32> to vector<16x128xf32>
    %c0_4 = arith.constant 0 : index
    %c0_5 = arith.constant 0 : index
    %4 = vector.load %arg1[%c0_4, %c0_5] : memref<128x192xf32, #tpu.memory_space<vmem>>, vector<128x192xf32>
    %cst = arith.constant dense<0.000000e+00> : vector<16x192xf32>
    %5 = tpu.matmul %1, %4, %cst {dimension_numbers = #tpu.dot_dimension_numbers<[1], [0], [0], [1], [0, 0, 1, 1], [], []>} : vector<16x128xf32>, vector<128x192xf32>, vector<16x192xf32> -> vector<16x192xf32>
    %cst_6 = arith.constant dense<0.000000e+00> : vector<16x192xf32>
    %6 = tpu.matmul %3, %4, %cst_6 {dimension_numbers = #tpu.dot_dimension_numbers<[1], [0], [0], [1], [0, 0, 1, 1], [], []>} : vector<16x128xf32>, vector<128x192xf32>, vector<16x192xf32> -> vector<16x192xf32>
    %cst_7 = arith.constant dense<0.000000e+00> : vector<192xf32>
    %7 = vector.multi_reduction <add>, %5, %cst_7 [0] : vector<16x192xf32> to vector<192xf32>
    %8 = vector.shape_cast %7 : vector<192xf32> to vector<1x192xf32>
    %9 = arith.mulf %5, %5 : vector<16x192xf32>
    %cst_8 = arith.constant dense<0.000000e+00> : vector<192xf32>
    %10 = vector.multi_reduction <add>, %9, %cst_8 [0] : vector<16x192xf32> to vector<192xf32>
    %11 = vector.shape_cast %10 : vector<192xf32> to vector<1x192xf32>
    %cst_9 = arith.constant dense<0.000000e+00> : vector<192xf32>
    %12 = vector.multi_reduction <add>, %6, %cst_9 [0] : vector<16x192xf32> to vector<192xf32>
    %13 = vector.shape_cast %12 : vector<192xf32> to vector<1x192xf32>
    %14 = arith.addf %8, %13 : vector<1x192xf32>
    %15 = arith.mulf %6, %6 : vector<16x192xf32>
    %cst_10 = arith.constant dense<0.000000e+00> : vector<192xf32>
    %16 = vector.multi_reduction <add>, %15, %cst_10 [0] : vector<16x192xf32> to vector<192xf32>
    %17 = vector.shape_cast %16 : vector<192xf32> to vector<1x192xf32>
    %18 = arith.addf %11, %17 : vector<1x192xf32>
    %cst_11 = arith.constant 3.125000e-02 : f32
    %19 = vector.broadcast %cst_11 : f32 to vector<1x192xf32>
    %20 = arith.mulf %14, %19 : vector<1x192xf32>
    %cst_12 = arith.constant 3.125000e-02 : f32
    %21 = vector.broadcast %cst_12 : f32 to vector<1x192xf32>
    %22 = arith.mulf %18, %21 : vector<1x192xf32>
    %23 = arith.mulf %20, %20 : vector<1x192xf32>
    %24 = arith.subf %22, %23 : vector<1x192xf32>
    %c0_13 = arith.constant 0 : index
    %c0_14 = arith.constant 0 : index
    %25 = vector.load %arg2[%c0_13, %c0_14] : memref<1x192xf32, #tpu.memory_space<vmem>>, vector<1x192xf32>
    %cst_15 = arith.constant 9.99999974E-6 : f32
    %26 = vector.broadcast %cst_15 : f32 to vector<1x192xf32>
    %27 = arith.addf %24, %26 : vector<1x192xf32>
    %28 = math.rsqrt %27 : vector<1x192xf32>
    %29 = arith.mulf %25, %28 : vector<1x192xf32>
    %c0_16 = arith.constant 0 : index
    %c0_17 = arith.constant 0 : index
    %30 = vector.load %arg3[%c0_16, %c0_17] : memref<1x192xf32, #tpu.memory_space<vmem>>, vector<1x192xf32>
    %31 = arith.mulf %20, %29 : vector<1x192xf32>
    %32 = arith.subf %30, %31 : vector<1x192xf32>
    %33 = vector.broadcast %29 : vector<1x192xf32> to vector<16x192xf32>
    %34 = arith.mulf %5, %33 : vector<16x192xf32>
    %35 = vector.broadcast %32 : vector<1x192xf32> to vector<16x192xf32>
    %36 = arith.addf %34, %35 : vector<16x192xf32>
    %cst_18 = arith.constant 0.000000e+00 : f32
    %37 = vector.broadcast %cst_18 : f32 to vector<16x192xf32>
    %38 = arith.maximumf %36, %37 : vector<16x192xf32>
    %39 = vector.broadcast %29 : vector<1x192xf32> to vector<16x192xf32>
    %40 = arith.mulf %6, %39 : vector<16x192xf32>
    %41 = vector.broadcast %32 : vector<1x192xf32> to vector<16x192xf32>
    %42 = arith.addf %40, %41 : vector<16x192xf32>
    %cst_19 = arith.constant 0.000000e+00 : f32
    %43 = vector.broadcast %cst_19 : f32 to vector<16x192xf32>
    %44 = arith.maximumf %42, %43 : vector<16x192xf32>
    %45 = tpu.iota {dimensions = array<i32: 0>} : vector<7x16xi32>
    %46 = tpu.iota {dimensions = array<i32: 1>} : vector<7x16xi32>
    %c2_i32 = arith.constant 2 : i32
    %47 = vector.broadcast %c2_i32 : i32 to vector<7x16xi32>
    %48 = arith.muli %45, %47 : vector<7x16xi32>
    %c0_i32 = arith.constant 0 : i32
    %49 = vector.broadcast %c0_i32 : i32 to vector<7x16xi32>
    %50 = arith.addi %48, %49 : vector<7x16xi32>
    %51 = arith.cmpi eq, %46, %50 : vector<7x16xi32>
    %52 = arith.extui %51 : vector<7x16xi1> to vector<7x16xi32>
    %53 = arith.sitofp %52 : vector<7x16xi32> to vector<7x16xf32>
    %54 = tpu.iota {dimensions = array<i32: 0>} : vector<7x16xi32>
    %55 = tpu.iota {dimensions = array<i32: 1>} : vector<7x16xi32>
    %c2_i32_20 = arith.constant 2 : i32
    %56 = vector.broadcast %c2_i32_20 : i32 to vector<7x16xi32>
    %57 = arith.muli %54, %56 : vector<7x16xi32>
    %c1_i32 = arith.constant 1 : i32
    %58 = vector.broadcast %c1_i32 : i32 to vector<7x16xi32>
    %59 = arith.addi %57, %58 : vector<7x16xi32>
    %60 = arith.cmpi eq, %55, %59 : vector<7x16xi32>
    %61 = arith.extui %60 : vector<7x16xi1> to vector<7x16xi32>
    %62 = arith.sitofp %61 : vector<7x16xi32> to vector<7x16xf32>
    %63 = tpu.iota {dimensions = array<i32: 0>} : vector<7x16xi32>
    %64 = tpu.iota {dimensions = array<i32: 1>} : vector<7x16xi32>
    %c2_i32_21 = arith.constant 2 : i32
    %65 = vector.broadcast %c2_i32_21 : i32 to vector<7x16xi32>
    %66 = arith.muli %63, %65 : vector<7x16xi32>
    %c2_i32_22 = arith.constant 2 : i32
    %67 = vector.broadcast %c2_i32_22 : i32 to vector<7x16xi32>
    %68 = arith.addi %66, %67 : vector<7x16xi32>
    %69 = arith.cmpi eq, %64, %68 : vector<7x16xi32>
    %70 = arith.extui %69 : vector<7x16xi1> to vector<7x16xi32>
    %71 = arith.sitofp %70 : vector<7x16xi32> to vector<7x16xf32>
    %cst_23 = arith.constant dense<0.000000e+00> : vector<7x192xf32>
    %72 = tpu.matmul %53, %38, %cst_23 {dimension_numbers = #tpu.dot_dimension_numbers<[1], [0], [0], [1], [0, 0, 1, 1], [], []>} : vector<7x16xf32>, vector<16x192xf32>, vector<7x192xf32> -> vector<7x192xf32>
    %cst_24 = arith.constant dense<0.000000e+00> : vector<7x192xf32>
    %73 = tpu.matmul %62, %38, %cst_24 {dimension_numbers = #tpu.dot_dimension_numbers<[1], [0], [0], [1], [0, 0, 1, 1], [], []>} : vector<7x16xf32>, vector<16x192xf32>, vector<7x192xf32> -> vector<7x192xf32>
    %cst_25 = arith.constant dense<0.000000e+00> : vector<7x192xf32>
    %74 = tpu.matmul %71, %38, %cst_25 {dimension_numbers = #tpu.dot_dimension_numbers<[1], [0], [0], [1], [0, 0, 1, 1], [], []>} : vector<7x16xf32>, vector<16x192xf32>, vector<7x192xf32> -> vector<7x192xf32>
    %75 = tpu.concatenate %72, %73, %74 in 1 : vector<7x192xf32>, vector<7x192xf32>, vector<7x192xf32> -> vector<7x576xf32>
    %cst_26 = arith.constant dense<0.000000e+00> : vector<7x192xf32>
    %76 = tpu.matmul %53, %44, %cst_26 {dimension_numbers = #tpu.dot_dimension_numbers<[1], [0], [0], [1], [0, 0, 1, 1], [], []>} : vector<7x16xf32>, vector<16x192xf32>, vector<7x192xf32> -> vector<7x192xf32>
    %cst_27 = arith.constant dense<0.000000e+00> : vector<7x192xf32>
    %77 = tpu.matmul %62, %44, %cst_27 {dimension_numbers = #tpu.dot_dimension_numbers<[1], [0], [0], [1], [0, 0, 1, 1], [], []>} : vector<7x16xf32>, vector<16x192xf32>, vector<7x192xf32> -> vector<7x192xf32>
    %cst_28 = arith.constant dense<0.000000e+00> : vector<7x192xf32>
    %78 = tpu.matmul %71, %44, %cst_28 {dimension_numbers = #tpu.dot_dimension_numbers<[1], [0], [0], [1], [0, 0, 1, 1], [], []>} : vector<7x16xf32>, vector<16x192xf32>, vector<7x192xf32> -> vector<7x192xf32>
    %79 = tpu.concatenate %76, %77, %78 in 1 : vector<7x192xf32>, vector<7x192xf32>, vector<7x192xf32> -> vector<7x576xf32>
    %c0_29 = arith.constant 0 : index
    %c0_30 = arith.constant 0 : index
    %80 = vector.load %arg4[%c0_29, %c0_30] : memref<576x320xf32, #tpu.memory_space<vmem>>, vector<576x320xf32>
    %cst_31 = arith.constant dense<0.000000e+00> : vector<7x320xf32>
    %81 = tpu.matmul %75, %80, %cst_31 {dimension_numbers = #tpu.dot_dimension_numbers<[1], [0], [0], [1], [0, 0, 1, 1], [], []>} : vector<7x576xf32>, vector<576x320xf32>, vector<7x320xf32> -> vector<7x320xf32>
    %cst_32 = arith.constant dense<0.000000e+00> : vector<7x320xf32>
    %82 = tpu.matmul %79, %80, %cst_32 {dimension_numbers = #tpu.dot_dimension_numbers<[1], [0], [0], [1], [0, 0, 1, 1], [], []>} : vector<7x576xf32>, vector<576x320xf32>, vector<7x320xf32> -> vector<7x320xf32>
    %cst_33 = arith.constant dense<0.000000e+00> : vector<320xf32>
    %83 = vector.multi_reduction <add>, %81, %cst_33 [0] : vector<7x320xf32> to vector<320xf32>
    %84 = vector.shape_cast %83 : vector<320xf32> to vector<1x320xf32>
    %85 = arith.mulf %81, %81 : vector<7x320xf32>
    %cst_34 = arith.constant dense<0.000000e+00> : vector<320xf32>
    %86 = vector.multi_reduction <add>, %85, %cst_34 [0] : vector<7x320xf32> to vector<320xf32>
    %87 = vector.shape_cast %86 : vector<320xf32> to vector<1x320xf32>
    %cst_35 = arith.constant dense<0.000000e+00> : vector<320xf32>
    %88 = vector.multi_reduction <add>, %82, %cst_35 [0] : vector<7x320xf32> to vector<320xf32>
    %89 = vector.shape_cast %88 : vector<320xf32> to vector<1x320xf32>
    %90 = arith.addf %84, %89 : vector<1x320xf32>
    %91 = arith.mulf %82, %82 : vector<7x320xf32>
    %cst_36 = arith.constant dense<0.000000e+00> : vector<320xf32>
    %92 = vector.multi_reduction <add>, %91, %cst_36 [0] : vector<7x320xf32> to vector<320xf32>
    %93 = vector.shape_cast %92 : vector<320xf32> to vector<1x320xf32>
    %94 = arith.addf %87, %93 : vector<1x320xf32>
    %cst_37 = arith.constant 0.0714285746 : f32
    %95 = vector.broadcast %cst_37 : f32 to vector<1x320xf32>
    %96 = arith.mulf %90, %95 : vector<1x320xf32>
    %cst_38 = arith.constant 0.0714285746 : f32
    %97 = vector.broadcast %cst_38 : f32 to vector<1x320xf32>
    %98 = arith.mulf %94, %97 : vector<1x320xf32>
    %99 = arith.mulf %96, %96 : vector<1x320xf32>
    %100 = arith.subf %98, %99 : vector<1x320xf32>
    %c0_39 = arith.constant 0 : index
    %c0_40 = arith.constant 0 : index
    %101 = vector.load %arg5[%c0_39, %c0_40] : memref<1x320xf32, #tpu.memory_space<vmem>>, vector<1x320xf32>
    %cst_41 = arith.constant 9.99999974E-6 : f32
    %102 = vector.broadcast %cst_41 : f32 to vector<1x320xf32>
    %103 = arith.addf %100, %102 : vector<1x320xf32>
    %104 = math.rsqrt %103 : vector<1x320xf32>
    %105 = arith.mulf %101, %104 : vector<1x320xf32>
    %c0_42 = arith.constant 0 : index
    %c0_43 = arith.constant 0 : index
    %106 = vector.load %arg6[%c0_42, %c0_43] : memref<1x320xf32, #tpu.memory_space<vmem>>, vector<1x320xf32>
    %107 = arith.mulf %96, %105 : vector<1x320xf32>
    %108 = arith.subf %106, %107 : vector<1x320xf32>
    %109 = vector.broadcast %105 : vector<1x320xf32> to vector<7x320xf32>
    %110 = arith.mulf %81, %109 : vector<7x320xf32>
    %111 = vector.broadcast %108 : vector<1x320xf32> to vector<7x320xf32>
    %112 = arith.addf %110, %111 : vector<7x320xf32>
    %cst_44 = arith.constant 0.000000e+00 : f32
    %113 = vector.broadcast %cst_44 : f32 to vector<7x320xf32>
    %114 = arith.maximumf %112, %113 : vector<7x320xf32>
    %115 = vector.broadcast %105 : vector<1x320xf32> to vector<7x320xf32>
    %116 = arith.mulf %82, %115 : vector<7x320xf32>
    %117 = vector.broadcast %108 : vector<1x320xf32> to vector<7x320xf32>
    %118 = arith.addf %116, %117 : vector<7x320xf32>
    %cst_45 = arith.constant 0.000000e+00 : f32
    %119 = vector.broadcast %cst_45 : f32 to vector<7x320xf32>
    %120 = arith.maximumf %118, %119 : vector<7x320xf32>
    %c0_46 = arith.constant 0 : index
    %c0_47 = arith.constant 0 : index
    %121 = vector.load %arg7[%c0_46, %c0_47] : memref<128x192xf32, #tpu.memory_space<vmem>>, vector<128x192xf32>
    %cst_48 = arith.constant dense<0.000000e+00> : vector<16x192xf32>
    %122 = tpu.matmul %1, %121, %cst_48 {dimension_numbers = #tpu.dot_dimension_numbers<[1], [0], [0], [1], [0, 0, 1, 1], [], []>} : vector<16x128xf32>, vector<128x192xf32>, vector<16x192xf32> -> vector<16x192xf32>
    %cst_49 = arith.constant dense<0.000000e+00> : vector<16x192xf32>
    %123 = tpu.matmul %3, %121, %cst_49 {dimension_numbers = #tpu.dot_dimension_numbers<[1], [0], [0], [1], [0, 0, 1, 1], [], []>} : vector<16x128xf32>, vector<128x192xf32>, vector<16x192xf32> -> vector<16x192xf32>
    %cst_50 = arith.constant dense<0.000000e+00> : vector<192xf32>
    %124 = vector.multi_reduction <add>, %122, %cst_50 [0] : vector<16x192xf32> to vector<192xf32>
    %125 = vector.shape_cast %124 : vector<192xf32> to vector<1x192xf32>
    %126 = arith.mulf %122, %122 : vector<16x192xf32>
    %cst_51 = arith.constant dense<0.000000e+00> : vector<192xf32>
    %127 = vector.multi_reduction <add>, %126, %cst_51 [0] : vector<16x192xf32> to vector<192xf32>
    %128 = vector.shape_cast %127 : vector<192xf32> to vector<1x192xf32>
    %cst_52 = arith.constant dense<0.000000e+00> : vector<192xf32>
    %129 = vector.multi_reduction <add>, %123, %cst_52 [0] : vector<16x192xf32> to vector<192xf32>
    %130 = vector.shape_cast %129 : vector<192xf32> to vector<1x192xf32>
    %131 = arith.addf %125, %130 : vector<1x192xf32>
    %132 = arith.mulf %123, %123 : vector<16x192xf32>
    %cst_53 = arith.constant dense<0.000000e+00> : vector<192xf32>
    %133 = vector.multi_reduction <add>, %132, %cst_53 [0] : vector<16x192xf32> to vector<192xf32>
    %134 = vector.shape_cast %133 : vector<192xf32> to vector<1x192xf32>
    %135 = arith.addf %128, %134 : vector<1x192xf32>
    %cst_54 = arith.constant 3.125000e-02 : f32
    %136 = vector.broadcast %cst_54 : f32 to vector<1x192xf32>
    %137 = arith.mulf %131, %136 : vector<1x192xf32>
    %cst_55 = arith.constant 3.125000e-02 : f32
    %138 = vector.broadcast %cst_55 : f32 to vector<1x192xf32>
    %139 = arith.mulf %135, %138 : vector<1x192xf32>
    %140 = arith.mulf %137, %137 : vector<1x192xf32>
    %141 = arith.subf %139, %140 : vector<1x192xf32>
    %c0_56 = arith.constant 0 : index
    %c0_57 = arith.constant 0 : index
    %142 = vector.load %arg8[%c0_56, %c0_57] : memref<1x192xf32, #tpu.memory_space<vmem>>, vector<1x192xf32>
    %cst_58 = arith.constant 9.99999974E-6 : f32
    %143 = vector.broadcast %cst_58 : f32 to vector<1x192xf32>
    %144 = arith.addf %141, %143 : vector<1x192xf32>
    %145 = math.rsqrt %144 : vector<1x192xf32>
    %146 = arith.mulf %142, %145 : vector<1x192xf32>
    %c0_59 = arith.constant 0 : index
    %c0_60 = arith.constant 0 : index
    %147 = vector.load %arg9[%c0_59, %c0_60] : memref<1x192xf32, #tpu.memory_space<vmem>>, vector<1x192xf32>
    %148 = arith.mulf %137, %146 : vector<1x192xf32>
    %149 = arith.subf %147, %148 : vector<1x192xf32>
    %150 = vector.broadcast %146 : vector<1x192xf32> to vector<16x192xf32>
    %151 = arith.mulf %122, %150 : vector<16x192xf32>
    %152 = vector.broadcast %149 : vector<1x192xf32> to vector<16x192xf32>
    %153 = arith.addf %151, %152 : vector<16x192xf32>
    %cst_61 = arith.constant 0.000000e+00 : f32
    %154 = vector.broadcast %cst_61 : f32 to vector<16x192xf32>
    %155 = arith.maximumf %153, %154 : vector<16x192xf32>
    %156 = vector.broadcast %146 : vector<1x192xf32> to vector<16x192xf32>
    %157 = arith.mulf %123, %156 : vector<16x192xf32>
    %158 = vector.broadcast %149 : vector<1x192xf32> to vector<16x192xf32>
    %159 = arith.addf %157, %158 : vector<16x192xf32>
    %cst_62 = arith.constant 0.000000e+00 : f32
    %160 = vector.broadcast %cst_62 : f32 to vector<16x192xf32>
    %161 = arith.maximumf %159, %160 : vector<16x192xf32>
    %162 = tpu.iota {dimensions = array<i32: 0>} : vector<16x16xi32>
    %163 = tpu.iota {dimensions = array<i32: 1>} : vector<16x16xi32>
    %c1_i32_63 = arith.constant 1 : i32
    %164 = vector.broadcast %c1_i32_63 : i32 to vector<16x16xi32>
    %165 = arith.muli %162, %164 : vector<16x16xi32>
    %c-3_i32 = arith.constant -3 : i32
    %166 = vector.broadcast %c-3_i32 : i32 to vector<16x16xi32>
    %167 = arith.addi %165, %166 : vector<16x16xi32>
    %168 = arith.cmpi eq, %163, %167 : vector<16x16xi32>
    %169 = arith.extui %168 : vector<16x16xi1> to vector<16x16xi32>
    %170 = arith.sitofp %169 : vector<16x16xi32> to vector<16x16xf32>
    %171 = tpu.iota {dimensions = array<i32: 0>} : vector<16x16xi32>
    %172 = tpu.iota {dimensions = array<i32: 1>} : vector<16x16xi32>
    %c1_i32_64 = arith.constant 1 : i32
    %173 = vector.broadcast %c1_i32_64 : i32 to vector<16x16xi32>
    %174 = arith.muli %171, %173 : vector<16x16xi32>
    %c-2_i32 = arith.constant -2 : i32
    %175 = vector.broadcast %c-2_i32 : i32 to vector<16x16xi32>
    %176 = arith.addi %174, %175 : vector<16x16xi32>
    %177 = arith.cmpi eq, %172, %176 : vector<16x16xi32>
    %178 = arith.extui %177 : vector<16x16xi1> to vector<16x16xi32>
    %179 = arith.sitofp %178 : vector<16x16xi32> to vector<16x16xf32>
    %180 = tpu.iota {dimensions = array<i32: 0>} : vector<16x16xi32>
    %181 = tpu.iota {dimensions = array<i32: 1>} : vector<16x16xi32>
    %c1_i32_65 = arith.constant 1 : i32
    %182 = vector.broadcast %c1_i32_65 : i32 to vector<16x16xi32>
    %183 = arith.muli %180, %182 : vector<16x16xi32>
    %c-1_i32 = arith.constant -1 : i32
    %184 = vector.broadcast %c-1_i32 : i32 to vector<16x16xi32>
    %185 = arith.addi %183, %184 : vector<16x16xi32>
    %186 = arith.cmpi eq, %181, %185 : vector<16x16xi32>
    %187 = arith.extui %186 : vector<16x16xi1> to vector<16x16xi32>
    %188 = arith.sitofp %187 : vector<16x16xi32> to vector<16x16xf32>
    %189 = tpu.iota {dimensions = array<i32: 0>} : vector<16x16xi32>
    %190 = tpu.iota {dimensions = array<i32: 1>} : vector<16x16xi32>
    %c1_i32_66 = arith.constant 1 : i32
    %191 = vector.broadcast %c1_i32_66 : i32 to vector<16x16xi32>
    %192 = arith.muli %189, %191 : vector<16x16xi32>
    %c0_i32_67 = arith.constant 0 : i32
    %193 = vector.broadcast %c0_i32_67 : i32 to vector<16x16xi32>
    %194 = arith.addi %192, %193 : vector<16x16xi32>
    %195 = arith.cmpi eq, %190, %194 : vector<16x16xi32>
    %196 = arith.extui %195 : vector<16x16xi1> to vector<16x16xi32>
    %197 = arith.sitofp %196 : vector<16x16xi32> to vector<16x16xf32>
    %198 = tpu.iota {dimensions = array<i32: 0>} : vector<16x16xi32>
    %199 = tpu.iota {dimensions = array<i32: 1>} : vector<16x16xi32>
    %c1_i32_68 = arith.constant 1 : i32
    %200 = vector.broadcast %c1_i32_68 : i32 to vector<16x16xi32>
    %201 = arith.muli %198, %200 : vector<16x16xi32>
    %c1_i32_69 = arith.constant 1 : i32
    %202 = vector.broadcast %c1_i32_69 : i32 to vector<16x16xi32>
    %203 = arith.addi %201, %202 : vector<16x16xi32>
    %204 = arith.cmpi eq, %199, %203 : vector<16x16xi32>
    %205 = arith.extui %204 : vector<16x16xi1> to vector<16x16xi32>
    %206 = arith.sitofp %205 : vector<16x16xi32> to vector<16x16xf32>
    %207 = tpu.iota {dimensions = array<i32: 0>} : vector<16x16xi32>
    %208 = tpu.iota {dimensions = array<i32: 1>} : vector<16x16xi32>
    %c1_i32_70 = arith.constant 1 : i32
    %209 = vector.broadcast %c1_i32_70 : i32 to vector<16x16xi32>
    %210 = arith.muli %207, %209 : vector<16x16xi32>
    %c2_i32_71 = arith.constant 2 : i32
    %211 = vector.broadcast %c2_i32_71 : i32 to vector<16x16xi32>
    %212 = arith.addi %210, %211 : vector<16x16xi32>
    %213 = arith.cmpi eq, %208, %212 : vector<16x16xi32>
    %214 = arith.extui %213 : vector<16x16xi1> to vector<16x16xi32>
    %215 = arith.sitofp %214 : vector<16x16xi32> to vector<16x16xf32>
    %216 = tpu.iota {dimensions = array<i32: 0>} : vector<16x16xi32>
    %217 = tpu.iota {dimensions = array<i32: 1>} : vector<16x16xi32>
    %c1_i32_72 = arith.constant 1 : i32
    %218 = vector.broadcast %c1_i32_72 : i32 to vector<16x16xi32>
    %219 = arith.muli %216, %218 : vector<16x16xi32>
    %c3_i32 = arith.constant 3 : i32
    %220 = vector.broadcast %c3_i32 : i32 to vector<16x16xi32>
    %221 = arith.addi %219, %220 : vector<16x16xi32>
    %222 = arith.cmpi eq, %217, %221 : vector<16x16xi32>
    %223 = arith.extui %222 : vector<16x16xi1> to vector<16x16xi32>
    %224 = arith.sitofp %223 : vector<16x16xi32> to vector<16x16xf32>
    %cst_73 = arith.constant dense<0.000000e+00> : vector<16x192xf32>
    %225 = tpu.matmul %170, %155, %cst_73 {dimension_numbers = #tpu.dot_dimension_numbers<[1], [0], [0], [1], [0, 0, 1, 1], [], []>} : vector<16x16xf32>, vector<16x192xf32>, vector<16x192xf32> -> vector<16x192xf32>
    %cst_74 = arith.constant dense<0.000000e+00> : vector<16x192xf32>
    %226 = tpu.matmul %179, %155, %cst_74 {dimension_numbers = #tpu.dot_dimension_numbers<[1], [0], [0], [1], [0, 0, 1, 1], [], []>} : vector<16x16xf32>, vector<16x192xf32>, vector<16x192xf32> -> vector<16x192xf32>
    %cst_75 = arith.constant dense<0.000000e+00> : vector<16x192xf32>
    %227 = tpu.matmul %188, %155, %cst_75 {dimension_numbers = #tpu.dot_dimension_numbers<[1], [0], [0], [1], [0, 0, 1, 1], [], []>} : vector<16x16xf32>, vector<16x192xf32>, vector<16x192xf32> -> vector<16x192xf32>
    %cst_76 = arith.constant dense<0.000000e+00> : vector<16x192xf32>
    %228 = tpu.matmul %197, %155, %cst_76 {dimension_numbers = #tpu.dot_dimension_numbers<[1], [0], [0], [1], [0, 0, 1, 1], [], []>} : vector<16x16xf32>, vector<16x192xf32>, vector<16x192xf32> -> vector<16x192xf32>
    %cst_77 = arith.constant dense<0.000000e+00> : vector<16x192xf32>
    %229 = tpu.matmul %206, %155, %cst_77 {dimension_numbers = #tpu.dot_dimension_numbers<[1], [0], [0], [1], [0, 0, 1, 1], [], []>} : vector<16x16xf32>, vector<16x192xf32>, vector<16x192xf32> -> vector<16x192xf32>
    %cst_78 = arith.constant dense<0.000000e+00> : vector<16x192xf32>
    %230 = tpu.matmul %215, %155, %cst_78 {dimension_numbers = #tpu.dot_dimension_numbers<[1], [0], [0], [1], [0, 0, 1, 1], [], []>} : vector<16x16xf32>, vector<16x192xf32>, vector<16x192xf32> -> vector<16x192xf32>
    %cst_79 = arith.constant dense<0.000000e+00> : vector<16x192xf32>
    %231 = tpu.matmul %224, %155, %cst_79 {dimension_numbers = #tpu.dot_dimension_numbers<[1], [0], [0], [1], [0, 0, 1, 1], [], []>} : vector<16x16xf32>, vector<16x192xf32>, vector<16x192xf32> -> vector<16x192xf32>
    %232 = tpu.concatenate %225, %226, %227, %228, %229, %230, %231 in 1 : vector<16x192xf32>, vector<16x192xf32>, vector<16x192xf32>, vector<16x192xf32>, vector<16x192xf32>, vector<16x192xf32>, vector<16x192xf32> -> vector<16x1344xf32>
    %cst_80 = arith.constant dense<0.000000e+00> : vector<16x192xf32>
    %233 = tpu.matmul %170, %161, %cst_80 {dimension_numbers = #tpu.dot_dimension_numbers<[1], [0], [0], [1], [0, 0, 1, 1], [], []>} : vector<16x16xf32>, vector<16x192xf32>, vector<16x192xf32> -> vector<16x192xf32>
    %cst_81 = arith.constant dense<0.000000e+00> : vector<16x192xf32>
    %234 = tpu.matmul %179, %161, %cst_81 {dimension_numbers = #tpu.dot_dimension_numbers<[1], [0], [0], [1], [0, 0, 1, 1], [], []>} : vector<16x16xf32>, vector<16x192xf32>, vector<16x192xf32> -> vector<16x192xf32>
    %cst_82 = arith.constant dense<0.000000e+00> : vector<16x192xf32>
    %235 = tpu.matmul %188, %161, %cst_82 {dimension_numbers = #tpu.dot_dimension_numbers<[1], [0], [0], [1], [0, 0, 1, 1], [], []>} : vector<16x16xf32>, vector<16x192xf32>, vector<16x192xf32> -> vector<16x192xf32>
    %cst_83 = arith.constant dense<0.000000e+00> : vector<16x192xf32>
    %236 = tpu.matmul %197, %161, %cst_83 {dimension_numbers = #tpu.dot_dimension_numbers<[1], [0], [0], [1], [0, 0, 1, 1], [], []>} : vector<16x16xf32>, vector<16x192xf32>, vector<16x192xf32> -> vector<16x192xf32>
    %cst_84 = arith.constant dense<0.000000e+00> : vector<16x192xf32>
    %237 = tpu.matmul %206, %161, %cst_84 {dimension_numbers = #tpu.dot_dimension_numbers<[1], [0], [0], [1], [0, 0, 1, 1], [], []>} : vector<16x16xf32>, vector<16x192xf32>, vector<16x192xf32> -> vector<16x192xf32>
    %cst_85 = arith.constant dense<0.000000e+00> : vector<16x192xf32>
    %238 = tpu.matmul %215, %161, %cst_85 {dimension_numbers = #tpu.dot_dimension_numbers<[1], [0], [0], [1], [0, 0, 1, 1], [], []>} : vector<16x16xf32>, vector<16x192xf32>, vector<16x192xf32> -> vector<16x192xf32>
    %cst_86 = arith.constant dense<0.000000e+00> : vector<16x192xf32>
    %239 = tpu.matmul %224, %161, %cst_86 {dimension_numbers = #tpu.dot_dimension_numbers<[1], [0], [0], [1], [0, 0, 1, 1], [], []>} : vector<16x16xf32>, vector<16x192xf32>, vector<16x192xf32> -> vector<16x192xf32>
    %240 = tpu.concatenate %233, %234, %235, %236, %237, %238, %239 in 1 : vector<16x192xf32>, vector<16x192xf32>, vector<16x192xf32>, vector<16x192xf32>, vector<16x192xf32>, vector<16x192xf32>, vector<16x192xf32> -> vector<16x1344xf32>
    %c0_87 = arith.constant 0 : index
    %c0_88 = arith.constant 0 : index
    %241 = vector.load %arg10[%c0_87, %c0_88] : memref<1344x192xf32, #tpu.memory_space<vmem>>, vector<1344x192xf32>
    %cst_89 = arith.constant dense<0.000000e+00> : vector<16x192xf32>
    %242 = tpu.matmul %232, %241, %cst_89 {dimension_numbers = #tpu.dot_dimension_numbers<[1], [0], [0], [1], [0, 0, 1, 1], [], []>} : vector<16x1344xf32>, vector<1344x192xf32>, vector<16x192xf32> -> vector<16x192xf32>
    %cst_90 = arith.constant dense<0.000000e+00> : vector<16x192xf32>
    %243 = tpu.matmul %240, %241, %cst_90 {dimension_numbers = #tpu.dot_dimension_numbers<[1], [0], [0], [1], [0, 0, 1, 1], [], []>} : vector<16x1344xf32>, vector<1344x192xf32>, vector<16x192xf32> -> vector<16x192xf32>
    %cst_91 = arith.constant dense<0.000000e+00> : vector<192xf32>
    %244 = vector.multi_reduction <add>, %242, %cst_91 [0] : vector<16x192xf32> to vector<192xf32>
    %245 = vector.shape_cast %244 : vector<192xf32> to vector<1x192xf32>
    %246 = arith.mulf %242, %242 : vector<16x192xf32>
    %cst_92 = arith.constant dense<0.000000e+00> : vector<192xf32>
    %247 = vector.multi_reduction <add>, %246, %cst_92 [0] : vector<16x192xf32> to vector<192xf32>
    %248 = vector.shape_cast %247 : vector<192xf32> to vector<1x192xf32>
    %cst_93 = arith.constant dense<0.000000e+00> : vector<192xf32>
    %249 = vector.multi_reduction <add>, %243, %cst_93 [0] : vector<16x192xf32> to vector<192xf32>
    %250 = vector.shape_cast %249 : vector<192xf32> to vector<1x192xf32>
    %251 = arith.addf %245, %250 : vector<1x192xf32>
    %252 = arith.mulf %243, %243 : vector<16x192xf32>
    %cst_94 = arith.constant dense<0.000000e+00> : vector<192xf32>
    %253 = vector.multi_reduction <add>, %252, %cst_94 [0] : vector<16x192xf32> to vector<192xf32>
    %254 = vector.shape_cast %253 : vector<192xf32> to vector<1x192xf32>
    %255 = arith.addf %248, %254 : vector<1x192xf32>
    %cst_95 = arith.constant 3.125000e-02 : f32
    %256 = vector.broadcast %cst_95 : f32 to vector<1x192xf32>
    %257 = arith.mulf %251, %256 : vector<1x192xf32>
    %cst_96 = arith.constant 3.125000e-02 : f32
    %258 = vector.broadcast %cst_96 : f32 to vector<1x192xf32>
    %259 = arith.mulf %255, %258 : vector<1x192xf32>
    %260 = arith.mulf %257, %257 : vector<1x192xf32>
    %261 = arith.subf %259, %260 : vector<1x192xf32>
    %c0_97 = arith.constant 0 : index
    %c0_98 = arith.constant 0 : index
    %262 = vector.load %arg11[%c0_97, %c0_98] : memref<1x192xf32, #tpu.memory_space<vmem>>, vector<1x192xf32>
    %cst_99 = arith.constant 9.99999974E-6 : f32
    %263 = vector.broadcast %cst_99 : f32 to vector<1x192xf32>
    %264 = arith.addf %261, %263 : vector<1x192xf32>
    %265 = math.rsqrt %264 : vector<1x192xf32>
    %266 = arith.mulf %262, %265 : vector<1x192xf32>
    %c0_100 = arith.constant 0 : index
    %c0_101 = arith.constant 0 : index
    %267 = vector.load %arg12[%c0_100, %c0_101] : memref<1x192xf32, #tpu.memory_space<vmem>>, vector<1x192xf32>
    %268 = arith.mulf %257, %266 : vector<1x192xf32>
    %269 = arith.subf %267, %268 : vector<1x192xf32>
    %270 = vector.broadcast %266 : vector<1x192xf32> to vector<16x192xf32>
    %271 = arith.mulf %242, %270 : vector<16x192xf32>
    %272 = vector.broadcast %269 : vector<1x192xf32> to vector<16x192xf32>
    %273 = arith.addf %271, %272 : vector<16x192xf32>
    %cst_102 = arith.constant 0.000000e+00 : f32
    %274 = vector.broadcast %cst_102 : f32 to vector<16x192xf32>
    %275 = arith.maximumf %273, %274 : vector<16x192xf32>
    %276 = vector.broadcast %266 : vector<1x192xf32> to vector<16x192xf32>
    %277 = arith.mulf %243, %276 : vector<16x192xf32>
    %278 = vector.broadcast %269 : vector<1x192xf32> to vector<16x192xf32>
    %279 = arith.addf %277, %278 : vector<16x192xf32>
    %cst_103 = arith.constant 0.000000e+00 : f32
    %280 = vector.broadcast %cst_103 : f32 to vector<16x192xf32>
    %281 = arith.maximumf %279, %280 : vector<16x192xf32>
    %282 = tpu.iota {dimensions = array<i32: 0>} : vector<16x16xi32>
    %283 = tpu.iota {dimensions = array<i32: 1>} : vector<16x16xi32>
    %c1_i32_104 = arith.constant 1 : i32
    %284 = vector.broadcast %c1_i32_104 : i32 to vector<16x16xi32>
    %285 = arith.muli %282, %284 : vector<16x16xi32>
    %c-3_i32_105 = arith.constant -3 : i32
    %286 = vector.broadcast %c-3_i32_105 : i32 to vector<16x16xi32>
    %287 = arith.addi %285, %286 : vector<16x16xi32>
    %288 = arith.cmpi eq, %283, %287 : vector<16x16xi32>
    %289 = arith.extui %288 : vector<16x16xi1> to vector<16x16xi32>
    %290 = arith.sitofp %289 : vector<16x16xi32> to vector<16x16xf32>
    %291 = tpu.iota {dimensions = array<i32: 0>} : vector<16x16xi32>
    %292 = tpu.iota {dimensions = array<i32: 1>} : vector<16x16xi32>
    %c1_i32_106 = arith.constant 1 : i32
    %293 = vector.broadcast %c1_i32_106 : i32 to vector<16x16xi32>
    %294 = arith.muli %291, %293 : vector<16x16xi32>
    %c-2_i32_107 = arith.constant -2 : i32
    %295 = vector.broadcast %c-2_i32_107 : i32 to vector<16x16xi32>
    %296 = arith.addi %294, %295 : vector<16x16xi32>
    %297 = arith.cmpi eq, %292, %296 : vector<16x16xi32>
    %298 = arith.extui %297 : vector<16x16xi1> to vector<16x16xi32>
    %299 = arith.sitofp %298 : vector<16x16xi32> to vector<16x16xf32>
    %300 = tpu.iota {dimensions = array<i32: 0>} : vector<16x16xi32>
    %301 = tpu.iota {dimensions = array<i32: 1>} : vector<16x16xi32>
    %c1_i32_108 = arith.constant 1 : i32
    %302 = vector.broadcast %c1_i32_108 : i32 to vector<16x16xi32>
    %303 = arith.muli %300, %302 : vector<16x16xi32>
    %c-1_i32_109 = arith.constant -1 : i32
    %304 = vector.broadcast %c-1_i32_109 : i32 to vector<16x16xi32>
    %305 = arith.addi %303, %304 : vector<16x16xi32>
    %306 = arith.cmpi eq, %301, %305 : vector<16x16xi32>
    %307 = arith.extui %306 : vector<16x16xi1> to vector<16x16xi32>
    %308 = arith.sitofp %307 : vector<16x16xi32> to vector<16x16xf32>
    %309 = tpu.iota {dimensions = array<i32: 0>} : vector<16x16xi32>
    %310 = tpu.iota {dimensions = array<i32: 1>} : vector<16x16xi32>
    %c1_i32_110 = arith.constant 1 : i32
    %311 = vector.broadcast %c1_i32_110 : i32 to vector<16x16xi32>
    %312 = arith.muli %309, %311 : vector<16x16xi32>
    %c0_i32_111 = arith.constant 0 : i32
    %313 = vector.broadcast %c0_i32_111 : i32 to vector<16x16xi32>
    %314 = arith.addi %312, %313 : vector<16x16xi32>
    %315 = arith.cmpi eq, %310, %314 : vector<16x16xi32>
    %316 = arith.extui %315 : vector<16x16xi1> to vector<16x16xi32>
    %317 = arith.sitofp %316 : vector<16x16xi32> to vector<16x16xf32>
    %318 = tpu.iota {dimensions = array<i32: 0>} : vector<16x16xi32>
    %319 = tpu.iota {dimensions = array<i32: 1>} : vector<16x16xi32>
    %c1_i32_112 = arith.constant 1 : i32
    %320 = vector.broadcast %c1_i32_112 : i32 to vector<16x16xi32>
    %321 = arith.muli %318, %320 : vector<16x16xi32>
    %c1_i32_113 = arith.constant 1 : i32
    %322 = vector.broadcast %c1_i32_113 : i32 to vector<16x16xi32>
    %323 = arith.addi %321, %322 : vector<16x16xi32>
    %324 = arith.cmpi eq, %319, %323 : vector<16x16xi32>
    %325 = arith.extui %324 : vector<16x16xi1> to vector<16x16xi32>
    %326 = arith.sitofp %325 : vector<16x16xi32> to vector<16x16xf32>
    %327 = tpu.iota {dimensions = array<i32: 0>} : vector<16x16xi32>
    %328 = tpu.iota {dimensions = array<i32: 1>} : vector<16x16xi32>
    %c1_i32_114 = arith.constant 1 : i32
    %329 = vector.broadcast %c1_i32_114 : i32 to vector<16x16xi32>
    %330 = arith.muli %327, %329 : vector<16x16xi32>
    %c2_i32_115 = arith.constant 2 : i32
    %331 = vector.broadcast %c2_i32_115 : i32 to vector<16x16xi32>
    %332 = arith.addi %330, %331 : vector<16x16xi32>
    %333 = arith.cmpi eq, %328, %332 : vector<16x16xi32>
    %334 = arith.extui %333 : vector<16x16xi1> to vector<16x16xi32>
    %335 = arith.sitofp %334 : vector<16x16xi32> to vector<16x16xf32>
    %336 = tpu.iota {dimensions = array<i32: 0>} : vector<16x16xi32>
    %337 = tpu.iota {dimensions = array<i32: 1>} : vector<16x16xi32>
    %c1_i32_116 = arith.constant 1 : i32
    %338 = vector.broadcast %c1_i32_116 : i32 to vector<16x16xi32>
    %339 = arith.muli %336, %338 : vector<16x16xi32>
    %c3_i32_117 = arith.constant 3 : i32
    %340 = vector.broadcast %c3_i32_117 : i32 to vector<16x16xi32>
    %341 = arith.addi %339, %340 : vector<16x16xi32>
    %342 = arith.cmpi eq, %337, %341 : vector<16x16xi32>
    %343 = arith.extui %342 : vector<16x16xi1> to vector<16x16xi32>
    %344 = arith.sitofp %343 : vector<16x16xi32> to vector<16x16xf32>
    %cst_118 = arith.constant dense<0.000000e+00> : vector<16x192xf32>
    %345 = tpu.matmul %290, %275, %cst_118 {dimension_numbers = #tpu.dot_dimension_numbers<[1], [0], [0], [1], [0, 0, 1, 1], [], []>} : vector<16x16xf32>, vector<16x192xf32>, vector<16x192xf32> -> vector<16x192xf32>
    %cst_119 = arith.constant dense<0.000000e+00> : vector<16x192xf32>
    %346 = tpu.matmul %299, %275, %cst_119 {dimension_numbers = #tpu.dot_dimension_numbers<[1], [0], [0], [1], [0, 0, 1, 1], [], []>} : vector<16x16xf32>, vector<16x192xf32>, vector<16x192xf32> -> vector<16x192xf32>
    %cst_120 = arith.constant dense<0.000000e+00> : vector<16x192xf32>
    %347 = tpu.matmul %308, %275, %cst_120 {dimension_numbers = #tpu.dot_dimension_numbers<[1], [0], [0], [1], [0, 0, 1, 1], [], []>} : vector<16x16xf32>, vector<16x192xf32>, vector<16x192xf32> -> vector<16x192xf32>
    %cst_121 = arith.constant dense<0.000000e+00> : vector<16x192xf32>
    %348 = tpu.matmul %317, %275, %cst_121 {dimension_numbers = #tpu.dot_dimension_numbers<[1], [0], [0], [1], [0, 0, 1, 1], [], []>} : vector<16x16xf32>, vector<16x192xf32>, vector<16x192xf32> -> vector<16x192xf32>
    %cst_122 = arith.constant dense<0.000000e+00> : vector<16x192xf32>
    %349 = tpu.matmul %326, %275, %cst_122 {dimension_numbers = #tpu.dot_dimension_numbers<[1], [0], [0], [1], [0, 0, 1, 1], [], []>} : vector<16x16xf32>, vector<16x192xf32>, vector<16x192xf32> -> vector<16x192xf32>
    %cst_123 = arith.constant dense<0.000000e+00> : vector<16x192xf32>
    %350 = tpu.matmul %335, %275, %cst_123 {dimension_numbers = #tpu.dot_dimension_numbers<[1], [0], [0], [1], [0, 0, 1, 1], [], []>} : vector<16x16xf32>, vector<16x192xf32>, vector<16x192xf32> -> vector<16x192xf32>
    %cst_124 = arith.constant dense<0.000000e+00> : vector<16x192xf32>
    %351 = tpu.matmul %344, %275, %cst_124 {dimension_numbers = #tpu.dot_dimension_numbers<[1], [0], [0], [1], [0, 0, 1, 1], [], []>} : vector<16x16xf32>, vector<16x192xf32>, vector<16x192xf32> -> vector<16x192xf32>
    %352 = tpu.concatenate %345, %346, %347, %348, %349, %350, %351 in 1 : vector<16x192xf32>, vector<16x192xf32>, vector<16x192xf32>, vector<16x192xf32>, vector<16x192xf32>, vector<16x192xf32>, vector<16x192xf32> -> vector<16x1344xf32>
    %cst_125 = arith.constant dense<0.000000e+00> : vector<16x192xf32>
    %353 = tpu.matmul %290, %281, %cst_125 {dimension_numbers = #tpu.dot_dimension_numbers<[1], [0], [0], [1], [0, 0, 1, 1], [], []>} : vector<16x16xf32>, vector<16x192xf32>, vector<16x192xf32> -> vector<16x192xf32>
    %cst_126 = arith.constant dense<0.000000e+00> : vector<16x192xf32>
    %354 = tpu.matmul %299, %281, %cst_126 {dimension_numbers = #tpu.dot_dimension_numbers<[1], [0], [0], [1], [0, 0, 1, 1], [], []>} : vector<16x16xf32>, vector<16x192xf32>, vector<16x192xf32> -> vector<16x192xf32>
    %cst_127 = arith.constant dense<0.000000e+00> : vector<16x192xf32>
    %355 = tpu.matmul %308, %281, %cst_127 {dimension_numbers = #tpu.dot_dimension_numbers<[1], [0], [0], [1], [0, 0, 1, 1], [], []>} : vector<16x16xf32>, vector<16x192xf32>, vector<16x192xf32> -> vector<16x192xf32>
    %cst_128 = arith.constant dense<0.000000e+00> : vector<16x192xf32>
    %356 = tpu.matmul %317, %281, %cst_128 {dimension_numbers = #tpu.dot_dimension_numbers<[1], [0], [0], [1], [0, 0, 1, 1], [], []>} : vector<16x16xf32>, vector<16x192xf32>, vector<16x192xf32> -> vector<16x192xf32>
    %cst_129 = arith.constant dense<0.000000e+00> : vector<16x192xf32>
    %357 = tpu.matmul %326, %281, %cst_129 {dimension_numbers = #tpu.dot_dimension_numbers<[1], [0], [0], [1], [0, 0, 1, 1], [], []>} : vector<16x16xf32>, vector<16x192xf32>, vector<16x192xf32> -> vector<16x192xf32>
    %cst_130 = arith.constant dense<0.000000e+00> : vector<16x192xf32>
    %358 = tpu.matmul %335, %281, %cst_130 {dimension_numbers = #tpu.dot_dimension_numbers<[1], [0], [0], [1], [0, 0, 1, 1], [], []>} : vector<16x16xf32>, vector<16x192xf32>, vector<16x192xf32> -> vector<16x192xf32>
    %cst_131 = arith.constant dense<0.000000e+00> : vector<16x192xf32>
    %359 = tpu.matmul %344, %281, %cst_131 {dimension_numbers = #tpu.dot_dimension_numbers<[1], [0], [0], [1], [0, 0, 1, 1], [], []>} : vector<16x16xf32>, vector<16x192xf32>, vector<16x192xf32> -> vector<16x192xf32>
    %360 = tpu.concatenate %353, %354, %355, %356, %357, %358, %359 in 1 : vector<16x192xf32>, vector<16x192xf32>, vector<16x192xf32>, vector<16x192xf32>, vector<16x192xf32>, vector<16x192xf32>, vector<16x192xf32> -> vector<16x1344xf32>
    %c0_132 = arith.constant 0 : index
    %c0_133 = arith.constant 0 : index
    %361 = vector.load %arg13[%c0_132, %c0_133] : memref<1344x192xf32, #tpu.memory_space<vmem>>, vector<1344x192xf32>
    %cst_134 = arith.constant dense<0.000000e+00> : vector<16x192xf32>
    %362 = tpu.matmul %352, %361, %cst_134 {dimension_numbers = #tpu.dot_dimension_numbers<[1], [0], [0], [1], [0, 0, 1, 1], [], []>} : vector<16x1344xf32>, vector<1344x192xf32>, vector<16x192xf32> -> vector<16x192xf32>
    %cst_135 = arith.constant dense<0.000000e+00> : vector<16x192xf32>
    %363 = tpu.matmul %360, %361, %cst_135 {dimension_numbers = #tpu.dot_dimension_numbers<[1], [0], [0], [1], [0, 0, 1, 1], [], []>} : vector<16x1344xf32>, vector<1344x192xf32>, vector<16x192xf32> -> vector<16x192xf32>
    %cst_136 = arith.constant dense<0.000000e+00> : vector<192xf32>
    %364 = vector.multi_reduction <add>, %362, %cst_136 [0] : vector<16x192xf32> to vector<192xf32>
    %365 = vector.shape_cast %364 : vector<192xf32> to vector<1x192xf32>
    %366 = arith.mulf %362, %362 : vector<16x192xf32>
    %cst_137 = arith.constant dense<0.000000e+00> : vector<192xf32>
    %367 = vector.multi_reduction <add>, %366, %cst_137 [0] : vector<16x192xf32> to vector<192xf32>
    %368 = vector.shape_cast %367 : vector<192xf32> to vector<1x192xf32>
    %cst_138 = arith.constant dense<0.000000e+00> : vector<192xf32>
    %369 = vector.multi_reduction <add>, %363, %cst_138 [0] : vector<16x192xf32> to vector<192xf32>
    %370 = vector.shape_cast %369 : vector<192xf32> to vector<1x192xf32>
    %371 = arith.addf %365, %370 : vector<1x192xf32>
    %372 = arith.mulf %363, %363 : vector<16x192xf32>
    %cst_139 = arith.constant dense<0.000000e+00> : vector<192xf32>
    %373 = vector.multi_reduction <add>, %372, %cst_139 [0] : vector<16x192xf32> to vector<192xf32>
    %374 = vector.shape_cast %373 : vector<192xf32> to vector<1x192xf32>
    %375 = arith.addf %368, %374 : vector<1x192xf32>
    %cst_140 = arith.constant 3.125000e-02 : f32
    %376 = vector.broadcast %cst_140 : f32 to vector<1x192xf32>
    %377 = arith.mulf %371, %376 : vector<1x192xf32>
    %cst_141 = arith.constant 3.125000e-02 : f32
    %378 = vector.broadcast %cst_141 : f32 to vector<1x192xf32>
    %379 = arith.mulf %375, %378 : vector<1x192xf32>
    %380 = arith.mulf %377, %377 : vector<1x192xf32>
    %381 = arith.subf %379, %380 : vector<1x192xf32>
    %c0_142 = arith.constant 0 : index
    %c0_143 = arith.constant 0 : index
    %382 = vector.load %arg14[%c0_142, %c0_143] : memref<1x192xf32, #tpu.memory_space<vmem>>, vector<1x192xf32>
    %cst_144 = arith.constant 9.99999974E-6 : f32
    %383 = vector.broadcast %cst_144 : f32 to vector<1x192xf32>
    %384 = arith.addf %381, %383 : vector<1x192xf32>
    %385 = math.rsqrt %384 : vector<1x192xf32>
    %386 = arith.mulf %382, %385 : vector<1x192xf32>
    %c0_145 = arith.constant 0 : index
    %c0_146 = arith.constant 0 : index
    %387 = vector.load %arg15[%c0_145, %c0_146] : memref<1x192xf32, #tpu.memory_space<vmem>>, vector<1x192xf32>
    %388 = arith.mulf %377, %386 : vector<1x192xf32>
    %389 = arith.subf %387, %388 : vector<1x192xf32>
    %390 = vector.broadcast %386 : vector<1x192xf32> to vector<16x192xf32>
    %391 = arith.mulf %362, %390 : vector<16x192xf32>
    %392 = vector.broadcast %389 : vector<1x192xf32> to vector<16x192xf32>
    %393 = arith.addf %391, %392 : vector<16x192xf32>
    %cst_147 = arith.constant 0.000000e+00 : f32
    %394 = vector.broadcast %cst_147 : f32 to vector<16x192xf32>
    %395 = arith.maximumf %393, %394 : vector<16x192xf32>
    %396 = vector.broadcast %386 : vector<1x192xf32> to vector<16x192xf32>
    %397 = arith.mulf %363, %396 : vector<16x192xf32>
    %398 = vector.broadcast %389 : vector<1x192xf32> to vector<16x192xf32>
    %399 = arith.addf %397, %398 : vector<16x192xf32>
    %cst_148 = arith.constant 0.000000e+00 : f32
    %400 = vector.broadcast %cst_148 : f32 to vector<16x192xf32>
    %401 = arith.maximumf %399, %400 : vector<16x192xf32>
    %402 = tpu.iota {dimensions = array<i32: 0>} : vector<7x16xi32>
    %403 = tpu.iota {dimensions = array<i32: 1>} : vector<7x16xi32>
    %c2_i32_149 = arith.constant 2 : i32
    %404 = vector.broadcast %c2_i32_149 : i32 to vector<7x16xi32>
    %405 = arith.muli %402, %404 : vector<7x16xi32>
    %c0_i32_150 = arith.constant 0 : i32
    %406 = vector.broadcast %c0_i32_150 : i32 to vector<7x16xi32>
    %407 = arith.addi %405, %406 : vector<7x16xi32>
    %408 = arith.cmpi eq, %403, %407 : vector<7x16xi32>
    %409 = arith.extui %408 : vector<7x16xi1> to vector<7x16xi32>
    %410 = arith.sitofp %409 : vector<7x16xi32> to vector<7x16xf32>
    %411 = tpu.iota {dimensions = array<i32: 0>} : vector<7x16xi32>
    %412 = tpu.iota {dimensions = array<i32: 1>} : vector<7x16xi32>
    %c2_i32_151 = arith.constant 2 : i32
    %413 = vector.broadcast %c2_i32_151 : i32 to vector<7x16xi32>
    %414 = arith.muli %411, %413 : vector<7x16xi32>
    %c1_i32_152 = arith.constant 1 : i32
    %415 = vector.broadcast %c1_i32_152 : i32 to vector<7x16xi32>
    %416 = arith.addi %414, %415 : vector<7x16xi32>
    %417 = arith.cmpi eq, %412, %416 : vector<7x16xi32>
    %418 = arith.extui %417 : vector<7x16xi1> to vector<7x16xi32>
    %419 = arith.sitofp %418 : vector<7x16xi32> to vector<7x16xf32>
    %420 = tpu.iota {dimensions = array<i32: 0>} : vector<7x16xi32>
    %421 = tpu.iota {dimensions = array<i32: 1>} : vector<7x16xi32>
    %c2_i32_153 = arith.constant 2 : i32
    %422 = vector.broadcast %c2_i32_153 : i32 to vector<7x16xi32>
    %423 = arith.muli %420, %422 : vector<7x16xi32>
    %c2_i32_154 = arith.constant 2 : i32
    %424 = vector.broadcast %c2_i32_154 : i32 to vector<7x16xi32>
    %425 = arith.addi %423, %424 : vector<7x16xi32>
    %426 = arith.cmpi eq, %421, %425 : vector<7x16xi32>
    %427 = arith.extui %426 : vector<7x16xi1> to vector<7x16xi32>
    %428 = arith.sitofp %427 : vector<7x16xi32> to vector<7x16xf32>
    %cst_155 = arith.constant dense<0.000000e+00> : vector<7x192xf32>
    %429 = tpu.matmul %410, %395, %cst_155 {dimension_numbers = #tpu.dot_dimension_numbers<[1], [0], [0], [1], [0, 0, 1, 1], [], []>} : vector<7x16xf32>, vector<16x192xf32>, vector<7x192xf32> -> vector<7x192xf32>
    %cst_156 = arith.constant dense<0.000000e+00> : vector<7x192xf32>
    %430 = tpu.matmul %419, %395, %cst_156 {dimension_numbers = #tpu.dot_dimension_numbers<[1], [0], [0], [1], [0, 0, 1, 1], [], []>} : vector<7x16xf32>, vector<16x192xf32>, vector<7x192xf32> -> vector<7x192xf32>
    %cst_157 = arith.constant dense<0.000000e+00> : vector<7x192xf32>
    %431 = tpu.matmul %428, %395, %cst_157 {dimension_numbers = #tpu.dot_dimension_numbers<[1], [0], [0], [1], [0, 0, 1, 1], [], []>} : vector<7x16xf32>, vector<16x192xf32>, vector<7x192xf32> -> vector<7x192xf32>
    %432 = tpu.concatenate %429, %430, %431 in 1 : vector<7x192xf32>, vector<7x192xf32>, vector<7x192xf32> -> vector<7x576xf32>
    %cst_158 = arith.constant dense<0.000000e+00> : vector<7x192xf32>
    %433 = tpu.matmul %410, %401, %cst_158 {dimension_numbers = #tpu.dot_dimension_numbers<[1], [0], [0], [1], [0, 0, 1, 1], [], []>} : vector<7x16xf32>, vector<16x192xf32>, vector<7x192xf32> -> vector<7x192xf32>
    %cst_159 = arith.constant dense<0.000000e+00> : vector<7x192xf32>
    %434 = tpu.matmul %419, %401, %cst_159 {dimension_numbers = #tpu.dot_dimension_numbers<[1], [0], [0], [1], [0, 0, 1, 1], [], []>} : vector<7x16xf32>, vector<16x192xf32>, vector<7x192xf32> -> vector<7x192xf32>
    %cst_160 = arith.constant dense<0.000000e+00> : vector<7x192xf32>
    %435 = tpu.matmul %428, %401, %cst_160 {dimension_numbers = #tpu.dot_dimension_numbers<[1], [0], [0], [1], [0, 0, 1, 1], [], []>} : vector<7x16xf32>, vector<16x192xf32>, vector<7x192xf32> -> vector<7x192xf32>
    %436 = tpu.concatenate %433, %434, %435 in 1 : vector<7x192xf32>, vector<7x192xf32>, vector<7x192xf32> -> vector<7x576xf32>
    %c0_161 = arith.constant 0 : index
    %c0_162 = arith.constant 0 : index
    %437 = vector.load %arg16[%c0_161, %c0_162] : memref<576x192xf32, #tpu.memory_space<vmem>>, vector<576x192xf32>
    %cst_163 = arith.constant dense<0.000000e+00> : vector<7x192xf32>
    %438 = tpu.matmul %432, %437, %cst_163 {dimension_numbers = #tpu.dot_dimension_numbers<[1], [0], [0], [1], [0, 0, 1, 1], [], []>} : vector<7x576xf32>, vector<576x192xf32>, vector<7x192xf32> -> vector<7x192xf32>
    %cst_164 = arith.constant dense<0.000000e+00> : vector<7x192xf32>
    %439 = tpu.matmul %436, %437, %cst_164 {dimension_numbers = #tpu.dot_dimension_numbers<[1], [0], [0], [1], [0, 0, 1, 1], [], []>} : vector<7x576xf32>, vector<576x192xf32>, vector<7x192xf32> -> vector<7x192xf32>
    %cst_165 = arith.constant dense<0.000000e+00> : vector<192xf32>
    %440 = vector.multi_reduction <add>, %438, %cst_165 [0] : vector<7x192xf32> to vector<192xf32>
    %441 = vector.shape_cast %440 : vector<192xf32> to vector<1x192xf32>
    %442 = arith.mulf %438, %438 : vector<7x192xf32>
    %cst_166 = arith.constant dense<0.000000e+00> : vector<192xf32>
    %443 = vector.multi_reduction <add>, %442, %cst_166 [0] : vector<7x192xf32> to vector<192xf32>
    %444 = vector.shape_cast %443 : vector<192xf32> to vector<1x192xf32>
    %cst_167 = arith.constant dense<0.000000e+00> : vector<192xf32>
    %445 = vector.multi_reduction <add>, %439, %cst_167 [0] : vector<7x192xf32> to vector<192xf32>
    %446 = vector.shape_cast %445 : vector<192xf32> to vector<1x192xf32>
    %447 = arith.addf %441, %446 : vector<1x192xf32>
    %448 = arith.mulf %439, %439 : vector<7x192xf32>
    %cst_168 = arith.constant dense<0.000000e+00> : vector<192xf32>
    %449 = vector.multi_reduction <add>, %448, %cst_168 [0] : vector<7x192xf32> to vector<192xf32>
    %450 = vector.shape_cast %449 : vector<192xf32> to vector<1x192xf32>
    %451 = arith.addf %444, %450 : vector<1x192xf32>
    %cst_169 = arith.constant 0.0714285746 : f32
    %452 = vector.broadcast %cst_169 : f32 to vector<1x192xf32>
    %453 = arith.mulf %447, %452 : vector<1x192xf32>
    %cst_170 = arith.constant 0.0714285746 : f32
    %454 = vector.broadcast %cst_170 : f32 to vector<1x192xf32>
    %455 = arith.mulf %451, %454 : vector<1x192xf32>
    %456 = arith.mulf %453, %453 : vector<1x192xf32>
    %457 = arith.subf %455, %456 : vector<1x192xf32>
    %c0_171 = arith.constant 0 : index
    %c0_172 = arith.constant 0 : index
    %458 = vector.load %arg17[%c0_171, %c0_172] : memref<1x192xf32, #tpu.memory_space<vmem>>, vector<1x192xf32>
    %cst_173 = arith.constant 9.99999974E-6 : f32
    %459 = vector.broadcast %cst_173 : f32 to vector<1x192xf32>
    %460 = arith.addf %457, %459 : vector<1x192xf32>
    %461 = math.rsqrt %460 : vector<1x192xf32>
    %462 = arith.mulf %458, %461 : vector<1x192xf32>
    %c0_174 = arith.constant 0 : index
    %c0_175 = arith.constant 0 : index
    %463 = vector.load %arg18[%c0_174, %c0_175] : memref<1x192xf32, #tpu.memory_space<vmem>>, vector<1x192xf32>
    %464 = arith.mulf %453, %462 : vector<1x192xf32>
    %465 = arith.subf %463, %464 : vector<1x192xf32>
    %466 = vector.broadcast %462 : vector<1x192xf32> to vector<7x192xf32>
    %467 = arith.mulf %438, %466 : vector<7x192xf32>
    %468 = vector.broadcast %465 : vector<1x192xf32> to vector<7x192xf32>
    %469 = arith.addf %467, %468 : vector<7x192xf32>
    %cst_176 = arith.constant 0.000000e+00 : f32
    %470 = vector.broadcast %cst_176 : f32 to vector<7x192xf32>
    %471 = arith.maximumf %469, %470 : vector<7x192xf32>
    %472 = vector.broadcast %462 : vector<1x192xf32> to vector<7x192xf32>
    %473 = arith.mulf %439, %472 : vector<7x192xf32>
    %474 = vector.broadcast %465 : vector<1x192xf32> to vector<7x192xf32>
    %475 = arith.addf %473, %474 : vector<7x192xf32>
    %cst_177 = arith.constant 0.000000e+00 : f32
    %476 = vector.broadcast %cst_177 : f32 to vector<7x192xf32>
    %477 = arith.maximumf %475, %476 : vector<7x192xf32>
    %478 = tpu.iota {dimensions = array<i32: 0>} : vector<7x16xi32>
    %479 = tpu.iota {dimensions = array<i32: 1>} : vector<7x16xi32>
    %c2_i32_178 = arith.constant 2 : i32
    %480 = vector.broadcast %c2_i32_178 : i32 to vector<7x16xi32>
    %481 = arith.muli %478, %480 : vector<7x16xi32>
    %c0_i32_179 = arith.constant 0 : i32
    %482 = vector.broadcast %c0_i32_179 : i32 to vector<7x16xi32>
    %483 = arith.addi %481, %482 : vector<7x16xi32>
    %484 = arith.cmpi eq, %479, %483 : vector<7x16xi32>
    %485 = arith.extui %484 : vector<7x16xi1> to vector<7x16xi32>
    %486 = arith.sitofp %485 : vector<7x16xi32> to vector<7x16xf32>
    %487 = tpu.iota {dimensions = array<i32: 0>} : vector<7x16xi32>
    %488 = tpu.iota {dimensions = array<i32: 1>} : vector<7x16xi32>
    %c2_i32_180 = arith.constant 2 : i32
    %489 = vector.broadcast %c2_i32_180 : i32 to vector<7x16xi32>
    %490 = arith.muli %487, %489 : vector<7x16xi32>
    %c1_i32_181 = arith.constant 1 : i32
    %491 = vector.broadcast %c1_i32_181 : i32 to vector<7x16xi32>
    %492 = arith.addi %490, %491 : vector<7x16xi32>
    %493 = arith.cmpi eq, %488, %492 : vector<7x16xi32>
    %494 = arith.extui %493 : vector<7x16xi1> to vector<7x16xi32>
    %495 = arith.sitofp %494 : vector<7x16xi32> to vector<7x16xf32>
    %496 = arith.addf %486, %495 : vector<7x16xf32>
    %497 = tpu.iota {dimensions = array<i32: 0>} : vector<7x16xi32>
    %498 = tpu.iota {dimensions = array<i32: 1>} : vector<7x16xi32>
    %c2_i32_182 = arith.constant 2 : i32
    %499 = vector.broadcast %c2_i32_182 : i32 to vector<7x16xi32>
    %500 = arith.muli %497, %499 : vector<7x16xi32>
    %c2_i32_183 = arith.constant 2 : i32
    %501 = vector.broadcast %c2_i32_183 : i32 to vector<7x16xi32>
    %502 = arith.addi %500, %501 : vector<7x16xi32>
    %503 = arith.cmpi eq, %498, %502 : vector<7x16xi32>
    %504 = arith.extui %503 : vector<7x16xi1> to vector<7x16xi32>
    %505 = arith.sitofp %504 : vector<7x16xi32> to vector<7x16xf32>
    %506 = arith.addf %496, %505 : vector<7x16xf32>
    %cst_184 = arith.constant 0.333333343 : f32
    %507 = vector.broadcast %cst_184 : f32 to vector<7x16xf32>
    %508 = arith.mulf %506, %507 : vector<7x16xf32>
    %cst_185 = arith.constant dense<0.000000e+00> : vector<7x128xf32>
    %509 = tpu.matmul %508, %1, %cst_185 {dimension_numbers = #tpu.dot_dimension_numbers<[1], [0], [0], [1], [0, 0, 1, 1], [], []>} : vector<7x16xf32>, vector<16x128xf32>, vector<7x128xf32> -> vector<7x128xf32>
    %cst_186 = arith.constant dense<0.000000e+00> : vector<7x128xf32>
    %510 = tpu.matmul %508, %3, %cst_186 {dimension_numbers = #tpu.dot_dimension_numbers<[1], [0], [0], [1], [0, 0, 1, 1], [], []>} : vector<7x16xf32>, vector<16x128xf32>, vector<7x128xf32> -> vector<7x128xf32>
    %511 = tpu.concatenate %114, %471, %509 in 1 : vector<7x320xf32>, vector<7x192xf32>, vector<7x128xf32> -> vector<7x640xf32>
    %c0_187 = arith.constant 0 : index
    %c0_188 = arith.constant 0 : index
    %c0_189 = arith.constant 0 : index
    %512 = vector.load %arg19[%c0_187, %c0_188, %c0_189] : memref<2x7x640xf32, #tpu.memory_space<vmem>>, vector<1x7x640xf32>
    %513 = vector.shape_cast %512 : vector<1x7x640xf32> to vector<7x640xf32>
    %514 = vector.shape_cast %511 : vector<7x640xf32> to vector<1x7x640xf32>
    tpu.vector_store %arg19[%c0_187, %c0_188, %c0_189], %514 {strides = array<i32>} : memref<2x7x640xf32, #tpu.memory_space<vmem>>, vector<1x7x640xf32>,
    %515 = tpu.concatenate %120, %477, %510 in 1 : vector<7x320xf32>, vector<7x192xf32>, vector<7x128xf32> -> vector<7x640xf32>
    %c1_190 = arith.constant 1 : index
    %c0_191 = arith.constant 0 : index
    %c0_192 = arith.constant 0 : index
    %516 = vector.load %arg19[%c1_190, %c0_191, %c0_192] : memref<2x7x640xf32, #tpu.memory_space<vmem>>, vector<1x7x640xf32>
    %517 = vector.shape_cast %516 : vector<1x7x640xf32> to vector<7x640xf32>
    %518 = vector.shape_cast %515 : vector<7x640xf32> to vector<1x7x640xf32>
    tpu.vector_store %arg19[%c1_190, %c0_191, %c0_192], %518 {strides = array<i32>} : memref<2x7x640xf32, #tpu.memory_space<vmem>>, vector<1x7x640xf32>,
    return
  }
}

</mosaic_0001>

<llo_original>
// kernel: inception_d_forward.1
$region0: #{inception_d_forward.1}
  #allocation0 [shape = 'u32[]', space=smem, size = 0x4, offset = 0x4, fixed_abs, tag = 'smem constant byte address 0x4 - core index']
  #allocation1 [shape = 'u32[144,128]{1,0:T(1,128)}', space=vmem, size = 0x12000, scoped, tag = 'internal scratch']
  %s0 = inlined_call_operand.hbm [shape: f32[2,16,128], index: 0, kind: input, shape index: {}]
  %s1 = inlined_call_operand.vmem [shape: f32[128,192], index: 1, kind: input, shape index: {}]
  %s2 = inlined_call_operand.hbm [shape: f32[1,192], index: 2, kind: input, shape index: {}]
  %s3 = inlined_call_operand.hbm [shape: f32[1,192], index: 3, kind: input, shape index: {}]
  %s4 = inlined_call_operand.hbm [shape: f32[576,320], index: 4, kind: input, shape index: {}]
  %s5 = inlined_call_operand.vmem [shape: f32[1,320], index: 5, kind: input, shape index: {}]
  %s6 = inlined_call_operand.vmem [shape: f32[1,320], index: 6, kind: input, shape index: {}]
  %s7 = inlined_call_operand.vmem [shape: f32[128,192], index: 7, kind: input, shape index: {}]
  %s8 = inlined_call_operand.hbm [shape: f32[1,192], index: 8, kind: input, shape index: {}]
  %s9 = inlined_call_operand.hbm [shape: f32[1,192], index: 9, kind: input, shape index: {}]
  %s10 = inlined_call_operand.hbm [shape: f32[1344,192], index: 10, kind: input, shape index: {}]
  %s11 = inlined_call_operand.hbm [shape: f32[1,192], index: 11, kind: input, shape index: {}]
  %s12 = inlined_call_operand.hbm [shape: f32[1,192], index: 12, kind: input, shape index: {}]
  %s13 = inlined_call_operand.hbm [shape: f32[1344,192], index: 13, kind: input, shape index: {}]
  %s14 = inlined_call_operand.hbm [shape: f32[1,192], index: 14, kind: input, shape index: {}]
  %s15 = inlined_call_operand.hbm [shape: f32[1,192], index: 15, kind: input, shape index: {}]
  %s16 = inlined_call_operand.hbm [shape: f32[576,192], index: 16, kind: input, shape index: {}]
  %s17 = inlined_call_operand.hbm [shape: f32[1,192], index: 17, kind: input, shape index: {}]
  %s18 = inlined_call_operand.hbm [shape: f32[1,192], index: 18, kind: input, shape index: {}]
  %s19 = inlined_call_operand.vmem [shape: f32[2,7,640], index: 19, kind: output, shape index: {}]
  %s20 = sld [smem:[#allocation0]]
  $region146: #{inception_d_forward.1} parent=0
    _
  %s22 = ssub.s32 1, %s20
  %s23 = scalar_select 0, %s22, %s20
  $region1: #{inception_d_forward.1} parent=0
    #allocation2 [shape = 'u8[16384]{0}', space=vmem, size = 0x4000, scoped, tag = 'input window, operand 0, single buffered']
    #allocation3 [shape = 's32[1]{0}', space=sflag, size = 0x4, scoped, tag = 'scoped memory for inception_d_forward.1']
    #allocation4 [shape = 'u8[1024]{0}', space=vmem, size = 0x400, scoped, tag = 'input window, operand 2, single buffered']
    #allocation5 [shape = 's32[1]{0}', space=sflag, size = 0x4, scoped, tag = 'scoped memory for inception_d_forward.1']
    #allocation6 [shape = 'u8[1024]{0}', space=vmem, size = 0x400, scoped, tag = 'input window, operand 3, single buffered']
    #allocation7 [shape = 'u8[884736]{0}', space=vmem, size = 0xd8000, scoped, tag = 'input window, operand 4, single buffered']
    #allocation8 [shape = 's32[1]{0}', space=sflag, size = 0x4, scoped, tag = 'scoped memory for inception_d_forward.1']
    #allocation9 [shape = 'u8[1024]{0}', space=vmem, size = 0x400, scoped, tag = 'input window, operand 8, single buffered']
    #allocation10 [shape = 'u8[1024]{0}', space=vmem, size = 0x400, scoped, tag = 'input window, operand 9, single buffered']
    #allocation11 [shape = 's32[1]{0}', space=sflag, size = 0x4, scoped, tag = 'scoped memory for inception_d_forward.1']
    #allocation12 [shape = 'u8[1376256]{0}', space=vmem, size = 0x150000, scoped, tag = 'input window, operand 10, single buffered']
    #allocation13 [shape = 'u8[1024]{0}', space=vmem, size = 0x400, scoped, tag = 'input window, operand 11, single buffered']
    #allocation14 [shape = 's32[1]{0}', space=sflag, size = 0x4, scoped, tag = 'scoped memory for inception_d_forward.1']
    #allocation15 [shape = 'u8[1024]{0}', space=vmem, size = 0x400, scoped, tag = 'input window, operand 12, single buffered']
    #allocation16 [shape = 'u8[1376256]{0}', space=vmem, size = 0x150000, scoped, tag = 'input window, operand 13, single buffered']
    #allocation17 [shape = 's32[1]{0}', space=sflag, size = 0x4, scoped, tag = 'scoped memory for inception_d_forward.1']
    #allocation18 [shape = 'u8[1024]{0}', space=vmem, size = 0x400, scoped, tag = 'input window, operand 14, single buffered']
    #allocation19 [shape = 'u8[1024]{0}', space=vmem, size = 0x400, scoped, tag = 'input window, operand 15, single buffered']
    #allocation20 [shape = 's32[1]{0}', space=sflag, size = 0x4, scoped, tag = 'scoped memory for inception_d_forward.1']
    #allocation21 [shape = 'u8[589824]{0}', space=vmem, size = 0x90000, scoped, tag = 'input window, operand 16, single buffered']
    #allocation22 [shape = 'u8[1024]{0}', space=vmem, size = 0x400, scoped, tag = 'input window, operand 17, single buffered']
    #allocation23 [shape = 's32[1]{0}', space=sflag, size = 0x4, scoped, tag = 'scoped memory for inception_d_forward.1']
    #allocation24 [shape = 'u8[1024]{0}', space=vmem, size = 0x400, scoped, tag = 'input window, operand 18, single buffered']
    %24 = vsyncpa [#allocation3], 0
    %25 = vsyncpa [#allocation5], 0
    %26 = vsyncpa [#allocation8], 0
    %27 = vsyncpa [#allocation11], 0
    %28 = vsyncpa [#allocation14], 0
    %29 = vsyncpa [#allocation17], 0
    %30 = vsyncpa [#allocation20], 0
    %31 = vsyncpa [#allocation23], 0
    // Predicated region
    $region2: #{inception_d_forward.1} parent=1 // pred_check
      _
    $region3: #{inception_d_forward.1} parent=1 // pred_check_branch
      %33 = sbr.rel (0) target = $region5
    $region4: #{inception_d_forward.1} parent=1 // pred_region
      %s35 = ssub.s32 512, 512
      %36 = vsyncadd [#allocation3], %s35
      %s37 = sshll.u32 [#allocation2], 4
      %s38 = int_to_ptr.vmem [resolvable:$true] %s37
      %43 = dma.hbm_to_vmem [thread:$0]  %s0, 512, %s38, [#allocation3], 128, 128, 8
    $region5: #{inception_d_forward.1} parent=1 // pred_fallthru
      _
    // Predicated region
    $region6: #{inception_d_forward.1} parent=1 // pred_check
      _
    $region7: #{inception_d_forward.1} parent=1 // pred_check_branch
      %45 = sbr.rel (0) target = $region9
    $region8: #{inception_d_forward.1} parent=1 // pred_region
      _
    $region9: #{inception_d_forward.1} parent=1 // pred_fallthru
      _
    // Predicated region
    $region10: #{inception_d_forward.1} parent=1 // pred_check
      _
    $region11: #{inception_d_forward.1} parent=1 // pred_check_branch
      %47 = sbr.rel (0) target = $region13
    $region12: #{inception_d_forward.1} parent=1 // pred_region
      %s49 = ssub.s32 32, 32
      %50 = vsyncadd [#allocation5], %s49
      %s52 = sshll.u32 [#allocation4], 4
      %s53 = int_to_ptr.vmem [resolvable:$true] %s52
      %55 = dma.hbm_to_vmem [thread:$0]  %s2, 32, %s53, [#allocation5]
    $region13: #{inception_d_forward.1} parent=1 // pred_fallthru
      _
    // Predicated region
    $region14: #{inception_d_forward.1} parent=1 // pred_check
      _
    $region15: #{inception_d_forward.1} parent=1 // pred_check_branch
      %57 = sbr.rel (0) target = $region17
    $region16: #{inception_d_forward.1} parent=1 // pred_region
      %s59 = ssub.s32 32, 32
      %60 = vsyncadd [#allocation5], %s59
      %s62 = sshll.u32 [#allocation6], 4
      %s63 = int_to_ptr.vmem [resolvable:$true] %s62
      %65 = dma.hbm_to_vmem [thread:$0]  %s3, 32, %s63, [#allocation5]
    $region17: #{inception_d_forward.1} parent=1 // pred_fallthru
      _
    // Predicated region
    $region18: #{inception_d_forward.1} parent=1 // pred_check
      _
    $region19: #{inception_d_forward.1} parent=1 // pred_check_branch
      %67 = sbr.rel (0) target = $region21
    $region20: #{inception_d_forward.1} parent=1 // pred_region
      %s69 = ssub.s32 27648, 27648
      %70 = vsyncadd [#allocation8], %s69
      %s71 = sshll.u32 [#allocation7], 4
      %s72 = int_to_ptr.vmem [resolvable:$true] %s71
      %77 = dma.hbm_to_vmem [thread:$0]  %s4, 27648, %s72, [#allocation8], 384, 384, 24
    $region21: #{inception_d_forward.1} parent=1 // pred_fallthru
      _
    // Predicated region
    $region22: #{inception_d_forward.1} parent=1 // pred_check
      _
    $region23: #{inception_d_forward.1} parent=1 // pred_check_branch
      %79 = sbr.rel (0) target = $region25
    $region24: #{inception_d_forward.1} parent=1 // pred_region
      _
    $region25: #{inception_d_forward.1} parent=1 // pred_fallthru
      _
    // Predicated region
    $region26: #{inception_d_forward.1} parent=1 // pred_check
      _
    $region27: #{inception_d_forward.1} parent=1 // pred_check_branch
      %81 = sbr.rel (0) target = $region29
    $region28: #{inception_d_forward.1} parent=1 // pred_region
      _
    $region29: #{inception_d_forward.1} parent=1 // pred_fallthru
      _
    // Predicated region
    $region30: #{inception_d_forward.1} parent=1 // pred_check
      _
    $region31: #{inception_d_forward.1} parent=1 // pred_check_branch
      %83 = sbr.rel (0) target = $region33
    $region32: #{inception_d_forward.1} parent=1 // pred_region
      _
    $region33: #{inception_d_forward.1} parent=1 // pred_fallthru
      _
    // Predicated region
    $region34: #{inception_d_forward.1} parent=1 // pred_check
      _
    $region35: #{inception_d_forward.1} parent=1 // pred_check_branch
      %85 = sbr.rel (0) target = $region37
    $region36: #{inception_d_forward.1} parent=1 // pred_region
      %s87 = ssub.s32 32, 32
      %88 = vsyncadd [#allocation8], %s87
      %s90 = sshll.u32 [#allocation9], 4
      %s91 = int_to_ptr.vmem [resolvable:$true] %s90
      %93 = dma.hbm_to_vmem [thread:$0]  %s8, 32, %s91, [#allocation8]
    $region37: #{inception_d_forward.1} parent=1 // pred_fallthru
      _
    // Predicated region
    $region38: #{inception_d_forward.1} parent=1 // pred_check
      _
    $region39: #{inception_d_forward.1} parent=1 // pred_check_branch
      %95 = sbr.rel (0) target = $region41
    $region40: #{inception_d_forward.1} parent=1 // pred_region
      %s97 = ssub.s32 32, 32
      %98 = vsyncadd [#allocation11], %s97
      %s100 = sshll.u32 [#allocation10], 4
      %s101 = int_to_ptr.vmem [resolvable:$true] %s100
      %103 = dma.hbm_to_vmem [thread:$0]  %s9, 32, %s101, [#allocation11]
    $region41: #{inception_d_forward.1} parent=1 // pred_fallthru
      _
    // Predicated region
    $region42: #{inception_d_forward.1} parent=1 // pred_check
      _
    $region43: #{inception_d_forward.1} parent=1 // pred_check_branch
      %105 = sbr.rel (0) target = $region45
    $region44: #{inception_d_forward.1} parent=1 // pred_region
      %s107 = ssub.s32 43008, 43008
      %108 = vsyncadd [#allocation11], %s107
      %s109 = sshll.u32 [#allocation12], 4
      %s110 = int_to_ptr.vmem [resolvable:$true] %s109
      %115 = dma.hbm_to_vmem [thread:$0]  %s10, 43008, %s110, [#allocation11], 256, 256, 16
    $region45: #{inception_d_forward.1} parent=1 // pred_fallthru
      _
    // Predicated region
    $region46: #{inception_d_forward.1} parent=1 // pred_check
      _
    $region47: #{inception_d_forward.1} parent=1 // pred_check_branch
      %117 = sbr.rel (0) target = $region49
    $region48: #{inception_d_forward.1} parent=1 // pred_region
      %s119 = ssub.s32 32, 32
      %120 = vsyncadd [#allocation14], %s119
      %s122 = sshll.u32 [#allocation13], 4
      %s123 = int_to_ptr.vmem [resolvable:$true] %s122
      %125 = dma.hbm_to_vmem [thread:$0]  %s11, 32, %s123, [#allocation14]
    $region49: #{inception_d_forward.1} parent=1 // pred_fallthru
      _
    // Predicated region
    $region50: #{inception_d_forward.1} parent=1 // pred_check
      _
    $region51: #{inception_d_forward.1} parent=1 // pred_check_branch
      %127 = sbr.rel (0) target = $region53
    $region52: #{inception_d_forward.1} parent=1 // pred_region
      %s129 = ssub.s32 32, 32
      %130 = vsyncadd [#allocation14], %s129
      %s132 = sshll.u32 [#allocation15], 4
      %s133 = int_to_ptr.vmem [resolvable:$true] %s132
      %135 = dma.hbm_to_vmem [thread:$0]  %s12, 32, %s133, [#allocation14]
    $region53: #{inception_d_forward.1} parent=1 // pred_fallthru
      _
    // Predicated region
    $region54: #{inception_d_forward.1} parent=1 // pred_check
      _
    $region55: #{inception_d_forward.1} parent=1 // pred_check_branch
      %137 = sbr.rel (0) target = $region57
    $region56: #{inception_d_forward.1} parent=1 // pred_region
      %s139 = ssub.s32 43008, 43008
      %140 = vsyncadd [#allocation17], %s139
      %s141 = sshll.u32 [#allocation16], 4
      %s142 = int_to_ptr.vmem [resolvable:$true] %s141
      %147 = dma.hbm_to_vmem [thread:$0]  %s13, 43008, %s142, [#allocation17], 256, 256, 16
    $region57: #{inception_d_forward.1} parent=1 // pred_fallthru
      _
    // Predicated region
    $region58: #{inception_d_forward.1} parent=1 // pred_check
      _
    $region59: #{inception_d_forward.1} parent=1 // pred_check_branch
      %149 = sbr.rel (0) target = $region61
    $region60: #{inception_d_forward.1} parent=1 // pred_region
      %s151 = ssub.s32 32, 32
      %152 = vsyncadd [#allocation17], %s151
      %s154 = sshll.u32 [#allocation18], 4
      %s155 = int_to_ptr.vmem [resolvable:$true] %s154
      %157 = dma.hbm_to_vmem [thread:$0]  %s14, 32, %s155, [#allocation17]
    $region61: #{inception_d_forward.1} parent=1 // pred_fallthru
      _
    // Predicated region
    $region62: #{inception_d_forward.1} parent=1 // pred_check
      _
    $region63: #{inception_d_forward.1} parent=1 // pred_check_branch
      %159 = sbr.rel (0) target = $region65
    $region64: #{inception_d_forward.1} parent=1 // pred_region
      %s161 = ssub.s32 32, 32
      %162 = vsyncadd [#allocation20], %s161
      %s164 = sshll.u32 [#allocation19], 4
      %s165 = int_to_ptr.vmem [resolvable:$true] %s164
      %167 = dma.hbm_to_vmem [thread:$0]  %s15, 32, %s165, [#allocation20]
    $region65: #{inception_d_forward.1} parent=1 // pred_fallthru
      _
    // Predicated region
    $region66: #{inception_d_forward.1} parent=1 // pred_check
      _
    $region67: #{inception_d_forward.1} parent=1 // pred_check_branch
      %169 = sbr.rel (0) target = $region69
    $region68: #{inception_d_forward.1} parent=1 // pred_region
      %s171 = ssub.s32 18432, 18432
      %172 = vsyncadd [#allocation20], %s171
      %s173 = sshll.u32 [#allocation21], 4
      %s174 = int_to_ptr.vmem [resolvable:$true] %s173
      %179 = dma.hbm_to_vmem [thread:$0]  %s16, 18432, %s174, [#allocation20], 256, 256, 16
    $region69: #{inception_d_forward.1} parent=1 // pred_fallthru
      _
    // Predicated region
    $region70: #{inception_d_forward.1} parent=1 // pred_check
      _
    $region71: #{inception_d_forward.1} parent=1 // pred_check_branch
      %181 = sbr.rel (0) target = $region73
    $region72: #{inception_d_forward.1} parent=1 // pred_region
      %s183 = ssub.s32 32, 32
      %184 = vsyncadd [#allocation23], %s183
      %s186 = sshll.u32 [#allocation22], 4
      %s187 = int_to_ptr.vmem [resolvable:$true] %s186
      %189 = dma.hbm_to_vmem [thread:$0]  %s17, 32, %s187, [#allocation23]
    $region73: #{inception_d_forward.1} parent=1 // pred_fallthru
      _
    // Predicated region
    $region74: #{inception_d_forward.1} parent=1 // pred_check
      _
    $region75: #{inception_d_forward.1} parent=1 // pred_check_branch
      %191 = sbr.rel (0) target = $region77
    $region76: #{inception_d_forward.1} parent=1 // pred_region
      %s193 = ssub.s32 32, 32
      %194 = vsyncadd [#allocation23], %s193
      %s196 = sshll.u32 [#allocation24], 4
      %s197 = int_to_ptr.vmem [resolvable:$true] %s196
      %199 = dma.hbm_to_vmem [thread:$0]  %s18, 32, %s197, [#allocation23]
    $region77: #{inception_d_forward.1} parent=1 // pred_fallthru
      _
    // Predicated region
    $region78: #{inception_d_forward.1} parent=1 // pred_check
      _
    $region79: #{inception_d_forward.1} parent=1 // pred_check_branch
      %201 = sbr.rel (0) target = $region81
    $region80: #{inception_d_forward.1} parent=1 // pred_region
      %202 = dma.done [#allocation3], 512
    $region81: #{inception_d_forward.1} parent=1 // pred_fallthru
      _
    // Predicated region
    $region82: #{inception_d_forward.1} parent=1 // pred_check
      _
    $region83: #{inception_d_forward.1} parent=1 // pred_check_branch
      %204 = sbr.rel (0) target = $region85
    $region84: #{inception_d_forward.1} parent=1 // pred_region
      %205 = dma.done [#allocation5], 32
    $region85: #{inception_d_forward.1} parent=1 // pred_fallthru
      _
    // Predicated region
    $region86: #{inception_d_forward.1} parent=1 // pred_check
      _
    $region87: #{inception_d_forward.1} parent=1 // pred_check_branch
      %207 = sbr.rel (0) target = $region89
    $region88: #{inception_d_forward.1} parent=1 // pred_region
      %208 = dma.done [#allocation5], 32
    $region89: #{inception_d_forward.1} parent=1 // pred_fallthru
      _
    // Predicated region
    $region90: #{inception_d_forward.1} parent=1 // pred_check
      _
    $region91: #{inception_d_forward.1} parent=1 // pred_check_branch
      %210 = sbr.rel (0) target = $region93
    $region92: #{inception_d_forward.1} parent=1 // pred_region
      %211 = dma.done [#allocation8], 27648
    $region93: #{inception_d_forward.1} parent=1 // pred_fallthru
      _
    // Predicated region
    $region94: #{inception_d_forward.1} parent=1 // pred_check
      _
    $region95: #{inception_d_forward.1} parent=1 // pred_check_branch
      %213 = sbr.rel (0) target = $region97
    $region96: #{inception_d_forward.1} parent=1 // pred_region
      %214 = dma.done [#allocation8], 32
    $region97: #{inception_d_forward.1} parent=1 // pred_fallthru
      _
    // Predicated region
    $region98: #{inception_d_forward.1} parent=1 // pred_check
      _
    $region99: #{inception_d_forward.1} parent=1 // pred_check_branch
      %216 = sbr.rel (0) target = $region101
    $region100: #{inception_d_forward.1} parent=1 // pred_region
      %217 = dma.done [#allocation11], 32
    $region101: #{inception_d_forward.1} parent=1 // pred_fallthru
      _
    // Predicated region
    $region102: #{inception_d_forward.1} parent=1 // pred_check
      _
    $region103: #{inception_d_forward.1} parent=1 // pred_check_branch
      %219 = sbr.rel (0) target = $region105
    $region104: #{inception_d_forward.1} parent=1 // pred_region
      %220 = dma.done [#allocation11], 43008
    $region105: #{inception_d_forward.1} parent=1 // pred_fallthru
      _
    // Predicated region
    $region106: #{inception_d_forward.1} parent=1 // pred_check
      _
    $region107: #{inception_d_forward.1} parent=1 // pred_check_branch
      %222 = sbr.rel (0) target = $region109
    $region108: #{inception_d_forward.1} parent=1 // pred_region
      %223 = dma.done [#allocation14], 32
    $region109: #{inception_d_forward.1} parent=1 // pred_fallthru
      _
    // Predicated region
    $region110: #{inception_d_forward.1} parent=1 // pred_check
      _
    $region111: #{inception_d_forward.1} parent=1 // pred_check_branch
      %225 = sbr.rel (0) target = $region113
    $region112: #{inception_d_forward.1} parent=1 // pred_region
      %226 = dma.done [#allocation14], 32
    $region113: #{inception_d_forward.1} parent=1 // pred_fallthru
      _
    // Predicated region
    $region114: #{inception_d_forward.1} parent=1 // pred_check
      _
    $region115: #{inception_d_forward.1} parent=1 // pred_check_branch
      %228 = sbr.rel (0) target = $region117
    $region116: #{inception_d_forward.1} parent=1 // pred_region
      %229 = dma.done [#allocation17], 43008
    $region117: #{inception_d_forward.1} parent=1 // pred_fallthru
      _
    // Predicated region
    $region118: #{inception_d_forward.1} parent=1 // pred_check
      _
    $region119: #{inception_d_forward.1} parent=1 // pred_check_branch
      %231 = sbr.rel (0) target = $region121
    $region120: #{inception_d_forward.1} parent=1 // pred_region
      %232 = dma.done [#allocation17], 32
    $region121: #{inception_d_forward.1} parent=1 // pred_fallthru
      _
    // Predicated region
    $region122: #{inception_d_forward.1} parent=1 // pred_check
      _
    $region123: #{inception_d_forward.1} parent=1 // pred_check_branch
      %234 = sbr.rel (0) target = $region125
    $region124: #{inception_d_forward.1} parent=1 // pred_region
      %235 = dma.done [#allocation20], 32
    $region125: #{inception_d_forward.1} parent=1 // pred_fallthru
      _
    // Predicated region
    $region126: #{inception_d_forward.1} parent=1 // pred_check
      _
    $region127: #{inception_d_forward.1} parent=1 // pred_check_branch
      %237 = sbr.rel (0) target = $region129
    $region128: #{inception_d_forward.1} parent=1 // pred_region
      %238 = dma.done [#allocation20], 18432
    $region129: #{inception_d_forward.1} parent=1 // pred_fallthru
      _
    // Predicated region
    $region130: #{inception_d_forward.1} parent=1 // pred_check
      _
    $region131: #{inception_d_forward.1} parent=1 // pred_check_branch
      %240 = sbr.rel (0) target = $region133
    $region132: #{inception_d_forward.1} parent=1 // pred_region
      %241 = dma.done [#allocation23], 32
    $region133: #{inception_d_forward.1} parent=1 // pred_fallthru
      _
    // Predicated region
    $region134: #{inception_d_forward.1} parent=1 // pred_check
      _
    $region135: #{inception_d_forward.1} parent=1 // pred_check_branch
      %243 = sbr.rel (0) target = $region137
    $region136: #{inception_d_forward.1} parent=1 // pred_region
      %244 = dma.done [#allocation23], 32
    $region137: #{inception_d_forward.1} parent=1 // pred_fallthru
      _
    %v245 = vld [vmem:[#allocation2] sm:$0xff]
    %v246 = vld [vmem:[#allocation2 + $0x8] sm:$0xff]
    %s247 = scalar_lea.vmem [#allocation2], 16
    %v248 = vld [vmem:[%s247] sm:$0xff]
    %v249 = vld [vmem:[%s247 + $0x8] sm:$0xff]
    %v250 = vld [vmem:[%s1] sm:$0xff]
    %v251 = vld [vmem:[%s1 + $0x8] sm:$0xff]
    %v252 = vld [vmem:[%s1 + $0x10] sm:$0xff]
    %v253 = vld [vmem:[%s1 + $0x18] sm:$0xff]
    %v254 = vld [vmem:[%s1 + $0x20] sm:$0xff]
    %v255 = vld [vmem:[%s1 + $0x28] sm:$0xff]
    %v256 = vld [vmem:[%s1 + $0x30] sm:$0xff]
    %v257 = vld [vmem:[%s1 + $0x38] sm:$0xff]
    %v258 = vld [vmem:[%s1 + $0x40] sm:$0xff]
    %v259 = vld [vmem:[%s1 + $0x48] sm:$0xff]
    %v260 = vld [vmem:[%s1 + $0x50] sm:$0xff]
    %v261 = vld [vmem:[%s1 + $0x58] sm:$0xff]
    %v262 = vld [vmem:[%s1 + $0x60] sm:$0xff]
    %v263 = vld [vmem:[%s1 + $0x68] sm:$0xff]
    %v264 = vld [vmem:[%s1 + $0x70] sm:$0xff]
    %v265 = vld [vmem:[%s1 + $0x78] sm:$0xff]
    %v266 = vld [vmem:[%s1 + $0x80] sm:$0xff]
    %v267 = vld [vmem:[%s1 + $0x88] sm:$0xff]
    %v268 = vld [vmem:[%s1 + $0x90] sm:$0xff]
    %v269 = vld [vmem:[%s1 + $0x98] sm:$0xff]
    %v270 = vld [vmem:[%s1 + $0xa0] sm:$0xff]
    %v271 = vld [vmem:[%s1 + $0xa8] sm:$0xff]
    %v272 = vld [vmem:[%s1 + $0xb0] sm:$0xff]
    %v273 = vld [vmem:[%s1 + $0xb8] sm:$0xff]
    %v274 = vld [vmem:[%s1 + $0xc0] sm:$0xff]
    %v275 = vld [vmem:[%s1 + $0xc8] sm:$0xff]
    %v276 = vld [vmem:[%s1 + $0xd0] sm:$0xff]
    %v277 = vld [vmem:[%s1 + $0xd8] sm:$0xff]
    %v278 = vld [vmem:[%s1 + $0xe0] sm:$0xff]
    %v279 = vld [vmem:[%s1 + $0xe8] sm:$0xff]
    %v280 = vld [vmem:[%s1 + $0xf0] sm:$0xff]
    %v281 = vld [vmem:[%s1 + $0xf8] sm:$0xff]
    %282 = vmatprep.subr.mxu0 %v251
    %283 = vmatpush1.msra.mxu0 %v250
    %284 = vmatprep.subr.mxu0 %v253
    %285 = vmatpush1.msra.mxu0 %v252
    %286 = vmatprep.subr.mxu0 %v255
    %287 = vmatpush1.msra.mxu0 %v254
    %288 = vmatprep.subr.mxu0 %v257
    %289 = vmatpush1.msra.mxu0 %v256
    %290 = vmatprep.subr.mxu0 %v259
    %291 = vmatpush1.msra.mxu0 %v258
    %292 = vmatprep.subr.mxu0 %v261
    %293 = vmatpush1.msra.mxu0 %v260
    %294 = vmatprep.subr.mxu0 %v263
    %295 = vmatpush1.msra.mxu0 %v262
    %296 = vmatprep.subr.mxu0 %v265
    %297 = vmatpush1.msra.mxu0 %v264
    %298 = vmatprep.subr.mxu0 %v267
    %299 = vmatpush1.msra.mxu0 %v266
    %300 = vmatprep.subr.mxu0 %v269
    %301 = vmatpush1.msra.mxu0 %v268
    %302 = vmatprep.subr.mxu0 %v271
    %303 = vmatpush1.msra.mxu0 %v270
    %304 = vmatprep.subr.mxu0 %v273
    %305 = vmatpush1.msra.mxu0 %v272
    %306 = vmatprep.subr.mxu0 %v275
    %307 = vmatpush1.msra.mxu0 %v274
    %308 = vmatprep.subr.mxu0 %v277
    %309 = vmatpush1.msra.mxu0 %v276
    %310 = vmatprep.subr.mxu0 %v279
    %311 = vmatpush1.msra.mxu0 %v278
    %312 = vmatprep.subr.mxu0 %v281
    %313 = vmatpush1.msra.mxu0 %v280
    %314 = vmatprep.subr.mxu0 0.0
    %315 = vmatpush1.msra.mxu0 0.0
    %316 = vmatprep.subr.mxu0 0.0
    %317 = vmatpush1.msra.mxu0 0.0
    %318 = vmatprep.subr.mxu0 0.0
    %319 = vmatpush1.msra.mxu0 0.0
    %320 = vmatprep.subr.mxu0 0.0
    %321 = vmatpush1.msra.mxu0 0.0
    %322 = vmatprep.subr.mxu0 0.0
    %323 = vmatpush1.msra.mxu0 0.0
    %324 = vmatprep.subr.mxu0 0.0
    %325 = vmatpush1.msra.mxu0 0.0
    %326 = vmatprep.subr.mxu0 0.0
    %327 = vmatpush1.msra.mxu0 0.0
    %328 = vmatprep.subr.mxu0 0.0
    %329 = vmatpush1.msra.mxu0 0.0
    %330 = vmatprep.subr.mxu0 0.0
    %331 = vmatpush1.msra.mxu0 0.0
    %332 = vmatprep.subr.mxu0 0.0
    %333 = vmatpush1.msra.mxu0 0.0
    %334 = vmatprep.subr.mxu0 0.0
    %335 = vmatpush1.msra.mxu0 0.0
    %336 = vmatprep.subr.mxu0 0.0
    %337 = vmatpush1.msra.mxu0 0.0
    %338 = vmatprep.subr.mxu0 0.0
    %339 = vmatpush1.msra.mxu0 0.0
    %340 = vmatprep.subr.mxu0 0.0
    %341 = vmatpush1.msra.mxu0 0.0
    %342 = vmatprep.subr.mxu0 0.0
    %343 = vmatpush1.msra.mxu0 0.0
    %344 = vmatprep.subr.mxu0 0.0
    %345 = vmatpush1.msra.mxu0 0.0
    %346 = vmatprep.mubr.f32.mxu0 0.0
    %347 = vmatmul.mubr.f32.gmra.mrb[0].mxu0 %v245
    %v348 = vpop.f32.mrb[0].mxu0
    %v349 = vadd.f32 0.0, %v348
    %v350 = vpop.f32.mrb[0].mxu0
    %v351 = vadd.f32 0.0, %v350
    %352 = vmatprep.mubr.f32.mxu0 0.0
    %353 = vmatmul.mubr.f32.gmra.mrb[0].mxu0 %v246
    %v354 = vpop.f32.mrb[0].mxu0
    %v355 = vadd.f32 0.0, %v354
    %v356 = vpop.f32.mrb[0].mxu0
    %v357 = vadd.f32 0.0, %v356
    %358 = vdwg.mxu0
    %359 = vmatprep.subr.mxu0 %v251
    %360 = vmatpush1.msra.mxu0 %v250
    %361 = vmatprep.subr.mxu0 %v253
    %362 = vmatpush1.msra.mxu0 %v252
    %363 = vmatprep.subr.mxu0 %v255
    %364 = vmatpush1.msra.mxu0 %v254
    %365 = vmatprep.subr.mxu0 %v257
    %366 = vmatpush1.msra.mxu0 %v256
    %367 = vmatprep.subr.mxu0 %v259
    %368 = vmatpush1.msra.mxu0 %v258
    %369 = vmatprep.subr.mxu0 %v261
    %370 = vmatpush1.msra.mxu0 %v260
    %371 = vmatprep.subr.mxu0 %v263
    %372 = vmatpush1.msra.mxu0 %v262
    %373 = vmatprep.subr.mxu0 %v265
    %374 = vmatpush1.msra.mxu0 %v264
    %375 = vmatprep.subr.mxu0 %v267
    %376 = vmatpush1.msra.mxu0 %v266
    %377 = vmatprep.subr.mxu0 %v269
    %378 = vmatpush1.msra.mxu0 %v268
    %379 = vmatprep.subr.mxu0 %v271
    %380 = vmatpush1.msra.mxu0 %v270
    %381 = vmatprep.subr.mxu0 %v273
    %382 = vmatpush1.msra.mxu0 %v272
    %383 = vmatprep.subr.mxu0 %v275
    %384 = vmatpush1.msra.mxu0 %v274
    %385 = vmatprep.subr.mxu0 %v277
    %386 = vmatpush1.msra.mxu0 %v276
    %387 = vmatprep.subr.mxu0 %v279
    %388 = vmatpush1.msra.mxu0 %v278
    %389 = vmatprep.subr.mxu0 %v281
    %390 = vmatpush1.msra.mxu0 %v280
    %391 = vmatprep.subr.mxu0 0.0
    %392 = vmatpush1.msra.mxu0 0.0
    %393 = vmatprep.subr.mxu0 0.0
    %394 = vmatpush1.msra.mxu0 0.0
    %395 = vmatprep.subr.mxu0 0.0
    %396 = vmatpush1.msra.mxu0 0.0
    %397 = vmatprep.subr.mxu0 0.0
    %398 = vmatpush1.msra.mxu0 0.0
    %399 = vmatprep.subr.mxu0 0.0
    %400 = vmatpush1.msra.mxu0 0.0
    %401 = vmatprep.subr.mxu0 0.0
    %402 = vmatpush1.msra.mxu0 0.0
    %403 = vmatprep.subr.mxu0 0.0
    %404 = vmatpush1.msra.mxu0 0.0
    %405 = vmatprep.subr.mxu0 0.0
    %406 = vmatpush1.msra.mxu0 0.0
    %407 = vmatprep.subr.mxu0 0.0
    %408 = vmatpush1.msra.mxu0 0.0
    %409 = vmatprep.subr.mxu0 0.0
    %410 = vmatpush1.msra.mxu0 0.0
    %411 = vmatprep.subr.mxu0 0.0
    %412 = vmatpush1.msra.mxu0 0.0
    %413 = vmatprep.subr.mxu0 0.0
    %414 = vmatpush1.msra.mxu0 0.0
    %415 = vmatprep.subr.mxu0 0.0
    %416 = vmatpush1.msra.mxu0 0.0
    %417 = vmatprep.subr.mxu0 0.0
    %418 = vmatpush1.msra.mxu0 0.0
    %419 = vmatprep.subr.mxu0 0.0
    %420 = vmatpush1.msra.mxu0 0.0
    %421 = vmatprep.subr.mxu0 0.0
    %422 = vmatpush1.msra.mxu0 0.0
    %423 = vmatprep.mubr.f32.mxu0 0.0
    %424 = vmatmul.mubr.f32.gmra.mrb[0].mxu0 %v248
    %v425 = vpop.f32.mrb[0].mxu0
    %v426 = vadd.f32 0.0, %v425
    %v427 = vpop.f32.mrb[0].mxu0
    %v428 = vadd.f32 0.0, %v427
    %429 = vmatprep.mubr.f32.mxu0 0.0
    %430 = vmatmul.mubr.f32.gmra.mrb[0].mxu0 %v249
    %v431 = vpop.f32.mrb[0].mxu0
    %v432 = vadd.f32 0.0, %v431
    %v433 = vpop.f32.mrb[0].mxu0
    %v434 = vadd.f32 0.0, %v433
    %435 = vdwg.mxu0
    %v436 = vadd.f32 %v349, %v355
    %v437 = vrot.slane %v436, 4
    %v438 = vadd.f32 %v436, %v437
    %v439 = vrot.slane %v438, 2
    %v440 = vadd.f32 %v438, %v439
    %v441 = vrot.slane %v440, 1
    %v442 = vadd.f32 %v440, %v441
    %vm443 = vcmask 523264
    %v444 = vsel %vm443, %v351, 0.0
    %v445 = vsel %vm443, %v357, 0.0
    %v446 = vadd.f32 %v444, %v445
    %v447 = vrot.slane %v446, 4
    %v448 = vadd.f32 %v446, %v447
    %v449 = vrot.slane %v448, 2
    %v450 = vadd.f32 %v448, %v449
    %v451 = vrot.slane %v450, 1
    %v452 = vadd.f32 %v450, %v451
    %v453 = vmul.f32 %v349, %v349
    %v454 = vmul.f32 %v351, %v351
    %v455 = vmul.f32 %v355, %v355
    %v456 = vmul.f32 %v357, %v357
    %v457 = vadd.f32 %v453, %v455
    %v458 = vrot.slane %v457, 4
    %v459 = vadd.f32 %v457, %v458
    %v460 = vrot.slane %v459, 2
    %v461 = vadd.f32 %v459, %v460
    %v462 = vrot.slane %v461, 1
    %v463 = vadd.f32 %v461, %v462
    %v464 = vsel %vm443, %v454, 0.0
    %v465 = vsel %vm443, %v456, 0.0
    %v466 = vadd.f32 %v464, %v465
    %v467 = vrot.slane %v466, 4
    %v468 = vadd.f32 %v466, %v467
    %v469 = vrot.slane %v468, 2
    %v470 = vadd.f32 %v468, %v469
    %v471 = vrot.slane %v470, 1
    %v472 = vadd.f32 %v470, %v471
    %v473 = vadd.f32 %v426, %v432
    %v474 = vrot.slane %v473, 4
    %v475 = vadd.f32 %v473, %v474
    %v476 = vrot.slane %v475, 2
    %v477 = vadd.f32 %v475, %v476
    %v478 = vrot.slane %v477, 1
    %v479 = vadd.f32 %v477, %v478
    %v480 = vsel %vm443, %v428, 0.0
    %v481 = vsel %vm443, %v434, 0.0
    %v482 = vadd.f32 %v480, %v481
    %v483 = vrot.slane %v482, 4
    %v484 = vadd.f32 %v482, %v483
    %v485 = vrot.slane %v484, 2
    %v486 = vadd.f32 %v484, %v485
    %v487 = vrot.slane %v486, 1
    %v488 = vadd.f32 %v486, %v487
    %v489 = vadd.f32 %v442, %v479
    %v490 = vadd.f32 %v452, %v488
    %v491 = vmul.f32 %v426, %v426
    %v492 = vmul.f32 %v428, %v428
    %v493 = vmul.f32 %v432, %v432
    %v494 = vmul.f32 %v434, %v434
    %v495 = vadd.f32 %v491, %v493
    %v496 = vrot.slane %v495, 4
    %v497 = vadd.f32 %v495, %v496
    %v498 = vrot.slane %v497, 2
    %v499 = vadd.f32 %v497, %v498
    %v500 = vrot.slane %v499, 1
    %v501 = vadd.f32 %v499, %v500
    %v502 = vsel %vm443, %v492, 0.0
    %v503 = vsel %vm443, %v494, 0.0
    %v504 = vadd.f32 %v502, %v503
    %v505 = vrot.slane %v504, 4
    %v506 = vadd.f32 %v504, %v505
    %v507 = vrot.slane %v506, 2
    %v508 = vadd.f32 %v506, %v507
    %v509 = vrot.slane %v508, 1
    %v510 = vadd.f32 %v508, %v509
    %v511 = vadd.f32 %v463, %v501
    %v512 = vadd.f32 %v472, %v510
    %v513 = vmul.f32 %v489, 0.03125
    %v514 = vmul.f32 %v490, 0.03125
    %v515 = vmul.f32 %v511, 0.03125
    %v516 = vmul.f32 %v512, 0.03125
    %v517 = vmul.f32 %v513, %v513
    %v518 = vmul.f32 %v514, %v514
    %v519 = vsub.f32 %v515, %v517
    %v520 = vsub.f32 %v516, %v518
    %v521 = vld [vmem:[#allocation4] sm:$0x3]
    %v522 = vadd.f32 %v519, 1e-05
    %v523 = vadd.f32 %v520, 1e-05
    %v524 = vrsqrt.pop %v522
    %v525 = vrsqrt.pop %v523
    %v528 = vcombine.low %v524, %v525
    %v530 = vunpack.c.l.s4 1966171168
    %v531 = vunpack.c.0.s8 %v530
    %v532 = vlaneseq
    %v533 = vshrl.u32 %v532, 7
    %v534 = vsub.s32 %v531, %v533
    %v535 = vrot.slane %v528, %v534
    %v537 = vunpack.c.l.s4 1966171168
    %v538 = vunpack.c.0.s8 %v537
    %v539 = vlaneseq
    %v540 = vshrl.u32 %v539, 7
    %v541 = vsub.s32 %v538, %v540
    %v542 = vrot.slane %v535, %v541
    %v544 = vmul.f32 %v521, %v542
    %v545 = vld [vmem:[#allocation6] sm:$0x3]
    %v547 = vlaneseq
    %v548 = vshrl.u32 %v547, 7
    %v549 = vsub.s32 0, %v548
    %v550 = vrot.slane %v544, %v549
    %v551 = vlaneseq
    %v552 = vshrl.u32 %v551, 7
    %v553 = vsub.s32 1, %v552
    %v554 = vrot.slane %v544, %v553
    %v557 = vmul.f32 %v513, %v550
    %v558 = vmul.f32 %v514, %v554
    %v561 = vcombine.low %v557, %v558
    %v563 = vunpack.c.l.s4 1966171168
    %v564 = vunpack.c.0.s8 %v563
    %v565 = vlaneseq
    %v566 = vshrl.u32 %v565, 7
    %v567 = vsub.s32 %v564, %v566
    %v568 = vrot.slane %v561, %v567
    %v570 = vunpack.c.l.s4 1966171168
    %v571 = vunpack.c.0.s8 %v570
    %v572 = vlaneseq
    %v573 = vshrl.u32 %v572, 7
    %v574 = vsub.s32 %v571, %v573
    %v575 = vrot.slane %v568, %v574
    %v577 = vsub.f32 %v545, %v575
    %v578 = vmul.f32 %v349, %v550
    %v579 = vmul.f32 %v351, %v554
    %v580 = vmul.f32 %v355, %v550
    %v581 = vmul.f32 %v357, %v554
    %v583 = vlaneseq
    %v584 = vshrl.u32 %v583, 7
    %v585 = vsub.s32 0, %v584
    %v586 = vrot.slane %v577, %v585
    %v587 = vlaneseq
    %v588 = vshrl.u32 %v587, 7
    %v589 = vsub.s32 1, %v588
    %v590 = vrot.slane %v577, %v589
    %v593 = vadd.f32 %v578, %v586
    %v594 = vadd.f32 %v579, %v590
    %v595 = vadd.f32 %v580, %v586
    %v596 = vadd.f32 %v581, %v590
    %v597 = vmax.f32 %v593, 0.0
    %v598 = vmax.f32 %v594, 0.0
    %v599 = vmax.f32 %v595, 0.0
    %v600 = vmax.f32 %v596, 0.0
    %v601 = vmul.f32 %v426, %v550
    %v602 = vmul.f32 %v428, %v554
    %v603 = vmul.f32 %v432, %v550
    %v604 = vmul.f32 %v434, %v554
    %v605 = vadd.f32 %v601, %v586
    %v606 = vadd.f32 %v602, %v590
    %v607 = vadd.f32 %v603, %v586
    %v608 = vadd.f32 %v604, %v590
    %v609 = vmax.f32 %v605, 0.0
    %v610 = vmax.f32 %v606, 0.0
    %v611 = vmax.f32 %v607, 0.0
    %v612 = vmax.f32 %v608, 0.0
    %v613 = vlaneseq
    %v614 = vshrl.u32 %v613, 7
    %v615 = vlaneseq
    %v616 = vand.u32 %v615, 127
    %v617 = vmul.u32 %v614, 2
    %vm618 = vcmp.eq.s32.totalorder %v616, %v617
    %v619 = vsel %vm618, 1, 0
    %v620 = vcvt.s32.f32 %v619
    %v621 = vadd.s32 %v617, 1
    %vm622 = vcmp.eq.s32.totalorder %v616, %v621
    %v623 = vsel %vm622, 1, 0
    %v624 = vcvt.s32.f32 %v623
    %v625 = vadd.s32 %v617, 2
    %vm626 = vcmp.eq.s32.totalorder %v616, %v625
    %v627 = vsel %vm626, 1, 0
    %v628 = vcvt.s32.f32 %v627
    %vm629 = vcmask 130048
    %v631 = vsel %vm629, %v620, 0
    %633 = vmatprep.subr.mxu0 %v598
    %634 = vmatpush1.msra.mxu0 %v597
    %635 = vmatprep.subr.mxu0 %v600
    %636 = vmatpush1.msra.mxu0 %v599
    %637 = vmatprep.subr.mxu0 0.0
    %638 = vmatpush1.msra.mxu0 0.0
    %639 = vmatprep.subr.mxu0 0.0
    %640 = vmatpush1.msra.mxu0 0.0
    %641 = vmatprep.subr.mxu0 0.0
    %642 = vmatpush1.msra.mxu0 0.0
    %643 = vmatprep.subr.mxu0 0.0
    %644 = vmatpush1.msra.mxu0 0.0
    %645 = vmatprep.subr.mxu0 0.0
    %646 = vmatpush1.msra.mxu0 0.0
    %647 = vmatprep.subr.mxu0 0.0
    %648 = vmatpush1.msra.mxu0 0.0
    %649 = vmatprep.subr.mxu0 0.0
    %650 = vmatpush1.msra.mxu0 0.0
    %651 = vmatprep.subr.mxu0 0.0
    %652 = vmatpush1.msra.mxu0 0.0
    %653 = vmatprep.subr.mxu0 0.0
    %654 = vmatpush1.msra.mxu0 0.0
    %655 = vmatprep.subr.mxu0 0.0
    %656 = vmatpush1.msra.mxu0 0.0
    %657 = vmatprep.subr.mxu0 0.0
    %658 = vmatpush1.msra.mxu0 0.0
    %659 = vmatprep.subr.mxu0 0.0
    %660 = vmatpush1.msra.mxu0 0.0
    %661 = vmatprep.subr.mxu0 0.0
    %662 = vmatpush1.msra.mxu0 0.0
    %663 = vmatprep.subr.mxu0 0.0
    %664 = vmatpush1.msra.mxu0 0.0
    %665 = vmatprep.subr.mxu0 0.0
    %666 = vmatpush1.msra.mxu0 0.0
    %667 = vmatprep.subr.mxu0 0.0
    %668 = vmatpush1.msra.mxu0 0.0
    %669 = vmatprep.subr.mxu0 0.0
    %670 = vmatpush1.msra.mxu0 0.0
    %671 = vmatprep.subr.mxu0 0.0
    %672 = vmatpush1.msra.mxu0 0.0
    %673 = vmatprep.subr.mxu0 0.0
    %674 = vmatpush1.msra.mxu0 0.0
    %675 = vmatprep.subr.mxu0 0.0
    %676 = vmatpush1.msra.mxu0 0.0
    %677 = vmatprep.subr.mxu0 0.0
    %678 = vmatpush1.msra.mxu0 0.0
    %679 = vmatprep.subr.mxu0 0.0
    %680 = vmatpush1.msra.mxu0 0.0
    %681 = vmatprep.subr.mxu0 0.0
    %682 = vmatpush1.msra.mxu0 0.0
    %683 = vmatprep.subr.mxu0 0.0
    %684 = vmatpush1.msra.mxu0 0.0
    %685 = vmatprep.subr.mxu0 0.0
    %686 = vmatpush1.msra.mxu0 0.0
    %687 = vmatprep.subr.mxu0 0.0
    %688 = vmatpush1.msra.mxu0 0.0
    %689 = vmatprep.subr.mxu0 0.0
    %690 = vmatpush1.msra.mxu0 0.0
    %691 = vmatprep.subr.mxu0 0.0
    %692 = vmatpush1.msra.mxu0 0.0
    %693 = vmatprep.subr.mxu0 0.0
    %694 = vmatpush1.msra.mxu0 0.0
    %695 = vmatprep.subr.mxu0 0.0
    %696 = vmatpush1.msra.mxu0 0.0
    %697 = vmatprep.mubr.f32.mxu0 0.0
    %698 = vmatmul.mubr.f32.gmra.mrb[0].mxu0 %v631
    %v699 = vpop.f32.mrb[0].mxu0
    %v700 = vadd.f32 0.0, %v699
    %v701 = vpop.f32.mrb[0].mxu0
    %v702 = vadd.f32 0.0, %v701
    %703 = vdwg.mxu0
    %v705 = vsel %vm629, %v624, 0
    %707 = vmatprep.subr.mxu0 %v598
    %708 = vmatpush1.msra.mxu0 %v597
    %709 = vmatprep.subr.mxu0 %v600
    %710 = vmatpush1.msra.mxu0 %v599
    %711 = vmatprep.subr.mxu0 0.0
    %712 = vmatpush1.msra.mxu0 0.0
    %713 = vmatprep.subr.mxu0 0.0
    %714 = vmatpush1.msra.mxu0 0.0
    %715 = vmatprep.subr.mxu0 0.0
    %716 = vmatpush1.msra.mxu0 0.0
    %717 = vmatprep.subr.mxu0 0.0
    %718 = vmatpush1.msra.mxu0 0.0
    %719 = vmatprep.subr.mxu0 0.0
    %720 = vmatpush1.msra.mxu0 0.0
    %721 = vmatprep.subr.mxu0 0.0
    %722 = vmatpush1.msra.mxu0 0.0
    %723 = vmatprep.subr.mxu0 0.0
    %724 = vmatpush1.msra.mxu0 0.0
    %725 = vmatprep.subr.mxu0 0.0
    %726 = vmatpush1.msra.mxu0 0.0
    %727 = vmatprep.subr.mxu0 0.0
    %728 = vmatpush1.msra.mxu0 0.0
    %729 = vmatprep.subr.mxu0 0.0
    %730 = vmatpush1.msra.mxu0 0.0
    %731 = vmatprep.subr.mxu0 0.0
    %732 = vmatpush1.msra.mxu0 0.0
    %733 = vmatprep.subr.mxu0 0.0
    %734 = vmatpush1.msra.mxu0 0.0
    %735 = vmatprep.subr.mxu0 0.0
    %736 = vmatpush1.msra.mxu0 0.0
    %737 = vmatprep.subr.mxu0 0.0
    %738 = vmatpush1.msra.mxu0 0.0
    %739 = vmatprep.subr.mxu0 0.0
    %740 = vmatpush1.msra.mxu0 0.0
    %741 = vmatprep.subr.mxu0 0.0
    %742 = vmatpush1.msra.mxu0 0.0
    %743 = vmatprep.subr.mxu0 0.0
    %744 = vmatpush1.msra.mxu0 0.0
    %745 = vmatprep.subr.mxu0 0.0
    %746 = vmatpush1.msra.mxu0 0.0
    %747 = vmatprep.subr.mxu0 0.0
    %748 = vmatpush1.msra.mxu0 0.0
    %749 = vmatprep.subr.mxu0 0.0
    %750 = vmatpush1.msra.mxu0 0.0
    %751 = vmatprep.subr.mxu0 0.0
    %752 = vmatpush1.msra.mxu0 0.0
    %753 = vmatprep.subr.mxu0 0.0
    %754 = vmatpush1.msra.mxu0 0.0
    %755 = vmatprep.subr.mxu0 0.0
    %756 = vmatpush1.msra.mxu0 0.0
    %757 = vmatprep.subr.mxu0 0.0
    %758 = vmatpush1.msra.mxu0 0.0
    %759 = vmatprep.subr.mxu0 0.0
    %760 = vmatpush1.msra.mxu0 0.0
    %761 = vmatprep.subr.mxu0 0.0
    %762 = vmatpush1.msra.mxu0 0.0
    %763 = vmatprep.subr.mxu0 0.0
    %764 = vmatpush1.msra.mxu0 0.0
    %765 = vmatprep.subr.mxu0 0.0
    %766 = vmatpush1.msra.mxu0 0.0
    %767 = vmatprep.subr.mxu0 0.0
    %768 = vmatpush1.msra.mxu0 0.0
    %769 = vmatprep.subr.mxu0 0.0
    %770 = vmatpush1.msra.mxu0 0.0
    %771 = vmatprep.mubr.f32.mxu0 0.0
    %772 = vmatmul.mubr.f32.gmra.mrb[0].mxu0 %v705
    %v773 = vpop.f32.mrb[0].mxu0
    %v774 = vadd.f32 0.0, %v773
    %v775 = vpop.f32.mrb[0].mxu0
    %v776 = vadd.f32 0.0, %v775
    %777 = vdwg.mxu0
    %v779 = vsel %vm629, %v628, 0
    %781 = vmatprep.subr.mxu0 %v598
    %782 = vmatpush1.msra.mxu0 %v597
    %783 = vmatprep.subr.mxu0 %v600
    %784 = vmatpush1.msra.mxu0 %v599
    %785 = vmatprep.subr.mxu0 0.0
    %786 = vmatpush1.msra.mxu0 0.0
    %787 = vmatprep.subr.mxu0 0.0
    %788 = vmatpush1.msra.mxu0 0.0
    %789 = vmatprep.subr.mxu0 0.0
    %790 = vmatpush1.msra.mxu0 0.0
    %791 = vmatprep.subr.mxu0 0.0
    %792 = vmatpush1.msra.mxu0 0.0
    %793 = vmatprep.subr.mxu0 0.0
    %794 = vmatpush1.msra.mxu0 0.0
    %795 = vmatprep.subr.mxu0 0.0
    %796 = vmatpush1.msra.mxu0 0.0
    %797 = vmatprep.subr.mxu0 0.0
    %798 = vmatpush1.msra.mxu0 0.0
    %799 = vmatprep.subr.mxu0 0.0
    %800 = vmatpush1.msra.mxu0 0.0
    %801 = vmatprep.subr.mxu0 0.0
    %802 = vmatpush1.msra.mxu0 0.0
    %803 = vmatprep.subr.mxu0 0.0
    %804 = vmatpush1.msra.mxu0 0.0
    %805 = vmatprep.subr.mxu0 0.0
    %806 = vmatpush1.msra.mxu0 0.0
    %807 = vmatprep.subr.mxu0 0.0
    %808 = vmatpush1.msra.mxu0 0.0
    %809 = vmatprep.subr.mxu0 0.0
    %810 = vmatpush1.msra.mxu0 0.0
    %811 = vmatprep.subr.mxu0 0.0
    %812 = vmatpush1.msra.mxu0 0.0
    %813 = vmatprep.subr.mxu0 0.0
    %814 = vmatpush1.msra.mxu0 0.0
    %815 = vmatprep.subr.mxu0 0.0
    %816 = vmatpush1.msra.mxu0 0.0
    %817 = vmatprep.subr.mxu0 0.0
    %818 = vmatpush1.msra.mxu0 0.0
    %819 = vmatprep.subr.mxu0 0.0
    %820 = vmatpush1.msra.mxu0 0.0
    %821 = vmatprep.subr.mxu0 0.0
    %822 = vmatpush1.msra.mxu0 0.0
    %823 = vmatprep.subr.mxu0 0.0
    %824 = vmatpush1.msra.mxu0 0.0
    %825 = vmatprep.subr.mxu0 0.0
    %826 = vmatpush1.msra.mxu0 0.0
    %827 = vmatprep.subr.mxu0 0.0
    %828 = vmatpush1.msra.mxu0 0.0
    %829 = vmatprep.subr.mxu0 0.0
    %830 = vmatpush1.msra.mxu0 0.0
    %831 = vmatprep.subr.mxu0 0.0
    %832 = vmatpush1.msra.mxu0 0.0
    %833 = vmatprep.subr.mxu0 0.0
    %834 = vmatpush1.msra.mxu0 0.0
    %835 = vmatprep.subr.mxu0 0.0
    %836 = vmatpush1.msra.mxu0 0.0
    %837 = vmatprep.subr.mxu0 0.0
    %838 = vmatpush1.msra.mxu0 0.0
    %839 = vmatprep.subr.mxu0 0.0
    %840 = vmatpush1.msra.mxu0 0.0
    %841 = vmatprep.subr.mxu0 0.0
    %842 = vmatpush1.msra.mxu0 0.0
    %843 = vmatprep.subr.mxu0 0.0
    %844 = vmatpush1.msra.mxu0 0.0
    %845 = vmatprep.mubr.f32.mxu0 0.0
    %846 = vmatmul.mubr.f32.gmra.mrb[0].mxu0 %v779
    %v847 = vpop.f32.mrb[0].mxu0
    %v848 = vadd.f32 0.0, %v847
    %v849 = vpop.f32.mrb[0].mxu0
    %v850 = vadd.f32 0.0, %v849
    %851 = vdwg.mxu0
    %854 = vrot.lane.b32.xlu0 %v774, 64
    %v855 = vpop.permute.xlu0 %854
    %856 = vrot.lane.b32.xlu0 %v776, 64
    %v857 = vpop.permute.xlu0 %856
    %v858 = vsel %vm443, %v855, %v857
    %v861 = vsel %vm443, %v702, %v855
    %862 = vmatprep.subr.mxu0 %v610
    %863 = vmatpush1.msra.mxu0 %v609
    %864 = vmatprep.subr.mxu0 %v612
    %865 = vmatpush1.msra.mxu0 %v611
    %866 = vmatprep.subr.mxu0 0.0
    %867 = vmatpush1.msra.mxu0 0.0
    %868 = vmatprep.subr.mxu0 0.0
    %869 = vmatpush1.msra.mxu0 0.0
    %870 = vmatprep.subr.mxu0 0.0
    %871 = vmatpush1.msra.mxu0 0.0
    %872 = vmatprep.subr.mxu0 0.0
    %873 = vmatpush1.msra.mxu0 0.0
    %874 = vmatprep.subr.mxu0 0.0
    %875 = vmatpush1.msra.mxu0 0.0
    %876 = vmatprep.subr.mxu0 0.0
    %877 = vmatpush1.msra.mxu0 0.0
    %878 = vmatprep.subr.mxu0 0.0
    %879 = vmatpush1.msra.mxu0 0.0
    %880 = vmatprep.subr.mxu0 0.0
    %881 = vmatpush1.msra.mxu0 0.0
    %882 = vmatprep.subr.mxu0 0.0
    %883 = vmatpush1.msra.mxu0 0.0
    %884 = vmatprep.subr.mxu0 0.0
    %885 = vmatpush1.msra.mxu0 0.0
    %886 = vmatprep.subr.mxu0 0.0
    %887 = vmatpush1.msra.mxu0 0.0
    %888 = vmatprep.subr.mxu0 0.0
    %889 = vmatpush1.msra.mxu0 0.0
    %890 = vmatprep.subr.mxu0 0.0
    %891 = vmatpush1.msra.mxu0 0.0
    %892 = vmatprep.subr.mxu0 0.0
    %893 = vmatpush1.msra.mxu0 0.0
    %894 = vmatprep.subr.mxu0 0.0
    %895 = vmatpush1.msra.mxu0 0.0
    %896 = vmatprep.subr.mxu0 0.0
    %897 = vmatpush1.msra.mxu0 0.0
    %898 = vmatprep.subr.mxu0 0.0
    %899 = vmatpush1.msra.mxu0 0.0
    %900 = vmatprep.subr.mxu0 0.0
    %901 = vmatpush1.msra.mxu0 0.0
    %902 = vmatprep.subr.mxu0 0.0
    %903 = vmatpush1.msra.mxu0 0.0
    %904 = vmatprep.subr.mxu0 0.0
    %905 = vmatpush1.msra.mxu0 0.0
    %906 = vmatprep.subr.mxu0 0.0
    %907 = vmatpush1.msra.mxu0 0.0
    %908 = vmatprep.subr.mxu0 0.0
    %909 = vmatpush1.msra.mxu0 0.0
    %910 = vmatprep.subr.mxu0 0.0
    %911 = vmatpush1.msra.mxu0 0.0
    %912 = vmatprep.subr.mxu0 0.0
    %913 = vmatpush1.msra.mxu0 0.0
    %914 = vmatprep.subr.mxu0 0.0
    %915 = vmatpush1.msra.mxu0 0.0
    %916 = vmatprep.subr.mxu0 0.0
    %917 = vmatpush1.msra.mxu0 0.0
    %918 = vmatprep.subr.mxu0 0.0
    %919 = vmatpush1.msra.mxu0 0.0
    %920 = vmatprep.subr.mxu0 0.0
    %921 = vmatpush1.msra.mxu0 0.0
    %922 = vmatprep.subr.mxu0 0.0
    %923 = vmatpush1.msra.mxu0 0.0
    %924 = vmatprep.subr.mxu0 0.0
    %925 = vmatpush1.msra.mxu0 0.0
    %926 = vmatprep.mubr.f32.mxu0 0.0
    %927 = vmatmul.mubr.f32.gmra.mrb[0].mxu0 %v631
    %v928 = vpop.f32.mrb[0].mxu0
    %v929 = vadd.f32 0.0, %v928
    %v930 = vpop.f32.mrb[0].mxu0
    %v931 = vadd.f32 0.0, %v930
    %932 = vdwg.mxu0
    %933 = vmatprep.subr.mxu0 %v610
    %934 = vmatpush1.msra.mxu0 %v609
    %935 = vmatprep.subr.mxu0 %v612
    %936 = vmatpush1.msra.mxu0 %v611
    %937 = vmatprep.subr.mxu0 0.0
    %938 = vmatpush1.msra.mxu0 0.0
    %939 = vmatprep.subr.mxu0 0.0
    %940 = vmatpush1.msra.mxu0 0.0
    %941 = vmatprep.subr.mxu0 0.0
    %942 = vmatpush1.msra.mxu0 0.0
    %943 = vmatprep.subr.mxu0 0.0
    %944 = vmatpush1.msra.mxu0 0.0
    %945 = vmatprep.subr.mxu0 0.0
    %946 = vmatpush1.msra.mxu0 0.0
    %947 = vmatprep.subr.mxu0 0.0
    %948 = vmatpush1.msra.mxu0 0.0
    %949 = vmatprep.subr.mxu0 0.0
    %950 = vmatpush1.msra.mxu0 0.0
    %951 = vmatprep.subr.mxu0 0.0
    %952 = vmatpush1.msra.mxu0 0.0
    %953 = vmatprep.subr.mxu0 0.0
    %954 = vmatpush1.msra.mxu0 0.0
    %955 = vmatprep.subr.mxu0 0.0
    %956 = vmatpush1.msra.mxu0 0.0
    %957 = vmatprep.subr.mxu0 0.0
    %958 = vmatpush1.msra.mxu0 0.0
    %959 = vmatprep.subr.mxu0 0.0
    %960 = vmatpush1.msra.mxu0 0.0
    %961 = vmatprep.subr.mxu0 0.0
    %962 = vmatpush1.msra.mxu0 0.0
    %963 = vmatprep.subr.mxu0 0.0
    %964 = vmatpush1.msra.mxu0 0.0
    %965 = vmatprep.subr.mxu0 0.0
    %966 = vmatpush1.msra.mxu0 0.0
    %967 = vmatprep.subr.mxu0 0.0
    %968 = vmatpush1.msra.mxu0 0.0
    %969 = vmatprep.subr.mxu0 0.0
    %970 = vmatpush1.msra.mxu0 0.0
    %971 = vmatprep.subr.mxu0 0.0
    %972 = vmatpush1.msra.mxu0 0.0
    %973 = vmatprep.subr.mxu0 0.0
    %974 = vmatpush1.msra.mxu0 0.0
    %975 = vmatprep.subr.mxu0 0.0
    %976 = vmatpush1.msra.mxu0 0.0
    %977 = vmatprep.subr.mxu0 0.0
    %978 = vmatpush1.msra.mxu0 0.0
    %979 = vmatprep.subr.mxu0 0.0
    %980 = vmatpush1.msra.mxu0 0.0
    %981 = vmatprep.subr.mxu0 0.0
    %982 = vmatpush1.msra.mxu0 0.0
    %983 = vmatprep.subr.mxu0 0.0
    %984 = vmatpush1.msra.mxu0 0.0
    %985 = vmatprep.subr.mxu0 0.0
    %986 = vmatpush1.msra.mxu0 0.0
    %987 = vmatprep.subr.mxu0 0.0
    %988 = vmatpush1.msra.mxu0 0.0
    %989 = vmatprep.subr.mxu0 0.0
    %990 = vmatpush1.msra.mxu0 0.0
    %991 = vmatprep.subr.mxu0 0.0
    %992 = vmatpush1.msra.mxu0 0.0
    %993 = vmatprep.subr.mxu0 0.0
    %994 = vmatpush1.msra.mxu0 0.0
    %995 = vmatprep.subr.mxu0 0.0
    %996 = vmatpush1.msra.mxu0 0.0
    %997 = vmatprep.mubr.f32.mxu0 0.0
    %998 = vmatmul.mubr.f32.gmra.mrb[0].mxu0 %v705
    %v999 = vpop.f32.mrb[0].mxu0
    %v1000 = vadd.f32 0.0, %v999
    %v1001 = vpop.f32.mrb[0].mxu0
    %v1002 = vadd.f32 0.0, %v1001
    %1003 = vdwg.mxu0
    %1004 = vmatprep.subr.mxu0 %v610
    %1005 = vmatpush1.msra.mxu0 %v609
    %1006 = vmatprep.subr.mxu0 %v612
    %1007 = vmatpush1.msra.mxu0 %v611
    %1008 = vmatprep.subr.mxu0 0.0
    %1009 = vmatpush1.msra.mxu0 0.0
    %1010 = vmatprep.subr.mxu0 0.0
    %1011 = vmatpush1.msra.mxu0 0.0
    %1012 = vmatprep.subr.mxu0 0.0
    %1013 = vmatpush1.msra.mxu0 0.0
    %1014 = vmatprep.subr.mxu0 0.0
    %1015 = vmatpush1.msra.mxu0 0.0
    %1016 = vmatprep.subr.mxu0 0.0
    %1017 = vmatpush1.msra.mxu0 0.0
    %1018 = vmatprep.subr.mxu0 0.0
    %1019 = vmatpush1.msra.mxu0 0.0
    %1020 = vmatprep.subr.mxu0 0.0
    %1021 = vmatpush1.msra.mxu0 0.0
    %1022 = vmatprep.subr.mxu0 0.0
    %1023 = vmatpush1.msra.mxu0 0.0
    %1024 = vmatprep.subr.mxu0 0.0
    %1025 = vmatpush1.msra.mxu0 0.0
    %1026 = vmatprep.subr.mxu0 0.0
    %1027 = vmatpush1.msra.mxu0 0.0
    %1028 = vmatprep.subr.mxu0 0.0
    %1029 = vmatpush1.msra.mxu0 0.0
    %1030 = vmatprep.subr.mxu0 0.0
    %1031 = vmatpush1.msra.mxu0 0.0
    %1032 = vmatprep.subr.mxu0 0.0
    %1033 = vmatpush1.msra.mxu0 0.0
    %1034 = vmatprep.subr.mxu0 0.0
    %1035 = vmatpush1.msra.mxu0 0.0
    %1036 = vmatprep.subr.mxu0 0.0
    %1037 = vmatpush1.msra.mxu0 0.0
    %1038 = vmatprep.subr.mxu0 0.0
    %1039 = vmatpush1.msra.mxu0 0.0
    %1040 = vmatprep.subr.mxu0 0.0
    %1041 = vmatpush1.msra.mxu0 0.0
    %1042 = vmatprep.subr.mxu0 0.0
    %1043 = vmatpush1.msra.mxu0 0.0
    %1044 = vmatprep.subr.mxu0 0.0
    %1045 = vmatpush1.msra.mxu0 0.0
    %1046 = vmatprep.subr.mxu0 0.0
    %1047 = vmatpush1.msra.mxu0 0.0
    %1048 = vmatprep.subr.mxu0 0.0
    %1049 = vmatpush1.msra.mxu0 0.0
    %1050 = vmatprep.subr.mxu0 0.0
    %1051 = vmatpush1.msra.mxu0 0.0
    %1052 = vmatprep.subr.mxu0 0.0
    %1053 = vmatpush1.msra.mxu0 0.0
    %1054 = vmatprep.subr.mxu0 0.0
    %1055 = vmatpush1.msra.mxu0 0.0
    %1056 = vmatprep.subr.mxu0 0.0
    %1057 = vmatpush1.msra.mxu0 0.0
    %1058 = vmatprep.subr.mxu0 0.0
    %1059 = vmatpush1.msra.mxu0 0.0
    %1060 = vmatprep.subr.mxu0 0.0
    %1061 = vmatpush1.msra.mxu0 0.0
    %1062 = vmatprep.subr.mxu0 0.0
    %1063 = vmatpush1.msra.mxu0 0.0
    %1064 = vmatprep.subr.mxu0 0.0
    %1065 = vmatpush1.msra.mxu0 0.0
    %1066 = vmatprep.subr.mxu0 0.0
    %1067 = vmatpush1.msra.mxu0 0.0
    %1068 = vmatprep.mubr.f32.mxu0 0.0
    %1069 = vmatmul.mubr.f32.gmra.mrb[0].mxu0 %v779
    %v1070 = vpop.f32.mrb[0].mxu0
    %v1071 = vadd.f32 0.0, %v1070
    %v1072 = vpop.f32.mrb[0].mxu0
    %v1073 = vadd.f32 0.0, %v1072
    %1074 = vdwg.mxu0
    %1077 = vrot.lane.b32.xlu0 %v1000, 64
    %v1078 = vpop.permute.xlu0 %1077
    %1079 = vrot.lane.b32.xlu0 %v1002, 64
    %v1080 = vpop.permute.xlu0 %1079
    %v1081 = vsel %vm443, %v1078, %v1080
    %v1084 = vsel %vm443, %v931, %v1078
    %v1085 = vld [vmem:[#allocation7] sm:$0xff]
    %v1086 = vld [vmem:[#allocation7 + $0x8] sm:$0xff]
    %v1087 = vld [vmem:[#allocation7 + $0x10] sm:$0xff]
    %v1088 = vld [vmem:[#allocation7 + $0x18] sm:$0xff]
    %v1089 = vld [vmem:[#allocation7 + $0x20] sm:$0xff]
    %v1090 = vld [vmem:[#allocation7 + $0x28] sm:$0xff]
    %v1091 = vld [vmem:[#allocation7 + $0x30] sm:$0xff]
    %v1092 = vld [vmem:[#allocation7 + $0x38] sm:$0xff]
    %v1093 = vld [vmem:[#allocation7 + $0x40] sm:$0xff]
    %v1094 = vld [vmem:[#allocation7 + $0x48] sm:$0xff]
    %v1095 = vld [vmem:[#allocation7 + $0x50] sm:$0xff]
    %v1096 = vld [vmem:[#allocation7 + $0x58] sm:$0xff]
    %v1097 = vld [vmem:[#allocation7 + $0x60] sm:$0xff]
    %v1098 = vld [vmem:[#allocation7 + $0x68] sm:$0xff]
    %v1099 = vld [vmem:[#allocation7 + $0x70] sm:$0xff]
    %v1100 = vld [vmem:[#allocation7 + $0x78] sm:$0xff]
    %v1101 = vld [vmem:[#allocation7 + $0x80] sm:$0xff]
    %v1102 = vld [vmem:[#allocation7 + $0x88] sm:$0xff]
    %v1103 = vld [vmem:[#allocation7 + $0x90] sm:$0xff]
    %v1104 = vld [vmem:[#allocation7 + $0x98] sm:$0xff]
    %v1105 = vld [vmem:[#allocation7 + $0xa0] sm:$0xff]
    %v1106 = vld [vmem:[#allocation7 + $0xa8] sm:$0xff]
    %v1107 = vld [vmem:[#allocation7 + $0xb0] sm:$0xff]
    %v1108 = vld [vmem:[#allocation7 + $0xb8] sm:$0xff]
    %v1109 = vld [vmem:[#allocation7 + $0xc0] sm:$0xff]
    %v1110 = vld [vmem:[#allocation7 + $0xc8] sm:$0xff]
    %v1111 = vld [vmem:[#allocation7 + $0xd0] sm:$0xff]
    %v1112 = vld [vmem:[#allocation7 + $0xd8] sm:$0xff]
    %v1113 = vld [vmem:[#allocation7 + $0xe0] sm:$0xff]
    %v1114 = vld [vmem:[#allocation7 + $0xe8] sm:$0xff]
    %v1115 = vld [vmem:[#allocation7 + $0xf0] sm:$0xff]
    %v1116 = vld [vmem:[#allocation7 + $0xf8] sm:$0xff]
    %v1117 = vld [vmem:[#allocation7 + $0x100] sm:$0xff]
    %v1118 = vld [vmem:[#allocation7 + $0x108] sm:$0xff]
    %v1119 = vld [vmem:[#allocation7 + $0x110] sm:$0xff]
    %v1120 = vld [vmem:[#allocation7 + $0x118] sm:$0xff]
    %v1121 = vld [vmem:[#allocation7 + $0x120] sm:$0xff]
    %v1122 = vld [vmem:[#allocation7 + $0x128] sm:$0xff]
    %v1123 = vld [vmem:[#allocation7 + $0x130] sm:$0xff]
    %v1124 = vld [vmem:[#allocation7 + $0x138] sm:$0xff]
    %v1125 = vld [vmem:[#allocation7 + $0x140] sm:$0xff]
    %v1126 = vld [vmem:[#allocation7 + $0x148] sm:$0xff]
    %v1127 = vld [vmem:[#allocation7 + $0x150] sm:$0xff]
    %v1128 = vld [vmem:[#allocation7 + $0x158] sm:$0xff]
    %v1129 = vld [vmem:[#allocation7 + $0x160] sm:$0xff]
    %v1130 = vld [vmem:[#allocation7 + $0x168] sm:$0xff]
    %v1131 = vld [vmem:[#allocation7 + $0x170] sm:$0xff]
    %v1132 = vld [vmem:[#allocation7 + $0x178] sm:$0xff]
    %v1133 = vld [vmem:[#allocation7 + $0x180] sm:$0xff]
    %v1134 = vld [vmem:[#allocation7 + $0x188] sm:$0xff]
    %v1135 = vld [vmem:[#allocation7 + $0x190] sm:$0xff]
    %v1136 = vld [vmem:[#allocation7 + $0x198] sm:$0xff]
    %v1137 = vld [vmem:[#allocation7 + $0x1a0] sm:$0xff]
    %v1138 = vld [vmem:[#allocation7 + $0x1a8] sm:$0xff]
    %v1139 = vld [vmem:[#allocation7 + $0x1b0] sm:$0xff]
    %v1140 = vld [vmem:[#allocation7 + $0x1b8] sm:$0xff]
    %v1141 = vld [vmem:[#allocation7 + $0x1c0] sm:$0xff]
    %v1142 = vld [vmem:[#allocation7 + $0x1c8] sm:$0xff]
    %v1143 = vld [vmem:[#allocation7 + $0x1d0] sm:$0xff]
    %v1144 = vld [vmem:[#allocation7 + $0x1d8] sm:$0xff]
    %v1145 = vld [vmem:[#allocation7 + $0x1e0] sm:$0xff]
    %v1146 = vld [vmem:[#allocation7 + $0x1e8] sm:$0xff]
    %v1147 = vld [vmem:[#allocation7 + $0x1f0] sm:$0xff]
    %v1148 = vld [vmem:[#allocation7 + $0x1f8] sm:$0xff]
    %v1149 = vld [vmem:[#allocation7 + $0x200] sm:$0xff]
    %v1150 = vld [vmem:[#allocation7 + $0x208] sm:$0xff]
    %v1151 = vld [vmem:[#allocation7 + $0x210] sm:$0xff]
    %v1152 = vld [vmem:[#allocation7 + $0x218] sm:$0xff]
    %v1153 = vld [vmem:[#allocation7 + $0x220] sm:$0xff]
    %v1154 = vld [vmem:[#allocation7 + $0x228] sm:$0xff]
    %v1155 = vld [vmem:[#allocation7 + $0x230] sm:$0xff]
    %v1156 = vld [vmem:[#allocation7 + $0x238] sm:$0xff]
    %v1157 = vld [vmem:[#allocation7 + $0x240] sm:$0xff]
    %v1158 = vld [vmem:[#allocation7 + $0x248] sm:$0xff]
    %v1159 = vld [vmem:[#allocation7 + $0x250] sm:$0xff]
    %v1160 = vld [vmem:[#allocation7 + $0x258] sm:$0xff]
    %v1161 = vld [vmem:[#allocation7 + $0x260] sm:$0xff]
    %v1162 = vld [vmem:[#allocation7 + $0x268] sm:$0xff]
    %v1163 = vld [vmem:[#allocation7 + $0x270] sm:$0xff]
    %v1164 = vld [vmem:[#allocation7 + $0x278] sm:$0xff]
    %v1165 = vld [vmem:[#allocation7 + $0x280] sm:$0xff]
    %v1166 = vld [vmem:[#allocation7 + $0x288] sm:$0xff]
    %v1167 = vld [vmem:[#allocation7 + $0x290] sm:$0xff]
    %v1168 = vld [vmem:[#allocation7 + $0x298] sm:$0xff]
    %v1169 = vld [vmem:[#allocation7 + $0x2a0] sm:$0xff]
    %v1170 = vld [vmem:[#allocation7 + $0x2a8] sm:$0xff]
    %v1171 = vld [vmem:[#allocation7 + $0x2b0] sm:$0xff]
    %v1172 = vld [vmem:[#allocation7 + $0x2b8] sm:$0xff]
    %v1173 = vld [vmem:[#allocation7 + $0x2c0] sm:$0xff]
    %v1174 = vld [vmem:[#allocation7 + $0x2c8] sm:$0xff]
    %v1175 = vld [vmem:[#allocation7 + $0x2d0] sm:$0xff]
    %v1176 = vld [vmem:[#allocation7 + $0x2d8] sm:$0xff]
    %v1177 = vld [vmem:[#allocation7 + $0x2e0] sm:$0xff]
    %v1178 = vld [vmem:[#allocation7 + $0x2e8] sm:$0xff]
    %v1179 = vld [vmem:[#allocation7 + $0x2f0] sm:$0xff]
    %v1180 = vld [vmem:[#allocation7 + $0x2f8] sm:$0xff]
    %v1181 = vld [vmem:[#allocation7 + $0x300] sm:$0xff]
    %v1182 = vld [vmem:[#allocation7 + $0x308] sm:$0xff]
    %v1183 = vld [vmem:[#allocation7 + $0x310] sm:$0xff]
    %v1184 = vld [vmem:[#allocation7 + $0x318] sm:$0xff]
    %v1185 = vld [vmem:[#allocation7 + $0x320] sm:$0xff]
    %v1186 = vld [vmem:[#allocation7 + $0x328] sm:$0xff]
    %v1187 = vld [vmem:[#allocation7 + $0x330] sm:$0xff]
    %v1188 = vld [vmem:[#allocation7 + $0x338] sm:$0xff]
    %v1189 = vld [vmem:[#allocation7 + $0x340] sm:$0xff]
    %v1190 = vld [vmem:[#allocation7 + $0x348] sm:$0xff]
    %v1191 = vld [vmem:[#allocation7 + $0x350] sm:$0xff]
    %v1192 = vld [vmem:[#allocation7 + $0x358] sm:$0xff]
    %v1193 = vld [vmem:[#allocation7 + $0x360] sm:$0xff]
    %v1194 = vld [vmem:[#allocation7 + $0x368] sm:$0xff]
    %v1195 = vld [vmem:[#allocation7 + $0x370] sm:$0xff]
    %v1196 = vld [vmem:[#allocation7 + $0x378] sm:$0xff]
    %v1197 = vld [vmem:[#allocation7 + $0x380] sm:$0xff]
    %v1198 = vld [vmem:[#allocation7 + $0x388] sm:$0xff]
    %v1199 = vld [vmem:[#allocation7 + $0x390] sm:$0xff]
    %v1200 = vld [vmem:[#allocation7 + $0x398] sm:$0xff]
    %v1201 = vld [vmem:[#allocation7 + $0x3a0] sm:$0xff]
    %v1202 = vld [vmem:[#allocation7 + $0x3a8] sm:$0xff]
    %v1203 = vld [vmem:[#allocation7 + $0x3b0] sm:$0xff]
    %v1204 = vld [vmem:[#allocation7 + $0x3b8] sm:$0xff]
    %v1205 = vld [vmem:[#allocation7 + $0x3c0] sm:$0xff]
    %v1206 = vld [vmem:[#allocation7 + $0x3c8] sm:$0xff]
    %v1207 = vld [vmem:[#allocation7 + $0x3d0] sm:$0xff]
    %v1208 = vld [vmem:[#allocation7 + $0x3d8] sm:$0xff]
    %v1209 = vld [vmem:[#allocation7 + $0x3e0] sm:$0xff]
    %v1210 = vld [vmem:[#allocation7 + $0x3e8] sm:$0xff]
    %v1211 = vld [vmem:[#allocation7 + $0x3f0] sm:$0xff]
    %v1212 = vld [vmem:[#allocation7 + $0x3f8] sm:$0xff]
    %v1213 = vld [vmem:[#allocation7 + $0x400] sm:$0xff]
    %v1214 = vld [vmem:[#allocation7 + $0x408] sm:$0xff]
    %v1215 = vld [vmem:[#allocation7 + $0x410] sm:$0xff]
    %v1216 = vld [vmem:[#allocation7 + $0x418] sm:$0xff]
    %v1217 = vld [vmem:[#allocation7 + $0x420] sm:$0xff]
    %v1218 = vld [vmem:[#allocation7 + $0x428] sm:$0xff]
    %v1219 = vld [vmem:[#allocation7 + $0x430] sm:$0xff]
    %v1220 = vld [vmem:[#allocation7 + $0x438] sm:$0xff]
    %v1221 = vld [vmem:[#allocation7 + $0x440] sm:$0xff]
    %v1222 = vld [vmem:[#allocation7 + $0x448] sm:$0xff]
    %v1223 = vld [vmem:[#allocation7 + $0x450] sm:$0xff]
    %v1224 = vld [vmem:[#allocation7 + $0x458] sm:$0xff]
    %v1225 = vld [vmem:[#allocation7 + $0x460] sm:$0xff]
    %v1226 = vld [vmem:[#allocation7 + $0x468] sm:$0xff]
    %v1227 = vld [vmem:[#allocation7 + $0x470] sm:$0xff]
    %v1228 = vld [vmem:[#allocation7 + $0x478] sm:$0xff]
    %v1229 = vld [vmem:[#allocation7 + $0x480] sm:$0xff]
    %v1230 = vld [vmem:[#allocation7 + $0x488] sm:$0xff]
    %v1231 = vld [vmem:[#allocation7 + $0x490] sm:$0xff]
    %v1232 = vld [vmem:[#allocation7 + $0x498] sm:$0xff]
    %v1233 = vld [vmem:[#allocation7 + $0x4a0] sm:$0xff]
    %v1234 = vld [vmem:[#allocation7 + $0x4a8] sm:$0xff]
    %v1235 = vld [vmem:[#allocation7 + $0x4b0] sm:$0xff]
    %v1236 = vld [vmem:[#allocation7 + $0x4b8] sm:$0xff]
    %v1237 = vld [vmem:[#allocation7 + $0x4c0] sm:$0xff]
    %v1238 = vld [vmem:[#allocation7 + $0x4c8] sm:$0xff]
    %v1239 = vld [vmem:[#allocation7 + $0x4d0] sm:$0xff]
    %v1240 = vld [vmem:[#allocation7 + $0x4d8] sm:$0xff]
    %v1241 = vld [vmem:[#allocation7 + $0x4e0] sm:$0xff]
    %v1242 = vld [vmem:[#allocation7 + $0x4e8] sm:$0xff]
    %v1243 = vld [vmem:[#allocation7 + $0x4f0] sm:$0xff]
    %v1244 = vld [vmem:[#allocation7 + $0x4f8] sm:$0xff]
    %v1245 = vld [vmem:[#allocation7 + $0x500] sm:$0xff]
    %v1246 = vld [vmem:[#allocation7 + $0x508] sm:$0xff]
    %v1247 = vld [vmem:[#allocation7 + $0x510] sm:$0xff]
    %v1248 = vld [vmem:[#allocation7 + $0x518] sm:$0xff]
    %v1249 = vld [vmem:[#allocation7 + $0x520] sm:$0xff]
    %v1250 = vld [vmem:[#allocation7 + $0x528] sm:$0xff]
    %v1251 = vld [vmem:[#allocation7 + $0x530] sm:$0xff]
    %v1252 = vld [vmem:[#allocation7 + $0x538] sm:$0xff]
    %v1253 = vld [vmem:[#allocation7 + $0x540] sm:$0xff]
    %v1254 = vld [vmem:[#allocation7 + $0x548] sm:$0xff]
    %v1255 = vld [vmem:[#allocation7 + $0x550] sm:$0xff]
    %v1256 = vld [vmem:[#allocation7 + $0x558] sm:$0xff]
    %v1257 = vld [vmem:[#allocation7 + $0x560] sm:$0xff]
    %v1258 = vld [vmem:[#allocation7 + $0x568] sm:$0xff]
    %v1259 = vld [vmem:[#allocation7 + $0x570] sm:$0xff]
    %v1260 = vld [vmem:[#allocation7 + $0x578] sm:$0xff]
    %v1261 = vld [vmem:[#allocation7 + $0x580] sm:$0xff]
    %v1262 = vld [vmem:[#allocation7 + $0x588] sm:$0xff]
    %v1263 = vld [vmem:[#allocation7 + $0x590] sm:$0xff]
    %v1264 = vld [vmem:[#allocation7 + $0x598] sm:$0xff]
    %v1265 = vld [vmem:[#allocation7 + $0x5a0] sm:$0xff]
    %v1266 = vld [vmem:[#allocation7 + $0x5a8] sm:$0xff]
    %v1267 = vld [vmem:[#allocation7 + $0x5b0] sm:$0xff]
    %v1268 = vld [vmem:[#allocation7 + $0x5b8] sm:$0xff]
    %v1269 = vld [vmem:[#allocation7 + $0x5c0] sm:$0xff]
    %v1270 = vld [vmem:[#allocation7 + $0x5c8] sm:$0xff]
    %v1271 = vld [vmem:[#allocation7 + $0x5d0] sm:$0xff]
    %v1272 = vld [vmem:[#allocation7 + $0x5d8] sm:$0xff]
    %v1273 = vld [vmem:[#allocation7 + $0x5e0] sm:$0xff]
    %v1274 = vld [vmem:[#allocation7 + $0x5e8] sm:$0xff]
    %v1275 = vld [vmem:[#allocation7 + $0x5f0] sm:$0xff]
    %v1276 = vld [vmem:[#allocation7 + $0x5f8] sm:$0xff]
    %v1277 = vld [vmem:[#allocation7 + $0x600] sm:$0xff]
    %v1278 = vld [vmem:[#allocation7 + $0x608] sm:$0xff]
    %v1279 = vld [vmem:[#allocation7 + $0x610] sm:$0xff]
    %v1280 = vld [vmem:[#allocation7 + $0x618] sm:$0xff]
    %v1281 = vld [vmem:[#allocation7 + $0x620] sm:$0xff]
    %v1282 = vld [vmem:[#allocation7 + $0x628] sm:$0xff]
    %v1283 = vld [vmem:[#allocation7 + $0x630] sm:$0xff]
    %v1284 = vld [vmem:[#allocation7 + $0x638] sm:$0xff]
    %v1285 = vld [vmem:[#allocation7 + $0x640] sm:$0xff]
    %v1286 = vld [vmem:[#allocation7 + $0x648] sm:$0xff]
    %v1287 = vld [vmem:[#allocation7 + $0x650] sm:$0xff]
    %v1288 = vld [vmem:[#allocation7 + $0x658] sm:$0xff]
    %v1289 = vld [vmem:[#allocation7 + $0x660] sm:$0xff]
    %v1290 = vld [vmem:[#allocation7 + $0x668] sm:$0xff]
    %v1291 = vld [vmem:[#allocation7 + $0x670] sm:$0xff]
    %v1292 = vld [vmem:[#allocation7 + $0x678] sm:$0xff]
    %v1293 = vld [vmem:[#allocation7 + $0x680] sm:$0xff]
    %v1294 = vld [vmem:[#allocation7 + $0x688] sm:$0xff]
    %v1295 = vld [vmem:[#allocation7 + $0x690] sm:$0xff]
    %v1296 = vld [vmem:[#allocation7 + $0x698] sm:$0xff]
    %v1297 = vld [vmem:[#allocation7 + $0x6a0] sm:$0xff]
    %v1298 = vld [vmem:[#allocation7 + $0x6a8] sm:$0xff]
    %v1299 = vld [vmem:[#allocation7 + $0x6b0] sm:$0xff]
    %v1300 = vld [vmem:[#allocation7 + $0x6b8] sm:$0xff]
    %v1302 = vsel %vm443, %v850, 0
    %1304 = vmatprep.subr.mxu0 %v1086
    %1305 = vmatpush1.msra.mxu0 %v1085
    %1306 = vmatprep.subr.mxu0 %v1089
    %1307 = vmatpush1.msra.mxu0 %v1088
    %1308 = vmatprep.subr.mxu0 %v1092
    %1309 = vmatpush1.msra.mxu0 %v1091
    %1310 = vmatprep.subr.mxu0 %v1095
    %1311 = vmatpush1.msra.mxu0 %v1094
    %1312 = vmatprep.subr.mxu0 %v1098
    %1313 = vmatpush1.msra.mxu0 %v1097
    %1314 = vmatprep.subr.mxu0 %v1101
    %1315 = vmatpush1.msra.mxu0 %v1100
    %1316 = vmatprep.subr.mxu0 %v1104
    %1317 = vmatpush1.msra.mxu0 %v1103
    %1318 = vmatprep.subr.mxu0 %v1107
    %1319 = vmatpush1.msra.mxu0 %v1106
    %1320 = vmatprep.subr.mxu0 %v1110
    %1321 = vmatpush1.msra.mxu0 %v1109
    %1322 = vmatprep.subr.mxu0 %v1113
    %1323 = vmatpush1.msra.mxu0 %v1112
    %1324 = vmatprep.subr.mxu0 %v1116
    %1325 = vmatpush1.msra.mxu0 %v1115
    %1326 = vmatprep.subr.mxu0 %v1119
    %1327 = vmatpush1.msra.mxu0 %v1118
    %1328 = vmatprep.subr.mxu0 %v1122
    %1329 = vmatpush1.msra.mxu0 %v1121
    %1330 = vmatprep.subr.mxu0 %v1125
    %1331 = vmatpush1.msra.mxu0 %v1124
    %1332 = vmatprep.subr.mxu0 %v1128
    %1333 = vmatpush1.msra.mxu0 %v1127
    %1334 = vmatprep.subr.mxu0 %v1131
    %1335 = vmatpush1.msra.mxu0 %v1130
    %1336 = vmatprep.subr.mxu0 %v1134
    %1337 = vmatpush1.msra.mxu0 %v1133
    %1338 = vmatprep.subr.mxu0 %v1137
    %1339 = vmatpush1.msra.mxu0 %v1136
    %1340 = vmatprep.subr.mxu0 %v1140
    %1341 = vmatpush1.msra.mxu0 %v1139
    %1342 = vmatprep.subr.mxu0 %v1143
    %1343 = vmatpush1.msra.mxu0 %v1142
    %1344 = vmatprep.subr.mxu0 %v1146
    %1345 = vmatpush1.msra.mxu0 %v1145
    %1346 = vmatprep.subr.mxu0 %v1149
    %1347 = vmatpush1.msra.mxu0 %v1148
    %1348 = vmatprep.subr.mxu0 %v1152
    %1349 = vmatpush1.msra.mxu0 %v1151
    %1350 = vmatprep.subr.mxu0 %v1155
    %1351 = vmatpush1.msra.mxu0 %v1154
    %1352 = vmatprep.subr.mxu0 %v1158
    %1353 = vmatpush1.msra.mxu0 %v1157
    %1354 = vmatprep.subr.mxu0 %v1161
    %1355 = vmatpush1.msra.mxu0 %v1160
    %1356 = vmatprep.subr.mxu0 %v1164
    %1357 = vmatpush1.msra.mxu0 %v1163
    %1358 = vmatprep.subr.mxu0 %v1167
    %1359 = vmatpush1.msra.mxu0 %v1166
    %1360 = vmatprep.subr.mxu0 %v1170
    %1361 = vmatpush1.msra.mxu0 %v1169
    %1362 = vmatprep.subr.mxu0 %v1173
    %1363 = vmatpush1.msra.mxu0 %v1172
    %1364 = vmatprep.subr.mxu0 %v1176
    %1365 = vmatpush1.msra.mxu0 %v1175
    %1366 = vmatprep.subr.mxu0 %v1179
    %1367 = vmatpush1.msra.mxu0 %v1178
    %1368 = vmatprep.mubr.f32.mxu0 %v861
    %1369 = vmatmul.mubr.f32.gmra.mrb[0].mxu0 %v700
    %v1370 = vpop.f32.mrb[0].mxu0
    %v1371 = vadd.f32 0.0, %v1370
    %v1372 = vpop.f32.mrb[0].mxu0
    %v1373 = vadd.f32 0.0, %v1372
    %1374 = vdwg.mxu0
    %1375 = vmatprep.subr.mxu0 %v1182
    %1376 = vmatpush1.msra.mxu0 %v1181
    %1377 = vmatprep.subr.mxu0 %v1185
    %1378 = vmatpush1.msra.mxu0 %v1184
    %1379 = vmatprep.subr.mxu0 %v1188
    %1380 = vmatpush1.msra.mxu0 %v1187
    %1381 = vmatprep.subr.mxu0 %v1191
    %1382 = vmatpush1.msra.mxu0 %v1190
    %1383 = vmatprep.subr.mxu0 %v1194
    %1384 = vmatpush1.msra.mxu0 %v1193
    %1385 = vmatprep.subr.mxu0 %v1197
    %1386 = vmatpush1.msra.mxu0 %v1196
    %1387 = vmatprep.subr.mxu0 %v1200
    %1388 = vmatpush1.msra.mxu0 %v1199
    %1389 = vmatprep.subr.mxu0 %v1203
    %1390 = vmatpush1.msra.mxu0 %v1202
    %1391 = vmatprep.subr.mxu0 %v1206
    %1392 = vmatpush1.msra.mxu0 %v1205
    %1393 = vmatprep.subr.mxu0 %v1209
    %1394 = vmatpush1.msra.mxu0 %v1208
    %1395 = vmatprep.subr.mxu0 %v1212
    %1396 = vmatpush1.msra.mxu0 %v1211
    %1397 = vmatprep.subr.mxu0 %v1215
    %1398 = vmatpush1.msra.mxu0 %v1214
    %1399 = vmatprep.subr.mxu0 %v1218
    %1400 = vmatpush1.msra.mxu0 %v1217
    %1401 = vmatprep.subr.mxu0 %v1221
    %1402 = vmatpush1.msra.mxu0 %v1220
    %1403 = vmatprep.subr.mxu0 %v1224
    %1404 = vmatpush1.msra.mxu0 %v1223
    %1405 = vmatprep.subr.mxu0 %v1227
    %1406 = vmatpush1.msra.mxu0 %v1226
    %1407 = vmatprep.subr.mxu0 %v1230
    %1408 = vmatpush1.msra.mxu0 %v1229
    %1409 = vmatprep.subr.mxu0 %v1233
    %1410 = vmatpush1.msra.mxu0 %v1232
    %1411 = vmatprep.subr.mxu0 %v1236
    %1412 = vmatpush1.msra.mxu0 %v1235
    %1413 = vmatprep.subr.mxu0 %v1239
    %1414 = vmatpush1.msra.mxu0 %v1238
    %1415 = vmatprep.subr.mxu0 %v1242
    %1416 = vmatpush1.msra.mxu0 %v1241
    %1417 = vmatprep.subr.mxu0 %v1245
    %1418 = vmatpush1.msra.mxu0 %v1244
    %1419 = vmatprep.subr.mxu0 %v1248
    %1420 = vmatpush1.msra.mxu0 %v1247
    %1421 = vmatprep.subr.mxu0 %v1251
    %1422 = vmatpush1.msra.mxu0 %v1250
    %1423 = vmatprep.subr.mxu0 %v1254
    %1424 = vmatpush1.msra.mxu0 %v1253
    %1425 = vmatprep.subr.mxu0 %v1257
    %1426 = vmatpush1.msra.mxu0 %v1256
    %1427 = vmatprep.subr.mxu0 %v1260
    %1428 = vmatpush1.msra.mxu0 %v1259
    %1429 = vmatprep.subr.mxu0 %v1263
    %1430 = vmatpush1.msra.mxu0 %v1262
    %1431 = vmatprep.subr.mxu0 %v1266
    %1432 = vmatpush1.msra.mxu0 %v1265
    %1433 = vmatprep.subr.mxu0 %v1269
    %1434 = vmatpush1.msra.mxu0 %v1268
    %1435 = vmatprep.subr.mxu0 %v1272
    %1436 = vmatpush1.msra.mxu0 %v1271
    %1437 = vmatprep.subr.mxu0 %v1275
    %1438 = vmatpush1.msra.mxu0 %v1274
    %1439 = vmatprep.mubr.f32.mxu0 %v848
    %1440 = vmatmul.mubr.f32.gmra.mrb[0].mxu0 %v858
    %v1441 = vpop.f32.mrb[0].mxu0
    %v1442 = vadd.f32 %v1371, %v1441
    %v1443 = vpop.f32.mrb[0].mxu0
    %v1444 = vadd.f32 %v1373, %v1443
    %1445 = vdwg.mxu0
    %1446 = vmatprep.subr.mxu0 %v1278
    %1447 = vmatpush1.msra.mxu0 %v1277
    %1448 = vmatprep.subr.mxu0 %v1281
    %1449 = vmatpush1.msra.mxu0 %v1280
    %1450 = vmatprep.subr.mxu0 %v1284
    %1451 = vmatpush1.msra.mxu0 %v1283
    %1452 = vmatprep.subr.mxu0 %v1287
    %1453 = vmatpush1.msra.mxu0 %v1286
    %1454 = vmatprep.subr.mxu0 %v1290
    %1455 = vmatpush1.msra.mxu0 %v1289
    %1456 = vmatprep.subr.mxu0 %v1293
    %1457 = vmatpush1.msra.mxu0 %v1292
    %1458 = vmatprep.subr.mxu0 %v1296
    %1459 = vmatpush1.msra.mxu0 %v1295
    %1460 = vmatprep.subr.mxu0 %v1299
    %1461 = vmatpush1.msra.mxu0 %v1298
    %1462 = vmatprep.subr.mxu0 0.0
    %1463 = vmatpush1.msra.mxu0 0.0
    %1464 = vmatprep.subr.mxu0 0.0
    %1465 = vmatpush1.msra.mxu0 0.0
    %1466 = vmatprep.subr.mxu0 0.0
    %1467 = vmatpush1.msra.mxu0 0.0
    %1468 = vmatprep.subr.mxu0 0.0
    %1469 = vmatpush1.msra.mxu0 0.0
    %1470 = vmatprep.subr.mxu0 0.0
    %1471 = vmatpush1.msra.mxu0 0.0
    %1472 = vmatprep.subr.mxu0 0.0
    %1473 = vmatpush1.msra.mxu0 0.0
    %1474 = vmatprep.subr.mxu0 0.0
    %1475 = vmatpush1.msra.mxu0 0.0
    %1476 = vmatprep.subr.mxu0 0.0
    %1477 = vmatpush1.msra.mxu0 0.0
    %1478 = vmatprep.subr.mxu0 0.0
    %1479 = vmatpush1.msra.mxu0 0.0
    %1480 = vmatprep.subr.mxu0 0.0
    %1481 = vmatpush1.msra.mxu0 0.0
    %1482 = vmatprep.subr.mxu0 0.0
    %1483 = vmatpush1.msra.mxu0 0.0
    %1484 = vmatprep.subr.mxu0 0.0
    %1485 = vmatpush1.msra.mxu0 0.0
    %1486 = vmatprep.subr.mxu0 0.0
    %1487 = vmatpush1.msra.mxu0 0.0
    %1488 = vmatprep.subr.mxu0 0.0
    %1489 = vmatpush1.msra.mxu0 0.0
    %1490 = vmatprep.subr.mxu0 0.0
    %1491 = vmatpush1.msra.mxu0 0.0
    %1492 = vmatprep.subr.mxu0 0.0
    %1493 = vmatpush1.msra.mxu0 0.0
    %1494 = vmatprep.subr.mxu0 0.0
    %1495 = vmatpush1.msra.mxu0 0.0
    %1496 = vmatprep.subr.mxu0 0.0
    %1497 = vmatpush1.msra.mxu0 0.0
    %1498 = vmatprep.subr.mxu0 0.0
    %1499 = vmatpush1.msra.mxu0 0.0
    %1500 = vmatprep.subr.mxu0 0.0
    %1501 = vmatpush1.msra.mxu0 0.0
    %1502 = vmatprep.subr.mxu0 0.0
    %1503 = vmatpush1.msra.mxu0 0.0
    %1504 = vmatprep.subr.mxu0 0.0
    %1505 = vmatpush1.msra.mxu0 0.0
    %1506 = vmatprep.subr.mxu0 0.0
    %1507 = vmatpush1.msra.mxu0 0.0
    %1508 = vmatprep.subr.mxu0 0.0
    %1509 = vmatpush1.msra.mxu0 0.0
    %1510 = vmatprep.mubr.f32.mxu0 0.0
    %1511 = vmatmul.mubr.f32.gmra.mrb[0].mxu0 %v1302
    %v1512 = vpop.f32.mrb[0].mxu0
    %v1513 = vadd.f32 %v1442, %v1512
    %v1514 = vpop.f32.mrb[0].mxu0
    %v1515 = vadd.f32 %v1444, %v1514
    %1516 = vdwg.mxu0
    %1517 = vmatprep.subr.mxu0 0.0
    %1518 = vmatpush1.msra.mxu0 %v1087
    %1519 = vmatprep.subr.mxu0 0.0
    %1520 = vmatpush1.msra.mxu0 %v1090
    %1521 = vmatprep.subr.mxu0 0.0
    %1522 = vmatpush1.msra.mxu0 %v1093
    %1523 = vmatprep.subr.mxu0 0.0
    %1524 = vmatpush1.msra.mxu0 %v1096
    %1525 = vmatprep.subr.mxu0 0.0
    %1526 = vmatpush1.msra.mxu0 %v1099
    %1527 = vmatprep.subr.mxu0 0.0
    %1528 = vmatpush1.msra.mxu0 %v1102
    %1529 = vmatprep.subr.mxu0 0.0
    %1530 = vmatpush1.msra.mxu0 %v1105
    %1531 = vmatprep.subr.mxu0 0.0
    %1532 = vmatpush1.msra.mxu0 %v1108
    %1533 = vmatprep.subr.mxu0 0.0
    %1534 = vmatpush1.msra.mxu0 %v1111
    %1535 = vmatprep.subr.mxu0 0.0
    %1536 = vmatpush1.msra.mxu0 %v1114
    %1537 = vmatprep.subr.mxu0 0.0
    %1538 = vmatpush1.msra.mxu0 %v1117
    %1539 = vmatprep.subr.mxu0 0.0
    %1540 = vmatpush1.msra.mxu0 %v1120
    %1541 = vmatprep.subr.mxu0 0.0
    %1542 = vmatpush1.msra.mxu0 %v1123
    %1543 = vmatprep.subr.mxu0 0.0
    %1544 = vmatpush1.msra.mxu0 %v1126
    %1545 = vmatprep.subr.mxu0 0.0
    %1546 = vmatpush1.msra.mxu0 %v1129
    %1547 = vmatprep.subr.mxu0 0.0
    %1548 = vmatpush1.msra.mxu0 %v1132
    %1549 = vmatprep.subr.mxu0 0.0
    %1550 = vmatpush1.msra.mxu0 %v1135
    %1551 = vmatprep.subr.mxu0 0.0
    %1552 = vmatpush1.msra.mxu0 %v1138
    %1553 = vmatprep.subr.mxu0 0.0
    %1554 = vmatpush1.msra.mxu0 %v1141
    %1555 = vmatprep.subr.mxu0 0.0
    %1556 = vmatpush1.msra.mxu0 %v1144
    %1557 = vmatprep.subr.mxu0 0.0
    %1558 = vmatpush1.msra.mxu0 %v1147
    %1559 = vmatprep.subr.mxu0 0.0
    %1560 = vmatpush1.msra.mxu0 %v1150
    %1561 = vmatprep.subr.mxu0 0.0
    %1562 = vmatpush1.msra.mxu0 %v1153
    %1563 = vmatprep.subr.mxu0 0.0
    %1564 = vmatpush1.msra.mxu0 %v1156
    %1565 = vmatprep.subr.mxu0 0.0
    %1566 = vmatpush1.msra.mxu0 %v1159
    %1567 = vmatprep.subr.mxu0 0.0
    %1568 = vmatpush1.msra.mxu0 %v1162
    %1569 = vmatprep.subr.mxu0 0.0
    %1570 = vmatpush1.msra.mxu0 %v1165
    %1571 = vmatprep.subr.mxu0 0.0
    %1572 = vmatpush1.msra.mxu0 %v1168
    %1573 = vmatprep.subr.mxu0 0.0
    %1574 = vmatpush1.msra.mxu0 %v1171
    %1575 = vmatprep.subr.mxu0 0.0
    %1576 = vmatpush1.msra.mxu0 %v1174
    %1577 = vmatprep.subr.mxu0 0.0
    %1578 = vmatpush1.msra.mxu0 %v1177
    %1579 = vmatprep.subr.mxu0 0.0
    %1580 = vmatpush1.msra.mxu0 %v1180
    %1581 = vmatprep.mubr.f32.mxu0 %v861
    %1582 = vmatmul.mubr.f32.gmra.mrb[0].mxu0 %v700
    %v1583 = vpop.f32.mrb[0].mxu0
    %v1584 = vadd.f32 0.0, %v1583
    %v1585 = vpop.f32.mrb[0].mxu0
    %1586 = vdwg.mxu0
    %1587 = vmatprep.subr.mxu0 0.0
    %1588 = vmatpush1.msra.mxu0 %v1183
    %1589 = vmatprep.subr.mxu0 0.0
    %1590 = vmatpush1.msra.mxu0 %v1186
    %1591 = vmatprep.subr.mxu0 0.0
    %1592 = vmatpush1.msra.mxu0 %v1189
    %1593 = vmatprep.subr.mxu0 0.0
    %1594 = vmatpush1.msra.mxu0 %v1192
    %1595 = vmatprep.subr.mxu0 0.0
    %1596 = vmatpush1.msra.mxu0 %v1195
    %1597 = vmatprep.subr.mxu0 0.0
    %1598 = vmatpush1.msra.mxu0 %v1198
    %1599 = vmatprep.subr.mxu0 0.0
    %1600 = vmatpush1.msra.mxu0 %v1201
    %1601 = vmatprep.subr.mxu0 0.0
    %1602 = vmatpush1.msra.mxu0 %v1204
    %1603 = vmatprep.subr.mxu0 0.0
    %1604 = vmatpush1.msra.mxu0 %v1207
    %1605 = vmatprep.subr.mxu0 0.0
    %1606 = vmatpush1.msra.mxu0 %v1210
    %1607 = vmatprep.subr.mxu0 0.0
    %1608 = vmatpush1.msra.mxu0 %v1213
    %1609 = vmatprep.subr.mxu0 0.0
    %1610 = vmatpush1.msra.mxu0 %v1216
    %1611 = vmatprep.subr.mxu0 0.0
    %1612 = vmatpush1.msra.mxu0 %v1219
    %1613 = vmatprep.subr.mxu0 0.0
    %1614 = vmatpush1.msra.mxu0 %v1222
    %1615 = vmatprep.subr.mxu0 0.0
    %1616 = vmatpush1.msra.mxu0 %v1225
    %1617 = vmatprep.subr.mxu0 0.0
    %1618 = vmatpush1.msra.mxu0 %v1228
    %1619 = vmatprep.subr.mxu0 0.0
    %1620 = vmatpush1.msra.mxu0 %v1231
    %1621 = vmatprep.subr.mxu0 0.0
    %1622 = vmatpush1.msra.mxu0 %v1234
    %1623 = vmatprep.subr.mxu0 0.0
    %1624 = vmatpush1.msra.mxu0 %v1237
    %1625 = vmatprep.subr.mxu0 0.0
    %1626 = vmatpush1.msra.mxu0 %v1240
    %1627 = vmatprep.subr.mxu0 0.0
    %1628 = vmatpush1.msra.mxu0 %v1243
    %1629 = vmatprep.subr.mxu0 0.0
    %1630 = vmatpush1.msra.mxu0 %v1246
    %1631 = vmatprep.subr.mxu0 0.0
    %1632 = vmatpush1.msra.mxu0 %v1249
    %1633 = vmatprep.subr.mxu0 0.0
    %1634 = vmatpush1.msra.mxu0 %v1252
    %1635 = vmatprep.subr.mxu0 0.0
    %1636 = vmatpush1.msra.mxu0 %v1255
    %1637 = vmatprep.subr.mxu0 0.0
    %1638 = vmatpush1.msra.mxu0 %v1258
    %1639 = vmatprep.subr.mxu0 0.0
    %1640 = vmatpush1.msra.mxu0 %v1261
    %1641 = vmatprep.subr.mxu0 0.0
    %1642 = vmatpush1.msra.mxu0 %v1264
    %1643 = vmatprep.subr.mxu0 0.0
    %1644 = vmatpush1.msra.mxu0 %v1267
    %1645 = vmatprep.subr.mxu0 0.0
    %1646 = vmatpush1.msra.mxu0 %v1270
    %1647 = vmatprep.subr.mxu0 0.0
    %1648 = vmatpush1.msra.mxu0 %v1273
    %1649 = vmatprep.subr.mxu0 0.0
    %1650 = vmatpush1.msra.mxu0 %v1276
    %1651 = vmatprep.mubr.f32.mxu0 %v848
    %1652 = vmatmul.mubr.f32.gmra.mrb[0].mxu0 %v858
    %v1653 = vpop.f32.mrb[0].mxu0
    %v1654 = vadd.f32 %v1584, %v1653
    %v1655 = vpop.f32.mrb[0].mxu0
    %1656 = vdwg.mxu0
    %1657 = vmatprep.subr.mxu0 0.0
    %1658 = vmatpush1.msra.mxu0 %v1279
    %1659 = vmatprep.subr.mxu0 0.0
    %1660 = vmatpush1.msra.mxu0 %v1282
    %1661 = vmatprep.subr.mxu0 0.0
    %1662 = vmatpush1.msra.mxu0 %v1285
    %1663 = vmatprep.subr.mxu0 0.0
    %1664 = vmatpush1.msra.mxu0 %v1288
    %1665 = vmatprep.subr.mxu0 0.0
    %1666 = vmatpush1.msra.mxu0 %v1291
    %1667 = vmatprep.subr.mxu0 0.0
    %1668 = vmatpush1.msra.mxu0 %v1294
    %1669 = vmatprep.subr.mxu0 0.0
    %1670 = vmatpush1.msra.mxu0 %v1297
    %1671 = vmatprep.subr.mxu0 0.0
    %1672 = vmatpush1.msra.mxu0 %v1300
    %1673 = vmatprep.subr.mxu0 0.0
    %1674 = vmatpush1.msra.mxu0 0.0
    %1675 = vmatprep.subr.mxu0 0.0
    %1676 = vmatpush1.msra.mxu0 0.0
    %1677 = vmatprep.subr.mxu0 0.0
    %1678 = vmatpush1.msra.mxu0 0.0
    %1679 = vmatprep.subr.mxu0 0.0
    %1680 = vmatpush1.msra.mxu0 0.0
    %1681 = vmatprep.subr.mxu0 0.0
    %1682 = vmatpush1.msra.mxu0 0.0
    %1683 = vmatprep.subr.mxu0 0.0
    %1684 = vmatpush1.msra.mxu0 0.0
    %1685 = vmatprep.subr.mxu0 0.0
    %1686 = vmatpush1.msra.mxu0 0.0
    %1687 = vmatprep.subr.mxu0 0.0
    %1688 = vmatpush1.msra.mxu0 0.0
    %1689 = vmatprep.subr.mxu0 0.0
    %1690 = vmatpush1.msra.mxu0 0.0
    %1691 = vmatprep.subr.mxu0 0.0
    %1692 = vmatpush1.msra.mxu0 0.0
    %1693 = vmatprep.subr.mxu0 0.0
    %1694 = vmatpush1.msra.mxu0 0.0
    %1695 = vmatprep.subr.mxu0 0.0
    %1696 = vmatpush1.msra.mxu0 0.0
    %1697 = vmatprep.subr.mxu0 0.0
    %1698 = vmatpush1.msra.mxu0 0.0
    %1699 = vmatprep.subr.mxu0 0.0
    %1700 = vmatpush1.msra.mxu0 0.0
    %1701 = vmatprep.subr.mxu0 0.0
    %1702 = vmatpush1.msra.mxu0 0.0
    %1703 = vmatprep.subr.mxu0 0.0
    %1704 = vmatpush1.msra.mxu0 0.0
    %1705 = vmatprep.subr.mxu0 0.0
    %1706 = vmatpush1.msra.mxu0 0.0
    %1707 = vmatprep.subr.mxu0 0.0
    %1708 = vmatpush1.msra.mxu0 0.0
    %1709 = vmatprep.subr.mxu0 0.0
    %1710 = vmatpush1.msra.mxu0 0.0
    %1711 = vmatprep.subr.mxu0 0.0
    %1712 = vmatpush1.msra.mxu0 0.0
    %1713 = vmatprep.subr.mxu0 0.0
    %1714 = vmatpush1.msra.mxu0 0.0
    %1715 = vmatprep.subr.mxu0 0.0
    %1716 = vmatpush1.msra.mxu0 0.0
    %1717 = vmatprep.subr.mxu0 0.0
    %1718 = vmatpush1.msra.mxu0 0.0
    %1719 = vmatprep.subr.mxu0 0.0
    %1720 = vmatpush1.msra.mxu0 0.0
    %1721 = vmatprep.mubr.f32.mxu0 0.0
    %1722 = vmatmul.mubr.f32.gmra.mrb[0].mxu0 %v1302
    %v1723 = vpop.f32.mrb[0].mxu0
    %v1724 = vadd.f32 %v1654, %v1723
    %v1725 = vpop.f32.mrb[0].mxu0
    %1726 = vdwg.mxu0
    %v1728 = vsel %vm443, %v1073, 0
    %1730 = vmatprep.subr.mxu0 %v1086
    %1731 = vmatpush1.msra.mxu0 %v1085
    %1732 = vmatprep.subr.mxu0 %v1089
    %1733 = vmatpush1.msra.mxu0 %v1088
    %1734 = vmatprep.subr.mxu0 %v1092
    %1735 = vmatpush1.msra.mxu0 %v1091
    %1736 = vmatprep.subr.mxu0 %v1095
    %1737 = vmatpush1.msra.mxu0 %v1094
    %1738 = vmatprep.subr.mxu0 %v1098
    %1739 = vmatpush1.msra.mxu0 %v1097
    %1740 = vmatprep.subr.mxu0 %v1101
    %1741 = vmatpush1.msra.mxu0 %v1100
    %1742 = vmatprep.subr.mxu0 %v1104
    %1743 = vmatpush1.msra.mxu0 %v1103
    %1744 = vmatprep.subr.mxu0 %v1107
    %1745 = vmatpush1.msra.mxu0 %v1106
    %1746 = vmatprep.subr.mxu0 %v1110
    %1747 = vmatpush1.msra.mxu0 %v1109
    %1748 = vmatprep.subr.mxu0 %v1113
    %1749 = vmatpush1.msra.mxu0 %v1112
    %1750 = vmatprep.subr.mxu0 %v1116
    %1751 = vmatpush1.msra.mxu0 %v1115
    %1752 = vmatprep.subr.mxu0 %v1119
    %1753 = vmatpush1.msra.mxu0 %v1118
    %1754 = vmatprep.subr.mxu0 %v1122
    %1755 = vmatpush1.msra.mxu0 %v1121
    %1756 = vmatprep.subr.mxu0 %v1125
    %1757 = vmatpush1.msra.mxu0 %v1124
    %1758 = vmatprep.subr.mxu0 %v1128
    %1759 = vmatpush1.msra.mxu0 %v1127
    %1760 = vmatprep.subr.mxu0 %v1131
    %1761 = vmatpush1.msra.mxu0 %v1130
    %1762 = vmatprep.subr.mxu0 %v1134
    %1763 = vmatpush1.msra.mxu0 %v1133
    %1764 = vmatprep.subr.mxu0 %v1137
    %1765 = vmatpush1.msra.mxu0 %v1136
    %1766 = vmatprep.subr.mxu0 %v1140
    %1767 = vmatpush1.msra.mxu0 %v1139
    %1768 = vmatprep.subr.mxu0 %v1143
    %1769 = vmatpush1.msra.mxu0 %v1142
    %1770 = vmatprep.subr.mxu0 %v1146
    %1771 = vmatpush1.msra.mxu0 %v1145
    %1772 = vmatprep.subr.mxu0 %v1149
    %1773 = vmatpush1.msra.mxu0 %v1148
    %1774 = vmatprep.subr.mxu0 %v1152
    %1775 = vmatpush1.msra.mxu0 %v1151
    %1776 = vmatprep.subr.mxu0 %v1155
    %1777 = vmatpush1.msra.mxu0 %v1154
    %1778 = vmatprep.subr.mxu0 %v1158
    %1779 = vmatpush1.msra.mxu0 %v1157
    %1780 = vmatprep.subr.mxu0 %v1161
    %1781 = vmatpush1.msra.mxu0 %v1160
    %1782 = vmatprep.subr.mxu0 %v1164
    %1783 = vmatpush1.msra.mxu0 %v1163
    %1784 = vmatprep.subr.mxu0 %v1167
    %1785 = vmatpush1.msra.mxu0 %v1166
    %1786 = vmatprep.subr.mxu0 %v1170
    %1787 = vmatpush1.msra.mxu0 %v1169
    %1788 = vmatprep.subr.mxu0 %v1173
    %1789 = vmatpush1.msra.mxu0 %v1172
    %1790 = vmatprep.subr.mxu0 %v1176
    %1791 = vmatpush1.msra.mxu0 %v1175
    %1792 = vmatprep.subr.mxu0 %v1179
    %1793 = vmatpush1.msra.mxu0 %v1178
    %1794 = vmatprep.mubr.f32.mxu0 %v1084
    %1795 = vmatmul.mubr.f32.gmra.mrb[0].mxu0 %v929
    %v1796 = vpop.f32.mrb[0].mxu0
    %v1797 = vadd.f32 0.0, %v1796
    %v1798 = vpop.f32.mrb[0].mxu0
    %v1799 = vadd.f32 0.0, %v1798
    %1800 = vdwg.mxu0
    %1801 = vmatprep.subr.mxu0 %v1182
    %1802 = vmatpush1.msra.mxu0 %v1181
    %1803 = vmatprep.subr.mxu0 %v1185
    %1804 = vmatpush1.msra.mxu0 %v1184
    %1805 = vmatprep.subr.mxu0 %v1188
    %1806 = vmatpush1.msra.mxu0 %v1187
    %1807 = vmatprep.subr.mxu0 %v1191
    %1808 = vmatpush1.msra.mxu0 %v1190
    %1809 = vmatprep.subr.mxu0 %v1194
    %1810 = vmatpush1.msra.mxu0 %v1193
    %1811 = vmatprep.subr.mxu0 %v1197
    %1812 = vmatpush1.msra.mxu0 %v1196
    %1813 = vmatprep.subr.mxu0 %v1200
    %1814 = vmatpush1.msra.mxu0 %v1199
    %1815 = vmatprep.subr.mxu0 %v1203
    %1816 = vmatpush1.msra.mxu0 %v1202
    %1817 = vmatprep.subr.mxu0 %v1206
    %1818 = vmatpush1.msra.mxu0 %v1205
    %1819 = vmatprep.subr.mxu0 %v1209
    %1820 = vmatpush1.msra.mxu0 %v1208
    %1821 = vmatprep.subr.mxu0 %v1212
    %1822 = vmatpush1.msra.mxu0 %v1211
    %1823 = vmatprep.subr.mxu0 %v1215
    %1824 = vmatpush1.msra.mxu0 %v1214
    %1825 = vmatprep.subr.mxu0 %v1218
    %1826 = vmatpush1.msra.mxu0 %v1217
    %1827 = vmatprep.subr.mxu0 %v1221
    %1828 = vmatpush1.msra.mxu0 %v1220
    %1829 = vmatprep.subr.mxu0 %v1224
    %1830 = vmatpush1.msra.mxu0 %v1223
    %1831 = vmatprep.subr.mxu0 %v1227
    %1832 = vmatpush1.msra.mxu0 %v1226
    %1833 = vmatprep.subr.mxu0 %v1230
    %1834 = vmatpush1.msra.mxu0 %v1229
    %1835 = vmatprep.subr.mxu0 %v1233
    %1836 = vmatpush1.msra.mxu0 %v1232
    %1837 = vmatprep.subr.mxu0 %v1236
    %1838 = vmatpush1.msra.mxu0 %v1235
    %1839 = vmatprep.subr.mxu0 %v1239
    %1840 = vmatpush1.msra.mxu0 %v1238
    %1841 = vmatprep.subr.mxu0 %v1242
    %1842 = vmatpush1.msra.mxu0 %v1241
    %1843 = vmatprep.subr.mxu0 %v1245
    %1844 = vmatpush1.msra.mxu0 %v1244
    %1845 = vmatprep.subr.mxu0 %v1248
    %1846 = vmatpush1.msra.mxu0 %v1247
    %1847 = vmatprep.subr.mxu0 %v1251
    %1848 = vmatpush1.msra.mxu0 %v1250
    %1849 = vmatprep.subr.mxu0 %v1254
    %1850 = vmatpush1.msra.mxu0 %v1253
    %1851 = vmatprep.subr.mxu0 %v1257
    %1852 = vmatpush1.msra.mxu0 %v1256
    %1853 = vmatprep.subr.mxu0 %v1260
    %1854 = vmatpush1.msra.mxu0 %v1259
    %1855 = vmatprep.subr.mxu0 %v1263
    %1856 = vmatpush1.msra.mxu0 %v1262
    %1857 = vmatprep.subr.mxu0 %v1266
    %1858 = vmatpush1.msra.mxu0 %v1265
    %1859 = vmatprep.subr.mxu0 %v1269
    %1860 = vmatpush1.msra.mxu0 %v1268
    %1861 = vmatprep.subr.mxu0 %v1272
    %1862 = vmatpush1.msra.mxu0 %v1271
    %1863 = vmatprep.subr.mxu0 %v1275
    %1864 = vmatpush1.msra.mxu0 %v1274
    %1865 = vmatprep.mubr.f32.mxu0 %v1071
    %1866 = vmatmul.mubr.f32.gmra.mrb[0].mxu0 %v1081
    %v1867 = vpop.f32.mrb[0].mxu0
    %v1868 = vadd.f32 %v1797, %v1867
    %v1869 = vpop.f32.mrb[0].mxu0
    %v1870 = vadd.f32 %v1799, %v1869
    %1871 = vdwg.mxu0
    %1872 = vmatprep.subr.mxu0 %v1278
    %1873 = vmatpush1.msra.mxu0 %v1277
    %1874 = vmatprep.subr.mxu0 %v1281
    %1875 = vmatpush1.msra.mxu0 %v1280
    %1876 = vmatprep.subr.mxu0 %v1284
    %1877 = vmatpush1.msra.mxu0 %v1283
    %1878 = vmatprep.subr.mxu0 %v1287
    %1879 = vmatpush1.msra.mxu0 %v1286
    %1880 = vmatprep.subr.mxu0 %v1290
    %1881 = vmatpush1.msra.mxu0 %v1289
    %1882 = vmatprep.subr.mxu0 %v1293
    %1883 = vmatpush1.msra.mxu0 %v1292
    %1884 = vmatprep.subr.mxu0 %v1296
    %1885 = vmatpush1.msra.mxu0 %v1295
    %1886 = vmatprep.subr.mxu0 %v1299
    %1887 = vmatpush1.msra.mxu0 %v1298
    %1888 = vmatprep.subr.mxu0 0.0
    %1889 = vmatpush1.msra.mxu0 0.0
    %1890 = vmatprep.subr.mxu0 0.0
    %1891 = vmatpush1.msra.mxu0 0.0
    %1892 = vmatprep.subr.mxu0 0.0
    %1893 = vmatpush1.msra.mxu0 0.0
    %1894 = vmatprep.subr.mxu0 0.0
    %1895 = vmatpush1.msra.mxu0 0.0
    %1896 = vmatprep.subr.mxu0 0.0
    %1897 = vmatpush1.msra.mxu0 0.0
    %1898 = vmatprep.subr.mxu0 0.0
    %1899 = vmatpush1.msra.mxu0 0.0
    %1900 = vmatprep.subr.mxu0 0.0
    %1901 = vmatpush1.msra.mxu0 0.0
    %1902 = vmatprep.subr.mxu0 0.0
    %1903 = vmatpush1.msra.mxu0 0.0
    %1904 = vmatprep.subr.mxu0 0.0
    %1905 = vmatpush1.msra.mxu0 0.0
    %1906 = vmatprep.subr.mxu0 0.0
    %1907 = vmatpush1.msra.mxu0 0.0
    %1908 = vmatprep.subr.mxu0 0.0
    %1909 = vmatpush1.msra.mxu0 0.0
    %1910 = vmatprep.subr.mxu0 0.0
    %1911 = vmatpush1.msra.mxu0 0.0
    %1912 = vmatprep.subr.mxu0 0.0
    %1913 = vmatpush1.msra.mxu0 0.0
    %1914 = vmatprep.subr.mxu0 0.0
    %1915 = vmatpush1.msra.mxu0 0.0
    %1916 = vmatprep.subr.mxu0 0.0
    %1917 = vmatpush1.msra.mxu0 0.0
    %1918 = vmatprep.subr.mxu0 0.0
    %1919 = vmatpush1.msra.mxu0 0.0
    %1920 = vmatprep.subr.mxu0 0.0
    %1921 = vmatpush1.msra.mxu0 0.0
    %1922 = vmatprep.subr.mxu0 0.0
    %1923 = vmatpush1.msra.mxu0 0.0
    %1924 = vmatprep.subr.mxu0 0.0
    %1925 = vmatpush1.msra.mxu0 0.0
    %1926 = vmatprep.subr.mxu0 0.0
    %1927 = vmatpush1.msra.mxu0 0.0
    %1928 = vmatprep.subr.mxu0 0.0
    %1929 = vmatpush1.msra.mxu0 0.0
    %1930 = vmatprep.subr.mxu0 0.0
    %1931 = vmatpush1.msra.mxu0 0.0
    %1932 = vmatprep.subr.mxu0 0.0
    %1933 = vmatpush1.msra.mxu0 0.0
    %1934 = vmatprep.subr.mxu0 0.0
    %1935 = vmatpush1.msra.mxu0 0.0
    %1936 = vmatprep.mubr.f32.mxu0 0.0
    %1937 = vmatmul.mubr.f32.gmra.mrb[0].mxu0 %v1728
    %v1938 = vpop.f32.mrb[0].mxu0
    %v1939 = vadd.f32 %v1868, %v1938
    %v1940 = vpop.f32.mrb[0].mxu0
    %v1941 = vadd.f32 %v1870, %v1940
    %1942 = vdwg.mxu0
    %1943 = vmatprep.subr.mxu0 0.0
    %1944 = vmatpush1.msra.mxu0 %v1087
    %1945 = vmatprep.subr.mxu0 0.0
    %1946 = vmatpush1.msra.mxu0 %v1090
    %1947 = vmatprep.subr.mxu0 0.0
    %1948 = vmatpush1.msra.mxu0 %v1093
    %1949 = vmatprep.subr.mxu0 0.0
    %1950 = vmatpush1.msra.mxu0 %v1096
    %1951 = vmatprep.subr.mxu0 0.0
    %1952 = vmatpush1.msra.mxu0 %v1099
    %1953 = vmatprep.subr.mxu0 0.0
    %1954 = vmatpush1.msra.mxu0 %v1102
    %1955 = vmatprep.subr.mxu0 0.0
    %1956 = vmatpush1.msra.mxu0 %v1105
    %1957 = vmatprep.subr.mxu0 0.0
    %1958 = vmatpush1.msra.mxu0 %v1108
    %1959 = vmatprep.subr.mxu0 0.0
    %1960 = vmatpush1.msra.mxu0 %v1111
    %1961 = vmatprep.subr.mxu0 0.0
    %1962 = vmatpush1.msra.mxu0 %v1114
    %1963 = vmatprep.subr.mxu0 0.0
    %1964 = vmatpush1.msra.mxu0 %v1117
    %1965 = vmatprep.subr.mxu0 0.0
    %1966 = vmatpush1.msra.mxu0 %v1120
    %1967 = vmatprep.subr.mxu0 0.0
    %1968 = vmatpush1.msra.mxu0 %v1123
    %1969 = vmatprep.subr.mxu0 0.0
    %1970 = vmatpush1.msra.mxu0 %v1126
    %1971 = vmatprep.subr.mxu0 0.0
    %1972 = vmatpush1.msra.mxu0 %v1129
    %1973 = vmatprep.subr.mxu0 0.0
    %1974 = vmatpush1.msra.mxu0 %v1132
    %1975 = vmatprep.subr.mxu0 0.0
    %1976 = vmatpush1.msra.mxu0 %v1135
    %1977 = vmatprep.subr.mxu0 0.0
    %1978 = vmatpush1.msra.mxu0 %v1138
    %1979 = vmatprep.subr.mxu0 0.0
    %1980 = vmatpush1.msra.mxu0 %v1141
    %1981 = vmatprep.subr.mxu0 0.0
    %1982 = vmatpush1.msra.mxu0 %v1144
    %1983 = vmatprep.subr.mxu0 0.0
    %1984 = vmatpush1.msra.mxu0 %v1147
    %1985 = vmatprep.subr.mxu0 0.0
    %1986 = vmatpush1.msra.mxu0 %v1150
    %1987 = vmatprep.subr.mxu0 0.0
    %1988 = vmatpush1.msra.mxu0 %v1153
    %1989 = vmatprep.subr.mxu0 0.0
    %1990 = vmatpush1.msra.mxu0 %v1156
    %1991 = vmatprep.subr.mxu0 0.0
    %1992 = vmatpush1.msra.mxu0 %v1159
    %1993 = vmatprep.subr.mxu0 0.0
    %1994 = vmatpush1.msra.mxu0 %v1162
    %1995 = vmatprep.subr.mxu0 0.0
    %1996 = vmatpush1.msra.mxu0 %v1165
    %1997 = vmatprep.subr.mxu0 0.0
    %1998 = vmatpush1.msra.mxu0 %v1168
    %1999 = vmatprep.subr.mxu0 0.0
    %2000 = vmatpush1.msra.mxu0 %v1171
    %2001 = vmatprep.subr.mxu0 0.0
    %2002 = vmatpush1.msra.mxu0 %v1174
    %2003 = vmatprep.subr.mxu0 0.0
    %2004 = vmatpush1.msra.mxu0 %v1177
    %2005 = vmatprep.subr.mxu0 0.0
    %2006 = vmatpush1.msra.mxu0 %v1180
    %2007 = vmatprep.mubr.f32.mxu0 %v1084
    %2008 = vmatmul.mubr.f32.gmra.mrb[0].mxu0 %v929
    %v2009 = vpop.f32.mrb[0].mxu0
    %v2010 = vadd.f32 0.0, %v2009
    %v2011 = vpop.f32.mrb[0].mxu0
    %2012 = vdwg.mxu0
    %2013 = vmatprep.subr.mxu0 0.0
    %2014 = vmatpush1.msra.mxu0 %v1183
    %2015 = vmatprep.subr.mxu0 0.0
    %2016 = vmatpush1.msra.mxu0 %v1186
    %2017 = vmatprep.subr.mxu0 0.0
    %2018 = vmatpush1.msra.mxu0 %v1189
    %2019 = vmatprep.subr.mxu0 0.0
    %2020 = vmatpush1.msra.mxu0 %v1192
    %2021 = vmatprep.subr.mxu0 0.0
    %2022 = vmatpush1.msra.mxu0 %v1195
    %2023 = vmatprep.subr.mxu0 0.0
    %2024 = vmatpush1.msra.mxu0 %v1198
    %2025 = vmatprep.subr.mxu0 0.0
    %2026 = vmatpush1.msra.mxu0 %v1201
    %2027 = vmatprep.subr.mxu0 0.0
    %2028 = vmatpush1.msra.mxu0 %v1204
    %2029 = vmatprep.subr.mxu0 0.0
    %2030 = vmatpush1.msra.mxu0 %v1207
    %2031 = vmatprep.subr.mxu0 0.0
    %2032 = vmatpush1.msra.mxu0 %v1210
    %2033 = vmatprep.subr.mxu0 0.0
    %2034 = vmatpush1.msra.mxu0 %v1213
    %2035 = vmatprep.subr.mxu0 0.0
    %2036 = vmatpush1.msra.mxu0 %v1216
    %2037 = vmatprep.subr.mxu0 0.0
    %2038 = vmatpush1.msra.mxu0 %v1219
    %2039 = vmatprep.subr.mxu0 0.0
    %2040 = vmatpush1.msra.mxu0 %v1222
    %2041 = vmatprep.subr.mxu0 0.0
    %2042 = vmatpush1.msra.mxu0 %v1225
    %2043 = vmatprep.subr.mxu0 0.0
    %2044 = vmatpush1.msra.mxu0 %v1228
    %2045 = vmatprep.subr.mxu0 0.0
    %2046 = vmatpush1.msra.mxu0 %v1231
    %2047 = vmatprep.subr.mxu0 0.0
    %2048 = vmatpush1.msra.mxu0 %v1234
    %2049 = vmatprep.subr.mxu0 0.0
    %2050 = vmatpush1.msra.mxu0 %v1237
    %2051 = vmatprep.subr.mxu0 0.0
    %2052 = vmatpush1.msra.mxu0 %v1240
    %2053 = vmatprep.subr.mxu0 0.0
    %2054 = vmatpush1.msra.mxu0 %v1243
    %2055 = vmatprep.subr.mxu0 0.0
    %2056 = vmatpush1.msra.mxu0 %v1246
    %2057 = vmatprep.subr.mxu0 0.0
    %2058 = vmatpush1.msra.mxu0 %v1249
    %2059 = vmatprep.subr.mxu0 0.0
    %2060 = vmatpush1.msra.mxu0 %v1252
    %2061 = vmatprep.subr.mxu0 0.0
    %2062 = vmatpush1.msra.mxu0 %v1255
    %2063 = vmatprep.subr.mxu0 0.0
    %2064 = vmatpush1.msra.mxu0 %v1258
    %2065 = vmatprep.subr.mxu0 0.0
    %2066 = vmatpush1.msra.mxu0 %v1261
    %2067 = vmatprep.subr.mxu0 0.0
    %2068 = vmatpush1.msra.mxu0 %v1264
    %2069 = vmatprep.subr.mxu0 0.0
    %2070 = vmatpush1.msra.mxu0 %v1267
    %2071 = vmatprep.subr.mxu0 0.0
    %2072 = vmatpush1.msra.mxu0 %v1270
    %2073 = vmatprep.subr.mxu0 0.0
    %2074 = vmatpush1.msra.mxu0 %v1273
    %2075 = vmatprep.subr.mxu0 0.0
    %2076 = vmatpush1.msra.mxu0 %v1276
    %2077 = vmatprep.mubr.f32.mxu0 %v1071
    %2078 = vmatmul.mubr.f32.gmra.mrb[0].mxu0 %v1081
    %v2079 = vpop.f32.mrb[0].mxu0
    %v2080 = vadd.f32 %v2010, %v2079
    %v2081 = vpop.f32.mrb[0].mxu0
    %2082 = vdwg.mxu0
    %2083 = vmatprep.subr.mxu0 0.0
    %2084 = vmatpush1.msra.mxu0 %v1279
    %2085 = vmatprep.subr.mxu0 0.0
    %2086 = vmatpush1.msra.mxu0 %v1282
    %2087 = vmatprep.subr.mxu0 0.0
    %2088 = vmatpush1.msra.mxu0 %v1285
    %2089 = vmatprep.subr.mxu0 0.0
    %2090 = vmatpush1.msra.mxu0 %v1288
    %2091 = vmatprep.subr.mxu0 0.0
    %2092 = vmatpush1.msra.mxu0 %v1291
    %2093 = vmatprep.subr.mxu0 0.0
    %2094 = vmatpush1.msra.mxu0 %v1294
    %2095 = vmatprep.subr.mxu0 0.0
    %2096 = vmatpush1.msra.mxu0 %v1297
    %2097 = vmatprep.subr.mxu0 0.0
    %2098 = vmatpush1.msra.mxu0 %v1300
    %2099 = vmatprep.subr.mxu0 0.0
    %2100 = vmatpush1.msra.mxu0 0.0
    %2101 = vmatprep.subr.mxu0 0.0
    %2102 = vmatpush1.msra.mxu0 0.0
    %2103 = vmatprep.subr.mxu0 0.0
    %2104 = vmatpush1.msra.mxu0 0.0
    %2105 = vmatprep.subr.mxu0 0.0
    %2106 = vmatpush1.msra.mxu0 0.0
    %2107 = vmatprep.subr.mxu0 0.0
    %2108 = vmatpush1.msra.mxu0 0.0
    %2109 = vmatprep.subr.mxu0 0.0
    %2110 = vmatpush1.msra.mxu0 0.0
    %2111 = vmatprep.subr.mxu0 0.0
    %2112 = vmatpush1.msra.mxu0 0.0
    %2113 = vmatprep.subr.mxu0 0.0
    %2114 = vmatpush1.msra.mxu0 0.0
    %2115 = vmatprep.subr.mxu0 0.0
    %2116 = vmatpush1.msra.mxu0 0.0
    %2117 = vmatprep.subr.mxu0 0.0
    %2118 = vmatpush1.msra.mxu0 0.0
    %2119 = vmatprep.subr.mxu0 0.0
    %2120 = vmatpush1.msra.mxu0 0.0
    %2121 = vmatprep.subr.mxu0 0.0
    %2122 = vmatpush1.msra.mxu0 0.0
    %2123 = vmatprep.subr.mxu0 0.0
    %2124 = vmatpush1.msra.mxu0 0.0
    %2125 = vmatprep.subr.mxu0 0.0
    %2126 = vmatpush1.msra.mxu0 0.0
    %2127 = vmatprep.subr.mxu0 0.0
    %2128 = vmatpush1.msra.mxu0 0.0
    %2129 = vmatprep.subr.mxu0 0.0
    %2130 = vmatpush1.msra.mxu0 0.0
    %2131 = vmatprep.subr.mxu0 0.0
    %2132 = vmatpush1.msra.mxu0 0.0
    %2133 = vmatprep.subr.mxu0 0.0
    %2134 = vmatpush1.msra.mxu0 0.0
    %2135 = vmatprep.subr.mxu0 0.0
    %2136 = vmatpush1.msra.mxu0 0.0
    %2137 = vmatprep.subr.mxu0 0.0
    %2138 = vmatpush1.msra.mxu0 0.0
    %2139 = vmatprep.subr.mxu0 0.0
    %2140 = vmatpush1.msra.mxu0 0.0
    %2141 = vmatprep.subr.mxu0 0.0
    %2142 = vmatpush1.msra.mxu0 0.0
    %2143 = vmatprep.subr.mxu0 0.0
    %2144 = vmatpush1.msra.mxu0 0.0
    %2145 = vmatprep.subr.mxu0 0.0
    %2146 = vmatpush1.msra.mxu0 0.0
    %2147 = vmatprep.mubr.f32.mxu0 0.0
    %2148 = vmatmul.mubr.f32.gmra.mrb[0].mxu0 %v1728
    %v2149 = vpop.f32.mrb[0].mxu0
    %v2150 = vadd.f32 %v2080, %v2149
    %v2151 = vpop.f32.mrb[0].mxu0
    %2152 = vdwg.mxu0
    %vm2153 = vcmask 1046528
    %v2154 = vsel %vm2153, %v1513, 0.0
    %v2155 = vrot.slane %v2154, 4
    %v2156 = vadd.f32 %v2154, %v2155
    %v2157 = vrot.slane %v2156, 2
    %v2158 = vadd.f32 %v2156, %v2157
    %v2159 = vrot.slane %v2158, 1
    %v2160 = vadd.f32 %v2158, %v2159
    %v2161 = vsel %vm2153, %v1515, 0.0
    %v2162 = vrot.slane %v2161, 4
    %v2163 = vadd.f32 %v2161, %v2162
    %v2164 = vrot.slane %v2163, 2
    %v2165 = vadd.f32 %v2163, %v2164
    %v2166 = vrot.slane %v2165, 1
    %v2167 = vadd.f32 %v2165, %v2166
    %vm2168 = vcmask 522240
    %v2169 = vsel %vm2168, %v1724, 0.0
    %v2170 = vrot.slane %v2169, 4
    %v2171 = vadd.f32 %v2169, %v2170
    %v2172 = vrot.slane %v2171, 2
    %v2173 = vadd.f32 %v2171, %v2172
    %v2174 = vrot.slane %v2173, 1
    %v2175 = vadd.f32 %v2173, %v2174
    %v2176 = vmul.f32 %v1513, %v1513
    %v2177 = vmul.f32 %v1515, %v1515
    %v2178 = vmul.f32 %v1724, %v1724
    %v2179 = vsel %vm2153, %v2176, 0.0
    %v2180 = vrot.slane %v2179, 4
    %v2181 = vadd.f32 %v2179, %v2180
    %v2182 = vrot.slane %v2181, 2
    %v2183 = vadd.f32 %v2181, %v2182
    %v2184 = vrot.slane %v2183, 1
    %v2185 = vadd.f32 %v2183, %v2184
    %v2186 = vsel %vm2153, %v2177, 0.0
    %v2187 = vrot.slane %v2186, 4
    %v2188 = vadd.f32 %v2186, %v2187
    %v2189 = vrot.slane %v2188, 2
    %v2190 = vadd.f32 %v2188, %v2189
    %v2191 = vrot.slane %v2190, 1
    %v2192 = vadd.f32 %v2190, %v2191
    %v2193 = vsel %vm2168, %v2178, 0.0
    %v2194 = vrot.slane %v2193, 4
    %v2195 = vadd.f32 %v2193, %v2194
    %v2196 = vrot.slane %v2195, 2
    %v2197 = vadd.f32 %v2195, %v2196
    %v2198 = vrot.slane %v2197, 1
    %v2199 = vadd.f32 %v2197, %v2198
    %v2200 = vsel %vm2153, %v1939, 0.0
    %v2201 = vrot.slane %v2200, 4
    %v2202 = vadd.f32 %v2200, %v2201
    %v2203 = vrot.slane %v2202, 2
    %v2204 = vadd.f32 %v2202, %v2203
    %v2205 = vrot.slane %v2204, 1
    %v2206 = vadd.f32 %v2204, %v2205
    %v2207 = vsel %vm2153, %v1941, 0.0
    %v2208 = vrot.slane %v2207, 4
    %v2209 = vadd.f32 %v2207, %v2208
    %v2210 = vrot.slane %v2209, 2
    %v2211 = vadd.f32 %v2209, %v2210
    %v2212 = vrot.slane %v2211, 1
    %v2213 = vadd.f32 %v2211, %v2212
    %v2214 = vsel %vm2168, %v2150, 0.0
    %v2215 = vrot.slane %v2214, 4
    %v2216 = vadd.f32 %v2214, %v2215
    %v2217 = vrot.slane %v2216, 2
    %v2218 = vadd.f32 %v2216, %v2217
    %v2219 = vrot.slane %v2218, 1
    %v2220 = vadd.f32 %v2218, %v2219
    %v2221 = vadd.f32 %v2160, %v2206
    %v2222 = vadd.f32 %v2167, %v2213
    %v2223 = vadd.f32 %v2175, %v2220
    %v2224 = vmul.f32 %v1939, %v1939
    %v2225 = vmul.f32 %v1941, %v1941
    %v2226 = vmul.f32 %v2150, %v2150
    %v2227 = vsel %vm2153, %v2224, 0.0
    %v2228 = vrot.slane %v2227, 4
    %v2229 = vadd.f32 %v2227, %v2228
    %v2230 = vrot.slane %v2229, 2
    %v2231 = vadd.f32 %v2229, %v2230
    %v2232 = vrot.slane %v2231, 1
    %v2233 = vadd.f32 %v2231, %v2232
    %v2234 = vsel %vm2153, %v2225, 0.0
    %v2235 = vrot.slane %v2234, 4
    %v2236 = vadd.f32 %v2234, %v2235
    %v2237 = vrot.slane %v2236, 2
    %v2238 = vadd.f32 %v2236, %v2237
    %v2239 = vrot.slane %v2238, 1
    %v2240 = vadd.f32 %v2238, %v2239
    %v2241 = vsel %vm2168, %v2226, 0.0
    %v2242 = vrot.slane %v2241, 4
    %v2243 = vadd.f32 %v2241, %v2242
    %v2244 = vrot.slane %v2243, 2
    %v2245 = vadd.f32 %v2243, %v2244
    %v2246 = vrot.slane %v2245, 1
    %v2247 = vadd.f32 %v2245, %v2246
    %v2248 = vadd.f32 %v2185, %v2233
    %v2249 = vadd.f32 %v2192, %v2240
    %v2250 = vadd.f32 %v2199, %v2247
    %v2251 = vmul.f32 %v2221, 0.071428575
    %v2252 = vmul.f32 %v2222, 0.071428575
    %v2253 = vmul.f32 %v2223, 0.071428575
    %v2254 = vmul.f32 %v2248, 0.071428575
    %v2255 = vmul.f32 %v2249, 0.071428575
    %v2256 = vmul.f32 %v2250, 0.071428575
    %v2257 = vmul.f32 %v2251, %v2251
    %v2258 = vmul.f32 %v2252, %v2252
    %v2259 = vmul.f32 %v2253, %v2253
    %v2260 = vsub.f32 %v2254, %v2257
    %v2261 = vsub.f32 %v2255, %v2258
    %v2262 = vsub.f32 %v2256, %v2259
    %v2263 = vld [vmem:[%s5] sm:$0x7]
    %v2264 = vadd.f32 %v2260, 1e-05
    %v2265 = vadd.f32 %v2261, 1e-05
    %v2266 = vadd.f32 %v2262, 1e-05
    %v2267 = vrsqrt.pop %v2264
    %v2268 = vrsqrt.pop %v2265
    %v2269 = vrsqrt.pop %v2266
    %v2273 = vcombine.low %v2267, %v2268
    %v2275 = vunpack.c.l.s4 1966171168
    %v2276 = vunpack.c.0.s8 %v2275
    %v2277 = vlaneseq
    %v2278 = vshrl.u32 %v2277, 7
    %v2279 = vsub.s32 %v2276, %v2278
    %v2280 = vrot.slane %v2273, %v2279
    %v2282 = vunpack.c.l.s4 1966171168
    %v2283 = vunpack.c.0.s8 %v2282
    %v2284 = vlaneseq
    %v2285 = vshrl.u32 %v2284, 7
    %v2286 = vsub.s32 %v2283, %v2285
    %v2287 = vrot.slane %v2269, %v2286
    %v2288 = vcombine.low %v2280, %v2287
    %v2290 = vunpack.c.l.s4 1966171168
    %v2291 = vunpack.c.0.s8 %v2290
    %v2292 = vlaneseq
    %v2293 = vshrl.u32 %v2292, 7
    %v2294 = vsub.s32 %v2291, %v2293
    %v2295 = vrot.slane %v2288, %v2294
    %v2297 = vmul.f32 %v2263, %v2295
    %v2298 = vld [vmem:[%s6] sm:$0x7]
    %v2300 = vlaneseq
    %v2301 = vshrl.u32 %v2300, 7
    %v2302 = vsub.s32 0, %v2301
    %v2303 = vrot.slane %v2297, %v2302
    %v2304 = vlaneseq
    %v2305 = vshrl.u32 %v2304, 7
    %v2306 = vsub.s32 1, %v2305
    %v2307 = vrot.slane %v2297, %v2306
    %v2308 = vlaneseq
    %v2309 = vshrl.u32 %v2308, 7
    %v2310 = vsub.s32 2, %v2309
    %v2311 = vrot.slane %v2297, %v2310
    %v2315 = vmul.f32 %v2251, %v2303
    %v2316 = vmul.f32 %v2252, %v2307
    %v2317 = vmul.f32 %v2253, %v2311
    %v2321 = vcombine.low %v2315, %v2316
    %v2323 = vunpack.c.l.s4 1966171168
    %v2324 = vunpack.c.0.s8 %v2323
    %v2325 = vlaneseq
    %v2326 = vshrl.u32 %v2325, 7
    %v2327 = vsub.s32 %v2324, %v2326
    %v2328 = vrot.slane %v2321, %v2327
    %v2330 = vunpack.c.l.s4 1966171168
    %v2331 = vunpack.c.0.s8 %v2330
    %v2332 = vlaneseq
    %v2333 = vshrl.u32 %v2332, 7
    %v2334 = vsub.s32 %v2331, %v2333
    %v2335 = vrot.slane %v2317, %v2334
    %v2336 = vcombine.low %v2328, %v2335
    %v2338 = vunpack.c.l.s4 1966171168
    %v2339 = vunpack.c.0.s8 %v2338
    %v2340 = vlaneseq
    %v2341 = vshrl.u32 %v2340, 7
    %v2342 = vsub.s32 %v2339, %v2341
    %v2343 = vrot.slane %v2336, %v2342
    %v2345 = vsub.f32 %v2298, %v2343
    %v2346 = vmul.f32 %v1513, %v2303
    %v2347 = vmul.f32 %v1515, %v2307
    %v2348 = vmul.f32 %v1724, %v2311
    %v2350 = vlaneseq
    %v2351 = vshrl.u32 %v2350, 7
    %v2352 = vsub.s32 0, %v2351
    %v2353 = vrot.slane %v2345, %v2352
    %v2354 = vlaneseq
    %v2355 = vshrl.u32 %v2354, 7
    %v2356 = vsub.s32 1, %v2355
    %v2357 = vrot.slane %v2345, %v2356
    %v2358 = vlaneseq
    %v2359 = vshrl.u32 %v2358, 7
    %v2360 = vsub.s32 2, %v2359
    %v2361 = vrot.slane %v2345, %v2360
    %v2365 = vadd.f32 %v2346, %v2353
    %v2366 = vadd.f32 %v2347, %v2357
    %v2367 = vadd.f32 %v2348, %v2361
    %v2368 = vmax.f32 %v2365, 0.0
    %v2369 = vmax.f32 %v2366, 0.0
    %v2370 = vmax.f32 %v2367, 0.0
    %v2371 = vmul.f32 %v1939, %v2303
    %v2372 = vmul.f32 %v1941, %v2307
    %v2373 = vmul.f32 %v2150, %v2311
    %v2374 = vadd.f32 %v2371, %v2353
    %v2375 = vadd.f32 %v2372, %v2357
    %v2376 = vadd.f32 %v2373, %v2361
    %v2377 = vmax.f32 %v2374, 0.0
    %v2378 = vmax.f32 %v2375, 0.0
    %v2379 = vmax.f32 %v2376, 0.0
    %v2380 = vld [vmem:[%s7] sm:$0xff]
    %v2381 = vld [vmem:[%s7 + $0x8] sm:$0xff]
    %v2382 = vld [vmem:[%s7 + $0x10] sm:$0xff]
    %v2383 = vld [vmem:[%s7 + $0x18] sm:$0xff]
    %v2384 = vld [vmem:[%s7 + $0x20] sm:$0xff]
    %v2385 = vld [vmem:[%s7 + $0x28] sm:$0xff]
    %v2386 = vld [vmem:[%s7 + $0x30] sm:$0xff]
    %v2387 = vld [vmem:[%s7 + $0x38] sm:$0xff]
    %v2388 = vld [vmem:[%s7 + $0x40] sm:$0xff]
    %v2389 = vld [vmem:[%s7 + $0x48] sm:$0xff]
    %v2390 = vld [vmem:[%s7 + $0x50] sm:$0xff]
    %v2391 = vld [vmem:[%s7 + $0x58] sm:$0xff]
    %v2392 = vld [vmem:[%s7 + $0x60] sm:$0xff]
    %v2393 = vld [vmem:[%s7 + $0x68] sm:$0xff]
    %v2394 = vld [vmem:[%s7 + $0x70] sm:$0xff]
    %v2395 = vld [vmem:[%s7 + $0x78] sm:$0xff]
    %v2396 = vld [vmem:[%s7 + $0x80] sm:$0xff]
    %v2397 = vld [vmem:[%s7 + $0x88] sm:$0xff]
    %v2398 = vld [vmem:[%s7 + $0x90] sm:$0xff]
    %v2399 = vld [vmem:[%s7 + $0x98] sm:$0xff]
    %v2400 = vld [vmem:[%s7 + $0xa0] sm:$0xff]
    %v2401 = vld [vmem:[%s7 + $0xa8] sm:$0xff]
    %v2402 = vld [vmem:[%s7 + $0xb0] sm:$0xff]
    %v2403 = vld [vmem:[%s7 + $0xb8] sm:$0xff]
    %v2404 = vld [vmem:[%s7 + $0xc0] sm:$0xff]
    %v2405 = vld [vmem:[%s7 + $0xc8] sm:$0xff]
    %v2406 = vld [vmem:[%s7 + $0xd0] sm:$0xff]
    %v2407 = vld [vmem:[%s7 + $0xd8] sm:$0xff]
    %v2408 = vld [vmem:[%s7 + $0xe0] sm:$0xff]
    %v2409 = vld [vmem:[%s7 + $0xe8] sm:$0xff]
    %v2410 = vld [vmem:[%s7 + $0xf0] sm:$0xff]
    %v2411 = vld [vmem:[%s7 + $0xf8] sm:$0xff]
    %2412 = vmatprep.subr.mxu0 %v2381
    %2413 = vmatpush1.msra.mxu0 %v2380
    %2414 = vmatprep.subr.mxu0 %v2383
    %2415 = vmatpush1.msra.mxu0 %v2382
    %2416 = vmatprep.subr.mxu0 %v2385
    %2417 = vmatpush1.msra.mxu0 %v2384
    %2418 = vmatprep.subr.mxu0 %v2387
    %2419 = vmatpush1.msra.mxu0 %v2386
    %2420 = vmatprep.subr.mxu0 %v2389
    %2421 = vmatpush1.msra.mxu0 %v2388
    %2422 = vmatprep.subr.mxu0 %v2391
    %2423 = vmatpush1.msra.mxu0 %v2390
    %2424 = vmatprep.subr.mxu0 %v2393
    %2425 = vmatpush1.msra.mxu0 %v2392
    %2426 = vmatprep.subr.mxu0 %v2395
    %2427 = vmatpush1.msra.mxu0 %v2394
    %2428 = vmatprep.subr.mxu0 %v2397
    %2429 = vmatpush1.msra.mxu0 %v2396
    %2430 = vmatprep.subr.mxu0 %v2399
    %2431 = vmatpush1.msra.mxu0 %v2398
    %2432 = vmatprep.subr.mxu0 %v2401
    %2433 = vmatpush1.msra.mxu0 %v2400
    %2434 = vmatprep.subr.mxu0 %v2403
    %2435 = vmatpush1.msra.mxu0 %v2402
    %2436 = vmatprep.subr.mxu0 %v2405
    %2437 = vmatpush1.msra.mxu0 %v2404
    %2438 = vmatprep.subr.mxu0 %v2407
    %2439 = vmatpush1.msra.mxu0 %v2406
    %2440 = vmatprep.subr.mxu0 %v2409
    %2441 = vmatpush1.msra.mxu0 %v2408
    %2442 = vmatprep.subr.mxu0 %v2411
    %2443 = vmatpush1.msra.mxu0 %v2410
    %2444 = vmatprep.subr.mxu0 0.0
    %2445 = vmatpush1.msra.mxu0 0.0
    %2446 = vmatprep.subr.mxu0 0.0
    %2447 = vmatpush1.msra.mxu0 0.0
    %2448 = vmatprep.subr.mxu0 0.0
    %2449 = vmatpush1.msra.mxu0 0.0
    %2450 = vmatprep.subr.mxu0 0.0
    %2451 = vmatpush1.msra.mxu0 0.0
    %2452 = vmatprep.subr.mxu0 0.0
    %2453 = vmatpush1.msra.mxu0 0.0
    %2454 = vmatprep.subr.mxu0 0.0
    %2455 = vmatpush1.msra.mxu0 0.0
    %2456 = vmatprep.subr.mxu0 0.0
    %2457 = vmatpush1.msra.mxu0 0.0
    %2458 = vmatprep.subr.mxu0 0.0
    %2459 = vmatpush1.msra.mxu0 0.0
    %2460 = vmatprep.subr.mxu0 0.0
    %2461 = vmatpush1.msra.mxu0 0.0
    %2462 = vmatprep.subr.mxu0 0.0
    %2463 = vmatpush1.msra.mxu0 0.0
    %2464 = vmatprep.subr.mxu0 0.0
    %2465 = vmatpush1.msra.mxu0 0.0
    %2466 = vmatprep.subr.mxu0 0.0
    %2467 = vmatpush1.msra.mxu0 0.0
    %2468 = vmatprep.subr.mxu0 0.0
    %2469 = vmatpush1.msra.mxu0 0.0
    %2470 = vmatprep.subr.mxu0 0.0
    %2471 = vmatpush1.msra.mxu0 0.0
    %2472 = vmatprep.subr.mxu0 0.0
    %2473 = vmatpush1.msra.mxu0 0.0
    %2474 = vmatprep.subr.mxu0 0.0
    %2475 = vmatpush1.msra.mxu0 0.0
    %2476 = vmatprep.mubr.f32.mxu0 0.0
    %2477 = vmatmul.mubr.f32.gmra.mrb[0].mxu0 %v245
    %v2478 = vpop.f32.mrb[0].mxu0
    %v2479 = vadd.f32 0.0, %v2478
    %v2480 = vpop.f32.mrb[0].mxu0
    %v2481 = vadd.f32 0.0, %v2480
    %2482 = vmatprep.mubr.f32.mxu0 0.0
    %2483 = vmatmul.mubr.f32.gmra.mrb[0].mxu0 %v246
    %v2484 = vpop.f32.mrb[0].mxu0
    %v2485 = vadd.f32 0.0, %v2484
    %v2486 = vpop.f32.mrb[0].mxu0
    %v2487 = vadd.f32 0.0, %v2486
    %2488 = vdwg.mxu0
    %2489 = vmatprep.subr.mxu0 %v2381
    %2490 = vmatpush1.msra.mxu0 %v2380
    %2491 = vmatprep.subr.mxu0 %v2383
    %2492 = vmatpush1.msra.mxu0 %v2382
    %2493 = vmatprep.subr.mxu0 %v2385
    %2494 = vmatpush1.msra.mxu0 %v2384
    %2495 = vmatprep.subr.mxu0 %v2387
    %2496 = vmatpush1.msra.mxu0 %v2386
    %2497 = vmatprep.subr.mxu0 %v2389
    %2498 = vmatpush1.msra.mxu0 %v2388
    %2499 = vmatprep.subr.mxu0 %v2391
    %2500 = vmatpush1.msra.mxu0 %v2390
    %2501 = vmatprep.subr.mxu0 %v2393
    %2502 = vmatpush1.msra.mxu0 %v2392
    %2503 = vmatprep.subr.mxu0 %v2395
    %2504 = vmatpush1.msra.mxu0 %v2394
    %2505 = vmatprep.subr.mxu0 %v2397
    %2506 = vmatpush1.msra.mxu0 %v2396
    %2507 = vmatprep.subr.mxu0 %v2399
    %2508 = vmatpush1.msra.mxu0 %v2398
    %2509 = vmatprep.subr.mxu0 %v2401
    %2510 = vmatpush1.msra.mxu0 %v2400
    %2511 = vmatprep.subr.mxu0 %v2403
    %2512 = vmatpush1.msra.mxu0 %v2402
    %2513 = vmatprep.subr.mxu0 %v2405
    %2514 = vmatpush1.msra.mxu0 %v2404
    %2515 = vmatprep.subr.mxu0 %v2407
    %2516 = vmatpush1.msra.mxu0 %v2406
    %2517 = vmatprep.subr.mxu0 %v2409
    %2518 = vmatpush1.msra.mxu0 %v2408
    %2519 = vmatprep.subr.mxu0 %v2411
    %2520 = vmatpush1.msra.mxu0 %v2410
    %2521 = vmatprep.subr.mxu0 0.0
    %2522 = vmatpush1.msra.mxu0 0.0
    %2523 = vmatprep.subr.mxu0 0.0
    %2524 = vmatpush1.msra.mxu0 0.0
    %2525 = vmatprep.subr.mxu0 0.0
    %2526 = vmatpush1.msra.mxu0 0.0
    %2527 = vmatprep.subr.mxu0 0.0
    %2528 = vmatpush1.msra.mxu0 0.0
    %2529 = vmatprep.subr.mxu0 0.0
    %2530 = vmatpush1.msra.mxu0 0.0
    %2531 = vmatprep.subr.mxu0 0.0
    %2532 = vmatpush1.msra.mxu0 0.0
    %2533 = vmatprep.subr.mxu0 0.0
    %2534 = vmatpush1.msra.mxu0 0.0
    %2535 = vmatprep.subr.mxu0 0.0
    %2536 = vmatpush1.msra.mxu0 0.0
    %2537 = vmatprep.subr.mxu0 0.0
    %2538 = vmatpush1.msra.mxu0 0.0
    %2539 = vmatprep.subr.mxu0 0.0
    %2540 = vmatpush1.msra.mxu0 0.0
    %2541 = vmatprep.subr.mxu0 0.0
    %2542 = vmatpush1.msra.mxu0 0.0
    %2543 = vmatprep.subr.mxu0 0.0
    %2544 = vmatpush1.msra.mxu0 0.0
    %2545 = vmatprep.subr.mxu0 0.0
    %2546 = vmatpush1.msra.mxu0 0.0
    %2547 = vmatprep.subr.mxu0 0.0
    %2548 = vmatpush1.msra.mxu0 0.0
    %2549 = vmatprep.subr.mxu0 0.0
    %2550 = vmatpush1.msra.mxu0 0.0
    %2551 = vmatprep.subr.mxu0 0.0
    %2552 = vmatpush1.msra.mxu0 0.0
    %2553 = vmatprep.mubr.f32.mxu0 0.0
    %2554 = vmatmul.mubr.f32.gmra.mrb[0].mxu0 %v248
    %v2555 = vpop.f32.mrb[0].mxu0
    %v2556 = vadd.f32 0.0, %v2555
    %v2557 = vpop.f32.mrb[0].mxu0
    %v2558 = vadd.f32 0.0, %v2557
    %2559 = vmatprep.mubr.f32.mxu0 0.0
    %2560 = vmatmul.mubr.f32.gmra.mrb[0].mxu0 %v249
    %v2561 = vpop.f32.mrb[0].mxu0
    %v2562 = vadd.f32 0.0, %v2561
    %v2563 = vpop.f32.mrb[0].mxu0
    %v2564 = vadd.f32 0.0, %v2563
    %2565 = vdwg.mxu0
    %v2566 = vadd.f32 %v2479, %v2485
    %v2567 = vrot.slane %v2566, 4
    %v2568 = vadd.f32 %v2566, %v2567
    %v2569 = vrot.slane %v2568, 2
    %v2570 = vadd.f32 %v2568, %v2569
    %v2571 = vrot.slane %v2570, 1
    %v2572 = vadd.f32 %v2570, %v2571
    %v2573 = vsel %vm443, %v2481, 0.0
    %v2574 = vsel %vm443, %v2487, 0.0
    %v2575 = vadd.f32 %v2573, %v2574
    %v2576 = vrot.slane %v2575, 4
    %v2577 = vadd.f32 %v2575, %v2576
    %v2578 = vrot.slane %v2577, 2
    %v2579 = vadd.f32 %v2577, %v2578
    %v2580 = vrot.slane %v2579, 1
    %v2581 = vadd.f32 %v2579, %v2580
    %v2582 = vmul.f32 %v2479, %v2479
    %v2583 = vmul.f32 %v2481, %v2481
    %v2584 = vmul.f32 %v2485, %v2485
    %v2585 = vmul.f32 %v2487, %v2487
    %v2586 = vadd.f32 %v2582, %v2584
    %v2587 = vrot.slane %v2586, 4
    %v2588 = vadd.f32 %v2586, %v2587
    %v2589 = vrot.slane %v2588, 2
    %v2590 = vadd.f32 %v2588, %v2589
    %v2591 = vrot.slane %v2590, 1
    %v2592 = vadd.f32 %v2590, %v2591
    %v2593 = vsel %vm443, %v2583, 0.0
    %v2594 = vsel %vm443, %v2585, 0.0
    %v2595 = vadd.f32 %v2593, %v2594
    %v2596 = vrot.slane %v2595, 4
    %v2597 = vadd.f32 %v2595, %v2596
    %v2598 = vrot.slane %v2597, 2
    %v2599 = vadd.f32 %v2597, %v2598
    %v2600 = vrot.slane %v2599, 1
    %v2601 = vadd.f32 %v2599, %v2600
    %v2602 = vadd.f32 %v2556, %v2562
    %v2603 = vrot.slane %v2602, 4
    %v2604 = vadd.f32 %v2602, %v2603
    %v2605 = vrot.slane %v2604, 2
    %v2606 = vadd.f32 %v2604, %v2605
    %v2607 = vrot.slane %v2606, 1
    %v2608 = vadd.f32 %v2606, %v2607
    %v2609 = vsel %vm443, %v2558, 0.0
    %v2610 = vsel %vm443, %v2564, 0.0
    %v2611 = vadd.f32 %v2609, %v2610
    %v2612 = vrot.slane %v2611, 4
    %v2613 = vadd.f32 %v2611, %v2612
    %v2614 = vrot.slane %v2613, 2
    %v2615 = vadd.f32 %v2613, %v2614
    %v2616 = vrot.slane %v2615, 1
    %v2617 = vadd.f32 %v2615, %v2616
    %v2618 = vadd.f32 %v2572, %v2608
    %v2619 = vadd.f32 %v2581, %v2617
    %v2620 = vmul.f32 %v2556, %v2556
    %v2621 = vmul.f32 %v2558, %v2558
    %v2622 = vmul.f32 %v2562, %v2562
    %v2623 = vmul.f32 %v2564, %v2564
    %v2624 = vadd.f32 %v2620, %v2622
    %v2625 = vrot.slane %v2624, 4
    %v2626 = vadd.f32 %v2624, %v2625
    %v2627 = vrot.slane %v2626, 2
    %v2628 = vadd.f32 %v2626, %v2627
    %v2629 = vrot.slane %v2628, 1
    %v2630 = vadd.f32 %v2628, %v2629
    %v2631 = vsel %vm443, %v2621, 0.0
    %v2632 = vsel %vm443, %v2623, 0.0
    %v2633 = vadd.f32 %v2631, %v2632
    %v2634 = vrot.slane %v2633, 4
    %v2635 = vadd.f32 %v2633, %v2634
    %v2636 = vrot.slane %v2635, 2
    %v2637 = vadd.f32 %v2635, %v2636
    %v2638 = vrot.slane %v2637, 1
    %v2639 = vadd.f32 %v2637, %v2638
    %v2640 = vadd.f32 %v2592, %v2630
    %v2641 = vadd.f32 %v2601, %v2639
    %v2642 = vmul.f32 %v2618, 0.03125
    %v2643 = vmul.f32 %v2619, 0.03125
    %v2644 = vmul.f32 %v2640, 0.03125
    %v2645 = vmul.f32 %v2641, 0.03125
    %v2646 = vmul.f32 %v2642, %v2642
    %v2647 = vmul.f32 %v2643, %v2643
    %v2648 = vsub.f32 %v2644, %v2646
    %v2649 = vsub.f32 %v2645, %v2647
    %v2650 = vld [vmem:[#allocation9] sm:$0x3]
    %v2651 = vadd.f32 %v2648, 1e-05
    %v2652 = vadd.f32 %v2649, 1e-05
    %v2653 = vrsqrt.pop %v2651
    %v2654 = vrsqrt.pop %v2652
    %v2657 = vcombine.low %v2653, %v2654
    %v2659 = vunpack.c.l.s4 1966171168
    %v2660 = vunpack.c.0.s8 %v2659
    %v2661 = vlaneseq
    %v2662 = vshrl.u32 %v2661, 7
    %v2663 = vsub.s32 %v2660, %v2662
    %v2664 = vrot.slane %v2657, %v2663
    %v2666 = vunpack.c.l.s4 1966171168
    %v2667 = vunpack.c.0.s8 %v2666
    %v2668 = vlaneseq
    %v2669 = vshrl.u32 %v2668, 7
    %v2670 = vsub.s32 %v2667, %v2669
    %v2671 = vrot.slane %v2664, %v2670
    %v2673 = vmul.f32 %v2650, %v2671
    %v2674 = vld [vmem:[#allocation10] sm:$0x3]
    %v2676 = vlaneseq
    %v2677 = vshrl.u32 %v2676, 7
    %v2678 = vsub.s32 0, %v2677
    %v2679 = vrot.slane %v2673, %v2678
    %v2680 = vlaneseq
    %v2681 = vshrl.u32 %v2680, 7
    %v2682 = vsub.s32 1, %v2681
    %v2683 = vrot.slane %v2673, %v2682
    %v2686 = vmul.f32 %v2642, %v2679
    %v2687 = vmul.f32 %v2643, %v2683
    %v2690 = vcombine.low %v2686, %v2687
    %v2692 = vunpack.c.l.s4 1966171168
    %v2693 = vunpack.c.0.s8 %v2692
    %v2694 = vlaneseq
    %v2695 = vshrl.u32 %v2694, 7
    %v2696 = vsub.s32 %v2693, %v2695
    %v2697 = vrot.slane %v2690, %v2696
    %v2699 = vunpack.c.l.s4 1966171168
    %v2700 = vunpack.c.0.s8 %v2699
    %v2701 = vlaneseq
    %v2702 = vshrl.u32 %v2701, 7
    %v2703 = vsub.s32 %v2700, %v2702
    %v2704 = vrot.slane %v2697, %v2703
    %v2706 = vsub.f32 %v2674, %v2704
    %v2707 = vmul.f32 %v2479, %v2679
    %v2708 = vmul.f32 %v2481, %v2683
    %v2709 = vmul.f32 %v2485, %v2679
    %v2710 = vmul.f32 %v2487, %v2683
    %v2712 = vlaneseq
    %v2713 = vshrl.u32 %v2712, 7
    %v2714 = vsub.s32 0, %v2713
    %v2715 = vrot.slane %v2706, %v2714
    %v2716 = vlaneseq
    %v2717 = vshrl.u32 %v2716, 7
    %v2718 = vsub.s32 1, %v2717
    %v2719 = vrot.slane %v2706, %v2718
    %v2722 = vadd.f32 %v2707, %v2715
    %v2723 = vadd.f32 %v2708, %v2719
    %v2724 = vadd.f32 %v2709, %v2715
    %v2725 = vadd.f32 %v2710, %v2719
    %v2726 = vmax.f32 %v2722, 0.0
    %v2727 = vmax.f32 %v2723, 0.0
    %v2728 = vmax.f32 %v2724, 0.0
    %v2729 = vmax.f32 %v2725, 0.0
    %v2730 = vmul.f32 %v2556, %v2679
    %v2731 = vmul.f32 %v2558, %v2683
    %v2732 = vmul.f32 %v2562, %v2679
    %v2733 = vmul.f32 %v2564, %v2683
    %v2734 = vadd.f32 %v2730, %v2715
    %v2735 = vadd.f32 %v2731, %v2719
    %v2736 = vadd.f32 %v2732, %v2715
    %v2737 = vadd.f32 %v2733, %v2719
    %v2738 = vmax.f32 %v2734, 0.0
    %v2739 = vmax.f32 %v2735, 0.0
    %v2740 = vmax.f32 %v2736, 0.0
    %v2741 = vmax.f32 %v2737, 0.0
    %v2742 = vadd.s32 %v614, 8
    %v2743 = vadd.s32 %v614, 4294967293
    %v2744 = vadd.s32 %v2742, 4294967293
    %vm2745 = vcmp.eq.s32.totalorder %v616, %v2743
    %vm2746 = vcmp.eq.s32.totalorder %v616, %v2744
    %v2747 = vsel %vm2745, 1, 0
    %v2748 = vsel %vm2746, 1, 0
    %v2749 = vcvt.s32.f32 %v2747
    %v2750 = vcvt.s32.f32 %v2748
    %v2751 = vadd.s32 %v614, 4294967294
    %v2752 = vadd.s32 %v2742, 4294967294
    %vm2753 = vcmp.eq.s32.totalorder %v616, %v2751
    %vm2754 = vcmp.eq.s32.totalorder %v616, %v2752
    %v2755 = vsel %vm2753, 1, 0
    %v2756 = vsel %vm2754, 1, 0
    %v2757 = vcvt.s32.f32 %v2755
    %v2758 = vcvt.s32.f32 %v2756
    %v2759 = vadd.s32 %v614, 4294967295
    %v2760 = vadd.s32 %v2742, 4294967295
    %vm2761 = vcmp.eq.s32.totalorder %v616, %v2759
    %vm2762 = vcmp.eq.s32.totalorder %v616, %v2760
    %v2763 = vsel %vm2761, 1, 0
    %v2764 = vsel %vm2762, 1, 0
    %v2765 = vcvt.s32.f32 %v2763
    %v2766 = vcvt.s32.f32 %v2764
    %vm2767 = vcmp.eq.s32.totalorder %v616, %v614
    %vm2768 = vcmp.eq.s32.totalorder %v616, %v2742
    %v2769 = vsel %vm2767, 1, 0
    %v2770 = vsel %vm2768, 1, 0
    %v2771 = vcvt.s32.f32 %v2769
    %v2772 = vcvt.s32.f32 %v2770
    %v2773 = vadd.s32 %v614, 1
    %v2774 = vadd.s32 %v2742, 1
    %vm2775 = vcmp.eq.s32.totalorder %v616, %v2773
    %vm2776 = vcmp.eq.s32.totalorder %v616, %v2774
    %v2777 = vsel %vm2775, 1, 0
    %v2778 = vsel %vm2776, 1, 0
    %v2779 = vcvt.s32.f32 %v2777
    %v2780 = vcvt.s32.f32 %v2778
    %v2781 = vadd.s32 %v614, 2
    %v2782 = vadd.s32 %v2742, 2
    %vm2783 = vcmp.eq.s32.totalorder %v616, %v2781
    %vm2784 = vcmp.eq.s32.totalorder %v616, %v2782
    %v2785 = vsel %vm2783, 1, 0
    %v2786 = vsel %vm2784, 1, 0
    %v2787 = vcvt.s32.f32 %v2785
    %v2788 = vcvt.s32.f32 %v2786
    %v2789 = vadd.s32 %v614, 3
    %v2790 = vadd.s32 %v2742, 3
    %vm2791 = vcmp.eq.s32.totalorder %v616, %v2789
    %vm2792 = vcmp.eq.s32.totalorder %v616, %v2790
    %v2793 = vsel %vm2791, 1, 0
    %v2794 = vsel %vm2792, 1, 0
    %v2795 = vcvt.s32.f32 %v2793
    %v2796 = vcvt.s32.f32 %v2794
    %v2798 = vsel %vm629, %v2749, 0
    %v2801 = vsel %vm629, %v2750, 0
    %2803 = vmatprep.subr.mxu0 %v2727
    %2804 = vmatpush1.msra.mxu0 %v2726
    %2805 = vmatprep.subr.mxu0 %v2729
    %2806 = vmatpush1.msra.mxu0 %v2728
    %2807 = vmatprep.subr.mxu0 0.0
    %2808 = vmatpush1.msra.mxu0 0.0
    %2809 = vmatprep.subr.mxu0 0.0
    %2810 = vmatpush1.msra.mxu0 0.0
    %2811 = vmatprep.subr.mxu0 0.0
    %2812 = vmatpush1.msra.mxu0 0.0
    %2813 = vmatprep.subr.mxu0 0.0
    %2814 = vmatpush1.msra.mxu0 0.0
    %2815 = vmatprep.subr.mxu0 0.0
    %2816 = vmatpush1.msra.mxu0 0.0
    %2817 = vmatprep.subr.mxu0 0.0
    %2818 = vmatpush1.msra.mxu0 0.0
    %2819 = vmatprep.subr.mxu0 0.0
    %2820 = vmatpush1.msra.mxu0 0.0
    %2821 = vmatprep.subr.mxu0 0.0
    %2822 = vmatpush1.msra.mxu0 0.0
    %2823 = vmatprep.subr.mxu0 0.0
    %2824 = vmatpush1.msra.mxu0 0.0
    %2825 = vmatprep.subr.mxu0 0.0
    %2826 = vmatpush1.msra.mxu0 0.0
    %2827 = vmatprep.subr.mxu0 0.0
    %2828 = vmatpush1.msra.mxu0 0.0
    %2829 = vmatprep.subr.mxu0 0.0
    %2830 = vmatpush1.msra.mxu0 0.0
    %2831 = vmatprep.subr.mxu0 0.0
    %2832 = vmatpush1.msra.mxu0 0.0
    %2833 = vmatprep.subr.mxu0 0.0
    %2834 = vmatpush1.msra.mxu0 0.0
    %2835 = vmatprep.subr.mxu0 0.0
    %2836 = vmatpush1.msra.mxu0 0.0
    %2837 = vmatprep.subr.mxu0 0.0
    %2838 = vmatpush1.msra.mxu0 0.0
    %2839 = vmatprep.subr.mxu0 0.0
    %2840 = vmatpush1.msra.mxu0 0.0
    %2841 = vmatprep.subr.mxu0 0.0
    %2842 = vmatpush1.msra.mxu0 0.0
    %2843 = vmatprep.subr.mxu0 0.0
    %2844 = vmatpush1.msra.mxu0 0.0
    %2845 = vmatprep.subr.mxu0 0.0
    %2846 = vmatpush1.msra.mxu0 0.0
    %2847 = vmatprep.subr.mxu0 0.0
    %2848 = vmatpush1.msra.mxu0 0.0
    %2849 = vmatprep.subr.mxu0 0.0
    %2850 = vmatpush1.msra.mxu0 0.0
    %2851 = vmatprep.subr.mxu0 0.0
    %2852 = vmatpush1.msra.mxu0 0.0
    %2853 = vmatprep.subr.mxu0 0.0
    %2854 = vmatpush1.msra.mxu0 0.0
    %2855 = vmatprep.subr.mxu0 0.0
    %2856 = vmatpush1.msra.mxu0 0.0
    %2857 = vmatprep.subr.mxu0 0.0
    %2858 = vmatpush1.msra.mxu0 0.0
    %2859 = vmatprep.subr.mxu0 0.0
    %2860 = vmatpush1.msra.mxu0 0.0
    %2861 = vmatprep.subr.mxu0 0.0
    %2862 = vmatpush1.msra.mxu0 0.0
    %2863 = vmatprep.subr.mxu0 0.0
    %2864 = vmatpush1.msra.mxu0 0.0
    %2865 = vmatprep.subr.mxu0 0.0
    %2866 = vmatpush1.msra.mxu0 0.0
    %2867 = vmatprep.mubr.f32.mxu0 0.0
    %2868 = vmatmul.mubr.f32.gmra.mrb[0].mxu0 %v2798
    %v2869 = vpop.f32.mrb[0].mxu0
    %v2870 = vadd.f32 0.0, %v2869
    %v2871 = vpop.f32.mrb[0].mxu0
    %v2872 = vadd.f32 0.0, %v2871
    %2873 = vmatprep.mubr.f32.mxu0 0.0
    %2874 = vmatmul.mubr.f32.gmra.mrb[0].mxu0 %v2801
    %v2875 = vpop.f32.mrb[0].mxu0
    %v2876 = vadd.f32 0.0, %v2875
    %v2877 = vpop.f32.mrb[0].mxu0
    %v2878 = vadd.f32 0.0, %v2877
    %2879 = vdwg.mxu0
    %v2881 = vsel %vm629, %v2757, 0
    %v2884 = vsel %vm629, %v2758, 0
    %2886 = vmatprep.subr.mxu0 %v2727
    %2887 = vmatpush1.msra.mxu0 %v2726
    %2888 = vmatprep.subr.mxu0 %v2729
    %2889 = vmatpush1.msra.mxu0 %v2728
    %2890 = vmatprep.subr.mxu0 0.0
    %2891 = vmatpush1.msra.mxu0 0.0
    %2892 = vmatprep.subr.mxu0 0.0
    %2893 = vmatpush1.msra.mxu0 0.0
    %2894 = vmatprep.subr.mxu0 0.0
    %2895 = vmatpush1.msra.mxu0 0.0
    %2896 = vmatprep.subr.mxu0 0.0
    %2897 = vmatpush1.msra.mxu0 0.0
    %2898 = vmatprep.subr.mxu0 0.0
    %2899 = vmatpush1.msra.mxu0 0.0
    %2900 = vmatprep.subr.mxu0 0.0
    %2901 = vmatpush1.msra.mxu0 0.0
    %2902 = vmatprep.subr.mxu0 0.0
    %2903 = vmatpush1.msra.mxu0 0.0
    %2904 = vmatprep.subr.mxu0 0.0
    %2905 = vmatpush1.msra.mxu0 0.0
    %2906 = vmatprep.subr.mxu0 0.0
    %2907 = vmatpush1.msra.mxu0 0.0
    %2908 = vmatprep.subr.mxu0 0.0
    %2909 = vmatpush1.msra.mxu0 0.0
    %2910 = vmatprep.subr.mxu0 0.0
    %2911 = vmatpush1.msra.mxu0 0.0
    %2912 = vmatprep.subr.mxu0 0.0
    %2913 = vmatpush1.msra.mxu0 0.0
    %2914 = vmatprep.subr.mxu0 0.0
    %2915 = vmatpush1.msra.mxu0 0.0
    %2916 = vmatprep.subr.mxu0 0.0
    %2917 = vmatpush1.msra.mxu0 0.0
    %2918 = vmatprep.subr.mxu0 0.0
    %2919 = vmatpush1.msra.mxu0 0.0
    %2920 = vmatprep.subr.mxu0 0.0
    %2921 = vmatpush1.msra.mxu0 0.0
    %2922 = vmatprep.subr.mxu0 0.0
    %2923 = vmatpush1.msra.mxu0 0.0
    %2924 = vmatprep.subr.mxu0 0.0
    %2925 = vmatpush1.msra.mxu0 0.0
    %2926 = vmatprep.subr.mxu0 0.0
    %2927 = vmatpush1.msra.mxu0 0.0
    %2928 = vmatprep.subr.mxu0 0.0
    %2929 = vmatpush1.msra.mxu0 0.0
    %2930 = vmatprep.subr.mxu0 0.0
    %2931 = vmatpush1.msra.mxu0 0.0
    %2932 = vmatprep.subr.mxu0 0.0
    %2933 = vmatpush1.msra.mxu0 0.0
    %2934 = vmatprep.subr.mxu0 0.0
    %2935 = vmatpush1.msra.mxu0 0.0
    %2936 = vmatprep.subr.mxu0 0.0
    %2937 = vmatpush1.msra.mxu0 0.0
    %2938 = vmatprep.subr.mxu0 0.0
    %2939 = vmatpush1.msra.mxu0 0.0
    %2940 = vmatprep.subr.mxu0 0.0
    %2941 = vmatpush1.msra.mxu0 0.0
    %2942 = vmatprep.subr.mxu0 0.0
    %2943 = vmatpush1.msra.mxu0 0.0
    %2944 = vmatprep.subr.mxu0 0.0
    %2945 = vmatpush1.msra.mxu0 0.0
    %2946 = vmatprep.subr.mxu0 0.0
    %2947 = vmatpush1.msra.mxu0 0.0
    %2948 = vmatprep.subr.mxu0 0.0
    %2949 = vmatpush1.msra.mxu0 0.0
    %2950 = vmatprep.mubr.f32.mxu0 0.0
    %2951 = vmatmul.mubr.f32.gmra.mrb[0].mxu0 %v2881
    %v2952 = vpop.f32.mrb[0].mxu0
    %v2953 = vadd.f32 0.0, %v2952
    %v2954 = vpop.f32.mrb[0].mxu0
    %v2955 = vadd.f32 0.0, %v2954
    %2956 = vmatprep.mubr.f32.mxu0 0.0
    %2957 = vmatmul.mubr.f32.gmra.mrb[0].mxu0 %v2884
    %v2958 = vpop.f32.mrb[0].mxu0
    %v2959 = vadd.f32 0.0, %v2958
    %v2960 = vpop.f32.mrb[0].mxu0
    %v2961 = vadd.f32 0.0, %v2960
    %2962 = vdwg.mxu0
    %v2964 = vsel %vm629, %v2765, 0
    %v2967 = vsel %vm629, %v2766, 0
    %2969 = vmatprep.subr.mxu0 %v2727
    %2970 = vmatpush1.msra.mxu0 %v2726
    %2971 = vmatprep.subr.mxu0 %v2729
    %2972 = vmatpush1.msra.mxu0 %v2728
    %2973 = vmatprep.subr.mxu0 0.0
    %2974 = vmatpush1.msra.mxu0 0.0
    %2975 = vmatprep.subr.mxu0 0.0
    %2976 = vmatpush1.msra.mxu0 0.0
    %2977 = vmatprep.subr.mxu0 0.0
    %2978 = vmatpush1.msra.mxu0 0.0
    %2979 = vmatprep.subr.mxu0 0.0
    %2980 = vmatpush1.msra.mxu0 0.0
    %2981 = vmatprep.subr.mxu0 0.0
    %2982 = vmatpush1.msra.mxu0 0.0
    %2983 = vmatprep.subr.mxu0 0.0
    %2984 = vmatpush1.msra.mxu0 0.0
    %2985 = vmatprep.subr.mxu0 0.0
    %2986 = vmatpush1.msra.mxu0 0.0
    %2987 = vmatprep.subr.mxu0 0.0
    %2988 = vmatpush1.msra.mxu0 0.0
    %2989 = vmatprep.subr.mxu0 0.0
    %2990 = vmatpush1.msra.mxu0 0.0
    %2991 = vmatprep.subr.mxu0 0.0
    %2992 = vmatpush1.msra.mxu0 0.0
    %2993 = vmatprep.subr.mxu0 0.0
    %2994 = vmatpush1.msra.mxu0 0.0
    %2995 = vmatprep.subr.mxu0 0.0
    %2996 = vmatpush1.msra.mxu0 0.0
    %2997 = vmatprep.subr.mxu0 0.0
    %2998 = vmatpush1.msra.mxu0 0.0
    %2999 = vmatprep.subr.mxu0 0.0
    %3000 = vmatpush1.msra.mxu0 0.0
    %3001 = vmatprep.subr.mxu0 0.0
    %3002 = vmatpush1.msra.mxu0 0.0
    %3003 = vmatprep.subr.mxu0 0.0
    %3004 = vmatpush1.msra.mxu0 0.0
    %3005 = vmatprep.subr.mxu0 0.0
    %3006 = vmatpush1.msra.mxu0 0.0
    %3007 = vmatprep.subr.mxu0 0.0
    %3008 = vmatpush1.msra.mxu0 0.0
    %3009 = vmatprep.subr.mxu0 0.0
    %3010 = vmatpush1.msra.mxu0 0.0
    %3011 = vmatprep.subr.mxu0 0.0
    %3012 = vmatpush1.msra.mxu0 0.0
    %3013 = vmatprep.subr.mxu0 0.0
    %3014 = vmatpush1.msra.mxu0 0.0
    %3015 = vmatprep.subr.mxu0 0.0
    %3016 = vmatpush1.msra.mxu0 0.0
    %3017 = vmatprep.subr.mxu0 0.0
    %3018 = vmatpush1.msra.mxu0 0.0
    %3019 = vmatprep.subr.mxu0 0.0
    %3020 = vmatpush1.msra.mxu0 0.0
    %3021 = vmatprep.subr.mxu0 0.0
    %3022 = vmatpush1.msra.mxu0 0.0
    %3023 = vmatprep.subr.mxu0 0.0
    %3024 = vmatpush1.msra.mxu0 0.0
    %3025 = vmatprep.subr.mxu0 0.0
    %3026 = vmatpush1.msra.mxu0 0.0
    %3027 = vmatprep.subr.mxu0 0.0
    %3028 = vmatpush1.msra.mxu0 0.0
    %3029 = vmatprep.subr.mxu0 0.0
    %3030 = vmatpush1.msra.mxu0 0.0
    %3031 = vmatprep.subr.mxu0 0.0
    %3032 = vmatpush1.msra.mxu0 0.0
    %3033 = vmatprep.mubr.f32.mxu0 0.0
    %3034 = vmatmul.mubr.f32.gmra.mrb[0].mxu0 %v2964
    %v3035 = vpop.f32.mrb[0].mxu0
    %v3036 = vadd.f32 0.0, %v3035
    %v3037 = vpop.f32.mrb[0].mxu0
    %v3038 = vadd.f32 0.0, %v3037
    %3039 = vmatprep.mubr.f32.mxu0 0.0
    %3040 = vmatmul.mubr.f32.gmra.mrb[0].mxu0 %v2967
    %v3041 = vpop.f32.mrb[0].mxu0
    %v3042 = vadd.f32 0.0, %v3041
    %v3043 = vpop.f32.mrb[0].mxu0
    %v3044 = vadd.f32 0.0, %v3043
    %3045 = vdwg.mxu0
    %v3047 = vsel %vm629, %v2771, 0
    %v3050 = vsel %vm629, %v2772, 0
    %3052 = vmatprep.subr.mxu0 %v2727
    %3053 = vmatpush1.msra.mxu0 %v2726
    %3054 = vmatprep.subr.mxu0 %v2729
    %3055 = vmatpush1.msra.mxu0 %v2728
    %3056 = vmatprep.subr.mxu0 0.0
    %3057 = vmatpush1.msra.mxu0 0.0
    %3058 = vmatprep.subr.mxu0 0.0
    %3059 = vmatpush1.msra.mxu0 0.0
    %3060 = vmatprep.subr.mxu0 0.0
    %3061 = vmatpush1.msra.mxu0 0.0
    %3062 = vmatprep.subr.mxu0 0.0
    %3063 = vmatpush1.msra.mxu0 0.0
    %3064 = vmatprep.subr.mxu0 0.0
    %3065 = vmatpush1.msra.mxu0 0.0
    %3066 = vmatprep.subr.mxu0 0.0
    %3067 = vmatpush1.msra.mxu0 0.0
    %3068 = vmatprep.subr.mxu0 0.0
    %3069 = vmatpush1.msra.mxu0 0.0
    %3070 = vmatprep.subr.mxu0 0.0
    %3071 = vmatpush1.msra.mxu0 0.0
    %3072 = vmatprep.subr.mxu0 0.0
    %3073 = vmatpush1.msra.mxu0 0.0
    %3074 = vmatprep.subr.mxu0 0.0
    %3075 = vmatpush1.msra.mxu0 0.0
    %3076 = vmatprep.subr.mxu0 0.0
    %3077 = vmatpush1.msra.mxu0 0.0
    %3078 = vmatprep.subr.mxu0 0.0
    %3079 = vmatpush1.msra.mxu0 0.0
    %3080 = vmatprep.subr.mxu0 0.0
    %3081 = vmatpush1.msra.mxu0 0.0
    %3082 = vmatprep.subr.mxu0 0.0
    %3083 = vmatpush1.msra.mxu0 0.0
    %3084 = vmatprep.subr.mxu0 0.0
    %3085 = vmatpush1.msra.mxu0 0.0
    %3086 = vmatprep.subr.mxu0 0.0
    %3087 = vmatpush1.msra.mxu0 0.0
    %3088 = vmatprep.subr.mxu0 0.0
    %3089 = vmatpush1.msra.mxu0 0.0
    %3090 = vmatprep.subr.mxu0 0.0
    %3091 = vmatpush1.msra.mxu0 0.0
    %3092 = vmatprep.subr.mxu0 0.0
    %3093 = vmatpush1.msra.mxu0 0.0
    %3094 = vmatprep.subr.mxu0 0.0
    %3095 = vmatpush1.msra.mxu0 0.0
    %3096 = vmatprep.subr.mxu0 0.0
    %3097 = vmatpush1.msra.mxu0 0.0
    %3098 = vmatprep.subr.mxu0 0.0
    %3099 = vmatpush1.msra.mxu0 0.0
    %3100 = vmatprep.subr.mxu0 0.0
    %3101 = vmatpush1.msra.mxu0 0.0
    %3102 = vmatprep.subr.mxu0 0.0
    %3103 = vmatpush1.msra.mxu0 0.0
    %3104 = vmatprep.subr.mxu0 0.0
    %3105 = vmatpush1.msra.mxu0 0.0
    %3106 = vmatprep.subr.mxu0 0.0
    %3107 = vmatpush1.msra.mxu0 0.0
    %3108 = vmatprep.subr.mxu0 0.0
    %3109 = vmatpush1.msra.mxu0 0.0
    %3110 = vmatprep.subr.mxu0 0.0
    %3111 = vmatpush1.msra.mxu0 0.0
    %3112 = vmatprep.subr.mxu0 0.0
    %3113 = vmatpush1.msra.mxu0 0.0
    %3114 = vmatprep.subr.mxu0 0.0
    %3115 = vmatpush1.msra.mxu0 0.0
    %3116 = vmatprep.mubr.f32.mxu0 0.0
    %3117 = vmatmul.mubr.f32.gmra.mrb[0].mxu0 %v3047
    %v3118 = vpop.f32.mrb[0].mxu0
    %v3119 = vadd.f32 0.0, %v3118
    %v3120 = vpop.f32.mrb[0].mxu0
    %v3121 = vadd.f32 0.0, %v3120
    %3122 = vmatprep.mubr.f32.mxu0 0.0
    %3123 = vmatmul.mubr.f32.gmra.mrb[0].mxu0 %v3050
    %v3124 = vpop.f32.mrb[0].mxu0
    %v3125 = vadd.f32 0.0, %v3124
    %v3126 = vpop.f32.mrb[0].mxu0
    %v3127 = vadd.f32 0.0, %v3126
    %3128 = vdwg.mxu0
    %v3130 = vsel %vm629, %v2779, 0
    %v3133 = vsel %vm629, %v2780, 0
    %3135 = vmatprep.subr.mxu0 %v2727
    %3136 = vmatpush1.msra.mxu0 %v2726
    %3137 = vmatprep.subr.mxu0 %v2729
    %3138 = vmatpush1.msra.mxu0 %v2728
    %3139 = vmatprep.subr.mxu0 0.0
    %3140 = vmatpush1.msra.mxu0 0.0
    %3141 = vmatprep.subr.mxu0 0.0
    %3142 = vmatpush1.msra.mxu0 0.0
    %3143 = vmatprep.subr.mxu0 0.0
    %3144 = vmatpush1.msra.mxu0 0.0
    %3145 = vmatprep.subr.mxu0 0.0
    %3146 = vmatpush1.msra.mxu0 0.0
    %3147 = vmatprep.subr.mxu0 0.0
    %3148 = vmatpush1.msra.mxu0 0.0
    %3149 = vmatprep.subr.mxu0 0.0
    %3150 = vmatpush1.msra.mxu0 0.0
    %3151 = vmatprep.subr.mxu0 0.0
    %3152 = vmatpush1.msra.mxu0 0.0
    %3153 = vmatprep.subr.mxu0 0.0
    %3154 = vmatpush1.msra.mxu0 0.0
    %3155 = vmatprep.subr.mxu0 0.0
    %3156 = vmatpush1.msra.mxu0 0.0
    %3157 = vmatprep.subr.mxu0 0.0
    %3158 = vmatpush1.msra.mxu0 0.0
    %3159 = vmatprep.subr.mxu0 0.0
    %3160 = vmatpush1.msra.mxu0 0.0
    %3161 = vmatprep.subr.mxu0 0.0
    %3162 = vmatpush1.msra.mxu0 0.0
    %3163 = vmatprep.subr.mxu0 0.0
    %3164 = vmatpush1.msra.mxu0 0.0
    %3165 = vmatprep.subr.mxu0 0.0
    %3166 = vmatpush1.msra.mxu0 0.0
    %3167 = vmatprep.subr.mxu0 0.0
    %3168 = vmatpush1.msra.mxu0 0.0
    %3169 = vmatprep.subr.mxu0 0.0
    %3170 = vmatpush1.msra.mxu0 0.0
    %3171 = vmatprep.subr.mxu0 0.0
    %3172 = vmatpush1.msra.mxu0 0.0
    %3173 = vmatprep.subr.mxu0 0.0
    %3174 = vmatpush1.msra.mxu0 0.0
    %3175 = vmatprep.subr.mxu0 0.0
    %3176 = vmatpush1.msra.mxu0 0.0
    %3177 = vmatprep.subr.mxu0 0.0
    %3178 = vmatpush1.msra.mxu0 0.0
    %3179 = vmatprep.subr.mxu0 0.0
    %3180 = vmatpush1.msra.mxu0 0.0
    %3181 = vmatprep.subr.mxu0 0.0
    %3182 = vmatpush1.msra.mxu0 0.0
    %3183 = vmatprep.subr.mxu0 0.0
    %3184 = vmatpush1.msra.mxu0 0.0
    %3185 = vmatprep.subr.mxu0 0.0
    %3186 = vmatpush1.msra.mxu0 0.0
    %3187 = vmatprep.subr.mxu0 0.0
    %3188 = vmatpush1.msra.mxu0 0.0
    %3189 = vmatprep.subr.mxu0 0.0
    %3190 = vmatpush1.msra.mxu0 0.0
    %3191 = vmatprep.subr.mxu0 0.0
    %3192 = vmatpush1.msra.mxu0 0.0
    %3193 = vmatprep.subr.mxu0 0.0
    %3194 = vmatpush1.msra.mxu0 0.0
    %3195 = vmatprep.subr.mxu0 0.0
    %3196 = vmatpush1.msra.mxu0 0.0
    %3197 = vmatprep.subr.mxu0 0.0
    %3198 = vmatpush1.msra.mxu0 0.0
    %3199 = vmatprep.mubr.f32.mxu0 0.0
    %3200 = vmatmul.mubr.f32.gmra.mrb[0].mxu0 %v3130
    %v3201 = vpop.f32.mrb[0].mxu0
    %v3202 = vadd.f32 0.0, %v3201
    %v3203 = vpop.f32.mrb[0].mxu0
    %v3204 = vadd.f32 0.0, %v3203
    %3205 = vmatprep.mubr.f32.mxu0 0.0
    %3206 = vmatmul.mubr.f32.gmra.mrb[0].mxu0 %v3133
    %v3207 = vpop.f32.mrb[0].mxu0
    %v3208 = vadd.f32 0.0, %v3207
    %v3209 = vpop.f32.mrb[0].mxu0
    %v3210 = vadd.f32 0.0, %v3209
    %3211 = vdwg.mxu0
    %v3213 = vsel %vm629, %v2787, 0
    %v3216 = vsel %vm629, %v2788, 0
    %3218 = vmatprep.subr.mxu0 %v2727
    %3219 = vmatpush1.msra.mxu0 %v2726
    %3220 = vmatprep.subr.mxu0 %v2729
    %3221 = vmatpush1.msra.mxu0 %v2728
    %3222 = vmatprep.subr.mxu0 0.0
    %3223 = vmatpush1.msra.mxu0 0.0
    %3224 = vmatprep.subr.mxu0 0.0
    %3225 = vmatpush1.msra.mxu0 0.0
    %3226 = vmatprep.subr.mxu0 0.0
    %3227 = vmatpush1.msra.mxu0 0.0
    %3228 = vmatprep.subr.mxu0 0.0
    %3229 = vmatpush1.msra.mxu0 0.0
    %3230 = vmatprep.subr.mxu0 0.0
    %3231 = vmatpush1.msra.mxu0 0.0
    %3232 = vmatprep.subr.mxu0 0.0
    %3233 = vmatpush1.msra.mxu0 0.0
    %3234 = vmatprep.subr.mxu0 0.0
    %3235 = vmatpush1.msra.mxu0 0.0
    %3236 = vmatprep.subr.mxu0 0.0
    %3237 = vmatpush1.msra.mxu0 0.0
    %3238 = vmatprep.subr.mxu0 0.0
    %3239 = vmatpush1.msra.mxu0 0.0
    %3240 = vmatprep.subr.mxu0 0.0
    %3241 = vmatpush1.msra.mxu0 0.0
    %3242 = vmatprep.subr.mxu0 0.0
    %3243 = vmatpush1.msra.mxu0 0.0
    %3244 = vmatprep.subr.mxu0 0.0
    %3245 = vmatpush1.msra.mxu0 0.0
    %3246 = vmatprep.subr.mxu0 0.0
    %3247 = vmatpush1.msra.mxu0 0.0
    %3248 = vmatprep.subr.mxu0 0.0
    %3249 = vmatpush1.msra.mxu0 0.0
    %3250 = vmatprep.subr.mxu0 0.0
    %3251 = vmatpush1.msra.mxu0 0.0
    %3252 = vmatprep.subr.mxu0 0.0
    %3253 = vmatpush1.msra.mxu0 0.0
    %3254 = vmatprep.subr.mxu0 0.0
    %3255 = vmatpush1.msra.mxu0 0.0
    %3256 = vmatprep.subr.mxu0 0.0
    %3257 = vmatpush1.msra.mxu0 0.0
    %3258 = vmatprep.subr.mxu0 0.0
    %3259 = vmatpush1.msra.mxu0 0.0
    %3260 = vmatprep.subr.mxu0 0.0
    %3261 = vmatpush1.msra.mxu0 0.0
    %3262 = vmatprep.subr.mxu0 0.0
    %3263 = vmatpush1.msra.mxu0 0.0
    %3264 = vmatprep.subr.mxu0 0.0
    %3265 = vmatpush1.msra.mxu0 0.0
    %3266 = vmatprep.subr.mxu0 0.0
    %3267 = vmatpush1.msra.mxu0 0.0
    %3268 = vmatprep.subr.mxu0 0.0
    %3269 = vmatpush1.msra.mxu0 0.0
    %3270 = vmatprep.subr.mxu0 0.0
    %3271 = vmatpush1.msra.mxu0 0.0
    %3272 = vmatprep.subr.mxu0 0.0
    %3273 = vmatpush1.msra.mxu0 0.0
    %3274 = vmatprep.subr.mxu0 0.0
    %3275 = vmatpush1.msra.mxu0 0.0
    %3276 = vmatprep.subr.mxu0 0.0
    %3277 = vmatpush1.msra.mxu0 0.0
    %3278 = vmatprep.subr.mxu0 0.0
    %3279 = vmatpush1.msra.mxu0 0.0
    %3280 = vmatprep.subr.mxu0 0.0
    %3281 = vmatpush1.msra.mxu0 0.0
    %3282 = vmatprep.mubr.f32.mxu0 0.0
    %3283 = vmatmul.mubr.f32.gmra.mrb[0].mxu0 %v3213
    %v3284 = vpop.f32.mrb[0].mxu0
    %v3285 = vadd.f32 0.0, %v3284
    %v3286 = vpop.f32.mrb[0].mxu0
    %v3287 = vadd.f32 0.0, %v3286
    %3288 = vmatprep.mubr.f32.mxu0 0.0
    %3289 = vmatmul.mubr.f32.gmra.mrb[0].mxu0 %v3216
    %v3290 = vpop.f32.mrb[0].mxu0
    %v3291 = vadd.f32 0.0, %v3290
    %v3292 = vpop.f32.mrb[0].mxu0
    %v3293 = vadd.f32 0.0, %v3292
    %3294 = vdwg.mxu0
    %v3296 = vsel %vm629, %v2795, 0
    %v3299 = vsel %vm629, %v2796, 0
    %3301 = vmatprep.subr.mxu0 %v2727
    %3302 = vmatpush1.msra.mxu0 %v2726
    %3303 = vmatprep.subr.mxu0 %v2729
    %3304 = vmatpush1.msra.mxu0 %v2728
    %3305 = vmatprep.subr.mxu0 0.0
    %3306 = vmatpush1.msra.mxu0 0.0
    %3307 = vmatprep.subr.mxu0 0.0
    %3308 = vmatpush1.msra.mxu0 0.0
    %3309 = vmatprep.subr.mxu0 0.0
    %3310 = vmatpush1.msra.mxu0 0.0
    %3311 = vmatprep.subr.mxu0 0.0
    %3312 = vmatpush1.msra.mxu0 0.0
    %3313 = vmatprep.subr.mxu0 0.0
    %3314 = vmatpush1.msra.mxu0 0.0
    %3315 = vmatprep.subr.mxu0 0.0
    %3316 = vmatpush1.msra.mxu0 0.0
    %3317 = vmatprep.subr.mxu0 0.0
    %3318 = vmatpush1.msra.mxu0 0.0
    %3319 = vmatprep.subr.mxu0 0.0
    %3320 = vmatpush1.msra.mxu0 0.0
    %3321 = vmatprep.subr.mxu0 0.0
    %3322 = vmatpush1.msra.mxu0 0.0
    %3323 = vmatprep.subr.mxu0 0.0
    %3324 = vmatpush1.msra.mxu0 0.0
    %3325 = vmatprep.subr.mxu0 0.0
    %3326 = vmatpush1.msra.mxu0 0.0
    %3327 = vmatprep.subr.mxu0 0.0
    %3328 = vmatpush1.msra.mxu0 0.0
    %3329 = vmatprep.subr.mxu0 0.0
    %3330 = vmatpush1.msra.mxu0 0.0
    %3331 = vmatprep.subr.mxu0 0.0
    %3332 = vmatpush1.msra.mxu0 0.0
    %3333 = vmatprep.subr.mxu0 0.0
    %3334 = vmatpush1.msra.mxu0 0.0
    %3335 = vmatprep.subr.mxu0 0.0
    %3336 = vmatpush1.msra.mxu0 0.0
    %3337 = vmatprep.subr.mxu0 0.0
    %3338 = vmatpush1.msra.mxu0 0.0
    %3339 = vmatprep.subr.mxu0 0.0
    %3340 = vmatpush1.msra.mxu0 0.0
    %3341 = vmatprep.subr.mxu0 0.0
    %3342 = vmatpush1.msra.mxu0 0.0
    %3343 = vmatprep.subr.mxu0 0.0
    %3344 = vmatpush1.msra.mxu0 0.0
    %3345 = vmatprep.subr.mxu0 0.0
    %3346 = vmatpush1.msra.mxu0 0.0
    %3347 = vmatprep.subr.mxu0 0.0
    %3348 = vmatpush1.msra.mxu0 0.0
    %3349 = vmatprep.subr.mxu0 0.0
    %3350 = vmatpush1.msra.mxu0 0.0
    %3351 = vmatprep.subr.mxu0 0.0
    %3352 = vmatpush1.msra.mxu0 0.0
    %3353 = vmatprep.subr.mxu0 0.0
    %3354 = vmatpush1.msra.mxu0 0.0
    %3355 = vmatprep.subr.mxu0 0.0
    %3356 = vmatpush1.msra.mxu0 0.0
    %3357 = vmatprep.subr.mxu0 0.0
    %3358 = vmatpush1.msra.mxu0 0.0
    %3359 = vmatprep.subr.mxu0 0.0
    %3360 = vmatpush1.msra.mxu0 0.0
    %3361 = vmatprep.subr.mxu0 0.0
    %3362 = vmatpush1.msra.mxu0 0.0
    %3363 = vmatprep.subr.mxu0 0.0
    %3364 = vmatpush1.msra.mxu0 0.0
    %3365 = vmatprep.mubr.f32.mxu0 0.0
    %3366 = vmatmul.mubr.f32.gmra.mrb[0].mxu0 %v3296
    %v3367 = vpop.f32.mrb[0].mxu0
    %v3368 = vadd.f32 0.0, %v3367
    %v3369 = vpop.f32.mrb[0].mxu0
    %v3370 = vadd.f32 0.0, %v3369
    %3371 = vmatprep.mubr.f32.mxu0 0.0
    %3372 = vmatmul.mubr.f32.gmra.mrb[0].mxu0 %v3299
    %v3373 = vpop.f32.mrb[0].mxu0
    %v3374 = vadd.f32 0.0, %v3373
    %v3375 = vpop.f32.mrb[0].mxu0
    %v3376 = vadd.f32 0.0, %v3375
    %3377 = vdwg.mxu0
    %3382 = vrot.lane.b32.xlu0 %v2953, 64
    %v3383 = vpop.permute.xlu0 %3382
    %3384 = vrot.lane.b32.xlu0 %v2955, 64
    %v3385 = vpop.permute.xlu0 %3384
    %3386 = vrot.lane.b32.xlu0 %v2959, 64
    %v3387 = vpop.permute.xlu0 %3386
    %3388 = vrot.lane.b32.xlu0 %v2961, 64
    %v3389 = vpop.permute.xlu0 %3388
    %v3390 = vsel %vm443, %v3383, %v3385
    %v3391 = vsel %vm443, %v3387, %v3389
    %3400 = vrot.lane.b32.xlu0 %v3119, 64
    %v3401 = vpop.permute.xlu0 %3400
    %3402 = vrot.lane.b32.xlu0 %v3121, 64
    %v3403 = vpop.permute.xlu0 %3402
    %3404 = vrot.lane.b32.xlu0 %v3125, 64
    %v3405 = vpop.permute.xlu0 %3404
    %3406 = vrot.lane.b32.xlu0 %v3127, 64
    %v3407 = vpop.permute.xlu0 %3406
    %v3408 = vsel %vm443, %v3401, %v3403
    %v3409 = vsel %vm443, %v3405, %v3407
    %3418 = vrot.lane.b32.xlu0 %v3285, 64
    %v3419 = vpop.permute.xlu0 %3418
    %3420 = vrot.lane.b32.xlu0 %v3287, 64
    %v3421 = vpop.permute.xlu0 %3420
    %3422 = vrot.lane.b32.xlu0 %v3291, 64
    %v3423 = vpop.permute.xlu0 %3422
    %3424 = vrot.lane.b32.xlu0 %v3293, 64
    %v3425 = vpop.permute.xlu0 %3424
    %v3426 = vsel %vm443, %v3419, %v3421
    %v3427 = vsel %vm443, %v3423, %v3425
    %v3432 = vsel %vm443, %v2872, %v3383
    %v3433 = vsel %vm443, %v2878, %v3387
    %v3434 = vsel %vm443, %v3038, %v3401
    %v3435 = vsel %vm443, %v3044, %v3405
    %v3436 = vsel %vm443, %v3204, %v3419
    %v3437 = vsel %vm443, %v3210, %v3423
    %3438 = vmatprep.subr.mxu0 %v2739
    %3439 = vmatpush1.msra.mxu0 %v2738
    %3440 = vmatprep.subr.mxu0 %v2741
    %3441 = vmatpush1.msra.mxu0 %v2740
    %3442 = vmatprep.subr.mxu0 0.0
    %3443 = vmatpush1.msra.mxu0 0.0
    %3444 = vmatprep.subr.mxu0 0.0
    %3445 = vmatpush1.msra.mxu0 0.0
    %3446 = vmatprep.subr.mxu0 0.0
    %3447 = vmatpush1.msra.mxu0 0.0
    %3448 = vmatprep.subr.mxu0 0.0
    %3449 = vmatpush1.msra.mxu0 0.0
    %3450 = vmatprep.subr.mxu0 0.0
    %3451 = vmatpush1.msra.mxu0 0.0
    %3452 = vmatprep.subr.mxu0 0.0
    %3453 = vmatpush1.msra.mxu0 0.0
    %3454 = vmatprep.subr.mxu0 0.0
    %3455 = vmatpush1.msra.mxu0 0.0
    %3456 = vmatprep.subr.mxu0 0.0
    %3457 = vmatpush1.msra.mxu0 0.0
    %3458 = vmatprep.subr.mxu0 0.0
    %3459 = vmatpush1.msra.mxu0 0.0
    %3460 = vmatprep.subr.mxu0 0.0
    %3461 = vmatpush1.msra.mxu0 0.0
    %3462 = vmatprep.subr.mxu0 0.0
    %3463 = vmatpush1.msra.mxu0 0.0
    %3464 = vmatprep.subr.mxu0 0.0
    %3465 = vmatpush1.msra.mxu0 0.0
    %3466 = vmatprep.subr.mxu0 0.0
    %3467 = vmatpush1.msra.mxu0 0.0
    %3468 = vmatprep.subr.mxu0 0.0
    %3469 = vmatpush1.msra.mxu0 0.0
    %3470 = vmatprep.subr.mxu0 0.0
    %3471 = vmatpush1.msra.mxu0 0.0
    %3472 = vmatprep.subr.mxu0 0.0
    %3473 = vmatpush1.msra.mxu0 0.0
    %3474 = vmatprep.subr.mxu0 0.0
    %3475 = vmatpush1.msra.mxu0 0.0
    %3476 = vmatprep.subr.mxu0 0.0
    %3477 = vmatpush1.msra.mxu0 0.0
    %3478 = vmatprep.subr.mxu0 0.0
    %3479 = vmatpush1.msra.mxu0 0.0
    %3480 = vmatprep.subr.mxu0 0.0
    %3481 = vmatpush1.msra.mxu0 0.0
    %3482 = vmatprep.subr.mxu0 0.0
    %3483 = vmatpush1.msra.mxu0 0.0
    %3484 = vmatprep.subr.mxu0 0.0
    %3485 = vmatpush1.msra.mxu0 0.0
    %3486 = vmatprep.subr.mxu0 0.0
    %3487 = vmatpush1.msra.mxu0 0.0
    %3488 = vmatprep.subr.mxu0 0.0
    %3489 = vmatpush1.msra.mxu0 0.0
    %3490 = vmatprep.subr.mxu0 0.0
    %3491 = vmatpush1.msra.mxu0 0.0
    %3492 = vmatprep.subr.mxu0 0.0
    %3493 = vmatpush1.msra.mxu0 0.0
    %3494 = vmatprep.subr.mxu0 0.0
    %3495 = vmatpush1.msra.mxu0 0.0
    %3496 = vmatprep.subr.mxu0 0.0
    %3497 = vmatpush1.msra.mxu0 0.0
    %3498 = vmatprep.subr.mxu0 0.0
    %3499 = vmatpush1.msra.mxu0 0.0
    %3500 = vmatprep.subr.mxu0 0.0
    %3501 = vmatpush1.msra.mxu0 0.0
    %3502 = vmatprep.mubr.f32.mxu0 0.0
    %3503 = vmatmul.mubr.f32.gmra.mrb[0].mxu0 %v2798
    %v3504 = vpop.f32.mrb[0].mxu0
    %v3505 = vadd.f32 0.0, %v3504
    %v3506 = vpop.f32.mrb[0].mxu0
    %v3507 = vadd.f32 0.0, %v3506
    %3508 = vmatprep.mubr.f32.mxu0 0.0
    %3509 = vmatmul.mubr.f32.gmra.mrb[0].mxu0 %v2801
    %v3510 = vpop.f32.mrb[0].mxu0
    %v3511 = vadd.f32 0.0, %v3510
    %v3512 = vpop.f32.mrb[0].mxu0
    %v3513 = vadd.f32 0.0, %v3512
    %3514 = vdwg.mxu0
    %3515 = vmatprep.subr.mxu0 %v2739
    %3516 = vmatpush1.msra.mxu0 %v2738
    %3517 = vmatprep.subr.mxu0 %v2741
    %3518 = vmatpush1.msra.mxu0 %v2740
    %3519 = vmatprep.subr.mxu0 0.0
    %3520 = vmatpush1.msra.mxu0 0.0
    %3521 = vmatprep.subr.mxu0 0.0
    %3522 = vmatpush1.msra.mxu0 0.0
    %3523 = vmatprep.subr.mxu0 0.0
    %3524 = vmatpush1.msra.mxu0 0.0
    %3525 = vmatprep.subr.mxu0 0.0
    %3526 = vmatpush1.msra.mxu0 0.0
    %3527 = vmatprep.subr.mxu0 0.0
    %3528 = vmatpush1.msra.mxu0 0.0
    %3529 = vmatprep.subr.mxu0 0.0
    %3530 = vmatpush1.msra.mxu0 0.0
    %3531 = vmatprep.subr.mxu0 0.0
    %3532 = vmatpush1.msra.mxu0 0.0
    %3533 = vmatprep.subr.mxu0 0.0
    %3534 = vmatpush1.msra.mxu0 0.0
    %3535 = vmatprep.subr.mxu0 0.0
    %3536 = vmatpush1.msra.mxu0 0.0
    %3537 = vmatprep.subr.mxu0 0.0
    %3538 = vmatpush1.msra.mxu0 0.0
    %3539 = vmatprep.subr.mxu0 0.0
    %3540 = vmatpush1.msra.mxu0 0.0
    %3541 = vmatprep.subr.mxu0 0.0
    %3542 = vmatpush1.msra.mxu0 0.0
    %3543 = vmatprep.subr.mxu0 0.0
    %3544 = vmatpush1.msra.mxu0 0.0
    %3545 = vmatprep.subr.mxu0 0.0
    %3546 = vmatpush1.msra.mxu0 0.0
    %3547 = vmatprep.subr.mxu0 0.0
    %3548 = vmatpush1.msra.mxu0 0.0
    %3549 = vmatprep.subr.mxu0 0.0
    %3550 = vmatpush1.msra.mxu0 0.0
    %3551 = vmatprep.subr.mxu0 0.0
    %3552 = vmatpush1.msra.mxu0 0.0
    %3553 = vmatprep.subr.mxu0 0.0
    %3554 = vmatpush1.msra.mxu0 0.0
    %3555 = vmatprep.subr.mxu0 0.0
    %3556 = vmatpush1.msra.mxu0 0.0
    %3557 = vmatprep.subr.mxu0 0.0
    %3558 = vmatpush1.msra.mxu0 0.0
    %3559 = vmatprep.subr.mxu0 0.0
    %3560 = vmatpush1.msra.mxu0 0.0
    %3561 = vmatprep.subr.mxu0 0.0
    %3562 = vmatpush1.msra.mxu0 0.0
    %3563 = vmatprep.subr.mxu0 0.0
    %3564 = vmatpush1.msra.mxu0 0.0
    %3565 = vmatprep.subr.mxu0 0.0
    %3566 = vmatpush1.msra.mxu0 0.0
    %3567 = vmatprep.subr.mxu0 0.0
    %3568 = vmatpush1.msra.mxu0 0.0
    %3569 = vmatprep.subr.mxu0 0.0
    %3570 = vmatpush1.msra.mxu0 0.0
    %3571 = vmatprep.subr.mxu0 0.0
    %3572 = vmatpush1.msra.mxu0 0.0
    %3573 = vmatprep.subr.mxu0 0.0
    %3574 = vmatpush1.msra.mxu0 0.0
    %3575 = vmatprep.subr.mxu0 0.0
    %3576 = vmatpush1.msra.mxu0 0.0
    %3577 = vmatprep.subr.mxu0 0.0
    %3578 = vmatpush1.msra.mxu0 0.0
    %3579 = vmatprep.mubr.f32.mxu0 0.0
    %3580 = vmatmul.mubr.f32.gmra.mrb[0].mxu0 %v2881
    %v3581 = vpop.f32.mrb[0].mxu0
    %v3582 = vadd.f32 0.0, %v3581
    %v3583 = vpop.f32.mrb[0].mxu0
    %v3584 = vadd.f32 0.0, %v3583
    %3585 = vmatprep.mubr.f32.mxu0 0.0
    %3586 = vmatmul.mubr.f32.gmra.mrb[0].mxu0 %v2884
    %v3587 = vpop.f32.mrb[0].mxu0
    %v3588 = vadd.f32 0.0, %v3587
    %v3589 = vpop.f32.mrb[0].mxu0
    %v3590 = vadd.f32 0.0, %v3589
    %3591 = vdwg.mxu0
    %3592 = vmatprep.subr.mxu0 %v2739
    %3593 = vmatpush1.msra.mxu0 %v2738
    %3594 = vmatprep.subr.mxu0 %v2741
    %3595 = vmatpush1.msra.mxu0 %v2740
    %3596 = vmatprep.subr.mxu0 0.0
    %3597 = vmatpush1.msra.mxu0 0.0
    %3598 = vmatprep.subr.mxu0 0.0
    %3599 = vmatpush1.msra.mxu0 0.0
    %3600 = vmatprep.subr.mxu0 0.0
    %3601 = vmatpush1.msra.mxu0 0.0
    %3602 = vmatprep.subr.mxu0 0.0
    %3603 = vmatpush1.msra.mxu0 0.0
    %3604 = vmatprep.subr.mxu0 0.0
    %3605 = vmatpush1.msra.mxu0 0.0
    %3606 = vmatprep.subr.mxu0 0.0
    %3607 = vmatpush1.msra.mxu0 0.0
    %3608 = vmatprep.subr.mxu0 0.0
    %3609 = vmatpush1.msra.mxu0 0.0
    %3610 = vmatprep.subr.mxu0 0.0
    %3611 = vmatpush1.msra.mxu0 0.0
    %3612 = vmatprep.subr.mxu0 0.0
    %3613 = vmatpush1.msra.mxu0 0.0
    %3614 = vmatprep.subr.mxu0 0.0
    %3615 = vmatpush1.msra.mxu0 0.0
    %3616 = vmatprep.subr.mxu0 0.0
    %3617 = vmatpush1.msra.mxu0 0.0
    %3618 = vmatprep.subr.mxu0 0.0
    %3619 = vmatpush1.msra.mxu0 0.0
    %3620 = vmatprep.subr.mxu0 0.0
    %3621 = vmatpush1.msra.mxu0 0.0
    %3622 = vmatprep.subr.mxu0 0.0
    %3623 = vmatpush1.msra.mxu0 0.0
    %3624 = vmatprep.subr.mxu0 0.0
    %3625 = vmatpush1.msra.mxu0 0.0
    %3626 = vmatprep.subr.mxu0 0.0
    %3627 = vmatpush1.msra.mxu0 0.0
    %3628 = vmatprep.subr.mxu0 0.0
    %3629 = vmatpush1.msra.mxu0 0.0
    %3630 = vmatprep.subr.mxu0 0.0
    %3631 = vmatpush1.msra.mxu0 0.0
    %3632 = vmatprep.subr.mxu0 0.0
    %3633 = vmatpush1.msra.mxu0 0.0
    %3634 = vmatprep.subr.mxu0 0.0
    %3635 = vmatpush1.msra.mxu0 0.0
    %3636 = vmatprep.subr.mxu0 0.0
    %3637 = vmatpush1.msra.mxu0 0.0
    %3638 = vmatprep.subr.mxu0 0.0
    %3639 = vmatpush1.msra.mxu0 0.0
    %3640 = vmatprep.subr.mxu0 0.0
    %3641 = vmatpush1.msra.mxu0 0.0
    %3642 = vmatprep.subr.mxu0 0.0
    %3643 = vmatpush1.msra.mxu0 0.0
    %3644 = vmatprep.subr.mxu0 0.0
    %3645 = vmatpush1.msra.mxu0 0.0
    %3646 = vmatprep.subr.mxu0 0.0
    %3647 = vmatpush1.msra.mxu0 0.0
    %3648 = vmatprep.subr.mxu0 0.0
    %3649 = vmatpush1.msra.mxu0 0.0
    %3650 = vmatprep.subr.mxu0 0.0
    %3651 = vmatpush1.msra.mxu0 0.0
    %3652 = vmatprep.subr.mxu0 0.0
    %3653 = vmatpush1.msra.mxu0 0.0
    %3654 = vmatprep.subr.mxu0 0.0
    %3655 = vmatpush1.msra.mxu0 0.0
    %3656 = vmatprep.mubr.f32.mxu0 0.0
    %3657 = vmatmul.mubr.f32.gmra.mrb[0].mxu0 %v2964
    %v3658 = vpop.f32.mrb[0].mxu0
    %v3659 = vadd.f32 0.0, %v3658
    %v3660 = vpop.f32.mrb[0].mxu0
    %v3661 = vadd.f32 0.0, %v3660
    %3662 = vmatprep.mubr.f32.mxu0 0.0
    %3663 = vmatmul.mubr.f32.gmra.mrb[0].mxu0 %v2967
    %v3664 = vpop.f32.mrb[0].mxu0
    %v3665 = vadd.f32 0.0, %v3664
    %v3666 = vpop.f32.mrb[0].mxu0
    %v3667 = vadd.f32 0.0, %v3666
    %3668 = vdwg.mxu0
    %3669 = vmatprep.subr.mxu0 %v2739
    %3670 = vmatpush1.msra.mxu0 %v2738
    %3671 = vmatprep.subr.mxu0 %v2741
    %3672 = vmatpush1.msra.mxu0 %v2740
    %3673 = vmatprep.subr.mxu0 0.0
    %3674 = vmatpush1.msra.mxu0 0.0
    %3675 = vmatprep.subr.mxu0 0.0
    %3676 = vmatpush1.msra.mxu0 0.0
    %3677 = vmatprep.subr.mxu0 0.0
    %3678 = vmatpush1.msra.mxu0 0.0
    %3679 = vmatprep.subr.mxu0 0.0
    %3680 = vmatpush1.msra.mxu0 0.0
    %3681 = vmatprep.subr.mxu0 0.0
    %3682 = vmatpush1.msra.mxu0 0.0
    %3683 = vmatprep.subr.mxu0 0.0
    %3684 = vmatpush1.msra.mxu0 0.0
    %3685 = vmatprep.subr.mxu0 0.0
    %3686 = vmatpush1.msra.mxu0 0.0
    %3687 = vmatprep.subr.mxu0 0.0
    %3688 = vmatpush1.msra.mxu0 0.0
    %3689 = vmatprep.subr.mxu0 0.0
    %3690 = vmatpush1.msra.mxu0 0.0
    %3691 = vmatprep.subr.mxu0 0.0
    %3692 = vmatpush1.msra.mxu0 0.0
    %3693 = vmatprep.subr.mxu0 0.0
    %3694 = vmatpush1.msra.mxu0 0.0
    %3695 = vmatprep.subr.mxu0 0.0
    %3696 = vmatpush1.msra.mxu0 0.0
    %3697 = vmatprep.subr.mxu0 0.0
    %3698 = vmatpush1.msra.mxu0 0.0
    %3699 = vmatprep.subr.mxu0 0.0
    %3700 = vmatpush1.msra.mxu0 0.0
    %3701 = vmatprep.subr.mxu0 0.0
    %3702 = vmatpush1.msra.mxu0 0.0
    %3703 = vmatprep.subr.mxu0 0.0
    %3704 = vmatpush1.msra.mxu0 0.0
    %3705 = vmatprep.subr.mxu0 0.0
    %3706 = vmatpush1.msra.mxu0 0.0
    %3707 = vmatprep.subr.mxu0 0.0
    %3708 = vmatpush1.msra.mxu0 0.0
    %3709 = vmatprep.subr.mxu0 0.0
    %3710 = vmatpush1.msra.mxu0 0.0
    %3711 = vmatprep.subr.mxu0 0.0
    %3712 = vmatpush1.msra.mxu0 0.0
    %3713 = vmatprep.subr.mxu0 0.0
    %3714 = vmatpush1.msra.mxu0 0.0
    %3715 = vmatprep.subr.mxu0 0.0
    %3716 = vmatpush1.msra.mxu0 0.0
    %3717 = vmatprep.subr.mxu0 0.0
    %3718 = vmatpush1.msra.mxu0 0.0
    %3719 = vmatprep.subr.mxu0 0.0
    %3720 = vmatpush1.msra.mxu0 0.0
    %3721 = vmatprep.subr.mxu0 0.0
    %3722 = vmatpush1.msra.mxu0 0.0
    %3723 = vmatprep.subr.mxu0 0.0
    %3724 = vmatpush1.msra.mxu0 0.0
    %3725 = vmatprep.subr.mxu0 0.0
    %3726 = vmatpush1.msra.mxu0 0.0
    %3727 = vmatprep.subr.mxu0 0.0
    %3728 = vmatpush1.msra.mxu0 0.0
    %3729 = vmatprep.subr.mxu0 0.0
    %3730 = vmatpush1.msra.mxu0 0.0
    %3731 = vmatprep.subr.mxu0 0.0
    %3732 = vmatpush1.msra.mxu0 0.0
    %3733 = vmatprep.mubr.f32.mxu0 0.0
    %3734 = vmatmul.mubr.f32.gmra.mrb[0].mxu0 %v3047
    %v3735 = vpop.f32.mrb[0].mxu0
    %v3736 = vadd.f32 0.0, %v3735
    %v3737 = vpop.f32.mrb[0].mxu0
    %v3738 = vadd.f32 0.0, %v3737
    %3739 = vmatprep.mubr.f32.mxu0 0.0
    %3740 = vmatmul.mubr.f32.gmra.mrb[0].mxu0 %v3050
    %v3741 = vpop.f32.mrb[0].mxu0
    %v3742 = vadd.f32 0.0, %v3741
    %v3743 = vpop.f32.mrb[0].mxu0
    %v3744 = vadd.f32 0.0, %v3743
    %3745 = vdwg.mxu0
    %3746 = vmatprep.subr.mxu0 %v2739
    %3747 = vmatpush1.msra.mxu0 %v2738
    %3748 = vmatprep.subr.mxu0 %v2741
    %3749 = vmatpush1.msra.mxu0 %v2740
    %3750 = vmatprep.subr.mxu0 0.0
    %3751 = vmatpush1.msra.mxu0 0.0
    %3752 = vmatprep.subr.mxu0 0.0
    %3753 = vmatpush1.msra.mxu0 0.0
    %3754 = vmatprep.subr.mxu0 0.0
    %3755 = vmatpush1.msra.mxu0 0.0
    %3756 = vmatprep.subr.mxu0 0.0
    %3757 = vmatpush1.msra.mxu0 0.0
    %3758 = vmatprep.subr.mxu0 0.0
    %3759 = vmatpush1.msra.mxu0 0.0
    %3760 = vmatprep.subr.mxu0 0.0
    %3761 = vmatpush1.msra.mxu0 0.0
    %3762 = vmatprep.subr.mxu0 0.0
    %3763 = vmatpush1.msra.mxu0 0.0
    %3764 = vmatprep.subr.mxu0 0.0
    %3765 = vmatpush1.msra.mxu0 0.0
    %3766 = vmatprep.subr.mxu0 0.0
    %3767 = vmatpush1.msra.mxu0 0.0
    %3768 = vmatprep.subr.mxu0 0.0
    %3769 = vmatpush1.msra.mxu0 0.0
    %3770 = vmatprep.subr.mxu0 0.0
    %3771 = vmatpush1.msra.mxu0 0.0
    %3772 = vmatprep.subr.mxu0 0.0
    %3773 = vmatpush1.msra.mxu0 0.0
    %3774 = vmatprep.subr.mxu0 0.0
    %3775 = vmatpush1.msra.mxu0 0.0
    %3776 = vmatprep.subr.mxu0 0.0
    %3777 = vmatpush1.msra.mxu0 0.0
    %3778 = vmatprep.subr.mxu0 0.0
    %3779 = vmatpush1.msra.mxu0 0.0
    %3780 = vmatprep.subr.mxu0 0.0
    %3781 = vmatpush1.msra.mxu0 0.0
    %3782 = vmatprep.subr.mxu0 0.0
    %3783 = vmatpush1.msra.mxu0 0.0
    %3784 = vmatprep.subr.mxu0 0.0
    %3785 = vmatpush1.msra.mxu0 0.0
    %3786 = vmatprep.subr.mxu0 0.0
    %3787 = vmatpush1.msra.mxu0 0.0
    %3788 = vmatprep.subr.mxu0 0.0
    %3789 = vmatpush1.msra.mxu0 0.0
    %3790 = vmatprep.subr.mxu0 0.0
    %3791 = vmatpush1.msra.mxu0 0.0
    %3792 = vmatprep.subr.mxu0 0.0
    %3793 = vmatpush1.msra.mxu0 0.0
    %3794 = vmatprep.subr.mxu0 0.0
    %3795 = vmatpush1.msra.mxu0 0.0
    %3796 = vmatprep.subr.mxu0 0.0
    %3797 = vmatpush1.msra.mxu0 0.0
    %3798 = vmatprep.subr.mxu0 0.0
    %3799 = vmatpush1.msra.mxu0 0.0
    %3800 = vmatprep.subr.mxu0 0.0
    %3801 = vmatpush1.msra.mxu0 0.0
    %3802 = vmatprep.subr.mxu0 0.0
    %3803 = vmatpush1.msra.mxu0 0.0
    %3804 = vmatprep.subr.mxu0 0.0
    %3805 = vmatpush1.msra.mxu0 0.0
    %3806 = vmatprep.subr.mxu0 0.0
    %3807 = vmatpush1.msra.mxu0 0.0
    %3808 = vmatprep.subr.mxu0 0.0
    %3809 = vmatpush1.msra.mxu0 0.0
    %3810 = vmatprep.mubr.f32.mxu0 0.0
    %3811 = vmatmul.mubr.f32.gmra.mrb[0].mxu0 %v3130
    %v3812 = vpop.f32.mrb[0].mxu0
    %v3813 = vadd.f32 0.0, %v3812
    %v3814 = vpop.f32.mrb[0].mxu0
    %v3815 = vadd.f32 0.0, %v3814
    %3816 = vmatprep.mubr.f32.mxu0 0.0
    %3817 = vmatmul.mubr.f32.gmra.mrb[0].mxu0 %v3133
    %v3818 = vpop.f32.mrb[0].mxu0
    %v3819 = vadd.f32 0.0, %v3818
    %v3820 = vpop.f32.mrb[0].mxu0
    %v3821 = vadd.f32 0.0, %v3820
    %3822 = vdwg.mxu0
    %3823 = vmatprep.subr.mxu0 %v2739
    %3824 = vmatpush1.msra.mxu0 %v2738
    %3825 = vmatprep.subr.mxu0 %v2741
    %3826 = vmatpush1.msra.mxu0 %v2740
    %3827 = vmatprep.subr.mxu0 0.0
    %3828 = vmatpush1.msra.mxu0 0.0
    %3829 = vmatprep.subr.mxu0 0.0
    %3830 = vmatpush1.msra.mxu0 0.0
    %3831 = vmatprep.subr.mxu0 0.0
    %3832 = vmatpush1.msra.mxu0 0.0
    %3833 = vmatprep.subr.mxu0 0.0
    %3834 = vmatpush1.msra.mxu0 0.0
    %3835 = vmatprep.subr.mxu0 0.0
    %3836 = vmatpush1.msra.mxu0 0.0
    %3837 = vmatprep.subr.mxu0 0.0
    %3838 = vmatpush1.msra.mxu0 0.0
    %3839 = vmatprep.subr.mxu0 0.0
    %3840 = vmatpush1.msra.mxu0 0.0
    %3841 = vmatprep.subr.mxu0 0.0
    %3842 = vmatpush1.msra.mxu0 0.0
    %3843 = vmatprep.subr.mxu0 0.0
    %3844 = vmatpush1.msra.mxu0 0.0
    %3845 = vmatprep.subr.mxu0 0.0
    %3846 = vmatpush1.msra.mxu0 0.0
    %3847 = vmatprep.subr.mxu0 0.0
    %3848 = vmatpush1.msra.mxu0 0.0
    %3849 = vmatprep.subr.mxu0 0.0
    %3850 = vmatpush1.msra.mxu0 0.0
    %3851 = vmatprep.subr.mxu0 0.0
    %3852 = vmatpush1.msra.mxu0 0.0
    %3853 = vmatprep.subr.mxu0 0.0
    %3854 = vmatpush1.msra.mxu0 0.0
    %3855 = vmatprep.subr.mxu0 0.0
    %3856 = vmatpush1.msra.mxu0 0.0
    %3857 = vmatprep.subr.mxu0 0.0
    %3858 = vmatpush1.msra.mxu0 0.0
    %3859 = vmatprep.subr.mxu0 0.0
    %3860 = vmatpush1.msra.mxu0 0.0
    %3861 = vmatprep.subr.mxu0 0.0
    %3862 = vmatpush1.msra.mxu0 0.0
    %3863 = vmatprep.subr.mxu0 0.0
    %3864 = vmatpush1.msra.mxu0 0.0
    %3865 = vmatprep.subr.mxu0 0.0
    %3866 = vmatpush1.msra.mxu0 0.0
    %3867 = vmatprep.subr.mxu0 0.0
    %3868 = vmatpush1.msra.mxu0 0.0
    %3869 = vmatprep.subr.mxu0 0.0
    %3870 = vmatpush1.msra.mxu0 0.0
    %3871 = vmatprep.subr.mxu0 0.0
    %3872 = vmatpush1.msra.mxu0 0.0
    %3873 = vmatprep.subr.mxu0 0.0
    %3874 = vmatpush1.msra.mxu0 0.0
    %3875 = vmatprep.subr.mxu0 0.0
    %3876 = vmatpush1.msra.mxu0 0.0
    %3877 = vmatprep.subr.mxu0 0.0
    %3878 = vmatpush1.msra.mxu0 0.0
    %3879 = vmatprep.subr.mxu0 0.0
    %3880 = vmatpush1.msra.mxu0 0.0
    %3881 = vmatprep.subr.mxu0 0.0
    %3882 = vmatpush1.msra.mxu0 0.0
    %3883 = vmatprep.subr.mxu0 0.0
    %3884 = vmatpush1.msra.mxu0 0.0
    %3885 = vmatprep.subr.mxu0 0.0
    %3886 = vmatpush1.msra.mxu0 0.0
    %3887 = vmatprep.mubr.f32.mxu0 0.0
    %3888 = vmatmul.mubr.f32.gmra.mrb[0].mxu0 %v3213
    %v3889 = vpop.f32.mrb[0].mxu0
    %v3890 = vadd.f32 0.0, %v3889
    %v3891 = vpop.f32.mrb[0].mxu0
    %v3892 = vadd.f32 0.0, %v3891
    %3893 = vmatprep.mubr.f32.mxu0 0.0
    %3894 = vmatmul.mubr.f32.gmra.mrb[0].mxu0 %v3216
    %v3895 = vpop.f32.mrb[0].mxu0
    %v3896 = vadd.f32 0.0, %v3895
    %v3897 = vpop.f32.mrb[0].mxu0
    %v3898 = vadd.f32 0.0, %v3897
    %3899 = vdwg.mxu0
    %3900 = vmatprep.subr.mxu0 %v2739
    %3901 = vmatpush1.msra.mxu0 %v2738
    %3902 = vmatprep.subr.mxu0 %v2741
    %3903 = vmatpush1.msra.mxu0 %v2740
    %3904 = vmatprep.subr.mxu0 0.0
    %3905 = vmatpush1.msra.mxu0 0.0
    %3906 = vmatprep.subr.mxu0 0.0
    %3907 = vmatpush1.msra.mxu0 0.0
    %3908 = vmatprep.subr.mxu0 0.0
    %3909 = vmatpush1.msra.mxu0 0.0
    %3910 = vmatprep.subr.mxu0 0.0
    %3911 = vmatpush1.msra.mxu0 0.0
    %3912 = vmatprep.subr.mxu0 0.0
    %3913 = vmatpush1.msra.mxu0 0.0
    %3914 = vmatprep.subr.mxu0 0.0
    %3915 = vmatpush1.msra.mxu0 0.0
    %3916 = vmatprep.subr.mxu0 0.0
    %3917 = vmatpush1.msra.mxu0 0.0
    %3918 = vmatprep.subr.mxu0 0.0
    %3919 = vmatpush1.msra.mxu0 0.0
    %3920 = vmatprep.subr.mxu0 0.0
    %3921 = vmatpush1.msra.mxu0 0.0
    %3922 = vmatprep.subr.mxu0 0.0
    %3923 = vmatpush1.msra.mxu0 0.0
    %3924 = vmatprep.subr.mxu0 0.0
    %3925 = vmatpush1.msra.mxu0 0.0
    %3926 = vmatprep.subr.mxu0 0.0
    %3927 = vmatpush1.msra.mxu0 0.0
    %3928 = vmatprep.subr.mxu0 0.0
    %3929 = vmatpush1.msra.mxu0 0.0
    %3930 = vmatprep.subr.mxu0 0.0
    %3931 = vmatpush1.msra.mxu0 0.0
    %3932 = vmatprep.subr.mxu0 0.0
    %3933 = vmatpush1.msra.mxu0 0.0
    %3934 = vmatprep.subr.mxu0 0.0
    %3935 = vmatpush1.msra.mxu0 0.0
    %3936 = vmatprep.subr.mxu0 0.0
    %3937 = vmatpush1.msra.mxu0 0.0
    %3938 = vmatprep.subr.mxu0 0.0
    %3939 = vmatpush1.msra.mxu0 0.0
    %3940 = vmatprep.subr.mxu0 0.0
    %3941 = vmatpush1.msra.mxu0 0.0
    %3942 = vmatprep.subr.mxu0 0.0
    %3943 = vmatpush1.msra.mxu0 0.0
    %3944 = vmatprep.subr.mxu0 0.0
    %3945 = vmatpush1.msra.mxu0 0.0
    %3946 = vmatprep.subr.mxu0 0.0
    %3947 = vmatpush1.msra.mxu0 0.0
    %3948 = vmatprep.subr.mxu0 0.0
    %3949 = vmatpush1.msra.mxu0 0.0
    %3950 = vmatprep.subr.mxu0 0.0
    %3951 = vmatpush1.msra.mxu0 0.0
    %3952 = vmatprep.subr.mxu0 0.0
    %3953 = vmatpush1.msra.mxu0 0.0
    %3954 = vmatprep.subr.mxu0 0.0
    %3955 = vmatpush1.msra.mxu0 0.0
    %3956 = vmatprep.subr.mxu0 0.0
    %3957 = vmatpush1.msra.mxu0 0.0
    %3958 = vmatprep.subr.mxu0 0.0
    %3959 = vmatpush1.msra.mxu0 0.0
    %3960 = vmatprep.subr.mxu0 0.0
    %3961 = vmatpush1.msra.mxu0 0.0
    %3962 = vmatprep.subr.mxu0 0.0
    %3963 = vmatpush1.msra.mxu0 0.0
    %3964 = vmatprep.mubr.f32.mxu0 0.0
    %3965 = vmatmul.mubr.f32.gmra.mrb[0].mxu0 %v3296
    %v3966 = vpop.f32.mrb[0].mxu0
    %v3967 = vadd.f32 0.0, %v3966
    %v3968 = vpop.f32.mrb[0].mxu0
    %v3969 = vadd.f32 0.0, %v3968
    %3970 = vmatprep.mubr.f32.mxu0 0.0
    %3971 = vmatmul.mubr.f32.gmra.mrb[0].mxu0 %v3299
    %v3972 = vpop.f32.mrb[0].mxu0
    %v3973 = vadd.f32 0.0, %v3972
    %v3974 = vpop.f32.mrb[0].mxu0
    %v3975 = vadd.f32 0.0, %v3974
    %3976 = vdwg.mxu0
    %3981 = vrot.lane.b32.xlu0 %v3582, 64
    %v3982 = vpop.permute.xlu0 %3981
    %3983 = vrot.lane.b32.xlu0 %v3584, 64
    %v3984 = vpop.permute.xlu0 %3983
    %3985 = vrot.lane.b32.xlu0 %v3588, 64
    %v3986 = vpop.permute.xlu0 %3985
    %3987 = vrot.lane.b32.xlu0 %v3590, 64
    %v3988 = vpop.permute.xlu0 %3987
    %v3989 = vsel %vm443, %v3982, %v3984
    %v3990 = vsel %vm443, %v3986, %v3988
    %3999 = vrot.lane.b32.xlu0 %v3736, 64
    %v4000 = vpop.permute.xlu0 %3999
    %4001 = vrot.lane.b32.xlu0 %v3738, 64
    %v4002 = vpop.permute.xlu0 %4001
    %4003 = vrot.lane.b32.xlu0 %v3742, 64
    %v4004 = vpop.permute.xlu0 %4003
    %4005 = vrot.lane.b32.xlu0 %v3744, 64
    %v4006 = vpop.permute.xlu0 %4005
    %v4007 = vsel %vm443, %v4000, %v4002
    %v4008 = vsel %vm443, %v4004, %v4006
    %4017 = vrot.lane.b32.xlu0 %v3890, 64
    %v4018 = vpop.permute.xlu0 %4017
    %4019 = vrot.lane.b32.xlu0 %v3892, 64
    %v4020 = vpop.permute.xlu0 %4019
    %4021 = vrot.lane.b32.xlu0 %v3896, 64
    %v4022 = vpop.permute.xlu0 %4021
    %4023 = vrot.lane.b32.xlu0 %v3898, 64
    %v4024 = vpop.permute.xlu0 %4023
    %v4025 = vsel %vm443, %v4018, %v4020
    %v4026 = vsel %vm443, %v4022, %v4024
    %v4031 = vsel %vm443, %v3507, %v3982
    %v4032 = vsel %vm443, %v3513, %v3986
    %v4033 = vsel %vm443, %v3661, %v4000
    %v4034 = vsel %vm443, %v3667, %v4004
    %v4035 = vsel %vm443, %v3815, %v4018
    %v4036 = vsel %vm443, %v3821, %v4022
    %v4037 = vld [vmem:[#allocation12] sm:$0xff]
    %v4038 = vld [vmem:[#allocation12 + $0x8] sm:$0xff]
    %v4039 = vld [vmem:[#allocation12 + $0x10] sm:$0xff]
    %v4040 = vld [vmem:[#allocation12 + $0x18] sm:$0xff]
    %v4041 = vld [vmem:[#allocation12 + $0x20] sm:$0xff]
    %v4042 = vld [vmem:[#allocation12 + $0x28] sm:$0xff]
    %v4043 = vld [vmem:[#allocation12 + $0x30] sm:$0xff]
    %v4044 = vld [vmem:[#allocation12 + $0x38] sm:$0xff]
    %v4045 = vld [vmem:[#allocation12 + $0x40] sm:$0xff]
    %v4046 = vld [vmem:[#allocation12 + $0x48] sm:$0xff]
    %v4047 = vld [vmem:[#allocation12 + $0x50] sm:$0xff]
    %v4048 = vld [vmem:[#allocation12 + $0x58] sm:$0xff]
    %v4049 = vld [vmem:[#allocation12 + $0x60] sm:$0xff]
    %v4050 = vld [vmem:[#allocation12 + $0x68] sm:$0xff]
    %v4051 = vld [vmem:[#allocation12 + $0x70] sm:$0xff]
    %v4052 = vld [vmem:[#allocation12 + $0x78] sm:$0xff]
    %v4053 = vld [vmem:[#allocation12 + $0x80] sm:$0xff]
    %v4054 = vld [vmem:[#allocation12 + $0x88] sm:$0xff]
    %v4055 = vld [vmem:[#allocation12 + $0x90] sm:$0xff]
    %v4056 = vld [vmem:[#allocation12 + $0x98] sm:$0xff]
    %v4057 = vld [vmem:[#allocation12 + $0xa0] sm:$0xff]
    %v4058 = vld [vmem:[#allocation12 + $0xa8] sm:$0xff]
    %v4059 = vld [vmem:[#allocation12 + $0xb0] sm:$0xff]
    %v4060 = vld [vmem:[#allocation12 + $0xb8] sm:$0xff]
    %v4061 = vld [vmem:[#allocation12 + $0xc0] sm:$0xff]
    %v4062 = vld [vmem:[#allocation12 + $0xc8] sm:$0xff]
    %v4063 = vld [vmem:[#allocation12 + $0xd0] sm:$0xff]
    %v4064 = vld [vmem:[#allocation12 + $0xd8] sm:$0xff]
    %v4065 = vld [vmem:[#allocation12 + $0xe0] sm:$0xff]
    %v4066 = vld [vmem:[#allocation12 + $0xe8] sm:$0xff]
    %v4067 = vld [vmem:[#allocation12 + $0xf0] sm:$0xff]
    %v4068 = vld [vmem:[#allocation12 + $0xf8] sm:$0xff]
    %v4069 = vld [vmem:[#allocation12 + $0x100] sm:$0xff]
    %v4070 = vld [vmem:[#allocation12 + $0x108] sm:$0xff]
    %v4071 = vld [vmem:[#allocation12 + $0x110] sm:$0xff]
    %v4072 = vld [vmem:[#allocation12 + $0x118] sm:$0xff]
    %v4073 = vld [vmem:[#allocation12 + $0x120] sm:$0xff]
    %v4074 = vld [vmem:[#allocation12 + $0x128] sm:$0xff]
    %v4075 = vld [vmem:[#allocation12 + $0x130] sm:$0xff]
    %v4076 = vld [vmem:[#allocation12 + $0x138] sm:$0xff]
    %v4077 = vld [vmem:[#allocation12 + $0x140] sm:$0xff]
    %v4078 = vld [vmem:[#allocation12 + $0x148] sm:$0xff]
    %v4079 = vld [vmem:[#allocation12 + $0x150] sm:$0xff]
    %v4080 = vld [vmem:[#allocation12 + $0x158] sm:$0xff]
    %v4081 = vld [vmem:[#allocation12 + $0x160] sm:$0xff]
    %v4082 = vld [vmem:[#allocation12 + $0x168] sm:$0xff]
    %v4083 = vld [vmem:[#allocation12 + $0x170] sm:$0xff]
    %v4084 = vld [vmem:[#allocation12 + $0x178] sm:$0xff]
    %v4085 = vld [vmem:[#allocation12 + $0x180] sm:$0xff]
    %v4086 = vld [vmem:[#allocation12 + $0x188] sm:$0xff]
    %v4087 = vld [vmem:[#allocation12 + $0x190] sm:$0xff]
    %v4088 = vld [vmem:[#allocation12 + $0x198] sm:$0xff]
    %v4089 = vld [vmem:[#allocation12 + $0x1a0] sm:$0xff]
    %v4090 = vld [vmem:[#allocation12 + $0x1a8] sm:$0xff]
    %v4091 = vld [vmem:[#allocation12 + $0x1b0] sm:$0xff]
    %v4092 = vld [vmem:[#allocation12 + $0x1b8] sm:$0xff]
    %v4093 = vld [vmem:[#allocation12 + $0x1c0] sm:$0xff]
    %v4094 = vld [vmem:[#allocation12 + $0x1c8] sm:$0xff]
    %v4095 = vld [vmem:[#allocation12 + $0x1d0] sm:$0xff]
    %v4096 = vld [vmem:[#allocation12 + $0x1d8] sm:$0xff]
    %v4097 = vld [vmem:[#allocation12 + $0x1e0] sm:$0xff]
    %v4098 = vld [vmem:[#allocation12 + $0x1e8] sm:$0xff]
    %v4099 = vld [vmem:[#allocation12 + $0x1f0] sm:$0xff]
    %v4100 = vld [vmem:[#allocation12 + $0x1f8] sm:$0xff]
    %v4101 = vld [vmem:[#allocation12 + $0x200] sm:$0xff]
    %v4102 = vld [vmem:[#allocation12 + $0x208] sm:$0xff]
    %v4103 = vld [vmem:[#allocation12 + $0x210] sm:$0xff]
    %v4104 = vld [vmem:[#allocation12 + $0x218] sm:$0xff]
    %v4105 = vld [vmem:[#allocation12 + $0x220] sm:$0xff]
    %v4106 = vld [vmem:[#allocation12 + $0x228] sm:$0xff]
    %v4107 = vld [vmem:[#allocation12 + $0x230] sm:$0xff]
    %v4108 = vld [vmem:[#allocation12 + $0x238] sm:$0xff]
    %v4109 = vld [vmem:[#allocation12 + $0x240] sm:$0xff]
    %v4110 = vld [vmem:[#allocation12 + $0x248] sm:$0xff]
    %v4111 = vld [vmem:[#allocation12 + $0x250] sm:$0xff]
    %v4112 = vld [vmem:[#allocation12 + $0x258] sm:$0xff]
    %v4113 = vld [vmem:[#allocation12 + $0x260] sm:$0xff]
    %v4114 = vld [vmem:[#allocation12 + $0x268] sm:$0xff]
    %v4115 = vld [vmem:[#allocation12 + $0x270] sm:$0xff]
    %v4116 = vld [vmem:[#allocation12 + $0x278] sm:$0xff]
    %v4117 = vld [vmem:[#allocation12 + $0x280] sm:$0xff]
    %v4118 = vld [vmem:[#allocation12 + $0x288] sm:$0xff]
    %v4119 = vld [vmem:[#allocation12 + $0x290] sm:$0xff]
    %v4120 = vld [vmem:[#allocation12 + $0x298] sm:$0xff]
    %v4121 = vld [vmem:[#allocation12 + $0x2a0] sm:$0xff]
    %v4122 = vld [vmem:[#allocation12 + $0x2a8] sm:$0xff]
    %v4123 = vld [vmem:[#allocation12 + $0x2b0] sm:$0xff]
    %v4124 = vld [vmem:[#allocation12 + $0x2b8] sm:$0xff]
    %v4125 = vld [vmem:[#allocation12 + $0x2c0] sm:$0xff]
    %v4126 = vld [vmem:[#allocation12 + $0x2c8] sm:$0xff]
    %v4127 = vld [vmem:[#allocation12 + $0x2d0] sm:$0xff]
    %v4128 = vld [vmem:[#allocation12 + $0x2d8] sm:$0xff]
    %v4129 = vld [vmem:[#allocation12 + $0x2e0] sm:$0xff]
    %v4130 = vld [vmem:[#allocation12 + $0x2e8] sm:$0xff]
    %v4131 = vld [vmem:[#allocation12 + $0x2f0] sm:$0xff]
    %v4132 = vld [vmem:[#allocation12 + $0x2f8] sm:$0xff]
    %v4133 = vld [vmem:[#allocation12 + $0x300] sm:$0xff]
    %v4134 = vld [vmem:[#allocation12 + $0x308] sm:$0xff]
    %v4135 = vld [vmem:[#allocation12 + $0x310] sm:$0xff]
    %v4136 = vld [vmem:[#allocation12 + $0x318] sm:$0xff]
    %v4137 = vld [vmem:[#allocation12 + $0x320] sm:$0xff]
    %v4138 = vld [vmem:[#allocation12 + $0x328] sm:$0xff]
    %v4139 = vld [vmem:[#allocation12 + $0x330] sm:$0xff]
    %v4140 = vld [vmem:[#allocation12 + $0x338] sm:$0xff]
    %v4141 = vld [vmem:[#allocation12 + $0x340] sm:$0xff]
    %v4142 = vld [vmem:[#allocation12 + $0x348] sm:$0xff]
    %v4143 = vld [vmem:[#allocation12 + $0x350] sm:$0xff]
    %v4144 = vld [vmem:[#allocation12 + $0x358] sm:$0xff]
    %v4145 = vld [vmem:[#allocation12 + $0x360] sm:$0xff]
    %v4146 = vld [vmem:[#allocation12 + $0x368] sm:$0xff]
    %v4147 = vld [vmem:[#allocation12 + $0x370] sm:$0xff]
    %v4148 = vld [vmem:[#allocation12 + $0x378] sm:$0xff]
    %v4149 = vld [vmem:[#allocation12 + $0x380] sm:$0xff]
    %v4150 = vld [vmem:[#allocation12 + $0x388] sm:$0xff]
    %v4151 = vld [vmem:[#allocation12 + $0x390] sm:$0xff]
    %v4152 = vld [vmem:[#allocation12 + $0x398] sm:$0xff]
    %v4153 = vld [vmem:[#allocation12 + $0x3a0] sm:$0xff]
    %v4154 = vld [vmem:[#allocation12 + $0x3a8] sm:$0xff]
    %v4155 = vld [vmem:[#allocation12 + $0x3b0] sm:$0xff]
    %v4156 = vld [vmem:[#allocation12 + $0x3b8] sm:$0xff]
    %v4157 = vld [vmem:[#allocation12 + $0x3c0] sm:$0xff]
    %v4158 = vld [vmem:[#allocation12 + $0x3c8] sm:$0xff]
    %v4159 = vld [vmem:[#allocation12 + $0x3d0] sm:$0xff]
    %v4160 = vld [vmem:[#allocation12 + $0x3d8] sm:$0xff]
    %v4161 = vld [vmem:[#allocation12 + $0x3e0] sm:$0xff]
    %v4162 = vld [vmem:[#allocation12 + $0x3e8] sm:$0xff]
    %v4163 = vld [vmem:[#allocation12 + $0x3f0] sm:$0xff]
    %v4164 = vld [vmem:[#allocation12 + $0x3f8] sm:$0xff]
    %v4165 = vld [vmem:[#allocation12 + $0x400] sm:$0xff]
    %v4166 = vld [vmem:[#allocation12 + $0x408] sm:$0xff]
    %v4167 = vld [vmem:[#allocation12 + $0x410] sm:$0xff]
    %v4168 = vld [vmem:[#allocation12 + $0x418] sm:$0xff]
    %v4169 = vld [vmem:[#allocation12 + $0x420] sm:$0xff]
    %v4170 = vld [vmem:[#allocation12 + $0x428] sm:$0xff]
    %v4171 = vld [vmem:[#allocation12 + $0x430] sm:$0xff]
    %v4172 = vld [vmem:[#allocation12 + $0x438] sm:$0xff]
    %v4173 = vld [vmem:[#allocation12 + $0x440] sm:$0xff]
    %v4174 = vld [vmem:[#allocation12 + $0x448] sm:$0xff]
    %v4175 = vld [vmem:[#allocation12 + $0x450] sm:$0xff]
    %v4176 = vld [vmem:[#allocation12 + $0x458] sm:$0xff]
    %v4177 = vld [vmem:[#allocation12 + $0x460] sm:$0xff]
    %v4178 = vld [vmem:[#allocation12 + $0x468] sm:$0xff]
    %v4179 = vld [vmem:[#allocation12 + $0x470] sm:$0xff]
    %v4180 = vld [vmem:[#allocation12 + $0x478] sm:$0xff]
    %v4181 = vld [vmem:[#allocation12 + $0x480] sm:$0xff]
    %v4182 = vld [vmem:[#allocation12 + $0x488] sm:$0xff]
    %v4183 = vld [vmem:[#allocation12 + $0x490] sm:$0xff]
    %v4184 = vld [vmem:[#allocation12 + $0x498] sm:$0xff]
    %v4185 = vld [vmem:[#allocation12 + $0x4a0] sm:$0xff]
    %v4186 = vld [vmem:[#allocation12 + $0x4a8] sm:$0xff]
    %v4187 = vld [vmem:[#allocation12 + $0x4b0] sm:$0xff]
    %v4188 = vld [vmem:[#allocation12 + $0x4b8] sm:$0xff]
    %v4189 = vld [vmem:[#allocation12 + $0x4c0] sm:$0xff]
    %v4190 = vld [vmem:[#allocation12 + $0x4c8] sm:$0xff]
    %v4191 = vld [vmem:[#allocation12 + $0x4d0] sm:$0xff]
    %v4192 = vld [vmem:[#allocation12 + $0x4d8] sm:$0xff]
    %v4193 = vld [vmem:[#allocation12 + $0x4e0] sm:$0xff]
    %v4194 = vld [vmem:[#allocation12 + $0x4e8] sm:$0xff]
    %v4195 = vld [vmem:[#allocation12 + $0x4f0] sm:$0xff]
    %v4196 = vld [vmem:[#allocation12 + $0x4f8] sm:$0xff]
    %v4197 = vld [vmem:[#allocation12 + $0x500] sm:$0xff]
    %v4198 = vld [vmem:[#allocation12 + $0x508] sm:$0xff]
    %v4199 = vld [vmem:[#allocation12 + $0x510] sm:$0xff]
    %v4200 = vld [vmem:[#allocation12 + $0x518] sm:$0xff]
    %v4201 = vld [vmem:[#allocation12 + $0x520] sm:$0xff]
    %v4202 = vld [vmem:[#allocation12 + $0x528] sm:$0xff]
    %v4203 = vld [vmem:[#allocation12 + $0x530] sm:$0xff]
    %v4204 = vld [vmem:[#allocation12 + $0x538] sm:$0xff]
    %v4205 = vld [vmem:[#allocation12 + $0x540] sm:$0xff]
    %v4206 = vld [vmem:[#allocation12 + $0x548] sm:$0xff]
    %v4207 = vld [vmem:[#allocation12 + $0x550] sm:$0xff]
    %v4208 = vld [vmem:[#allocation12 + $0x558] sm:$0xff]
    %v4209 = vld [vmem:[#allocation12 + $0x560] sm:$0xff]
    %v4210 = vld [vmem:[#allocation12 + $0x568] sm:$0xff]
    %v4211 = vld [vmem:[#allocation12 + $0x570] sm:$0xff]
    %v4212 = vld [vmem:[#allocation12 + $0x578] sm:$0xff]
    %v4213 = vld [vmem:[#allocation12 + $0x580] sm:$0xff]
    %v4214 = vld [vmem:[#allocation12 + $0x588] sm:$0xff]
    %v4215 = vld [vmem:[#allocation12 + $0x590] sm:$0xff]
    %v4216 = vld [vmem:[#allocation12 + $0x598] sm:$0xff]
    %v4217 = vld [vmem:[#allocation12 + $0x5a0] sm:$0xff]
    %v4218 = vld [vmem:[#allocation12 + $0x5a8] sm:$0xff]
    %v4219 = vld [vmem:[#allocation12 + $0x5b0] sm:$0xff]
    %v4220 = vld [vmem:[#allocation12 + $0x5b8] sm:$0xff]
    %v4221 = vld [vmem:[#allocation12 + $0x5c0] sm:$0xff]
    %v4222 = vld [vmem:[#allocation12 + $0x5c8] sm:$0xff]
    %v4223 = vld [vmem:[#allocation12 + $0x5d0] sm:$0xff]
    %v4224 = vld [vmem:[#allocation12 + $0x5d8] sm:$0xff]
    %v4225 = vld [vmem:[#allocation12 + $0x5e0] sm:$0xff]
    %v4226 = vld [vmem:[#allocation12 + $0x5e8] sm:$0xff]
    %v4227 = vld [vmem:[#allocation12 + $0x5f0] sm:$0xff]
    %v4228 = vld [vmem:[#allocation12 + $0x5f8] sm:$0xff]
    %v4229 = vld [vmem:[#allocation12 + $0x600] sm:$0xff]
    %v4230 = vld [vmem:[#allocation12 + $0x608] sm:$0xff]
    %v4231 = vld [vmem:[#allocation12 + $0x610] sm:$0xff]
    %v4232 = vld [vmem:[#allocation12 + $0x618] sm:$0xff]
    %v4233 = vld [vmem:[#allocation12 + $0x620] sm:$0xff]
    %v4234 = vld [vmem:[#allocation12 + $0x628] sm:$0xff]
    %v4235 = vld [vmem:[#allocation12 + $0x630] sm:$0xff]
    %v4236 = vld [vmem:[#allocation12 + $0x638] sm:$0xff]
    %v4237 = vld [vmem:[#allocation12 + $0x640] sm:$0xff]
    %v4238 = vld [vmem:[#allocation12 + $0x648] sm:$0xff]
    %v4239 = vld [vmem:[#allocation12 + $0x650] sm:$0xff]
    %v4240 = vld [vmem:[#allocation12 + $0x658] sm:$0xff]
    %v4241 = vld [vmem:[#allocation12 + $0x660] sm:$0xff]
    %v4242 = vld [vmem:[#allocation12 + $0x668] sm:$0xff]
    %v4243 = vld [vmem:[#allocation12 + $0x670] sm:$0xff]
    %v4244 = vld [vmem:[#allocation12 + $0x678] sm:$0xff]
    %v4245 = vld [vmem:[#allocation12 + $0x680] sm:$0xff]
    %v4246 = vld [vmem:[#allocation12 + $0x688] sm:$0xff]
    %v4247 = vld [vmem:[#allocation12 + $0x690] sm:$0xff]
    %v4248 = vld [vmem:[#allocation12 + $0x698] sm:$0xff]
    %v4249 = vld [vmem:[#allocation12 + $0x6a0] sm:$0xff]
    %v4250 = vld [vmem:[#allocation12 + $0x6a8] sm:$0xff]
    %v4251 = vld [vmem:[#allocation12 + $0x6b0] sm:$0xff]
    %v4252 = vld [vmem:[#allocation12 + $0x6b8] sm:$0xff]
    %v4253 = vld [vmem:[#allocation12 + $0x6c0] sm:$0xff]
    %v4254 = vld [vmem:[#allocation12 + $0x6c8] sm:$0xff]
    %v4255 = vld [vmem:[#allocation12 + $0x6d0] sm:$0xff]
    %v4256 = vld [vmem:[#allocation12 + $0x6d8] sm:$0xff]
    %v4257 = vld [vmem:[#allocation12 + $0x6e0] sm:$0xff]
    %v4258 = vld [vmem:[#allocation12 + $0x6e8] sm:$0xff]
    %v4259 = vld [vmem:[#allocation12 + $0x6f0] sm:$0xff]
    %v4260 = vld [vmem:[#allocation12 + $0x6f8] sm:$0xff]
    %v4261 = vld [vmem:[#allocation12 + $0x700] sm:$0xff]
    %v4262 = vld [vmem:[#allocation12 + $0x708] sm:$0xff]
    %v4263 = vld [vmem:[#allocation12 + $0x710] sm:$0xff]
    %v4264 = vld [vmem:[#allocation12 + $0x718] sm:$0xff]
    %v4265 = vld [vmem:[#allocation12 + $0x720] sm:$0xff]
    %v4266 = vld [vmem:[#allocation12 + $0x728] sm:$0xff]
    %v4267 = vld [vmem:[#allocation12 + $0x730] sm:$0xff]
    %v4268 = vld [vmem:[#allocation12 + $0x738] sm:$0xff]
    %v4269 = vld [vmem:[#allocation12 + $0x740] sm:$0xff]
    %v4270 = vld [vmem:[#allocation12 + $0x748] sm:$0xff]
    %v4271 = vld [vmem:[#allocation12 + $0x750] sm:$0xff]
    %v4272 = vld [vmem:[#allocation12 + $0x758] sm:$0xff]
    %v4273 = vld [vmem:[#allocation12 + $0x760] sm:$0xff]
    %v4274 = vld [vmem:[#allocation12 + $0x768] sm:$0xff]
    %v4275 = vld [vmem:[#allocation12 + $0x770] sm:$0xff]
    %v4276 = vld [vmem:[#allocation12 + $0x778] sm:$0xff]
    %v4277 = vld [vmem:[#allocation12 + $0x780] sm:$0xff]
    %v4278 = vld [vmem:[#allocation12 + $0x788] sm:$0xff]
    %v4279 = vld [vmem:[#allocation12 + $0x790] sm:$0xff]
    %v4280 = vld [vmem:[#allocation12 + $0x798] sm:$0xff]
    %v4281 = vld [vmem:[#allocation12 + $0x7a0] sm:$0xff]
    %v4282 = vld [vmem:[#allocation12 + $0x7a8] sm:$0xff]
    %v4283 = vld [vmem:[#allocation12 + $0x7b0] sm:$0xff]
    %v4284 = vld [vmem:[#allocation12 + $0x7b8] sm:$0xff]
    %v4285 = vld [vmem:[#allocation12 + $0x7c0] sm:$0xff]
    %v4286 = vld [vmem:[#allocation12 + $0x7c8] sm:$0xff]
    %v4287 = vld [vmem:[#allocation12 + $0x7d0] sm:$0xff]
    %v4288 = vld [vmem:[#allocation12 + $0x7d8] sm:$0xff]
    %v4289 = vld [vmem:[#allocation12 + $0x7e0] sm:$0xff]
    %v4290 = vld [vmem:[#allocation12 + $0x7e8] sm:$0xff]
    %v4291 = vld [vmem:[#allocation12 + $0x7f0] sm:$0xff]
    %v4292 = vld [vmem:[#allocation12 + $0x7f8] sm:$0xff]
    %v4293 = vld [vmem:[#allocation12 + $0x800] sm:$0xff]
    %v4294 = vld [vmem:[#allocation12 + $0x808] sm:$0xff]
    %v4295 = vld [vmem:[#allocation12 + $0x810] sm:$0xff]
    %v4296 = vld [vmem:[#allocation12 + $0x818] sm:$0xff]
    %v4297 = vld [vmem:[#allocation12 + $0x820] sm:$0xff]
    %v4298 = vld [vmem:[#allocation12 + $0x828] sm:$0xff]
    %v4299 = vld [vmem:[#allocation12 + $0x830] sm:$0xff]
    %v4300 = vld [vmem:[#allocation12 + $0x838] sm:$0xff]
    %v4301 = vld [vmem:[#allocation12 + $0x840] sm:$0xff]
    %v4302 = vld [vmem:[#allocation12 + $0x848] sm:$0xff]
    %v4303 = vld [vmem:[#allocation12 + $0x850] sm:$0xff]
    %v4304 = vld [vmem:[#allocation12 + $0x858] sm:$0xff]
    %v4305 = vld [vmem:[#allocation12 + $0x860] sm:$0xff]
    %v4306 = vld [vmem:[#allocation12 + $0x868] sm:$0xff]
    %v4307 = vld [vmem:[#allocation12 + $0x870] sm:$0xff]
    %v4308 = vld [vmem:[#allocation12 + $0x878] sm:$0xff]
    %v4309 = vld [vmem:[#allocation12 + $0x880] sm:$0xff]
    %v4310 = vld [vmem:[#allocation12 + $0x888] sm:$0xff]
    %v4311 = vld [vmem:[#allocation12 + $0x890] sm:$0xff]
    %v4312 = vld [vmem:[#allocation12 + $0x898] sm:$0xff]
    %v4313 = vld [vmem:[#allocation12 + $0x8a0] sm:$0xff]
    %v4314 = vld [vmem:[#allocation12 + $0x8a8] sm:$0xff]
    %v4315 = vld [vmem:[#allocation12 + $0x8b0] sm:$0xff]
    %v4316 = vld [vmem:[#allocation12 + $0x8b8] sm:$0xff]
    %v4317 = vld [vmem:[#allocation12 + $0x8c0] sm:$0xff]
    %v4318 = vld [vmem:[#allocation12 + $0x8c8] sm:$0xff]
    %v4319 = vld [vmem:[#allocation12 + $0x8d0] sm:$0xff]
    %v4320 = vld [vmem:[#allocation12 + $0x8d8] sm:$0xff]
    %v4321 = vld [vmem:[#allocation12 + $0x8e0] sm:$0xff]
    %v4322 = vld [vmem:[#allocation12 + $0x8e8] sm:$0xff]
    %v4323 = vld [vmem:[#allocation12 + $0x8f0] sm:$0xff]
    %v4324 = vld [vmem:[#allocation12 + $0x8f8] sm:$0xff]
    %v4325 = vld [vmem:[#allocation12 + $0x900] sm:$0xff]
    %v4326 = vld [vmem:[#allocation12 + $0x908] sm:$0xff]
    %v4327 = vld [vmem:[#allocation12 + $0x910] sm:$0xff]
    %v4328 = vld [vmem:[#allocation12 + $0x918] sm:$0xff]
    %v4329 = vld [vmem:[#allocation12 + $0x920] sm:$0xff]
    %v4330 = vld [vmem:[#allocation12 + $0x928] sm:$0xff]
    %v4331 = vld [vmem:[#allocation12 + $0x930] sm:$0xff]
    %v4332 = vld [vmem:[#allocation12 + $0x938] sm:$0xff]
    %v4333 = vld [vmem:[#allocation12 + $0x940] sm:$0xff]
    %v4334 = vld [vmem:[#allocation12 + $0x948] sm:$0xff]
    %v4335 = vld [vmem:[#allocation12 + $0x950] sm:$0xff]
    %v4336 = vld [vmem:[#allocation12 + $0x958] sm:$0xff]
    %v4337 = vld [vmem:[#allocation12 + $0x960] sm:$0xff]
    %v4338 = vld [vmem:[#allocation12 + $0x968] sm:$0xff]
    %v4339 = vld [vmem:[#allocation12 + $0x970] sm:$0xff]
    %v4340 = vld [vmem:[#allocation12 + $0x978] sm:$0xff]
    %v4341 = vld [vmem:[#allocation12 + $0x980] sm:$0xff]
    %v4342 = vld [vmem:[#allocation12 + $0x988] sm:$0xff]
    %v4343 = vld [vmem:[#allocation12 + $0x990] sm:$0xff]
    %v4344 = vld [vmem:[#allocation12 + $0x998] sm:$0xff]
    %v4345 = vld [vmem:[#allocation12 + $0x9a0] sm:$0xff]
    %v4346 = vld [vmem:[#allocation12 + $0x9a8] sm:$0xff]
    %v4347 = vld [vmem:[#allocation12 + $0x9b0] sm:$0xff]
    %v4348 = vld [vmem:[#allocation12 + $0x9b8] sm:$0xff]
    %v4349 = vld [vmem:[#allocation12 + $0x9c0] sm:$0xff]
    %v4350 = vld [vmem:[#allocation12 + $0x9c8] sm:$0xff]
    %v4351 = vld [vmem:[#allocation12 + $0x9d0] sm:$0xff]
    %v4352 = vld [vmem:[#allocation12 + $0x9d8] sm:$0xff]
    %v4353 = vld [vmem:[#allocation12 + $0x9e0] sm:$0xff]
    %v4354 = vld [vmem:[#allocation12 + $0x9e8] sm:$0xff]
    %v4355 = vld [vmem:[#allocation12 + $0x9f0] sm:$0xff]
    %v4356 = vld [vmem:[#allocation12 + $0x9f8] sm:$0xff]
    %v4357 = vld [vmem:[#allocation12 + $0xa00] sm:$0xff]
    %v4358 = vld [vmem:[#allocation12 + $0xa08] sm:$0xff]
    %v4359 = vld [vmem:[#allocation12 + $0xa10] sm:$0xff]
    %v4360 = vld [vmem:[#allocation12 + $0xa18] sm:$0xff]
    %v4361 = vld [vmem:[#allocation12 + $0xa20] sm:$0xff]
    %v4362 = vld [vmem:[#allocation12 + $0xa28] sm:$0xff]
    %v4363 = vld [vmem:[#allocation12 + $0xa30] sm:$0xff]
    %v4364 = vld [vmem:[#allocation12 + $0xa38] sm:$0xff]
    %v4365 = vld [vmem:[#allocation12 + $0xa40] sm:$0xff]
    %v4366 = vld [vmem:[#allocation12 + $0xa48] sm:$0xff]
    %v4367 = vld [vmem:[#allocation12 + $0xa50] sm:$0xff]
    %v4368 = vld [vmem:[#allocation12 + $0xa58] sm:$0xff]
    %v4369 = vld [vmem:[#allocation12 + $0xa60] sm:$0xff]
    %v4370 = vld [vmem:[#allocation12 + $0xa68] sm:$0xff]
    %v4371 = vld [vmem:[#allocation12 + $0xa70] sm:$0xff]
    %v4372 = vld [vmem:[#allocation12 + $0xa78] sm:$0xff]
    %v4374 = vsel %vm443, %v3370, 0
    %v4377 = vsel %vm443, %v3376, 0
    %4379 = vmatprep.subr.mxu0 %v4038
    %4380 = vmatpush1.msra.mxu0 %v4037
    %4381 = vmatprep.subr.mxu0 %v4040
    %4382 = vmatpush1.msra.mxu0 %v4039
    %4383 = vmatprep.subr.mxu0 %v4042
    %4384 = vmatpush1.msra.mxu0 %v4041
    %4385 = vmatprep.subr.mxu0 %v4044
    %4386 = vmatpush1.msra.mxu0 %v4043
    %4387 = vmatprep.subr.mxu0 %v4046
    %4388 = vmatpush1.msra.mxu0 %v4045
    %4389 = vmatprep.subr.mxu0 %v4048
    %4390 = vmatpush1.msra.mxu0 %v4047
    %4391 = vmatprep.subr.mxu0 %v4050
    %4392 = vmatpush1.msra.mxu0 %v4049
    %4393 = vmatprep.subr.mxu0 %v4052
    %4394 = vmatpush1.msra.mxu0 %v4051
    %4395 = vmatprep.subr.mxu0 %v4054
    %4396 = vmatpush1.msra.mxu0 %v4053
    %4397 = vmatprep.subr.mxu0 %v4056
    %4398 = vmatpush1.msra.mxu0 %v4055
    %4399 = vmatprep.subr.mxu0 %v4058
    %4400 = vmatpush1.msra.mxu0 %v4057
    %4401 = vmatprep.subr.mxu0 %v4060
    %4402 = vmatpush1.msra.mxu0 %v4059
    %4403 = vmatprep.subr.mxu0 %v4062
    %4404 = vmatpush1.msra.mxu0 %v4061
    %4405 = vmatprep.subr.mxu0 %v4064
    %4406 = vmatpush1.msra.mxu0 %v4063
    %4407 = vmatprep.subr.mxu0 %v4066
    %4408 = vmatpush1.msra.mxu0 %v4065
    %4409 = vmatprep.subr.mxu0 %v4068
    %4410 = vmatpush1.msra.mxu0 %v4067
    %4411 = vmatprep.subr.mxu0 %v4070
    %4412 = vmatpush1.msra.mxu0 %v4069
    %4413 = vmatprep.subr.mxu0 %v4072
    %4414 = vmatpush1.msra.mxu0 %v4071
    %4415 = vmatprep.subr.mxu0 %v4074
    %4416 = vmatpush1.msra.mxu0 %v4073
    %4417 = vmatprep.subr.mxu0 %v4076
    %4418 = vmatpush1.msra.mxu0 %v4075
    %4419 = vmatprep.subr.mxu0 %v4078
    %4420 = vmatpush1.msra.mxu0 %v4077
    %4421 = vmatprep.subr.mxu0 %v4080
    %4422 = vmatpush1.msra.mxu0 %v4079
    %4423 = vmatprep.subr.mxu0 %v4082
    %4424 = vmatpush1.msra.mxu0 %v4081
    %4425 = vmatprep.subr.mxu0 %v4084
    %4426 = vmatpush1.msra.mxu0 %v4083
    %4427 = vmatprep.subr.mxu0 %v4086
    %4428 = vmatpush1.msra.mxu0 %v4085
    %4429 = vmatprep.subr.mxu0 %v4088
    %4430 = vmatpush1.msra.mxu0 %v4087
    %4431 = vmatprep.subr.mxu0 %v4090
    %4432 = vmatpush1.msra.mxu0 %v4089
    %4433 = vmatprep.subr.mxu0 %v4092
    %4434 = vmatpush1.msra.mxu0 %v4091
    %4435 = vmatprep.subr.mxu0 %v4094
    %4436 = vmatpush1.msra.mxu0 %v4093
    %4437 = vmatprep.subr.mxu0 %v4096
    %4438 = vmatpush1.msra.mxu0 %v4095
    %4439 = vmatprep.subr.mxu0 %v4098
    %4440 = vmatpush1.msra.mxu0 %v4097
    %4441 = vmatprep.subr.mxu0 %v4100
    %4442 = vmatpush1.msra.mxu0 %v4099
    %4443 = vmatprep.mubr.f32.mxu0 %v3432
    %4444 = vmatmul.mubr.f32.gmra.mrb[0].mxu0 %v2870
    %v4445 = vpop.f32.mrb[0].mxu0
    %v4446 = vadd.f32 0.0, %v4445
    %v4447 = vpop.f32.mrb[0].mxu0
    %v4448 = vadd.f32 0.0, %v4447
    %4449 = vmatprep.mubr.f32.mxu0 %v3433
    %4450 = vmatmul.mubr.f32.gmra.mrb[0].mxu0 %v2876
    %v4451 = vpop.f32.mrb[0].mxu0
    %v4452 = vadd.f32 0.0, %v4451
    %v4453 = vpop.f32.mrb[0].mxu0
    %v4454 = vadd.f32 0.0, %v4453
    %4455 = vdwg.mxu0
    %4456 = vmatprep.subr.mxu0 %v4102
    %4457 = vmatpush1.msra.mxu0 %v4101
    %4458 = vmatprep.subr.mxu0 %v4104
    %4459 = vmatpush1.msra.mxu0 %v4103
    %4460 = vmatprep.subr.mxu0 %v4106
    %4461 = vmatpush1.msra.mxu0 %v4105
    %4462 = vmatprep.subr.mxu0 %v4108
    %4463 = vmatpush1.msra.mxu0 %v4107
    %4464 = vmatprep.subr.mxu0 %v4110
    %4465 = vmatpush1.msra.mxu0 %v4109
    %4466 = vmatprep.subr.mxu0 %v4112
    %4467 = vmatpush1.msra.mxu0 %v4111
    %4468 = vmatprep.subr.mxu0 %v4114
    %4469 = vmatpush1.msra.mxu0 %v4113
    %4470 = vmatprep.subr.mxu0 %v4116
    %4471 = vmatpush1.msra.mxu0 %v4115
    %4472 = vmatprep.subr.mxu0 %v4118
    %4473 = vmatpush1.msra.mxu0 %v4117
    %4474 = vmatprep.subr.mxu0 %v4120
    %4475 = vmatpush1.msra.mxu0 %v4119
    %4476 = vmatprep.subr.mxu0 %v4122
    %4477 = vmatpush1.msra.mxu0 %v4121
    %4478 = vmatprep.subr.mxu0 %v4124
    %4479 = vmatpush1.msra.mxu0 %v4123
    %4480 = vmatprep.subr.mxu0 %v4126
    %4481 = vmatpush1.msra.mxu0 %v4125
    %4482 = vmatprep.subr.mxu0 %v4128
    %4483 = vmatpush1.msra.mxu0 %v4127
    %4484 = vmatprep.subr.mxu0 %v4130
    %4485 = vmatpush1.msra.mxu0 %v4129
    %4486 = vmatprep.subr.mxu0 %v4132
    %4487 = vmatpush1.msra.mxu0 %v4131
    %4488 = vmatprep.subr.mxu0 %v4134
    %4489 = vmatpush1.msra.mxu0 %v4133
    %4490 = vmatprep.subr.mxu0 %v4136
    %4491 = vmatpush1.msra.mxu0 %v4135
    %4492 = vmatprep.subr.mxu0 %v4138
    %4493 = vmatpush1.msra.mxu0 %v4137
    %4494 = vmatprep.subr.mxu0 %v4140
    %4495 = vmatpush1.msra.mxu0 %v4139
    %4496 = vmatprep.subr.mxu0 %v4142
    %4497 = vmatpush1.msra.mxu0 %v4141
    %4498 = vmatprep.subr.mxu0 %v4144
    %4499 = vmatpush1.msra.mxu0 %v4143
    %4500 = vmatprep.subr.mxu0 %v4146
    %4501 = vmatpush1.msra.mxu0 %v4145
    %4502 = vmatprep.subr.mxu0 %v4148
    %4503 = vmatpush1.msra.mxu0 %v4147
    %4504 = vmatprep.subr.mxu0 %v4150
    %4505 = vmatpush1.msra.mxu0 %v4149
    %4506 = vmatprep.subr.mxu0 %v4152
    %4507 = vmatpush1.msra.mxu0 %v4151
    %4508 = vmatprep.subr.mxu0 %v4154
    %4509 = vmatpush1.msra.mxu0 %v4153
    %4510 = vmatprep.subr.mxu0 %v4156
    %4511 = vmatpush1.msra.mxu0 %v4155
    %4512 = vmatprep.subr.mxu0 %v4158
    %4513 = vmatpush1.msra.mxu0 %v4157
    %4514 = vmatprep.subr.mxu0 %v4160
    %4515 = vmatpush1.msra.mxu0 %v4159
    %4516 = vmatprep.subr.mxu0 %v4162
    %4517 = vmatpush1.msra.mxu0 %v4161
    %4518 = vmatprep.subr.mxu0 %v4164
    %4519 = vmatpush1.msra.mxu0 %v4163
    %4520 = vmatprep.mubr.f32.mxu0 %v3036
    %4521 = vmatmul.mubr.f32.gmra.mrb[0].mxu0 %v3390
    %v4522 = vpop.f32.mrb[0].mxu0
    %v4523 = vadd.f32 %v4446, %v4522
    %v4524 = vpop.f32.mrb[0].mxu0
    %v4525 = vadd.f32 %v4448, %v4524
    %4526 = vmatprep.mubr.f32.mxu0 %v3042
    %4527 = vmatmul.mubr.f32.gmra.mrb[0].mxu0 %v3391
    %v4528 = vpop.f32.mrb[0].mxu0
    %v4529 = vadd.f32 %v4452, %v4528
    %v4530 = vpop.f32.mrb[0].mxu0
    %v4531 = vadd.f32 %v4454, %v4530
    %4532 = vdwg.mxu0
    %4533 = vmatprep.subr.mxu0 %v4166
    %4534 = vmatpush1.msra.mxu0 %v4165
    %4535 = vmatprep.subr.mxu0 %v4168
    %4536 = vmatpush1.msra.mxu0 %v4167
    %4537 = vmatprep.subr.mxu0 %v4170
    %4538 = vmatpush1.msra.mxu0 %v4169
    %4539 = vmatprep.subr.mxu0 %v4172
    %4540 = vmatpush1.msra.mxu0 %v4171
    %4541 = vmatprep.subr.mxu0 %v4174
    %4542 = vmatpush1.msra.mxu0 %v4173
    %4543 = vmatprep.subr.mxu0 %v4176
    %4544 = vmatpush1.msra.mxu0 %v4175
    %4545 = vmatprep.subr.mxu0 %v4178
    %4546 = vmatpush1.msra.mxu0 %v4177
    %4547 = vmatprep.subr.mxu0 %v4180
    %4548 = vmatpush1.msra.mxu0 %v4179
    %4549 = vmatprep.subr.mxu0 %v4182
    %4550 = vmatpush1.msra.mxu0 %v4181
    %4551 = vmatprep.subr.mxu0 %v4184
    %4552 = vmatpush1.msra.mxu0 %v4183
    %4553 = vmatprep.subr.mxu0 %v4186
    %4554 = vmatpush1.msra.mxu0 %v4185
    %4555 = vmatprep.subr.mxu0 %v4188
    %4556 = vmatpush1.msra.mxu0 %v4187
    %4557 = vmatprep.subr.mxu0 %v4190
    %4558 = vmatpush1.msra.mxu0 %v4189
    %4559 = vmatprep.subr.mxu0 %v4192
    %4560 = vmatpush1.msra.mxu0 %v4191
    %4561 = vmatprep.subr.mxu0 %v4194
    %4562 = vmatpush1.msra.mxu0 %v4193
    %4563 = vmatprep.subr.mxu0 %v4196
    %4564 = vmatpush1.msra.mxu0 %v4195
    %4565 = vmatprep.subr.mxu0 %v4198
    %4566 = vmatpush1.msra.mxu0 %v4197
    %4567 = vmatprep.subr.mxu0 %v4200
    %4568 = vmatpush1.msra.mxu0 %v4199
    %4569 = vmatprep.subr.mxu0 %v4202
    %4570 = vmatpush1.msra.mxu0 %v4201
    %4571 = vmatprep.subr.mxu0 %v4204
    %4572 = vmatpush1.msra.mxu0 %v4203
    %4573 = vmatprep.subr.mxu0 %v4206
    %4574 = vmatpush1.msra.mxu0 %v4205
    %4575 = vmatprep.subr.mxu0 %v4208
    %4576 = vmatpush1.msra.mxu0 %v4207
    %4577 = vmatprep.subr.mxu0 %v4210
    %4578 = vmatpush1.msra.mxu0 %v4209
    %4579 = vmatprep.subr.mxu0 %v4212
    %4580 = vmatpush1.msra.mxu0 %v4211
    %4581 = vmatprep.subr.mxu0 %v4214
    %4582 = vmatpush1.msra.mxu0 %v4213
    %4583 = vmatprep.subr.mxu0 %v4216
    %4584 = vmatpush1.msra.mxu0 %v4215
    %4585 = vmatprep.subr.mxu0 %v4218
    %4586 = vmatpush1.msra.mxu0 %v4217
    %4587 = vmatprep.subr.mxu0 %v4220
    %4588 = vmatpush1.msra.mxu0 %v4219
    %4589 = vmatprep.subr.mxu0 %v4222
    %4590 = vmatpush1.msra.mxu0 %v4221
    %4591 = vmatprep.subr.mxu0 %v4224
    %4592 = vmatpush1.msra.mxu0 %v4223
    %4593 = vmatprep.subr.mxu0 %v4226
    %4594 = vmatpush1.msra.mxu0 %v4225
    %4595 = vmatprep.subr.mxu0 %v4228
    %4596 = vmatpush1.msra.mxu0 %v4227
    %4597 = vmatprep.mubr.f32.mxu0 %v3408
    %4598 = vmatmul.mubr.f32.gmra.mrb[0].mxu0 %v3434
    %v4599 = vpop.f32.mrb[0].mxu0
    %v4600 = vadd.f32 %v4523, %v4599
    %v4601 = vpop.f32.mrb[0].mxu0
    %v4602 = vadd.f32 %v4525, %v4601
    %4603 = vmatprep.mubr.f32.mxu0 %v3409
    %4604 = vmatmul.mubr.f32.gmra.mrb[0].mxu0 %v3435
    %v4605 = vpop.f32.mrb[0].mxu0
    %v4606 = vadd.f32 %v4529, %v4605
    %v4607 = vpop.f32.mrb[0].mxu0
    %v4608 = vadd.f32 %v4531, %v4607
    %4609 = vdwg.mxu0
    %4610 = vmatprep.subr.mxu0 %v4230
    %4611 = vmatpush1.msra.mxu0 %v4229
    %4612 = vmatprep.subr.mxu0 %v4232
    %4613 = vmatpush1.msra.mxu0 %v4231
    %4614 = vmatprep.subr.mxu0 %v4234
    %4615 = vmatpush1.msra.mxu0 %v4233
    %4616 = vmatprep.subr.mxu0 %v4236
    %4617 = vmatpush1.msra.mxu0 %v4235
    %4618 = vmatprep.subr.mxu0 %v4238
    %4619 = vmatpush1.msra.mxu0 %v4237
    %4620 = vmatprep.subr.mxu0 %v4240
    %4621 = vmatpush1.msra.mxu0 %v4239
    %4622 = vmatprep.subr.mxu0 %v4242
    %4623 = vmatpush1.msra.mxu0 %v4241
    %4624 = vmatprep.subr.mxu0 %v4244
    %4625 = vmatpush1.msra.mxu0 %v4243
    %4626 = vmatprep.subr.mxu0 %v4246
    %4627 = vmatpush1.msra.mxu0 %v4245
    %4628 = vmatprep.subr.mxu0 %v4248
    %4629 = vmatpush1.msra.mxu0 %v4247
    %4630 = vmatprep.subr.mxu0 %v4250
    %4631 = vmatpush1.msra.mxu0 %v4249
    %4632 = vmatprep.subr.mxu0 %v4252
    %4633 = vmatpush1.msra.mxu0 %v4251
    %4634 = vmatprep.subr.mxu0 %v4254
    %4635 = vmatpush1.msra.mxu0 %v4253
    %4636 = vmatprep.subr.mxu0 %v4256
    %4637 = vmatpush1.msra.mxu0 %v4255
    %4638 = vmatprep.subr.mxu0 %v4258
    %4639 = vmatpush1.msra.mxu0 %v4257
    %4640 = vmatprep.subr.mxu0 %v4260
    %4641 = vmatpush1.msra.mxu0 %v4259
    %4642 = vmatprep.subr.mxu0 %v4262
    %4643 = vmatpush1.msra.mxu0 %v4261
    %4644 = vmatprep.subr.mxu0 %v4264
    %4645 = vmatpush1.msra.mxu0 %v4263
    %4646 = vmatprep.subr.mxu0 %v4266
    %4647 = vmatpush1.msra.mxu0 %v4265
    %4648 = vmatprep.subr.mxu0 %v4268
    %4649 = vmatpush1.msra.mxu0 %v4267
    %4650 = vmatprep.subr.mxu0 %v4270
    %4651 = vmatpush1.msra.mxu0 %v4269
    %4652 = vmatprep.subr.mxu0 %v4272
    %4653 = vmatpush1.msra.mxu0 %v4271
    %4654 = vmatprep.subr.mxu0 %v4274
    %4655 = vmatpush1.msra.mxu0 %v4273
    %4656 = vmatprep.subr.mxu0 %v4276
    %4657 = vmatpush1.msra.mxu0 %v4275
    %4658 = vmatprep.subr.mxu0 %v4278
    %4659 = vmatpush1.msra.mxu0 %v4277
    %4660 = vmatprep.subr.mxu0 %v4280
    %4661 = vmatpush1.msra.mxu0 %v4279
    %4662 = vmatprep.subr.mxu0 %v4282
    %4663 = vmatpush1.msra.mxu0 %v4281
    %4664 = vmatprep.subr.mxu0 %v4284
    %4665 = vmatpush1.msra.mxu0 %v4283
    %4666 = vmatprep.subr.mxu0 %v4286
    %4667 = vmatpush1.msra.mxu0 %v4285
    %4668 = vmatprep.subr.mxu0 %v4288
    %4669 = vmatpush1.msra.mxu0 %v4287
    %4670 = vmatprep.subr.mxu0 %v4290
    %4671 = vmatpush1.msra.mxu0 %v4289
    %4672 = vmatprep.subr.mxu0 %v4292
    %4673 = vmatpush1.msra.mxu0 %v4291
    %4674 = vmatprep.mubr.f32.mxu0 %v3436
    %4675 = vmatmul.mubr.f32.gmra.mrb[0].mxu0 %v3202
    %v4676 = vpop.f32.mrb[0].mxu0
    %v4677 = vadd.f32 %v4600, %v4676
    %v4678 = vpop.f32.mrb[0].mxu0
    %v4679 = vadd.f32 %v4602, %v4678
    %4680 = vmatprep.mubr.f32.mxu0 %v3437
    %4681 = vmatmul.mubr.f32.gmra.mrb[0].mxu0 %v3208
    %v4682 = vpop.f32.mrb[0].mxu0
    %v4683 = vadd.f32 %v4606, %v4682
    %v4684 = vpop.f32.mrb[0].mxu0
    %v4685 = vadd.f32 %v4608, %v4684
    %4686 = vdwg.mxu0
    %4687 = vmatprep.subr.mxu0 %v4294
    %4688 = vmatpush1.msra.mxu0 %v4293
    %4689 = vmatprep.subr.mxu0 %v4296
    %4690 = vmatpush1.msra.mxu0 %v4295
    %4691 = vmatprep.subr.mxu0 %v4298
    %4692 = vmatpush1.msra.mxu0 %v4297
    %4693 = vmatprep.subr.mxu0 %v4300
    %4694 = vmatpush1.msra.mxu0 %v4299
    %4695 = vmatprep.subr.mxu0 %v4302
    %4696 = vmatpush1.msra.mxu0 %v4301
    %4697 = vmatprep.subr.mxu0 %v4304
    %4698 = vmatpush1.msra.mxu0 %v4303
    %4699 = vmatprep.subr.mxu0 %v4306
    %4700 = vmatpush1.msra.mxu0 %v4305
    %4701 = vmatprep.subr.mxu0 %v4308
    %4702 = vmatpush1.msra.mxu0 %v4307
    %4703 = vmatprep.subr.mxu0 %v4310
    %4704 = vmatpush1.msra.mxu0 %v4309
    %4705 = vmatprep.subr.mxu0 %v4312
    %4706 = vmatpush1.msra.mxu0 %v4311
    %4707 = vmatprep.subr.mxu0 %v4314
    %4708 = vmatpush1.msra.mxu0 %v4313
    %4709 = vmatprep.subr.mxu0 %v4316
    %4710 = vmatpush1.msra.mxu0 %v4315
    %4711 = vmatprep.subr.mxu0 %v4318
    %4712 = vmatpush1.msra.mxu0 %v4317
    %4713 = vmatprep.subr.mxu0 %v4320
    %4714 = vmatpush1.msra.mxu0 %v4319
    %4715 = vmatprep.subr.mxu0 %v4322
    %4716 = vmatpush1.msra.mxu0 %v4321
    %4717 = vmatprep.subr.mxu0 %v4324
    %4718 = vmatpush1.msra.mxu0 %v4323
    %4719 = vmatprep.subr.mxu0 %v4326
    %4720 = vmatpush1.msra.mxu0 %v4325
    %4721 = vmatprep.subr.mxu0 %v4328
    %4722 = vmatpush1.msra.mxu0 %v4327
    %4723 = vmatprep.subr.mxu0 %v4330
    %4724 = vmatpush1.msra.mxu0 %v4329
    %4725 = vmatprep.subr.mxu0 %v4332
    %4726 = vmatpush1.msra.mxu0 %v4331
    %4727 = vmatprep.subr.mxu0 %v4334
    %4728 = vmatpush1.msra.mxu0 %v4333
    %4729 = vmatprep.subr.mxu0 %v4336
    %4730 = vmatpush1.msra.mxu0 %v4335
    %4731 = vmatprep.subr.mxu0 %v4338
    %4732 = vmatpush1.msra.mxu0 %v4337
    %4733 = vmatprep.subr.mxu0 %v4340
    %4734 = vmatpush1.msra.mxu0 %v4339
    %4735 = vmatprep.subr.mxu0 %v4342
    %4736 = vmatpush1.msra.mxu0 %v4341
    %4737 = vmatprep.subr.mxu0 %v4344
    %4738 = vmatpush1.msra.mxu0 %v4343
    %4739 = vmatprep.subr.mxu0 %v4346
    %4740 = vmatpush1.msra.mxu0 %v4345
    %4741 = vmatprep.subr.mxu0 %v4348
    %4742 = vmatpush1.msra.mxu0 %v4347
    %4743 = vmatprep.subr.mxu0 %v4350
    %4744 = vmatpush1.msra.mxu0 %v4349
    %4745 = vmatprep.subr.mxu0 %v4352
    %4746 = vmatpush1.msra.mxu0 %v4351
    %4747 = vmatprep.subr.mxu0 %v4354
    %4748 = vmatpush1.msra.mxu0 %v4353
    %4749 = vmatprep.subr.mxu0 %v4356
    %4750 = vmatpush1.msra.mxu0 %v4355
    %4751 = vmatprep.mubr.f32.mxu0 %v3368
    %4752 = vmatmul.mubr.f32.gmra.mrb[0].mxu0 %v3426
    %v4753 = vpop.f32.mrb[0].mxu0
    %v4754 = vadd.f32 %v4677, %v4753
    %v4755 = vpop.f32.mrb[0].mxu0
    %v4756 = vadd.f32 %v4679, %v4755
    %4757 = vmatprep.mubr.f32.mxu0 %v3374
    %4758 = vmatmul.mubr.f32.gmra.mrb[0].mxu0 %v3427
    %v4759 = vpop.f32.mrb[0].mxu0
    %v4760 = vadd.f32 %v4683, %v4759
    %v4761 = vpop.f32.mrb[0].mxu0
    %v4762 = vadd.f32 %v4685, %v4761
    %4763 = vdwg.mxu0
    %4764 = vmatprep.subr.mxu0 %v4358
    %4765 = vmatpush1.msra.mxu0 %v4357
    %4766 = vmatprep.subr.mxu0 %v4360
    %4767 = vmatpush1.msra.mxu0 %v4359
    %4768 = vmatprep.subr.mxu0 %v4362
    %4769 = vmatpush1.msra.mxu0 %v4361
    %4770 = vmatprep.subr.mxu0 %v4364
    %4771 = vmatpush1.msra.mxu0 %v4363
    %4772 = vmatprep.subr.mxu0 %v4366
    %4773 = vmatpush1.msra.mxu0 %v4365
    %4774 = vmatprep.subr.mxu0 %v4368
    %4775 = vmatpush1.msra.mxu0 %v4367
    %4776 = vmatprep.subr.mxu0 %v4370
    %4777 = vmatpush1.msra.mxu0 %v4369
    %4778 = vmatprep.subr.mxu0 %v4372
    %4779 = vmatpush1.msra.mxu0 %v4371
    %4780 = vmatprep.subr.mxu0 0.0
    %4781 = vmatpush1.msra.mxu0 0.0
    %4782 = vmatprep.subr.mxu0 0.0
    %4783 = vmatpush1.msra.mxu0 0.0
    %4784 = vmatprep.subr.mxu0 0.0
    %4785 = vmatpush1.msra.mxu0 0.0
    %4786 = vmatprep.subr.mxu0 0.0
    %4787 = vmatpush1.msra.mxu0 0.0
    %4788 = vmatprep.subr.mxu0 0.0
    %4789 = vmatpush1.msra.mxu0 0.0
    %4790 = vmatprep.subr.mxu0 0.0
    %4791 = vmatpush1.msra.mxu0 0.0
    %4792 = vmatprep.subr.mxu0 0.0
    %4793 = vmatpush1.msra.mxu0 0.0
    %4794 = vmatprep.subr.mxu0 0.0
    %4795 = vmatpush1.msra.mxu0 0.0
    %4796 = vmatprep.subr.mxu0 0.0
    %4797 = vmatpush1.msra.mxu0 0.0
    %4798 = vmatprep.subr.mxu0 0.0
    %4799 = vmatpush1.msra.mxu0 0.0
    %4800 = vmatprep.subr.mxu0 0.0
    %4801 = vmatpush1.msra.mxu0 0.0
    %4802 = vmatprep.subr.mxu0 0.0
    %4803 = vmatpush1.msra.mxu0 0.0
    %4804 = vmatprep.subr.mxu0 0.0
    %4805 = vmatpush1.msra.mxu0 0.0
    %4806 = vmatprep.subr.mxu0 0.0
    %4807 = vmatpush1.msra.mxu0 0.0
    %4808 = vmatprep.subr.mxu0 0.0
    %4809 = vmatpush1.msra.mxu0 0.0
    %4810 = vmatprep.subr.mxu0 0.0
    %4811 = vmatpush1.msra.mxu0 0.0
    %4812 = vmatprep.subr.mxu0 0.0
    %4813 = vmatpush1.msra.mxu0 0.0
    %4814 = vmatprep.subr.mxu0 0.0
    %4815 = vmatpush1.msra.mxu0 0.0
    %4816 = vmatprep.subr.mxu0 0.0
    %4817 = vmatpush1.msra.mxu0 0.0
    %4818 = vmatprep.subr.mxu0 0.0
    %4819 = vmatpush1.msra.mxu0 0.0
    %4820 = vmatprep.subr.mxu0 0.0
    %4821 = vmatpush1.msra.mxu0 0.0
    %4822 = vmatprep.subr.mxu0 0.0
    %4823 = vmatpush1.msra.mxu0 0.0
    %4824 = vmatprep.subr.mxu0 0.0
    %4825 = vmatpush1.msra.mxu0 0.0
    %4826 = vmatprep.subr.mxu0 0.0
    %4827 = vmatpush1.msra.mxu0 0.0
    %4828 = vmatprep.mubr.f32.mxu0 0.0
    %4829 = vmatmul.mubr.f32.gmra.mrb[0].mxu0 %v4374
    %v4830 = vpop.f32.mrb[0].mxu0
    %v4831 = vadd.f32 %v4754, %v4830
    %v4832 = vpop.f32.mrb[0].mxu0
    %v4833 = vadd.f32 %v4756, %v4832
    %4834 = vmatprep.mubr.f32.mxu0 0.0
    %4835 = vmatmul.mubr.f32.gmra.mrb[0].mxu0 %v4377
    %v4836 = vpop.f32.mrb[0].mxu0
    %v4837 = vadd.f32 %v4760, %v4836
    %v4838 = vpop.f32.mrb[0].mxu0
    %v4839 = vadd.f32 %v4762, %v4838
    %4840 = vdwg.mxu0
    %v4842 = vsel %vm443, %v3969, 0
    %v4845 = vsel %vm443, %v3975, 0
    %4847 = vmatprep.subr.mxu0 %v4038
    %4848 = vmatpush1.msra.mxu0 %v4037
    %4849 = vmatprep.subr.mxu0 %v4040
    %4850 = vmatpush1.msra.mxu0 %v4039
    %4851 = vmatprep.subr.mxu0 %v4042
    %4852 = vmatpush1.msra.mxu0 %v4041
    %4853 = vmatprep.subr.mxu0 %v4044
    %4854 = vmatpush1.msra.mxu0 %v4043
    %4855 = vmatprep.subr.mxu0 %v4046
    %4856 = vmatpush1.msra.mxu0 %v4045
    %4857 = vmatprep.subr.mxu0 %v4048
    %4858 = vmatpush1.msra.mxu0 %v4047
    %4859 = vmatprep.subr.mxu0 %v4050
    %4860 = vmatpush1.msra.mxu0 %v4049
    %4861 = vmatprep.subr.mxu0 %v4052
    %4862 = vmatpush1.msra.mxu0 %v4051
    %4863 = vmatprep.subr.mxu0 %v4054
    %4864 = vmatpush1.msra.mxu0 %v4053
    %4865 = vmatprep.subr.mxu0 %v4056
    %4866 = vmatpush1.msra.mxu0 %v4055
    %4867 = vmatprep.subr.mxu0 %v4058
    %4868 = vmatpush1.msra.mxu0 %v4057
    %4869 = vmatprep.subr.mxu0 %v4060
    %4870 = vmatpush1.msra.mxu0 %v4059
    %4871 = vmatprep.subr.mxu0 %v4062
    %4872 = vmatpush1.msra.mxu0 %v4061
    %4873 = vmatprep.subr.mxu0 %v4064
    %4874 = vmatpush1.msra.mxu0 %v4063
    %4875 = vmatprep.subr.mxu0 %v4066
    %4876 = vmatpush1.msra.mxu0 %v4065
    %4877 = vmatprep.subr.mxu0 %v4068
    %4878 = vmatpush1.msra.mxu0 %v4067
    %4879 = vmatprep.subr.mxu0 %v4070
    %4880 = vmatpush1.msra.mxu0 %v4069
    %4881 = vmatprep.subr.mxu0 %v4072
    %4882 = vmatpush1.msra.mxu0 %v4071
    %4883 = vmatprep.subr.mxu0 %v4074
    %4884 = vmatpush1.msra.mxu0 %v4073
    %4885 = vmatprep.subr.mxu0 %v4076
    %4886 = vmatpush1.msra.mxu0 %v4075
    %4887 = vmatprep.subr.mxu0 %v4078
    %4888 = vmatpush1.msra.mxu0 %v4077
    %4889 = vmatprep.subr.mxu0 %v4080
    %4890 = vmatpush1.msra.mxu0 %v4079
    %4891 = vmatprep.subr.mxu0 %v4082
    %4892 = vmatpush1.msra.mxu0 %v4081
    %4893 = vmatprep.subr.mxu0 %v4084
    %4894 = vmatpush1.msra.mxu0 %v4083
    %4895 = vmatprep.subr.mxu0 %v4086
    %4896 = vmatpush1.msra.mxu0 %v4085
    %4897 = vmatprep.subr.mxu0 %v4088
    %4898 = vmatpush1.msra.mxu0 %v4087
    %4899 = vmatprep.subr.mxu0 %v4090
    %4900 = vmatpush1.msra.mxu0 %v4089
    %4901 = vmatprep.subr.mxu0 %v4092
    %4902 = vmatpush1.msra.mxu0 %v4091
    %4903 = vmatprep.subr.mxu0 %v4094
    %4904 = vmatpush1.msra.mxu0 %v4093
    %4905 = vmatprep.subr.mxu0 %v4096
    %4906 = vmatpush1.msra.mxu0 %v4095
    %4907 = vmatprep.subr.mxu0 %v4098
    %4908 = vmatpush1.msra.mxu0 %v4097
    %4909 = vmatprep.subr.mxu0 %v4100
    %4910 = vmatpush1.msra.mxu0 %v4099
    %4911 = vmatprep.mubr.f32.mxu0 %v4031
    %4912 = vmatmul.mubr.f32.gmra.mrb[0].mxu0 %v3505
    %v4913 = vpop.f32.mrb[0].mxu0
    %v4914 = vadd.f32 0.0, %v4913
    %v4915 = vpop.f32.mrb[0].mxu0
    %v4916 = vadd.f32 0.0, %v4915
    %4917 = vmatprep.mubr.f32.mxu0 %v4032
    %4918 = vmatmul.mubr.f32.gmra.mrb[0].mxu0 %v3511
    %v4919 = vpop.f32.mrb[0].mxu0
    %v4920 = vadd.f32 0.0, %v4919
    %v4921 = vpop.f32.mrb[0].mxu0
    %v4922 = vadd.f32 0.0, %v4921
    %4923 = vdwg.mxu0
    %4924 = vmatprep.subr.mxu0 %v4102
    %4925 = vmatpush1.msra.mxu0 %v4101
    %4926 = vmatprep.subr.mxu0 %v4104
    %4927 = vmatpush1.msra.mxu0 %v4103
    %4928 = vmatprep.subr.mxu0 %v4106
    %4929 = vmatpush1.msra.mxu0 %v4105
    %4930 = vmatprep.subr.mxu0 %v4108
    %4931 = vmatpush1.msra.mxu0 %v4107
    %4932 = vmatprep.subr.mxu0 %v4110
    %4933 = vmatpush1.msra.mxu0 %v4109
    %4934 = vmatprep.subr.mxu0 %v4112
    %4935 = vmatpush1.msra.mxu0 %v4111
    %4936 = vmatprep.subr.mxu0 %v4114
    %4937 = vmatpush1.msra.mxu0 %v4113
    %4938 = vmatprep.subr.mxu0 %v4116
    %4939 = vmatpush1.msra.mxu0 %v4115
    %4940 = vmatprep.subr.mxu0 %v4118
    %4941 = vmatpush1.msra.mxu0 %v4117
    %4942 = vmatprep.subr.mxu0 %v4120
    %4943 = vmatpush1.msra.mxu0 %v4119
    %4944 = vmatprep.subr.mxu0 %v4122
    %4945 = vmatpush1.msra.mxu0 %v4121
    %4946 = vmatprep.subr.mxu0 %v4124
    %4947 = vmatpush1.msra.mxu0 %v4123
    %4948 = vmatprep.subr.mxu0 %v4126
    %4949 = vmatpush1.msra.mxu0 %v4125
    %4950 = vmatprep.subr.mxu0 %v4128
    %4951 = vmatpush1.msra.mxu0 %v4127
    %4952 = vmatprep.subr.mxu0 %v4130
    %4953 = vmatpush1.msra.mxu0 %v4129
    %4954 = vmatprep.subr.mxu0 %v4132
    %4955 = vmatpush1.msra.mxu0 %v4131
    %4956 = vmatprep.subr.mxu0 %v4134
    %4957 = vmatpush1.msra.mxu0 %v4133
    %4958 = vmatprep.subr.mxu0 %v4136
    %4959 = vmatpush1.msra.mxu0 %v4135
    %4960 = vmatprep.subr.mxu0 %v4138
    %4961 = vmatpush1.msra.mxu0 %v4137
    %4962 = vmatprep.subr.mxu0 %v4140
    %4963 = vmatpush1.msra.mxu0 %v4139
    %4964 = vmatprep.subr.mxu0 %v4142
    %4965 = vmatpush1.msra.mxu0 %v4141
    %4966 = vmatprep.subr.mxu0 %v4144
    %4967 = vmatpush1.msra.mxu0 %v4143
    %4968 = vmatprep.subr.mxu0 %v4146
    %4969 = vmatpush1.msra.mxu0 %v4145
    %4970 = vmatprep.subr.mxu0 %v4148
    %4971 = vmatpush1.msra.mxu0 %v4147
    %4972 = vmatprep.subr.mxu0 %v4150
    %4973 = vmatpush1.msra.mxu0 %v4149
    %4974 = vmatprep.subr.mxu0 %v4152
    %4975 = vmatpush1.msra.mxu0 %v4151
    %4976 = vmatprep.subr.mxu0 %v4154
    %4977 = vmatpush1.msra.mxu0 %v4153
    %4978 = vmatprep.subr.mxu0 %v4156
    %4979 = vmatpush1.msra.mxu0 %v4155
    %4980 = vmatprep.subr.mxu0 %v4158
    %4981 = vmatpush1.msra.mxu0 %v4157
    %4982 = vmatprep.subr.mxu0 %v4160
    %4983 = vmatpush1.msra.mxu0 %v4159
    %4984 = vmatprep.subr.mxu0 %v4162
    %4985 = vmatpush1.msra.mxu0 %v4161
    %4986 = vmatprep.subr.mxu0 %v4164
    %4987 = vmatpush1.msra.mxu0 %v4163
    %4988 = vmatprep.mubr.f32.mxu0 %v3659
    %4989 = vmatmul.mubr.f32.gmra.mrb[0].mxu0 %v3989
    %v4990 = vpop.f32.mrb[0].mxu0
    %v4991 = vadd.f32 %v4914, %v4990
    %v4992 = vpop.f32.mrb[0].mxu0
    %v4993 = vadd.f32 %v4916, %v4992
    %4994 = vmatprep.mubr.f32.mxu0 %v3665
    %4995 = vmatmul.mubr.f32.gmra.mrb[0].mxu0 %v3990
    %v4996 = vpop.f32.mrb[0].mxu0
    %v4997 = vadd.f32 %v4920, %v4996
    %v4998 = vpop.f32.mrb[0].mxu0
    %v4999 = vadd.f32 %v4922, %v4998
    %5000 = vdwg.mxu0
    %5001 = vmatprep.subr.mxu0 %v4166
    %5002 = vmatpush1.msra.mxu0 %v4165
    %5003 = vmatprep.subr.mxu0 %v4168
    %5004 = vmatpush1.msra.mxu0 %v4167
    %5005 = vmatprep.subr.mxu0 %v4170
    %5006 = vmatpush1.msra.mxu0 %v4169
    %5007 = vmatprep.subr.mxu0 %v4172
    %5008 = vmatpush1.msra.mxu0 %v4171
    %5009 = vmatprep.subr.mxu0 %v4174
    %5010 = vmatpush1.msra.mxu0 %v4173
    %5011 = vmatprep.subr.mxu0 %v4176
    %5012 = vmatpush1.msra.mxu0 %v4175
    %5013 = vmatprep.subr.mxu0 %v4178
    %5014 = vmatpush1.msra.mxu0 %v4177
    %5015 = vmatprep.subr.mxu0 %v4180
    %5016 = vmatpush1.msra.mxu0 %v4179
    %5017 = vmatprep.subr.mxu0 %v4182
    %5018 = vmatpush1.msra.mxu0 %v4181
    %5019 = vmatprep.subr.mxu0 %v4184
    %5020 = vmatpush1.msra.mxu0 %v4183
    %5021 = vmatprep.subr.mxu0 %v4186
    %5022 = vmatpush1.msra.mxu0 %v4185
    %5023 = vmatprep.subr.mxu0 %v4188
    %5024 = vmatpush1.msra.mxu0 %v4187
    %5025 = vmatprep.subr.mxu0 %v4190
    %5026 = vmatpush1.msra.mxu0 %v4189
    %5027 = vmatprep.subr.mxu0 %v4192
    %5028 = vmatpush1.msra.mxu0 %v4191
    %5029 = vmatprep.subr.mxu0 %v4194
    %5030 = vmatpush1.msra.mxu0 %v4193
    %5031 = vmatprep.subr.mxu0 %v4196
    %5032 = vmatpush1.msra.mxu0 %v4195
    %5033 = vmatprep.subr.mxu0 %v4198
    %5034 = vmatpush1.msra.mxu0 %v4197
    %5035 = vmatprep.subr.mxu0 %v4200
    %5036 = vmatpush1.msra.mxu0 %v4199
    %5037 = vmatprep.subr.mxu0 %v4202
    %5038 = vmatpush1.msra.mxu0 %v4201
    %5039 = vmatprep.subr.mxu0 %v4204
    %5040 = vmatpush1.msra.mxu0 %v4203
    %5041 = vmatprep.subr.mxu0 %v4206
    %5042 = vmatpush1.msra.mxu0 %v4205
    %5043 = vmatprep.subr.mxu0 %v4208
    %5044 = vmatpush1.msra.mxu0 %v4207
    %5045 = vmatprep.subr.mxu0 %v4210
    %5046 = vmatpush1.msra.mxu0 %v4209
    %5047 = vmatprep.subr.mxu0 %v4212
    %5048 = vmatpush1.msra.mxu0 %v4211
    %5049 = vmatprep.subr.mxu0 %v4214
    %5050 = vmatpush1.msra.mxu0 %v4213
    %5051 = vmatprep.subr.mxu0 %v4216
    %5052 = vmatpush1.msra.mxu0 %v4215
    %5053 = vmatprep.subr.mxu0 %v4218
    %5054 = vmatpush1.msra.mxu0 %v4217
    %5055 = vmatprep.subr.mxu0 %v4220
    %5056 = vmatpush1.msra.mxu0 %v4219
    %5057 = vmatprep.subr.mxu0 %v4222
    %5058 = vmatpush1.msra.mxu0 %v4221
    %5059 = vmatprep.subr.mxu0 %v4224
    %5060 = vmatpush1.msra.mxu0 %v4223
    %5061 = vmatprep.subr.mxu0 %v4226
    %5062 = vmatpush1.msra.mxu0 %v4225
    %5063 = vmatprep.subr.mxu0 %v4228
    %5064 = vmatpush1.msra.mxu0 %v4227
    %5065 = vmatprep.mubr.f32.mxu0 %v4007
    %5066 = vmatmul.mubr.f32.gmra.mrb[0].mxu0 %v4033
    %v5067 = vpop.f32.mrb[0].mxu0
    %v5068 = vadd.f32 %v4991, %v5067
    %v5069 = vpop.f32.mrb[0].mxu0
    %v5070 = vadd.f32 %v4993, %v5069
    %5071 = vmatprep.mubr.f32.mxu0 %v4008
    %5072 = vmatmul.mubr.f32.gmra.mrb[0].mxu0 %v4034
    %v5073 = vpop.f32.mrb[0].mxu0
    %v5074 = vadd.f32 %v4997, %v5073
    %v5075 = vpop.f32.mrb[0].mxu0
    %v5076 = vadd.f32 %v4999, %v5075
    %5077 = vdwg.mxu0
    %5078 = vmatprep.subr.mxu0 %v4230
    %5079 = vmatpush1.msra.mxu0 %v4229
    %5080 = vmatprep.subr.mxu0 %v4232
    %5081 = vmatpush1.msra.mxu0 %v4231
    %5082 = vmatprep.subr.mxu0 %v4234
    %5083 = vmatpush1.msra.mxu0 %v4233
    %5084 = vmatprep.subr.mxu0 %v4236
    %5085 = vmatpush1.msra.mxu0 %v4235
    %5086 = vmatprep.subr.mxu0 %v4238
    %5087 = vmatpush1.msra.mxu0 %v4237
    %5088 = vmatprep.subr.mxu0 %v4240
    %5089 = vmatpush1.msra.mxu0 %v4239
    %5090 = vmatprep.subr.mxu0 %v4242
    %5091 = vmatpush1.msra.mxu0 %v4241
    %5092 = vmatprep.subr.mxu0 %v4244
    %5093 = vmatpush1.msra.mxu0 %v4243
    %5094 = vmatprep.subr.mxu0 %v4246
    %5095 = vmatpush1.msra.mxu0 %v4245
    %5096 = vmatprep.subr.mxu0 %v4248
    %5097 = vmatpush1.msra.mxu0 %v4247
    %5098 = vmatprep.subr.mxu0 %v4250
    %5099 = vmatpush1.msra.mxu0 %v4249
    %5100 = vmatprep.subr.mxu0 %v4252
    %5101 = vmatpush1.msra.mxu0 %v4251
    %5102 = vmatprep.subr.mxu0 %v4254
    %5103 = vmatpush1.msra.mxu0 %v4253
    %5104 = vmatprep.subr.mxu0 %v4256
    %5105 = vmatpush1.msra.mxu0 %v4255
    %5106 = vmatprep.subr.mxu0 %v4258
    %5107 = vmatpush1.msra.mxu0 %v4257
    %5108 = vmatprep.subr.mxu0 %v4260
    %5109 = vmatpush1.msra.mxu0 %v4259
    %5110 = vmatprep.subr.mxu0 %v4262
    %5111 = vmatpush1.msra.mxu0 %v4261
    %5112 = vmatprep.subr.mxu0 %v4264
    %5113 = vmatpush1.msra.mxu0 %v4263
    %5114 = vmatprep.subr.mxu0 %v4266
    %5115 = vmatpush1.msra.mxu0 %v4265
    %5116 = vmatprep.subr.mxu0 %v4268
    %5117 = vmatpush1.msra.mxu0 %v4267
    %5118 = vmatprep.subr.mxu0 %v4270
    %5119 = vmatpush1.msra.mxu0 %v4269
    %5120 = vmatprep.subr.mxu0 %v4272
    %5121 = vmatpush1.msra.mxu0 %v4271
    %5122 = vmatprep.subr.mxu0 %v4274
    %5123 = vmatpush1.msra.mxu0 %v4273
    %5124 = vmatprep.subr.mxu0 %v4276
    %5125 = vmatpush1.msra.mxu0 %v4275
    %5126 = vmatprep.subr.mxu0 %v4278
    %5127 = vmatpush1.msra.mxu0 %v4277
    %5128 = vmatprep.subr.mxu0 %v4280
    %5129 = vmatpush1.msra.mxu0 %v4279
    %5130 = vmatprep.subr.mxu0 %v4282
    %5131 = vmatpush1.msra.mxu0 %v4281
    %5132 = vmatprep.subr.mxu0 %v4284
    %5133 = vmatpush1.msra.mxu0 %v4283
    %5134 = vmatprep.subr.mxu0 %v4286
    %5135 = vmatpush1.msra.mxu0 %v4285
    %5136 = vmatprep.subr.mxu0 %v4288
    %5137 = vmatpush1.msra.mxu0 %v4287
    %5138 = vmatprep.subr.mxu0 %v4290
    %5139 = vmatpush1.msra.mxu0 %v4289
    %5140 = vmatprep.subr.mxu0 %v4292
    %5141 = vmatpush1.msra.mxu0 %v4291
    %5142 = vmatprep.mubr.f32.mxu0 %v4035
    %5143 = vmatmul.mubr.f32.gmra.mrb[0].mxu0 %v3813
    %v5144 = vpop.f32.mrb[0].mxu0
    %v5145 = vadd.f32 %v5068, %v5144
    %v5146 = vpop.f32.mrb[0].mxu0
    %v5147 = vadd.f32 %v5070, %v5146
    %5148 = vmatprep.mubr.f32.mxu0 %v4036
    %5149 = vmatmul.mubr.f32.gmra.mrb[0].mxu0 %v3819
    %v5150 = vpop.f32.mrb[0].mxu0
    %v5151 = vadd.f32 %v5074, %v5150
    %v5152 = vpop.f32.mrb[0].mxu0
    %v5153 = vadd.f32 %v5076, %v5152
    %5154 = vdwg.mxu0
    %5155 = vmatprep.subr.mxu0 %v4294
    %5156 = vmatpush1.msra.mxu0 %v4293
    %5157 = vmatprep.subr.mxu0 %v4296
    %5158 = vmatpush1.msra.mxu0 %v4295
    %5159 = vmatprep.subr.mxu0 %v4298
    %5160 = vmatpush1.msra.mxu0 %v4297
    %5161 = vmatprep.subr.mxu0 %v4300
    %5162 = vmatpush1.msra.mxu0 %v4299
    %5163 = vmatprep.subr.mxu0 %v4302
    %5164 = vmatpush1.msra.mxu0 %v4301
    %5165 = vmatprep.subr.mxu0 %v4304
    %5166 = vmatpush1.msra.mxu0 %v4303
    %5167 = vmatprep.subr.mxu0 %v4306
    %5168 = vmatpush1.msra.mxu0 %v4305
    %5169 = vmatprep.subr.mxu0 %v4308
    %5170 = vmatpush1.msra.mxu0 %v4307
    %5171 = vmatprep.subr.mxu0 %v4310
    %5172 = vmatpush1.msra.mxu0 %v4309
    %5173 = vmatprep.subr.mxu0 %v4312
    %5174 = vmatpush1.msra.mxu0 %v4311
    %5175 = vmatprep.subr.mxu0 %v4314
    %5176 = vmatpush1.msra.mxu0 %v4313
    %5177 = vmatprep.subr.mxu0 %v4316
    %5178 = vmatpush1.msra.mxu0 %v4315
    %5179 = vmatprep.subr.mxu0 %v4318
    %5180 = vmatpush1.msra.mxu0 %v4317
    %5181 = vmatprep.subr.mxu0 %v4320
    %5182 = vmatpush1.msra.mxu0 %v4319
    %5183 = vmatprep.subr.mxu0 %v4322
    %5184 = vmatpush1.msra.mxu0 %v4321
    %5185 = vmatprep.subr.mxu0 %v4324
    %5186 = vmatpush1.msra.mxu0 %v4323
    %5187 = vmatprep.subr.mxu0 %v4326
    %5188 = vmatpush1.msra.mxu0 %v4325
    %5189 = vmatprep.subr.mxu0 %v4328
    %5190 = vmatpush1.msra.mxu0 %v4327
    %5191 = vmatprep.subr.mxu0 %v4330
    %5192 = vmatpush1.msra.mxu0 %v4329
    %5193 = vmatprep.subr.mxu0 %v4332
    %5194 = vmatpush1.msra.mxu0 %v4331
    %5195 = vmatprep.subr.mxu0 %v4334
    %5196 = vmatpush1.msra.mxu0 %v4333
    %5197 = vmatprep.subr.mxu0 %v4336
    %5198 = vmatpush1.msra.mxu0 %v4335
    %5199 = vmatprep.subr.mxu0 %v4338
    %5200 = vmatpush1.msra.mxu0 %v4337
    %5201 = vmatprep.subr.mxu0 %v4340
    %5202 = vmatpush1.msra.mxu0 %v4339
    %5203 = vmatprep.subr.mxu0 %v4342
    %5204 = vmatpush1.msra.mxu0 %v4341
    %5205 = vmatprep.subr.mxu0 %v4344
    %5206 = vmatpush1.msra.mxu0 %v4343
    %5207 = vmatprep.subr.mxu0 %v4346
    %5208 = vmatpush1.msra.mxu0 %v4345
    %5209 = vmatprep.subr.mxu0 %v4348
    %5210 = vmatpush1.msra.mxu0 %v4347
    %5211 = vmatprep.subr.mxu0 %v4350
    %5212 = vmatpush1.msra.mxu0 %v4349
    %5213 = vmatprep.subr.mxu0 %v4352
    %5214 = vmatpush1.msra.mxu0 %v4351
    %5215 = vmatprep.subr.mxu0 %v4354
    %5216 = vmatpush1.msra.mxu0 %v4353
    %5217 = vmatprep.subr.mxu0 %v4356
    %5218 = vmatpush1.msra.mxu0 %v4355
    %5219 = vmatprep.mubr.f32.mxu0 %v3967
    %5220 = vmatmul.mubr.f32.gmra.mrb[0].mxu0 %v4025
    %v5221 = vpop.f32.mrb[0].mxu0
    %v5222 = vadd.f32 %v5145, %v5221
    %v5223 = vpop.f32.mrb[0].mxu0
    %v5224 = vadd.f32 %v5147, %v5223
    %5225 = vmatprep.mubr.f32.mxu0 %v3973
    %5226 = vmatmul.mubr.f32.gmra.mrb[0].mxu0 %v4026
    %v5227 = vpop.f32.mrb[0].mxu0
    %v5228 = vadd.f32 %v5151, %v5227
    %v5229 = vpop.f32.mrb[0].mxu0
    %v5230 = vadd.f32 %v5153, %v5229
    %5231 = vdwg.mxu0
    %5232 = vmatprep.subr.mxu0 %v4358
    %5233 = vmatpush1.msra.mxu0 %v4357
    %5234 = vmatprep.subr.mxu0 %v4360
    %5235 = vmatpush1.msra.mxu0 %v4359
    %5236 = vmatprep.subr.mxu0 %v4362
    %5237 = vmatpush1.msra.mxu0 %v4361
    %5238 = vmatprep.subr.mxu0 %v4364
    %5239 = vmatpush1.msra.mxu0 %v4363
    %5240 = vmatprep.subr.mxu0 %v4366
    %5241 = vmatpush1.msra.mxu0 %v4365
    %5242 = vmatprep.subr.mxu0 %v4368
    %5243 = vmatpush1.msra.mxu0 %v4367
    %5244 = vmatprep.subr.mxu0 %v4370
    %5245 = vmatpush1.msra.mxu0 %v4369
    %5246 = vmatprep.subr.mxu0 %v4372
    %5247 = vmatpush1.msra.mxu0 %v4371
    %5248 = vmatprep.subr.mxu0 0.0
    %5249 = vmatpush1.msra.mxu0 0.0
    %5250 = vmatprep.subr.mxu0 0.0
    %5251 = vmatpush1.msra.mxu0 0.0
    %5252 = vmatprep.subr.mxu0 0.0
    %5253 = vmatpush1.msra.mxu0 0.0
    %5254 = vmatprep.subr.mxu0 0.0
    %5255 = vmatpush1.msra.mxu0 0.0
    %5256 = vmatprep.subr.mxu0 0.0
    %5257 = vmatpush1.msra.mxu0 0.0
    %5258 = vmatprep.subr.mxu0 0.0
    %5259 = vmatpush1.msra.mxu0 0.0
    %5260 = vmatprep.subr.mxu0 0.0
    %5261 = vmatpush1.msra.mxu0 0.0
    %5262 = vmatprep.subr.mxu0 0.0
    %5263 = vmatpush1.msra.mxu0 0.0
    %5264 = vmatprep.subr.mxu0 0.0
    %5265 = vmatpush1.msra.mxu0 0.0
    %5266 = vmatprep.subr.mxu0 0.0
    %5267 = vmatpush1.msra.mxu0 0.0
    %5268 = vmatprep.subr.mxu0 0.0
    %5269 = vmatpush1.msra.mxu0 0.0
    %5270 = vmatprep.subr.mxu0 0.0
    %5271 = vmatpush1.msra.mxu0 0.0
    %5272 = vmatprep.subr.mxu0 0.0
    %5273 = vmatpush1.msra.mxu0 0.0
    %5274 = vmatprep.subr.mxu0 0.0
    %5275 = vmatpush1.msra.mxu0 0.0
    %5276 = vmatprep.subr.mxu0 0.0
    %5277 = vmatpush1.msra.mxu0 0.0
    %5278 = vmatprep.subr.mxu0 0.0
    %5279 = vmatpush1.msra.mxu0 0.0
    %5280 = vmatprep.subr.mxu0 0.0
    %5281 = vmatpush1.msra.mxu0 0.0
    %5282 = vmatprep.subr.mxu0 0.0
    %5283 = vmatpush1.msra.mxu0 0.0
    %5284 = vmatprep.subr.mxu0 0.0
    %5285 = vmatpush1.msra.mxu0 0.0
    %5286 = vmatprep.subr.mxu0 0.0
    %5287 = vmatpush1.msra.mxu0 0.0
    %5288 = vmatprep.subr.mxu0 0.0
    %5289 = vmatpush1.msra.mxu0 0.0
    %5290 = vmatprep.subr.mxu0 0.0
    %5291 = vmatpush1.msra.mxu0 0.0
    %5292 = vmatprep.subr.mxu0 0.0
    %5293 = vmatpush1.msra.mxu0 0.0
    %5294 = vmatprep.subr.mxu0 0.0
    %5295 = vmatpush1.msra.mxu0 0.0
    %5296 = vmatprep.mubr.f32.mxu0 0.0
    %5297 = vmatmul.mubr.f32.gmra.mrb[0].mxu0 %v4842
    %v5298 = vpop.f32.mrb[0].mxu0
    %v5299 = vadd.f32 %v5222, %v5298
    %v5300 = vpop.f32.mrb[0].mxu0
    %v5301 = vadd.f32 %v5224, %v5300
    %5302 = vmatprep.mubr.f32.mxu0 0.0
    %5303 = vmatmul.mubr.f32.gmra.mrb[0].mxu0 %v4845
    %v5304 = vpop.f32.mrb[0].mxu0
    %v5305 = vadd.f32 %v5228, %v5304
    %v5306 = vpop.f32.mrb[0].mxu0
    %v5307 = vadd.f32 %v5230, %v5306
    %5308 = vdwg.mxu0
    %v5309 = vadd.f32 %v4831, %v4837
    %v5310 = vrot.slane %v5309, 4
    %v5311 = vadd.f32 %v5309, %v5310
    %v5312 = vrot.slane %v5311, 2
    %v5313 = vadd.f32 %v5311, %v5312
    %v5314 = vrot.slane %v5313, 1
    %v5315 = vadd.f32 %v5313, %v5314
    %v5316 = vsel %vm443, %v4833, 0.0
    %v5317 = vsel %vm443, %v4839, 0.0
    %v5318 = vadd.f32 %v5316, %v5317
    %v5319 = vrot.slane %v5318, 4
    %v5320 = vadd.f32 %v5318, %v5319
    %v5321 = vrot.slane %v5320, 2
    %v5322 = vadd.f32 %v5320, %v5321
    %v5323 = vrot.slane %v5322, 1
    %v5324 = vadd.f32 %v5322, %v5323
    %v5325 = vmul.f32 %v4831, %v4831
    %v5326 = vmul.f32 %v4833, %v4833
    %v5327 = vmul.f32 %v4837, %v4837
    %v5328 = vmul.f32 %v4839, %v4839
    %v5329 = vadd.f32 %v5325, %v5327
    %v5330 = vrot.slane %v5329, 4
    %v5331 = vadd.f32 %v5329, %v5330
    %v5332 = vrot.slane %v5331, 2
    %v5333 = vadd.f32 %v5331, %v5332
    %v5334 = vrot.slane %v5333, 1
    %v5335 = vadd.f32 %v5333, %v5334
    %v5336 = vsel %vm443, %v5326, 0.0
    %v5337 = vsel %vm443, %v5328, 0.0
    %v5338 = vadd.f32 %v5336, %v5337
    %v5339 = vrot.slane %v5338, 4
    %v5340 = vadd.f32 %v5338, %v5339
    %v5341 = vrot.slane %v5340, 2
    %v5342 = vadd.f32 %v5340, %v5341
    %v5343 = vrot.slane %v5342, 1
    %v5344 = vadd.f32 %v5342, %v5343
    %v5345 = vadd.f32 %v5299, %v5305
    %v5346 = vrot.slane %v5345, 4
    %v5347 = vadd.f32 %v5345, %v5346
    %v5348 = vrot.slane %v5347, 2
    %v5349 = vadd.f32 %v5347, %v5348
    %v5350 = vrot.slane %v5349, 1
    %v5351 = vadd.f32 %v5349, %v5350
    %v5352 = vsel %vm443, %v5301, 0.0
    %v5353 = vsel %vm443, %v5307, 0.0
    %v5354 = vadd.f32 %v5352, %v5353
    %v5355 = vrot.slane %v5354, 4
    %v5356 = vadd.f32 %v5354, %v5355
    %v5357 = vrot.slane %v5356, 2
    %v5358 = vadd.f32 %v5356, %v5357
    %v5359 = vrot.slane %v5358, 1
    %v5360 = vadd.f32 %v5358, %v5359
    %v5361 = vadd.f32 %v5315, %v5351
    %v5362 = vadd.f32 %v5324, %v5360
    %v5363 = vmul.f32 %v5299, %v5299
    %v5364 = vmul.f32 %v5301, %v5301
    %v5365 = vmul.f32 %v5305, %v5305
    %v5366 = vmul.f32 %v5307, %v5307
    %v5367 = vadd.f32 %v5363, %v5365
    %v5368 = vrot.slane %v5367, 4
    %v5369 = vadd.f32 %v5367, %v5368
    %v5370 = vrot.slane %v5369, 2
    %v5371 = vadd.f32 %v5369, %v5370
    %v5372 = vrot.slane %v5371, 1
    %v5373 = vadd.f32 %v5371, %v5372
    %v5374 = vsel %vm443, %v5364, 0.0
    %v5375 = vsel %vm443, %v5366, 0.0
    %v5376 = vadd.f32 %v5374, %v5375
    %v5377 = vrot.slane %v5376, 4
    %v5378 = vadd.f32 %v5376, %v5377
    %v5379 = vrot.slane %v5378, 2
    %v5380 = vadd.f32 %v5378, %v5379
    %v5381 = vrot.slane %v5380, 1
    %v5382 = vadd.f32 %v5380, %v5381
    %v5383 = vadd.f32 %v5335, %v5373
    %v5384 = vadd.f32 %v5344, %v5382
    %v5385 = vmul.f32 %v5361, 0.03125
    %v5386 = vmul.f32 %v5362, 0.03125
    %v5387 = vmul.f32 %v5383, 0.03125
    %v5388 = vmul.f32 %v5384, 0.03125
    %v5389 = vmul.f32 %v5385, %v5385
    %v5390 = vmul.f32 %v5386, %v5386
    %v5391 = vsub.f32 %v5387, %v5389
    %v5392 = vsub.f32 %v5388, %v5390
    %v5393 = vld [vmem:[#allocation13] sm:$0x3]
    %v5394 = vadd.f32 %v5391, 1e-05
    %v5395 = vadd.f32 %v5392, 1e-05
    %v5396 = vrsqrt.pop %v5394
    %v5397 = vrsqrt.pop %v5395
    %v5400 = vcombine.low %v5396, %v5397
    %v5402 = vunpack.c.l.s4 1966171168
    %v5403 = vunpack.c.0.s8 %v5402
    %v5404 = vlaneseq
    %v5405 = vshrl.u32 %v5404, 7
    %v5406 = vsub.s32 %v5403, %v5405
    %v5407 = vrot.slane %v5400, %v5406
    %v5409 = vunpack.c.l.s4 1966171168
    %v5410 = vunpack.c.0.s8 %v5409
    %v5411 = vlaneseq
    %v5412 = vshrl.u32 %v5411, 7
    %v5413 = vsub.s32 %v5410, %v5412
    %v5414 = vrot.slane %v5407, %v5413
    %v5416 = vmul.f32 %v5393, %v5414
    %v5417 = vld [vmem:[#allocation15] sm:$0x3]
    %v5419 = vlaneseq
    %v5420 = vshrl.u32 %v5419, 7
    %v5421 = vsub.s32 0, %v5420
    %v5422 = vrot.slane %v5416, %v5421
    %v5423 = vlaneseq
    %v5424 = vshrl.u32 %v5423, 7
    %v5425 = vsub.s32 1, %v5424
    %v5426 = vrot.slane %v5416, %v5425
    %v5429 = vmul.f32 %v5385, %v5422
    %v5430 = vmul.f32 %v5386, %v5426
    %v5433 = vcombine.low %v5429, %v5430
    %v5435 = vunpack.c.l.s4 1966171168
    %v5436 = vunpack.c.0.s8 %v5435
    %v5437 = vlaneseq
    %v5438 = vshrl.u32 %v5437, 7
    %v5439 = vsub.s32 %v5436, %v5438
    %v5440 = vrot.slane %v5433, %v5439
    %v5442 = vunpack.c.l.s4 1966171168
    %v5443 = vunpack.c.0.s8 %v5442
    %v5444 = vlaneseq
    %v5445 = vshrl.u32 %v5444, 7
    %v5446 = vsub.s32 %v5443, %v5445
    %v5447 = vrot.slane %v5440, %v5446
    %v5449 = vsub.f32 %v5417, %v5447
    %v5450 = vmul.f32 %v4831, %v5422
    %v5451 = vmul.f32 %v4833, %v5426
    %v5452 = vmul.f32 %v4837, %v5422
    %v5453 = vmul.f32 %v4839, %v5426
    %v5455 = vlaneseq
    %v5456 = vshrl.u32 %v5455, 7
    %v5457 = vsub.s32 0, %v5456
    %v5458 = vrot.slane %v5449, %v5457
    %v5459 = vlaneseq
    %v5460 = vshrl.u32 %v5459, 7
    %v5461 = vsub.s32 1, %v5460
    %v5462 = vrot.slane %v5449, %v5461
    %v5465 = vadd.f32 %v5450, %v5458
    %v5466 = vadd.f32 %v5451, %v5462
    %v5467 = vadd.f32 %v5452, %v5458
    %v5468 = vadd.f32 %v5453, %v5462
    %v5469 = vmax.f32 %v5465, 0.0
    %v5470 = vmax.f32 %v5466, 0.0
    %v5471 = vmax.f32 %v5467, 0.0
    %v5472 = vmax.f32 %v5468, 0.0
    %v5473 = vmul.f32 %v5299, %v5422
    %v5474 = vmul.f32 %v5301, %v5426
    %v5475 = vmul.f32 %v5305, %v5422
    %v5476 = vmul.f32 %v5307, %v5426
    %v5477 = vadd.f32 %v5473, %v5458
    %v5478 = vadd.f32 %v5474, %v5462
    %v5479 = vadd.f32 %v5475, %v5458
    %v5480 = vadd.f32 %v5476, %v5462
    %v5481 = vmax.f32 %v5477, 0.0
    %v5482 = vmax.f32 %v5478, 0.0
    %v5483 = vmax.f32 %v5479, 0.0
    %v5484 = vmax.f32 %v5480, 0.0
    %5485 = vmatprep.subr.mxu0 %v5470
    %5486 = vmatpush1.msra.mxu0 %v5469
    %5487 = vmatprep.subr.mxu0 %v5472
    %5488 = vmatpush1.msra.mxu0 %v5471
    %5489 = vmatprep.subr.mxu0 0.0
    %5490 = vmatpush1.msra.mxu0 0.0
    %5491 = vmatprep.subr.mxu0 0.0
    %5492 = vmatpush1.msra.mxu0 0.0
    %5493 = vmatprep.subr.mxu0 0.0
    %5494 = vmatpush1.msra.mxu0 0.0
    %5495 = vmatprep.subr.mxu0 0.0
    %5496 = vmatpush1.msra.mxu0 0.0
    %5497 = vmatprep.subr.mxu0 0.0
    %5498 = vmatpush1.msra.mxu0 0.0
    %5499 = vmatprep.subr.mxu0 0.0
    %5500 = vmatpush1.msra.mxu0 0.0
    %5501 = vmatprep.subr.mxu0 0.0
    %5502 = vmatpush1.msra.mxu0 0.0
    %5503 = vmatprep.subr.mxu0 0.0
    %5504 = vmatpush1.msra.mxu0 0.0
    %5505 = vmatprep.subr.mxu0 0.0
    %5506 = vmatpush1.msra.mxu0 0.0
    %5507 = vmatprep.subr.mxu0 0.0
    %5508 = vmatpush1.msra.mxu0 0.0
    %5509 = vmatprep.subr.mxu0 0.0
    %5510 = vmatpush1.msra.mxu0 0.0
    %5511 = vmatprep.subr.mxu0 0.0
    %5512 = vmatpush1.msra.mxu0 0.0
    %5513 = vmatprep.subr.mxu0 0.0
    %5514 = vmatpush1.msra.mxu0 0.0
    %5515 = vmatprep.subr.mxu0 0.0
    %5516 = vmatpush1.msra.mxu0 0.0
    %5517 = vmatprep.subr.mxu0 0.0
    %5518 = vmatpush1.msra.mxu0 0.0
    %5519 = vmatprep.subr.mxu0 0.0
    %5520 = vmatpush1.msra.mxu0 0.0
    %5521 = vmatprep.subr.mxu0 0.0
    %5522 = vmatpush1.msra.mxu0 0.0
    %5523 = vmatprep.subr.mxu0 0.0
    %5524 = vmatpush1.msra.mxu0 0.0
    %5525 = vmatprep.subr.mxu0 0.0
    %5526 = vmatpush1.msra.mxu0 0.0
    %5527 = vmatprep.subr.mxu0 0.0
    %5528 = vmatpush1.msra.mxu0 0.0
    %5529 = vmatprep.subr.mxu0 0.0
    %5530 = vmatpush1.msra.mxu0 0.0
    %5531 = vmatprep.subr.mxu0 0.0
    %5532 = vmatpush1.msra.mxu0 0.0
    %5533 = vmatprep.subr.mxu0 0.0
    %5534 = vmatpush1.msra.mxu0 0.0
    %5535 = vmatprep.subr.mxu0 0.0
    %5536 = vmatpush1.msra.mxu0 0.0
    %5537 = vmatprep.subr.mxu0 0.0
    %5538 = vmatpush1.msra.mxu0 0.0
    %5539 = vmatprep.subr.mxu0 0.0
    %5540 = vmatpush1.msra.mxu0 0.0
    %5541 = vmatprep.subr.mxu0 0.0
    %5542 = vmatpush1.msra.mxu0 0.0
    %5543 = vmatprep.subr.mxu0 0.0
    %5544 = vmatpush1.msra.mxu0 0.0
    %5545 = vmatprep.subr.mxu0 0.0
    %5546 = vmatpush1.msra.mxu0 0.0
    %5547 = vmatprep.subr.mxu0 0.0
    %5548 = vmatpush1.msra.mxu0 0.0
    %5549 = vmatprep.mubr.f32.mxu0 0.0
    %5550 = vmatmul.mubr.f32.gmra.mrb[0].mxu0 %v2798
    %v5551 = vpop.f32.mrb[0].mxu0
    %v5552 = vadd.f32 0.0, %v5551
    %v5553 = vpop.f32.mrb[0].mxu0
    %v5554 = vadd.f32 0.0, %v5553
    %5555 = vmatprep.mubr.f32.mxu0 0.0
    %5556 = vmatmul.mubr.f32.gmra.mrb[0].mxu0 %v2801
    %v5557 = vpop.f32.mrb[0].mxu0
    %v5558 = vadd.f32 0.0, %v5557
    %v5559 = vpop.f32.mrb[0].mxu0
    %v5560 = vadd.f32 0.0, %v5559
    %5561 = vdwg.mxu0
    %5562 = vmatprep.subr.mxu0 %v5470
    %5563 = vmatpush1.msra.mxu0 %v5469
    %5564 = vmatprep.subr.mxu0 %v5472
    %5565 = vmatpush1.msra.mxu0 %v5471
    %5566 = vmatprep.subr.mxu0 0.0
    %5567 = vmatpush1.msra.mxu0 0.0
    %5568 = vmatprep.subr.mxu0 0.0
    %5569 = vmatpush1.msra.mxu0 0.0
    %5570 = vmatprep.subr.mxu0 0.0
    %5571 = vmatpush1.msra.mxu0 0.0
    %5572 = vmatprep.subr.mxu0 0.0
    %5573 = vmatpush1.msra.mxu0 0.0
    %5574 = vmatprep.subr.mxu0 0.0
    %5575 = vmatpush1.msra.mxu0 0.0
    %5576 = vmatprep.subr.mxu0 0.0
    %5577 = vmatpush1.msra.mxu0 0.0
    %5578 = vmatprep.subr.mxu0 0.0
    %5579 = vmatpush1.msra.mxu0 0.0
    %5580 = vmatprep.subr.mxu0 0.0
    %5581 = vmatpush1.msra.mxu0 0.0
    %5582 = vmatprep.subr.mxu0 0.0
    %5583 = vmatpush1.msra.mxu0 0.0
    %5584 = vmatprep.subr.mxu0 0.0
    %5585 = vmatpush1.msra.mxu0 0.0
    %5586 = vmatprep.subr.mxu0 0.0
    %5587 = vmatpush1.msra.mxu0 0.0
    %5588 = vmatprep.subr.mxu0 0.0
    %5589 = vmatpush1.msra.mxu0 0.0
    %5590 = vmatprep.subr.mxu0 0.0
    %5591 = vmatpush1.msra.mxu0 0.0
    %5592 = vmatprep.subr.mxu0 0.0
    %5593 = vmatpush1.msra.mxu0 0.0
    %5594 = vmatprep.subr.mxu0 0.0
    %5595 = vmatpush1.msra.mxu0 0.0
    %5596 = vmatprep.subr.mxu0 0.0
    %5597 = vmatpush1.msra.mxu0 0.0
    %5598 = vmatprep.subr.mxu0 0.0
    %5599 = vmatpush1.msra.mxu0 0.0
    %5600 = vmatprep.subr.mxu0 0.0
    %5601 = vmatpush1.msra.mxu0 0.0
    %5602 = vmatprep.subr.mxu0 0.0
    %5603 = vmatpush1.msra.mxu0 0.0
    %5604 = vmatprep.subr.mxu0 0.0
    %5605 = vmatpush1.msra.mxu0 0.0
    %5606 = vmatprep.subr.mxu0 0.0
    %5607 = vmatpush1.msra.mxu0 0.0
    %5608 = vmatprep.subr.mxu0 0.0
    %5609 = vmatpush1.msra.mxu0 0.0
    %5610 = vmatprep.subr.mxu0 0.0
    %5611 = vmatpush1.msra.mxu0 0.0
    %5612 = vmatprep.subr.mxu0 0.0
    %5613 = vmatpush1.msra.mxu0 0.0
    %5614 = vmatprep.subr.mxu0 0.0
    %5615 = vmatpush1.msra.mxu0 0.0
    %5616 = vmatprep.subr.mxu0 0.0
    %5617 = vmatpush1.msra.mxu0 0.0
    %5618 = vmatprep.subr.mxu0 0.0
    %5619 = vmatpush1.msra.mxu0 0.0
    %5620 = vmatprep.subr.mxu0 0.0
    %5621 = vmatpush1.msra.mxu0 0.0
    %5622 = vmatprep.subr.mxu0 0.0
    %5623 = vmatpush1.msra.mxu0 0.0
    %5624 = vmatprep.subr.mxu0 0.0
    %5625 = vmatpush1.msra.mxu0 0.0
    %5626 = vmatprep.mubr.f32.mxu0 0.0
    %5627 = vmatmul.mubr.f32.gmra.mrb[0].mxu0 %v2881
    %v5628 = vpop.f32.mrb[0].mxu0
    %v5629 = vadd.f32 0.0, %v5628
    %v5630 = vpop.f32.mrb[0].mxu0
    %v5631 = vadd.f32 0.0, %v5630
    %5632 = vmatprep.mubr.f32.mxu0 0.0
    %5633 = vmatmul.mubr.f32.gmra.mrb[0].mxu0 %v2884
    %v5634 = vpop.f32.mrb[0].mxu0
    %v5635 = vadd.f32 0.0, %v5634
    %v5636 = vpop.f32.mrb[0].mxu0
    %v5637 = vadd.f32 0.0, %v5636
    %5638 = vdwg.mxu0
    %5639 = vmatprep.subr.mxu0 %v5470
    %5640 = vmatpush1.msra.mxu0 %v5469
    %5641 = vmatprep.subr.mxu0 %v5472
    %5642 = vmatpush1.msra.mxu0 %v5471
    %5643 = vmatprep.subr.mxu0 0.0
    %5644 = vmatpush1.msra.mxu0 0.0
    %5645 = vmatprep.subr.mxu0 0.0
    %5646 = vmatpush1.msra.mxu0 0.0
    %5647 = vmatprep.subr.mxu0 0.0
    %5648 = vmatpush1.msra.mxu0 0.0
    %5649 = vmatprep.subr.mxu0 0.0
    %5650 = vmatpush1.msra.mxu0 0.0
    %5651 = vmatprep.subr.mxu0 0.0
    %5652 = vmatpush1.msra.mxu0 0.0
    %5653 = vmatprep.subr.mxu0 0.0
    %5654 = vmatpush1.msra.mxu0 0.0
    %5655 = vmatprep.subr.mxu0 0.0
    %5656 = vmatpush1.msra.mxu0 0.0
    %5657 = vmatprep.subr.mxu0 0.0
    %5658 = vmatpush1.msra.mxu0 0.0
    %5659 = vmatprep.subr.mxu0 0.0
    %5660 = vmatpush1.msra.mxu0 0.0
    %5661 = vmatprep.subr.mxu0 0.0
    %5662 = vmatpush1.msra.mxu0 0.0
    %5663 = vmatprep.subr.mxu0 0.0
    %5664 = vmatpush1.msra.mxu0 0.0
    %5665 = vmatprep.subr.mxu0 0.0
    %5666 = vmatpush1.msra.mxu0 0.0
    %5667 = vmatprep.subr.mxu0 0.0
    %5668 = vmatpush1.msra.mxu0 0.0
    %5669 = vmatprep.subr.mxu0 0.0
    %5670 = vmatpush1.msra.mxu0 0.0
    %5671 = vmatprep.subr.mxu0 0.0
    %5672 = vmatpush1.msra.mxu0 0.0
    %5673 = vmatprep.subr.mxu0 0.0
    %5674 = vmatpush1.msra.mxu0 0.0
    %5675 = vmatprep.subr.mxu0 0.0
    %5676 = vmatpush1.msra.mxu0 0.0
    %5677 = vmatprep.subr.mxu0 0.0
    %5678 = vmatpush1.msra.mxu0 0.0
    %5679 = vmatprep.subr.mxu0 0.0
    %5680 = vmatpush1.msra.mxu0 0.0
    %5681 = vmatprep.subr.mxu0 0.0
    %5682 = vmatpush1.msra.mxu0 0.0
    %5683 = vmatprep.subr.mxu0 0.0
    %5684 = vmatpush1.msra.mxu0 0.0
    %5685 = vmatprep.subr.mxu0 0.0
    %5686 = vmatpush1.msra.mxu0 0.0
    %5687 = vmatprep.subr.mxu0 0.0
    %5688 = vmatpush1.msra.mxu0 0.0
    %5689 = vmatprep.subr.mxu0 0.0
    %5690 = vmatpush1.msra.mxu0 0.0
    %5691 = vmatprep.subr.mxu0 0.0
    %5692 = vmatpush1.msra.mxu0 0.0
    %5693 = vmatprep.subr.mxu0 0.0
    %5694 = vmatpush1.msra.mxu0 0.0
    %5695 = vmatprep.subr.mxu0 0.0
    %5696 = vmatpush1.msra.mxu0 0.0
    %5697 = vmatprep.subr.mxu0 0.0
    %5698 = vmatpush1.msra.mxu0 0.0
    %5699 = vmatprep.subr.mxu0 0.0
    %5700 = vmatpush1.msra.mxu0 0.0
    %5701 = vmatprep.subr.mxu0 0.0
    %5702 = vmatpush1.msra.mxu0 0.0
    %5703 = vmatprep.mubr.f32.mxu0 0.0
    %5704 = vmatmul.mubr.f32.gmra.mrb[0].mxu0 %v2964
    %v5705 = vpop.f32.mrb[0].mxu0
    %v5706 = vadd.f32 0.0, %v5705
    %v5707 = vpop.f32.mrb[0].mxu0
    %v5708 = vadd.f32 0.0, %v5707
    %5709 = vmatprep.mubr.f32.mxu0 0.0
    %5710 = vmatmul.mubr.f32.gmra.mrb[0].mxu0 %v2967
    %v5711 = vpop.f32.mrb[0].mxu0
    %v5712 = vadd.f32 0.0, %v5711
    %v5713 = vpop.f32.mrb[0].mxu0
    %v5714 = vadd.f32 0.0, %v5713
    %5715 = vdwg.mxu0
    %5716 = vmatprep.subr.mxu0 %v5470
    %5717 = vmatpush1.msra.mxu0 %v5469
    %5718 = vmatprep.subr.mxu0 %v5472
    %5719 = vmatpush1.msra.mxu0 %v5471
    %5720 = vmatprep.subr.mxu0 0.0
    %5721 = vmatpush1.msra.mxu0 0.0
    %5722 = vmatprep.subr.mxu0 0.0
    %5723 = vmatpush1.msra.mxu0 0.0
    %5724 = vmatprep.subr.mxu0 0.0
    %5725 = vmatpush1.msra.mxu0 0.0
    %5726 = vmatprep.subr.mxu0 0.0
    %5727 = vmatpush1.msra.mxu0 0.0
    %5728 = vmatprep.subr.mxu0 0.0
    %5729 = vmatpush1.msra.mxu0 0.0
    %5730 = vmatprep.subr.mxu0 0.0
    %5731 = vmatpush1.msra.mxu0 0.0
    %5732 = vmatprep.subr.mxu0 0.0
    %5733 = vmatpush1.msra.mxu0 0.0
    %5734 = vmatprep.subr.mxu0 0.0
    %5735 = vmatpush1.msra.mxu0 0.0
    %5736 = vmatprep.subr.mxu0 0.0
    %5737 = vmatpush1.msra.mxu0 0.0
    %5738 = vmatprep.subr.mxu0 0.0
    %5739 = vmatpush1.msra.mxu0 0.0
    %5740 = vmatprep.subr.mxu0 0.0
    %5741 = vmatpush1.msra.mxu0 0.0
    %5742 = vmatprep.subr.mxu0 0.0
    %5743 = vmatpush1.msra.mxu0 0.0
    %5744 = vmatprep.subr.mxu0 0.0
    %5745 = vmatpush1.msra.mxu0 0.0
    %5746 = vmatprep.subr.mxu0 0.0
    %5747 = vmatpush1.msra.mxu0 0.0
    %5748 = vmatprep.subr.mxu0 0.0
    %5749 = vmatpush1.msra.mxu0 0.0
    %5750 = vmatprep.subr.mxu0 0.0
    %5751 = vmatpush1.msra.mxu0 0.0
    %5752 = vmatprep.subr.mxu0 0.0
    %5753 = vmatpush1.msra.mxu0 0.0
    %5754 = vmatprep.subr.mxu0 0.0
    %5755 = vmatpush1.msra.mxu0 0.0
    %5756 = vmatprep.subr.mxu0 0.0
    %5757 = vmatpush1.msra.mxu0 0.0
    %5758 = vmatprep.subr.mxu0 0.0
    %5759 = vmatpush1.msra.mxu0 0.0
    %5760 = vmatprep.subr.mxu0 0.0
    %5761 = vmatpush1.msra.mxu0 0.0
    %5762 = vmatprep.subr.mxu0 0.0
    %5763 = vmatpush1.msra.mxu0 0.0
    %5764 = vmatprep.subr.mxu0 0.0
    %5765 = vmatpush1.msra.mxu0 0.0
    %5766 = vmatprep.subr.mxu0 0.0
    %5767 = vmatpush1.msra.mxu0 0.0
    %5768 = vmatprep.subr.mxu0 0.0
    %5769 = vmatpush1.msra.mxu0 0.0
    %5770 = vmatprep.subr.mxu0 0.0
    %5771 = vmatpush1.msra.mxu0 0.0
    %5772 = vmatprep.subr.mxu0 0.0
    %5773 = vmatpush1.msra.mxu0 0.0
    %5774 = vmatprep.subr.mxu0 0.0
    %5775 = vmatpush1.msra.mxu0 0.0
    %5776 = vmatprep.subr.mxu0 0.0
    %5777 = vmatpush1.msra.mxu0 0.0
    %5778 = vmatprep.subr.mxu0 0.0
    %5779 = vmatpush1.msra.mxu0 0.0
    %5780 = vmatprep.mubr.f32.mxu0 0.0
    %5781 = vmatmul.mubr.f32.gmra.mrb[0].mxu0 %v3047
    %v5782 = vpop.f32.mrb[0].mxu0
    %v5783 = vadd.f32 0.0, %v5782
    %v5784 = vpop.f32.mrb[0].mxu0
    %v5785 = vadd.f32 0.0, %v5784
    %5786 = vmatprep.mubr.f32.mxu0 0.0
    %5787 = vmatmul.mubr.f32.gmra.mrb[0].mxu0 %v3050
    %v5788 = vpop.f32.mrb[0].mxu0
    %v5789 = vadd.f32 0.0, %v5788
    %v5790 = vpop.f32.mrb[0].mxu0
    %v5791 = vadd.f32 0.0, %v5790
    %5792 = vdwg.mxu0
    %5793 = vmatprep.subr.mxu0 %v5470
    %5794 = vmatpush1.msra.mxu0 %v5469
    %5795 = vmatprep.subr.mxu0 %v5472
    %5796 = vmatpush1.msra.mxu0 %v5471
    %5797 = vmatprep.subr.mxu0 0.0
    %5798 = vmatpush1.msra.mxu0 0.0
    %5799 = vmatprep.subr.mxu0 0.0
    %5800 = vmatpush1.msra.mxu0 0.0
    %5801 = vmatprep.subr.mxu0 0.0
    %5802 = vmatpush1.msra.mxu0 0.0
    %5803 = vmatprep.subr.mxu0 0.0
    %5804 = vmatpush1.msra.mxu0 0.0
    %5805 = vmatprep.subr.mxu0 0.0
    %5806 = vmatpush1.msra.mxu0 0.0
    %5807 = vmatprep.subr.mxu0 0.0
    %5808 = vmatpush1.msra.mxu0 0.0
    %5809 = vmatprep.subr.mxu0 0.0
    %5810 = vmatpush1.msra.mxu0 0.0
    %5811 = vmatprep.subr.mxu0 0.0
    %5812 = vmatpush1.msra.mxu0 0.0
    %5813 = vmatprep.subr.mxu0 0.0
    %5814 = vmatpush1.msra.mxu0 0.0
    %5815 = vmatprep.subr.mxu0 0.0
    %5816 = vmatpush1.msra.mxu0 0.0
    %5817 = vmatprep.subr.mxu0 0.0
    %5818 = vmatpush1.msra.mxu0 0.0
    %5819 = vmatprep.subr.mxu0 0.0
    %5820 = vmatpush1.msra.mxu0 0.0
    %5821 = vmatprep.subr.mxu0 0.0
    %5822 = vmatpush1.msra.mxu0 0.0
    %5823 = vmatprep.subr.mxu0 0.0
    %5824 = vmatpush1.msra.mxu0 0.0
    %5825 = vmatprep.subr.mxu0 0.0
    %5826 = vmatpush1.msra.mxu0 0.0
    %5827 = vmatprep.subr.mxu0 0.0
    %5828 = vmatpush1.msra.mxu0 0.0
    %5829 = vmatprep.subr.mxu0 0.0
    %5830 = vmatpush1.msra.mxu0 0.0
    %5831 = vmatprep.subr.mxu0 0.0
    %5832 = vmatpush1.msra.mxu0 0.0
    %5833 = vmatprep.subr.mxu0 0.0
    %5834 = vmatpush1.msra.mxu0 0.0
    %5835 = vmatprep.subr.mxu0 0.0
    %5836 = vmatpush1.msra.mxu0 0.0
    %5837 = vmatprep.subr.mxu0 0.0
    %5838 = vmatpush1.msra.mxu0 0.0
    %5839 = vmatprep.subr.mxu0 0.0
    %5840 = vmatpush1.msra.mxu0 0.0
    %5841 = vmatprep.subr.mxu0 0.0
    %5842 = vmatpush1.msra.mxu0 0.0
    %5843 = vmatprep.subr.mxu0 0.0
    %5844 = vmatpush1.msra.mxu0 0.0
    %5845 = vmatprep.subr.mxu0 0.0
    %5846 = vmatpush1.msra.mxu0 0.0
    %5847 = vmatprep.subr.mxu0 0.0
    %5848 = vmatpush1.msra.mxu0 0.0
    %5849 = vmatprep.subr.mxu0 0.0
    %5850 = vmatpush1.msra.mxu0 0.0
    %5851 = vmatprep.subr.mxu0 0.0
    %5852 = vmatpush1.msra.mxu0 0.0
    %5853 = vmatprep.subr.mxu0 0.0
    %5854 = vmatpush1.msra.mxu0 0.0
    %5855 = vmatprep.subr.mxu0 0.0
    %5856 = vmatpush1.msra.mxu0 0.0
    %5857 = vmatprep.mubr.f32.mxu0 0.0
    %5858 = vmatmul.mubr.f32.gmra.mrb[0].mxu0 %v3130
    %v5859 = vpop.f32.mrb[0].mxu0
    %v5860 = vadd.f32 0.0, %v5859
    %v5861 = vpop.f32.mrb[0].mxu0
    %v5862 = vadd.f32 0.0, %v5861
    %5863 = vmatprep.mubr.f32.mxu0 0.0
    %5864 = vmatmul.mubr.f32.gmra.mrb[0].mxu0 %v3133
    %v5865 = vpop.f32.mrb[0].mxu0
    %v5866 = vadd.f32 0.0, %v5865
    %v5867 = vpop.f32.mrb[0].mxu0
    %v5868 = vadd.f32 0.0, %v5867
    %5869 = vdwg.mxu0
    %5870 = vmatprep.subr.mxu0 %v5470
    %5871 = vmatpush1.msra.mxu0 %v5469
    %5872 = vmatprep.subr.mxu0 %v5472
    %5873 = vmatpush1.msra.mxu0 %v5471
    %5874 = vmatprep.subr.mxu0 0.0
    %5875 = vmatpush1.msra.mxu0 0.0
    %5876 = vmatprep.subr.mxu0 0.0
    %5877 = vmatpush1.msra.mxu0 0.0
    %5878 = vmatprep.subr.mxu0 0.0
    %5879 = vmatpush1.msra.mxu0 0.0
    %5880 = vmatprep.subr.mxu0 0.0
    %5881 = vmatpush1.msra.mxu0 0.0
    %5882 = vmatprep.subr.mxu0 0.0
    %5883 = vmatpush1.msra.mxu0 0.0
    %5884 = vmatprep.subr.mxu0 0.0
    %5885 = vmatpush1.msra.mxu0 0.0
    %5886 = vmatprep.subr.mxu0 0.0
    %5887 = vmatpush1.msra.mxu0 0.0
    %5888 = vmatprep.subr.mxu0 0.0
    %5889 = vmatpush1.msra.mxu0 0.0
    %5890 = vmatprep.subr.mxu0 0.0
    %5891 = vmatpush1.msra.mxu0 0.0
    %5892 = vmatprep.subr.mxu0 0.0
    %5893 = vmatpush1.msra.mxu0 0.0
    %5894 = vmatprep.subr.mxu0 0.0
    %5895 = vmatpush1.msra.mxu0 0.0
    %5896 = vmatprep.subr.mxu0 0.0
    %5897 = vmatpush1.msra.mxu0 0.0
    %5898 = vmatprep.subr.mxu0 0.0
    %5899 = vmatpush1.msra.mxu0 0.0
    %5900 = vmatprep.subr.mxu0 0.0
    %5901 = vmatpush1.msra.mxu0 0.0
    %5902 = vmatprep.subr.mxu0 0.0
    %5903 = vmatpush1.msra.mxu0 0.0
    %5904 = vmatprep.subr.mxu0 0.0
    %5905 = vmatpush1.msra.mxu0 0.0
    %5906 = vmatprep.subr.mxu0 0.0
    %5907 = vmatpush1.msra.mxu0 0.0
    %5908 = vmatprep.subr.mxu0 0.0
    %5909 = vmatpush1.msra.mxu0 0.0
    %5910 = vmatprep.subr.mxu0 0.0
    %5911 = vmatpush1.msra.mxu0 0.0
    %5912 = vmatprep.subr.mxu0 0.0
    %5913 = vmatpush1.msra.mxu0 0.0
    %5914 = vmatprep.subr.mxu0 0.0
    %5915 = vmatpush1.msra.mxu0 0.0
    %5916 = vmatprep.subr.mxu0 0.0
    %5917 = vmatpush1.msra.mxu0 0.0
    %5918 = vmatprep.subr.mxu0 0.0
    %5919 = vmatpush1.msra.mxu0 0.0
    %5920 = vmatprep.subr.mxu0 0.0
    %5921 = vmatpush1.msra.mxu0 0.0
    %5922 = vmatprep.subr.mxu0 0.0
    %5923 = vmatpush1.msra.mxu0 0.0
    %5924 = vmatprep.subr.mxu0 0.0
    %5925 = vmatpush1.msra.mxu0 0.0
    %5926 = vmatprep.subr.mxu0 0.0
    %5927 = vmatpush1.msra.mxu0 0.0
    %5928 = vmatprep.subr.mxu0 0.0
    %5929 = vmatpush1.msra.mxu0 0.0
    %5930 = vmatprep.subr.mxu0 0.0
    %5931 = vmatpush1.msra.mxu0 0.0
    %5932 = vmatprep.subr.mxu0 0.0
    %5933 = vmatpush1.msra.mxu0 0.0
    %5934 = vmatprep.mubr.f32.mxu0 0.0
    %5935 = vmatmul.mubr.f32.gmra.mrb[0].mxu0 %v3213
    %v5936 = vpop.f32.mrb[0].mxu0
    %v5937 = vadd.f32 0.0, %v5936
    %v5938 = vpop.f32.mrb[0].mxu0
    %v5939 = vadd.f32 0.0, %v5938
    %5940 = vmatprep.mubr.f32.mxu0 0.0
    %5941 = vmatmul.mubr.f32.gmra.mrb[0].mxu0 %v3216
    %v5942 = vpop.f32.mrb[0].mxu0
    %v5943 = vadd.f32 0.0, %v5942
    %v5944 = vpop.f32.mrb[0].mxu0
    %v5945 = vadd.f32 0.0, %v5944
    %5946 = vdwg.mxu0
    %5947 = vmatprep.subr.mxu0 %v5470
    %5948 = vmatpush1.msra.mxu0 %v5469
    %5949 = vmatprep.subr.mxu0 %v5472
    %5950 = vmatpush1.msra.mxu0 %v5471
    %5951 = vmatprep.subr.mxu0 0.0
    %5952 = vmatpush1.msra.mxu0 0.0
    %5953 = vmatprep.subr.mxu0 0.0
    %5954 = vmatpush1.msra.mxu0 0.0
    %5955 = vmatprep.subr.mxu0 0.0
    %5956 = vmatpush1.msra.mxu0 0.0
    %5957 = vmatprep.subr.mxu0 0.0
    %5958 = vmatpush1.msra.mxu0 0.0
    %5959 = vmatprep.subr.mxu0 0.0
    %5960 = vmatpush1.msra.mxu0 0.0
    %5961 = vmatprep.subr.mxu0 0.0
    %5962 = vmatpush1.msra.mxu0 0.0
    %5963 = vmatprep.subr.mxu0 0.0
    %5964 = vmatpush1.msra.mxu0 0.0
    %5965 = vmatprep.subr.mxu0 0.0
    %5966 = vmatpush1.msra.mxu0 0.0
    %5967 = vmatprep.subr.mxu0 0.0
    %5968 = vmatpush1.msra.mxu0 0.0
    %5969 = vmatprep.subr.mxu0 0.0
    %5970 = vmatpush1.msra.mxu0 0.0
    %5971 = vmatprep.subr.mxu0 0.0
    %5972 = vmatpush1.msra.mxu0 0.0
    %5973 = vmatprep.subr.mxu0 0.0
    %5974 = vmatpush1.msra.mxu0 0.0
    %5975 = vmatprep.subr.mxu0 0.0
    %5976 = vmatpush1.msra.mxu0 0.0
    %5977 = vmatprep.subr.mxu0 0.0
    %5978 = vmatpush1.msra.mxu0 0.0
    %5979 = vmatprep.subr.mxu0 0.0
    %5980 = vmatpush1.msra.mxu0 0.0
    %5981 = vmatprep.subr.mxu0 0.0
    %5982 = vmatpush1.msra.mxu0 0.0
    %5983 = vmatprep.subr.mxu0 0.0
    %5984 = vmatpush1.msra.mxu0 0.0
    %5985 = vmatprep.subr.mxu0 0.0
    %5986 = vmatpush1.msra.mxu0 0.0
    %5987 = vmatprep.subr.mxu0 0.0
    %5988 = vmatpush1.msra.mxu0 0.0
    %5989 = vmatprep.subr.mxu0 0.0
    %5990 = vmatpush1.msra.mxu0 0.0
    %5991 = vmatprep.subr.mxu0 0.0
    %5992 = vmatpush1.msra.mxu0 0.0
    %5993 = vmatprep.subr.mxu0 0.0
    %5994 = vmatpush1.msra.mxu0 0.0
    %5995 = vmatprep.subr.mxu0 0.0
    %5996 = vmatpush1.msra.mxu0 0.0
    %5997 = vmatprep.subr.mxu0 0.0
    %5998 = vmatpush1.msra.mxu0 0.0
    %5999 = vmatprep.subr.mxu0 0.0
    %6000 = vmatpush1.msra.mxu0 0.0
    %6001 = vmatprep.subr.mxu0 0.0
    %6002 = vmatpush1.msra.mxu0 0.0
    %6003 = vmatprep.subr.mxu0 0.0
    %6004 = vmatpush1.msra.mxu0 0.0
    %6005 = vmatprep.subr.mxu0 0.0
    %6006 = vmatpush1.msra.mxu0 0.0
    %6007 = vmatprep.subr.mxu0 0.0
    %6008 = vmatpush1.msra.mxu0 0.0
    %6009 = vmatprep.subr.mxu0 0.0
    %6010 = vmatpush1.msra.mxu0 0.0
    %6011 = vmatprep.mubr.f32.mxu0 0.0
    %6012 = vmatmul.mubr.f32.gmra.mrb[0].mxu0 %v3296
    %v6013 = vpop.f32.mrb[0].mxu0
    %v6014 = vadd.f32 0.0, %v6013
    %v6015 = vpop.f32.mrb[0].mxu0
    %v6016 = vadd.f32 0.0, %v6015
    %6017 = vmatprep.mubr.f32.mxu0 0.0
    %6018 = vmatmul.mubr.f32.gmra.mrb[0].mxu0 %v3299
    %v6019 = vpop.f32.mrb[0].mxu0
    %v6020 = vadd.f32 0.0, %v6019
    %v6021 = vpop.f32.mrb[0].mxu0
    %v6022 = vadd.f32 0.0, %v6021
    %6023 = vdwg.mxu0
    %6028 = vrot.lane.b32.xlu0 %v5629, 64
    %v6029 = vpop.permute.xlu0 %6028
    %6030 = vrot.lane.b32.xlu0 %v5631, 64
    %v6031 = vpop.permute.xlu0 %6030
    %6032 = vrot.lane.b32.xlu0 %v5635, 64
    %v6033 = vpop.permute.xlu0 %6032
    %6034 = vrot.lane.b32.xlu0 %v5637, 64
    %v6035 = vpop.permute.xlu0 %6034
    %v6036 = vsel %vm443, %v6029, %v6031
    %v6037 = vsel %vm443, %v6033, %v6035
    %6046 = vrot.lane.b32.xlu0 %v5783, 64
    %v6047 = vpop.permute.xlu0 %6046
    %6048 = vrot.lane.b32.xlu0 %v5785, 64
    %v6049 = vpop.permute.xlu0 %6048
    %6050 = vrot.lane.b32.xlu0 %v5789, 64
    %v6051 = vpop.permute.xlu0 %6050
    %6052 = vrot.lane.b32.xlu0 %v5791, 64
    %v6053 = vpop.permute.xlu0 %6052
    %v6054 = vsel %vm443, %v6047, %v6049
    %v6055 = vsel %vm443, %v6051, %v6053
    %6064 = vrot.lane.b32.xlu0 %v5937, 64
    %v6065 = vpop.permute.xlu0 %6064
    %6066 = vrot.lane.b32.xlu0 %v5939, 64
    %v6067 = vpop.permute.xlu0 %6066
    %6068 = vrot.lane.b32.xlu0 %v5943, 64
    %v6069 = vpop.permute.xlu0 %6068
    %6070 = vrot.lane.b32.xlu0 %v5945, 64
    %v6071 = vpop.permute.xlu0 %6070
    %v6072 = vsel %vm443, %v6065, %v6067
    %v6073 = vsel %vm443, %v6069, %v6071
    %v6078 = vsel %vm443, %v5554, %v6029
    %v6079 = vsel %vm443, %v5560, %v6033
    %v6080 = vsel %vm443, %v5708, %v6047
    %v6081 = vsel %vm443, %v5714, %v6051
    %v6082 = vsel %vm443, %v5862, %v6065
    %v6083 = vsel %vm443, %v5868, %v6069
    %6084 = vmatprep.subr.mxu0 %v5482
    %6085 = vmatpush1.msra.mxu0 %v5481
    %6086 = vmatprep.subr.mxu0 %v5484
    %6087 = vmatpush1.msra.mxu0 %v5483
    %6088 = vmatprep.subr.mxu0 0.0
    %6089 = vmatpush1.msra.mxu0 0.0
    %6090 = vmatprep.subr.mxu0 0.0
    %6091 = vmatpush1.msra.mxu0 0.0
    %6092 = vmatprep.subr.mxu0 0.0
    %6093 = vmatpush1.msra.mxu0 0.0
    %6094 = vmatprep.subr.mxu0 0.0
    %6095 = vmatpush1.msra.mxu0 0.0
    %6096 = vmatprep.subr.mxu0 0.0
    %6097 = vmatpush1.msra.mxu0 0.0
    %6098 = vmatprep.subr.mxu0 0.0
    %6099 = vmatpush1.msra.mxu0 0.0
    %6100 = vmatprep.subr.mxu0 0.0
    %6101 = vmatpush1.msra.mxu0 0.0
    %6102 = vmatprep.subr.mxu0 0.0
    %6103 = vmatpush1.msra.mxu0 0.0
    %6104 = vmatprep.subr.mxu0 0.0
    %6105 = vmatpush1.msra.mxu0 0.0
    %6106 = vmatprep.subr.mxu0 0.0
    %6107 = vmatpush1.msra.mxu0 0.0
    %6108 = vmatprep.subr.mxu0 0.0
    %6109 = vmatpush1.msra.mxu0 0.0
    %6110 = vmatprep.subr.mxu0 0.0
    %6111 = vmatpush1.msra.mxu0 0.0
    %6112 = vmatprep.subr.mxu0 0.0
    %6113 = vmatpush1.msra.mxu0 0.0
    %6114 = vmatprep.subr.mxu0 0.0
    %6115 = vmatpush1.msra.mxu0 0.0
    %6116 = vmatprep.subr.mxu0 0.0
    %6117 = vmatpush1.msra.mxu0 0.0
    %6118 = vmatprep.subr.mxu0 0.0
    %6119 = vmatpush1.msra.mxu0 0.0
    %6120 = vmatprep.subr.mxu0 0.0
    %6121 = vmatpush1.msra.mxu0 0.0
    %6122 = vmatprep.subr.mxu0 0.0
    %6123 = vmatpush1.msra.mxu0 0.0
    %6124 = vmatprep.subr.mxu0 0.0
    %6125 = vmatpush1.msra.mxu0 0.0
    %6126 = vmatprep.subr.mxu0 0.0
    %6127 = vmatpush1.msra.mxu0 0.0
    %6128 = vmatprep.subr.mxu0 0.0
    %6129 = vmatpush1.msra.mxu0 0.0
    %6130 = vmatprep.subr.mxu0 0.0
    %6131 = vmatpush1.msra.mxu0 0.0
    %6132 = vmatprep.subr.mxu0 0.0
    %6133 = vmatpush1.msra.mxu0 0.0
    %6134 = vmatprep.subr.mxu0 0.0
    %6135 = vmatpush1.msra.mxu0 0.0
    %6136 = vmatprep.subr.mxu0 0.0
    %6137 = vmatpush1.msra.mxu0 0.0
    %6138 = vmatprep.subr.mxu0 0.0
    %6139 = vmatpush1.msra.mxu0 0.0
    %6140 = vmatprep.subr.mxu0 0.0
    %6141 = vmatpush1.msra.mxu0 0.0
    %6142 = vmatprep.subr.mxu0 0.0
    %6143 = vmatpush1.msra.mxu0 0.0
    %6144 = vmatprep.subr.mxu0 0.0
    %6145 = vmatpush1.msra.mxu0 0.0
    %6146 = vmatprep.subr.mxu0 0.0
    %6147 = vmatpush1.msra.mxu0 0.0
    %6148 = vmatprep.mubr.f32.mxu0 0.0
    %6149 = vmatmul.mubr.f32.gmra.mrb[0].mxu0 %v2798
    %v6150 = vpop.f32.mrb[0].mxu0
    %v6151 = vadd.f32 0.0, %v6150
    %v6152 = vpop.f32.mrb[0].mxu0
    %v6153 = vadd.f32 0.0, %v6152
    %6154 = vmatprep.mubr.f32.mxu0 0.0
    %6155 = vmatmul.mubr.f32.gmra.mrb[0].mxu0 %v2801
    %v6156 = vpop.f32.mrb[0].mxu0
    %v6157 = vadd.f32 0.0, %v6156
    %v6158 = vpop.f32.mrb[0].mxu0
    %v6159 = vadd.f32 0.0, %v6158
    %6160 = vdwg.mxu0
    %6161 = vmatprep.subr.mxu0 %v5482
    %6162 = vmatpush1.msra.mxu0 %v5481
    %6163 = vmatprep.subr.mxu0 %v5484
    %6164 = vmatpush1.msra.mxu0 %v5483
    %6165 = vmatprep.subr.mxu0 0.0
    %6166 = vmatpush1.msra.mxu0 0.0
    %6167 = vmatprep.subr.mxu0 0.0
    %6168 = vmatpush1.msra.mxu0 0.0
    %6169 = vmatprep.subr.mxu0 0.0
    %6170 = vmatpush1.msra.mxu0 0.0
    %6171 = vmatprep.subr.mxu0 0.0
    %6172 = vmatpush1.msra.mxu0 0.0
    %6173 = vmatprep.subr.mxu0 0.0
    %6174 = vmatpush1.msra.mxu0 0.0
    %6175 = vmatprep.subr.mxu0 0.0
    %6176 = vmatpush1.msra.mxu0 0.0
    %6177 = vmatprep.subr.mxu0 0.0
    %6178 = vmatpush1.msra.mxu0 0.0
    %6179 = vmatprep.subr.mxu0 0.0
    %6180 = vmatpush1.msra.mxu0 0.0
    %6181 = vmatprep.subr.mxu0 0.0
    %6182 = vmatpush1.msra.mxu0 0.0
    %6183 = vmatprep.subr.mxu0 0.0
    %6184 = vmatpush1.msra.mxu0 0.0
    %6185 = vmatprep.subr.mxu0 0.0
    %6186 = vmatpush1.msra.mxu0 0.0
    %6187 = vmatprep.subr.mxu0 0.0
    %6188 = vmatpush1.msra.mxu0 0.0
    %6189 = vmatprep.subr.mxu0 0.0
    %6190 = vmatpush1.msra.mxu0 0.0
    %6191 = vmatprep.subr.mxu0 0.0
    %6192 = vmatpush1.msra.mxu0 0.0
    %6193 = vmatprep.subr.mxu0 0.0
    %6194 = vmatpush1.msra.mxu0 0.0
    %6195 = vmatprep.subr.mxu0 0.0
    %6196 = vmatpush1.msra.mxu0 0.0
    %6197 = vmatprep.subr.mxu0 0.0
    %6198 = vmatpush1.msra.mxu0 0.0
    %6199 = vmatprep.subr.mxu0 0.0
    %6200 = vmatpush1.msra.mxu0 0.0
    %6201 = vmatprep.subr.mxu0 0.0
    %6202 = vmatpush1.msra.mxu0 0.0
    %6203 = vmatprep.subr.mxu0 0.0
    %6204 = vmatpush1.msra.mxu0 0.0
    %6205 = vmatprep.subr.mxu0 0.0
    %6206 = vmatpush1.msra.mxu0 0.0
    %6207 = vmatprep.subr.mxu0 0.0
    %6208 = vmatpush1.msra.mxu0 0.0
    %6209 = vmatprep.subr.mxu0 0.0
    %6210 = vmatpush1.msra.mxu0 0.0
    %6211 = vmatprep.subr.mxu0 0.0
    %6212 = vmatpush1.msra.mxu0 0.0
    %6213 = vmatprep.subr.mxu0 0.0
    %6214 = vmatpush1.msra.mxu0 0.0
    %6215 = vmatprep.subr.mxu0 0.0
    %6216 = vmatpush1.msra.mxu0 0.0
    %6217 = vmatprep.subr.mxu0 0.0
    %6218 = vmatpush1.msra.mxu0 0.0
    %6219 = vmatprep.subr.mxu0 0.0
    %6220 = vmatpush1.msra.mxu0 0.0
    %6221 = vmatprep.subr.mxu0 0.0
    %6222 = vmatpush1.msra.mxu0 0.0
    %6223 = vmatprep.subr.mxu0 0.0
    %6224 = vmatpush1.msra.mxu0 0.0
    %6225 = vmatprep.mubr.f32.mxu0 0.0
    %6226 = vmatmul.mubr.f32.gmra.mrb[0].mxu0 %v2881
    %v6227 = vpop.f32.mrb[0].mxu0
    %v6228 = vadd.f32 0.0, %v6227
    %v6229 = vpop.f32.mrb[0].mxu0
    %v6230 = vadd.f32 0.0, %v6229
    %6231 = vmatprep.mubr.f32.mxu0 0.0
    %6232 = vmatmul.mubr.f32.gmra.mrb[0].mxu0 %v2884
    %v6233 = vpop.f32.mrb[0].mxu0
    %v6234 = vadd.f32 0.0, %v6233
    %v6235 = vpop.f32.mrb[0].mxu0
    %v6236 = vadd.f32 0.0, %v6235
    %6237 = vdwg.mxu0
    %6238 = vmatprep.subr.mxu0 %v5482
    %6239 = vmatpush1.msra.mxu0 %v5481
    %6240 = vmatprep.subr.mxu0 %v5484
    %6241 = vmatpush1.msra.mxu0 %v5483
    %6242 = vmatprep.subr.mxu0 0.0
    %6243 = vmatpush1.msra.mxu0 0.0
    %6244 = vmatprep.subr.mxu0 0.0
    %6245 = vmatpush1.msra.mxu0 0.0
    %6246 = vmatprep.subr.mxu0 0.0
    %6247 = vmatpush1.msra.mxu0 0.0
    %6248 = vmatprep.subr.mxu0 0.0
    %6249 = vmatpush1.msra.mxu0 0.0
    %6250 = vmatprep.subr.mxu0 0.0
    %6251 = vmatpush1.msra.mxu0 0.0
    %6252 = vmatprep.subr.mxu0 0.0
    %6253 = vmatpush1.msra.mxu0 0.0
    %6254 = vmatprep.subr.mxu0 0.0
    %6255 = vmatpush1.msra.mxu0 0.0
    %6256 = vmatprep.subr.mxu0 0.0
    %6257 = vmatpush1.msra.mxu0 0.0
    %6258 = vmatprep.subr.mxu0 0.0
    %6259 = vmatpush1.msra.mxu0 0.0
    %6260 = vmatprep.subr.mxu0 0.0
    %6261 = vmatpush1.msra.mxu0 0.0
    %6262 = vmatprep.subr.mxu0 0.0
    %6263 = vmatpush1.msra.mxu0 0.0
    %6264 = vmatprep.subr.mxu0 0.0
    %6265 = vmatpush1.msra.mxu0 0.0
    %6266 = vmatprep.subr.mxu0 0.0
    %6267 = vmatpush1.msra.mxu0 0.0
    %6268 = vmatprep.subr.mxu0 0.0
    %6269 = vmatpush1.msra.mxu0 0.0
    %6270 = vmatprep.subr.mxu0 0.0
    %6271 = vmatpush1.msra.mxu0 0.0
    %6272 = vmatprep.subr.mxu0 0.0
    %6273 = vmatpush1.msra.mxu0 0.0
    %6274 = vmatprep.subr.mxu0 0.0
    %6275 = vmatpush1.msra.mxu0 0.0
    %6276 = vmatprep.subr.mxu0 0.0
    %6277 = vmatpush1.msra.mxu0 0.0
    %6278 = vmatprep.subr.mxu0 0.0
    %6279 = vmatpush1.msra.mxu0 0.0
    %6280 = vmatprep.subr.mxu0 0.0
    %6281 = vmatpush1.msra.mxu0 0.0
    %6282 = vmatprep.subr.mxu0 0.0
    %6283 = vmatpush1.msra.mxu0 0.0
    %6284 = vmatprep.subr.mxu0 0.0
    %6285 = vmatpush1.msra.mxu0 0.0
    %6286 = vmatprep.subr.mxu0 0.0
    %6287 = vmatpush1.msra.mxu0 0.0
    %6288 = vmatprep.subr.mxu0 0.0
    %6289 = vmatpush1.msra.mxu0 0.0
    %6290 = vmatprep.subr.mxu0 0.0
    %6291 = vmatpush1.msra.mxu0 0.0
    %6292 = vmatprep.subr.mxu0 0.0
    %6293 = vmatpush1.msra.mxu0 0.0
    %6294 = vmatprep.subr.mxu0 0.0
    %6295 = vmatpush1.msra.mxu0 0.0
    %6296 = vmatprep.subr.mxu0 0.0
    %6297 = vmatpush1.msra.mxu0 0.0
    %6298 = vmatprep.subr.mxu0 0.0
    %6299 = vmatpush1.msra.mxu0 0.0
    %6300 = vmatprep.subr.mxu0 0.0
    %6301 = vmatpush1.msra.mxu0 0.0
    %6302 = vmatprep.mubr.f32.mxu0 0.0
    %6303 = vmatmul.mubr.f32.gmra.mrb[0].mxu0 %v2964
    %v6304 = vpop.f32.mrb[0].mxu0
    %v6305 = vadd.f32 0.0, %v6304
    %v6306 = vpop.f32.mrb[0].mxu0
    %v6307 = vadd.f32 0.0, %v6306
    %6308 = vmatprep.mubr.f32.mxu0 0.0
    %6309 = vmatmul.mubr.f32.gmra.mrb[0].mxu0 %v2967
    %v6310 = vpop.f32.mrb[0].mxu0
    %v6311 = vadd.f32 0.0, %v6310
    %v6312 = vpop.f32.mrb[0].mxu0
    %v6313 = vadd.f32 0.0, %v6312
    %6314 = vdwg.mxu0
    %6315 = vmatprep.subr.mxu0 %v5482
    %6316 = vmatpush1.msra.mxu0 %v5481
    %6317 = vmatprep.subr.mxu0 %v5484
    %6318 = vmatpush1.msra.mxu0 %v5483
    %6319 = vmatprep.subr.mxu0 0.0
    %6320 = vmatpush1.msra.mxu0 0.0
    %6321 = vmatprep.subr.mxu0 0.0
    %6322 = vmatpush1.msra.mxu0 0.0
    %6323 = vmatprep.subr.mxu0 0.0
    %6324 = vmatpush1.msra.mxu0 0.0
    %6325 = vmatprep.subr.mxu0 0.0
    %6326 = vmatpush1.msra.mxu0 0.0
    %6327 = vmatprep.subr.mxu0 0.0
    %6328 = vmatpush1.msra.mxu0 0.0
    %6329 = vmatprep.subr.mxu0 0.0
    %6330 = vmatpush1.msra.mxu0 0.0
    %6331 = vmatprep.subr.mxu0 0.0
    %6332 = vmatpush1.msra.mxu0 0.0
    %6333 = vmatprep.subr.mxu0 0.0
    %6334 = vmatpush1.msra.mxu0 0.0
    %6335 = vmatprep.subr.mxu0 0.0
    %6336 = vmatpush1.msra.mxu0 0.0
    %6337 = vmatprep.subr.mxu0 0.0
    %6338 = vmatpush1.msra.mxu0 0.0
    %6339 = vmatprep.subr.mxu0 0.0
    %6340 = vmatpush1.msra.mxu0 0.0
    %6341 = vmatprep.subr.mxu0 0.0
    %6342 = vmatpush1.msra.mxu0 0.0
    %6343 = vmatprep.subr.mxu0 0.0
    %6344 = vmatpush1.msra.mxu0 0.0
    %6345 = vmatprep.subr.mxu0 0.0
    %6346 = vmatpush1.msra.mxu0 0.0
    %6347 = vmatprep.subr.mxu0 0.0
    %6348 = vmatpush1.msra.mxu0 0.0
    %6349 = vmatprep.subr.mxu0 0.0
    %6350 = vmatpush1.msra.mxu0 0.0
    %6351 = vmatprep.subr.mxu0 0.0
    %6352 = vmatpush1.msra.mxu0 0.0
    %6353 = vmatprep.subr.mxu0 0.0
    %6354 = vmatpush1.msra.mxu0 0.0
    %6355 = vmatprep.subr.mxu0 0.0
    %6356 = vmatpush1.msra.mxu0 0.0
    %6357 = vmatprep.subr.mxu0 0.0
    %6358 = vmatpush1.msra.mxu0 0.0
    %6359 = vmatprep.subr.mxu0 0.0
    %6360 = vmatpush1.msra.mxu0 0.0
    %6361 = vmatprep.subr.mxu0 0.0
    %6362 = vmatpush1.msra.mxu0 0.0
    %6363 = vmatprep.subr.mxu0 0.0
    %6364 = vmatpush1.msra.mxu0 0.0
    %6365 = vmatprep.subr.mxu0 0.0
    %6366 = vmatpush1.msra.mxu0 0.0
    %6367 = vmatprep.subr.mxu0 0.0
    %6368 = vmatpush1.msra.mxu0 0.0
    %6369 = vmatprep.subr.mxu0 0.0
    %6370 = vmatpush1.msra.mxu0 0.0
    %6371 = vmatprep.subr.mxu0 0.0
    %6372 = vmatpush1.msra.mxu0 0.0
    %6373 = vmatprep.subr.mxu0 0.0
    %6374 = vmatpush1.msra.mxu0 0.0
    %6375 = vmatprep.subr.mxu0 0.0
    %6376 = vmatpush1.msra.mxu0 0.0
    %6377 = vmatprep.subr.mxu0 0.0
    %6378 = vmatpush1.msra.mxu0 0.0
    %6379 = vmatprep.mubr.f32.mxu0 0.0
    %6380 = vmatmul.mubr.f32.gmra.mrb[0].mxu0 %v3047
    %v6381 = vpop.f32.mrb[0].mxu0
    %v6382 = vadd.f32 0.0, %v6381
    %v6383 = vpop.f32.mrb[0].mxu0
    %v6384 = vadd.f32 0.0, %v6383
    %6385 = vmatprep.mubr.f32.mxu0 0.0
    %6386 = vmatmul.mubr.f32.gmra.mrb[0].mxu0 %v3050
    %v6387 = vpop.f32.mrb[0].mxu0
    %v6388 = vadd.f32 0.0, %v6387
    %v6389 = vpop.f32.mrb[0].mxu0
    %v6390 = vadd.f32 0.0, %v6389
    %6391 = vdwg.mxu0
    %6392 = vmatprep.subr.mxu0 %v5482
    %6393 = vmatpush1.msra.mxu0 %v5481
    %6394 = vmatprep.subr.mxu0 %v5484
    %6395 = vmatpush1.msra.mxu0 %v5483
    %6396 = vmatprep.subr.mxu0 0.0
    %6397 = vmatpush1.msra.mxu0 0.0
    %6398 = vmatprep.subr.mxu0 0.0
    %6399 = vmatpush1.msra.mxu0 0.0
    %6400 = vmatprep.subr.mxu0 0.0
    %6401 = vmatpush1.msra.mxu0 0.0
    %6402 = vmatprep.subr.mxu0 0.0
    %6403 = vmatpush1.msra.mxu0 0.0
    %6404 = vmatprep.subr.mxu0 0.0
    %6405 = vmatpush1.msra.mxu0 0.0
    %6406 = vmatprep.subr.mxu0 0.0
    %6407 = vmatpush1.msra.mxu0 0.0
    %6408 = vmatprep.subr.mxu0 0.0
    %6409 = vmatpush1.msra.mxu0 0.0
    %6410 = vmatprep.subr.mxu0 0.0
    %6411 = vmatpush1.msra.mxu0 0.0
    %6412 = vmatprep.subr.mxu0 0.0
    %6413 = vmatpush1.msra.mxu0 0.0
    %6414 = vmatprep.subr.mxu0 0.0
    %6415 = vmatpush1.msra.mxu0 0.0
    %6416 = vmatprep.subr.mxu0 0.0
    %6417 = vmatpush1.msra.mxu0 0.0
    %6418 = vmatprep.subr.mxu0 0.0
    %6419 = vmatpush1.msra.mxu0 0.0
    %6420 = vmatprep.subr.mxu0 0.0
    %6421 = vmatpush1.msra.mxu0 0.0
    %6422 = vmatprep.subr.mxu0 0.0
    %6423 = vmatpush1.msra.mxu0 0.0
    %6424 = vmatprep.subr.mxu0 0.0
    %6425 = vmatpush1.msra.mxu0 0.0
    %6426 = vmatprep.subr.mxu0 0.0
    %6427 = vmatpush1.msra.mxu0 0.0
    %6428 = vmatprep.subr.mxu0 0.0
    %6429 = vmatpush1.msra.mxu0 0.0
    %6430 = vmatprep.subr.mxu0 0.0
    %6431 = vmatpush1.msra.mxu0 0.0
    %6432 = vmatprep.subr.mxu0 0.0
    %6433 = vmatpush1.msra.mxu0 0.0
    %6434 = vmatprep.subr.mxu0 0.0
    %6435 = vmatpush1.msra.mxu0 0.0
    %6436 = vmatprep.subr.mxu0 0.0
    %6437 = vmatpush1.msra.mxu0 0.0
    %6438 = vmatprep.subr.mxu0 0.0
    %6439 = vmatpush1.msra.mxu0 0.0
    %6440 = vmatprep.subr.mxu0 0.0
    %6441 = vmatpush1.msra.mxu0 0.0
    %6442 = vmatprep.subr.mxu0 0.0
    %6443 = vmatpush1.msra.mxu0 0.0
    %6444 = vmatprep.subr.mxu0 0.0
    %6445 = vmatpush1.msra.mxu0 0.0
    %6446 = vmatprep.subr.mxu0 0.0
    %6447 = vmatpush1.msra.mxu0 0.0
    %6448 = vmatprep.subr.mxu0 0.0
    %6449 = vmatpush1.msra.mxu0 0.0
    %6450 = vmatprep.subr.mxu0 0.0
    %6451 = vmatpush1.msra.mxu0 0.0
    %6452 = vmatprep.subr.mxu0 0.0
    %6453 = vmatpush1.msra.mxu0 0.0
    %6454 = vmatprep.subr.mxu0 0.0
    %6455 = vmatpush1.msra.mxu0 0.0
    %6456 = vmatprep.mubr.f32.mxu0 0.0
    %6457 = vmatmul.mubr.f32.gmra.mrb[0].mxu0 %v3130
    %v6458 = vpop.f32.mrb[0].mxu0
    %v6459 = vadd.f32 0.0, %v6458
    %v6460 = vpop.f32.mrb[0].mxu0
    %v6461 = vadd.f32 0.0, %v6460
    %6462 = vmatprep.mubr.f32.mxu0 0.0
    %6463 = vmatmul.mubr.f32.gmra.mrb[0].mxu0 %v3133
    %v6464 = vpop.f32.mrb[0].mxu0
    %v6465 = vadd.f32 0.0, %v6464
    %v6466 = vpop.f32.mrb[0].mxu0
    %v6467 = vadd.f32 0.0, %v6466
    %6468 = vdwg.mxu0
    %6469 = vmatprep.subr.mxu0 %v5482
    %6470 = vmatpush1.msra.mxu0 %v5481
    %6471 = vmatprep.subr.mxu0 %v5484
    %6472 = vmatpush1.msra.mxu0 %v5483
    %6473 = vmatprep.subr.mxu0 0.0
    %6474 = vmatpush1.msra.mxu0 0.0
    %6475 = vmatprep.subr.mxu0 0.0
    %6476 = vmatpush1.msra.mxu0 0.0
    %6477 = vmatprep.subr.mxu0 0.0
    %6478 = vmatpush1.msra.mxu0 0.0
    %6479 = vmatprep.subr.mxu0 0.0
    %6480 = vmatpush1.msra.mxu0 0.0
    %6481 = vmatprep.subr.mxu0 0.0
    %6482 = vmatpush1.msra.mxu0 0.0
    %6483 = vmatprep.subr.mxu0 0.0
    %6484 = vmatpush1.msra.mxu0 0.0
    %6485 = vmatprep.subr.mxu0 0.0
    %6486 = vmatpush1.msra.mxu0 0.0
    %6487 = vmatprep.subr.mxu0 0.0
    %6488 = vmatpush1.msra.mxu0 0.0
    %6489 = vmatprep.subr.mxu0 0.0
    %6490 = vmatpush1.msra.mxu0 0.0
    %6491 = vmatprep.subr.mxu0 0.0
    %6492 = vmatpush1.msra.mxu0 0.0
    %6493 = vmatprep.subr.mxu0 0.0
    %6494 = vmatpush1.msra.mxu0 0.0
    %6495 = vmatprep.subr.mxu0 0.0
    %6496 = vmatpush1.msra.mxu0 0.0
    %6497 = vmatprep.subr.mxu0 0.0
    %6498 = vmatpush1.msra.mxu0 0.0
    %6499 = vmatprep.subr.mxu0 0.0
    %6500 = vmatpush1.msra.mxu0 0.0
    %6501 = vmatprep.subr.mxu0 0.0
    %6502 = vmatpush1.msra.mxu0 0.0
    %6503 = vmatprep.subr.mxu0 0.0
    %6504 = vmatpush1.msra.mxu0 0.0
    %6505 = vmatprep.subr.mxu0 0.0
    %6506 = vmatpush1.msra.mxu0 0.0
    %6507 = vmatprep.subr.mxu0 0.0
    %6508 = vmatpush1.msra.mxu0 0.0
    %6509 = vmatprep.subr.mxu0 0.0
    %6510 = vmatpush1.msra.mxu0 0.0
    %6511 = vmatprep.subr.mxu0 0.0
    %6512 = vmatpush1.msra.mxu0 0.0
    %6513 = vmatprep.subr.mxu0 0.0
    %6514 = vmatpush1.msra.mxu0 0.0
    %6515 = vmatprep.subr.mxu0 0.0
    %6516 = vmatpush1.msra.mxu0 0.0
    %6517 = vmatprep.subr.mxu0 0.0
    %6518 = vmatpush1.msra.mxu0 0.0
    %6519 = vmatprep.subr.mxu0 0.0
    %6520 = vmatpush1.msra.mxu0 0.0
    %6521 = vmatprep.subr.mxu0 0.0
    %6522 = vmatpush1.msra.mxu0 0.0
    %6523 = vmatprep.subr.mxu0 0.0
    %6524 = vmatpush1.msra.mxu0 0.0
    %6525 = vmatprep.subr.mxu0 0.0
    %6526 = vmatpush1.msra.mxu0 0.0
    %6527 = vmatprep.subr.mxu0 0.0
    %6528 = vmatpush1.msra.mxu0 0.0
    %6529 = vmatprep.subr.mxu0 0.0
    %6530 = vmatpush1.msra.mxu0 0.0
    %6531 = vmatprep.subr.mxu0 0.0
    %6532 = vmatpush1.msra.mxu0 0.0
    %6533 = vmatprep.mubr.f32.mxu0 0.0
    %6534 = vmatmul.mubr.f32.gmra.mrb[0].mxu0 %v3213
    %v6535 = vpop.f32.mrb[0].mxu0
    %v6536 = vadd.f32 0.0, %v6535
    %v6537 = vpop.f32.mrb[0].mxu0
    %v6538 = vadd.f32 0.0, %v6537
    %6539 = vmatprep.mubr.f32.mxu0 0.0
    %6540 = vmatmul.mubr.f32.gmra.mrb[0].mxu0 %v3216
    %v6541 = vpop.f32.mrb[0].mxu0
    %v6542 = vadd.f32 0.0, %v6541
    %v6543 = vpop.f32.mrb[0].mxu0
    %v6544 = vadd.f32 0.0, %v6543
    %6545 = vdwg.mxu0
    %6546 = vmatprep.subr.mxu0 %v5482
    %6547 = vmatpush1.msra.mxu0 %v5481
    %6548 = vmatprep.subr.mxu0 %v5484
    %6549 = vmatpush1.msra.mxu0 %v5483
    %6550 = vmatprep.subr.mxu0 0.0
    %6551 = vmatpush1.msra.mxu0 0.0
    %6552 = vmatprep.subr.mxu0 0.0
    %6553 = vmatpush1.msra.mxu0 0.0
    %6554 = vmatprep.subr.mxu0 0.0
    %6555 = vmatpush1.msra.mxu0 0.0
    %6556 = vmatprep.subr.mxu0 0.0
    %6557 = vmatpush1.msra.mxu0 0.0
    %6558 = vmatprep.subr.mxu0 0.0
    %6559 = vmatpush1.msra.mxu0 0.0
    %6560 = vmatprep.subr.mxu0 0.0
    %6561 = vmatpush1.msra.mxu0 0.0
    %6562 = vmatprep.subr.mxu0 0.0
    %6563 = vmatpush1.msra.mxu0 0.0
    %6564 = vmatprep.subr.mxu0 0.0
    %6565 = vmatpush1.msra.mxu0 0.0
    %6566 = vmatprep.subr.mxu0 0.0
    %6567 = vmatpush1.msra.mxu0 0.0
    %6568 = vmatprep.subr.mxu0 0.0
    %6569 = vmatpush1.msra.mxu0 0.0
    %6570 = vmatprep.subr.mxu0 0.0
    %6571 = vmatpush1.msra.mxu0 0.0
    %6572 = vmatprep.subr.mxu0 0.0
    %6573 = vmatpush1.msra.mxu0 0.0
    %6574 = vmatprep.subr.mxu0 0.0
    %6575 = vmatpush1.msra.mxu0 0.0
    %6576 = vmatprep.subr.mxu0 0.0
    %6577 = vmatpush1.msra.mxu0 0.0
    %6578 = vmatprep.subr.mxu0 0.0
    %6579 = vmatpush1.msra.mxu0 0.0
    %6580 = vmatprep.subr.mxu0 0.0
    %6581 = vmatpush1.msra.mxu0 0.0
    %6582 = vmatprep.subr.mxu0 0.0
    %6583 = vmatpush1.msra.mxu0 0.0
    %6584 = vmatprep.subr.mxu0 0.0
    %6585 = vmatpush1.msra.mxu0 0.0
    %6586 = vmatprep.subr.mxu0 0.0
    %6587 = vmatpush1.msra.mxu0 0.0
    %6588 = vmatprep.subr.mxu0 0.0
    %6589 = vmatpush1.msra.mxu0 0.0
    %6590 = vmatprep.subr.mxu0 0.0
    %6591 = vmatpush1.msra.mxu0 0.0
    %6592 = vmatprep.subr.mxu0 0.0
    %6593 = vmatpush1.msra.mxu0 0.0
    %6594 = vmatprep.subr.mxu0 0.0
    %6595 = vmatpush1.msra.mxu0 0.0
    %6596 = vmatprep.subr.mxu0 0.0
    %6597 = vmatpush1.msra.mxu0 0.0
    %6598 = vmatprep.subr.mxu0 0.0
    %6599 = vmatpush1.msra.mxu0 0.0
    %6600 = vmatprep.subr.mxu0 0.0
    %6601 = vmatpush1.msra.mxu0 0.0
    %6602 = vmatprep.subr.mxu0 0.0
    %6603 = vmatpush1.msra.mxu0 0.0
    %6604 = vmatprep.subr.mxu0 0.0
    %6605 = vmatpush1.msra.mxu0 0.0
    %6606 = vmatprep.subr.mxu0 0.0
    %6607 = vmatpush1.msra.mxu0 0.0
    %6608 = vmatprep.subr.mxu0 0.0
    %6609 = vmatpush1.msra.mxu0 0.0
    %6610 = vmatprep.mubr.f32.mxu0 0.0
    %6611 = vmatmul.mubr.f32.gmra.mrb[0].mxu0 %v3296
    %v6612 = vpop.f32.mrb[0].mxu0
    %v6613 = vadd.f32 0.0, %v6612
    %v6614 = vpop.f32.mrb[0].mxu0
    %v6615 = vadd.f32 0.0, %v6614
    %6616 = vmatprep.mubr.f32.mxu0 0.0
    %6617 = vmatmul.mubr.f32.gmra.mrb[0].mxu0 %v3299
    %v6618 = vpop.f32.mrb[0].mxu0
    %v6619 = vadd.f32 0.0, %v6618
    %v6620 = vpop.f32.mrb[0].mxu0
    %v6621 = vadd.f32 0.0, %v6620
    %6622 = vdwg.mxu0
    %6627 = vrot.lane.b32.xlu0 %v6228, 64
    %v6628 = vpop.permute.xlu0 %6627
    %6629 = vrot.lane.b32.xlu0 %v6230, 64
    %v6630 = vpop.permute.xlu0 %6629
    %6631 = vrot.lane.b32.xlu0 %v6234, 64
    %v6632 = vpop.permute.xlu0 %6631
    %6633 = vrot.lane.b32.xlu0 %v6236, 64
    %v6634 = vpop.permute.xlu0 %6633
    %v6635 = vsel %vm443, %v6628, %v6630
    %v6636 = vsel %vm443, %v6632, %v6634
    %6645 = vrot.lane.b32.xlu0 %v6382, 64
    %v6646 = vpop.permute.xlu0 %6645
    %6647 = vrot.lane.b32.xlu0 %v6384, 64
    %v6648 = vpop.permute.xlu0 %6647
    %6649 = vrot.lane.b32.xlu0 %v6388, 64
    %v6650 = vpop.permute.xlu0 %6649
    %6651 = vrot.lane.b32.xlu0 %v6390, 64
    %v6652 = vpop.permute.xlu0 %6651
    %v6653 = vsel %vm443, %v6646, %v6648
    %v6654 = vsel %vm443, %v6650, %v6652
    %6663 = vrot.lane.b32.xlu0 %v6536, 64
    %v6664 = vpop.permute.xlu0 %6663
    %6665 = vrot.lane.b32.xlu0 %v6538, 64
    %v6666 = vpop.permute.xlu0 %6665
    %6667 = vrot.lane.b32.xlu0 %v6542, 64
    %v6668 = vpop.permute.xlu0 %6667
    %6669 = vrot.lane.b32.xlu0 %v6544, 64
    %v6670 = vpop.permute.xlu0 %6669
    %v6671 = vsel %vm443, %v6664, %v6666
    %v6672 = vsel %vm443, %v6668, %v6670
    %v6677 = vsel %vm443, %v6153, %v6628
    %v6678 = vsel %vm443, %v6159, %v6632
    %v6679 = vsel %vm443, %v6307, %v6646
    %v6680 = vsel %vm443, %v6313, %v6650
    %v6681 = vsel %vm443, %v6461, %v6664
    %v6682 = vsel %vm443, %v6467, %v6668
    %v6683 = vld [vmem:[#allocation16] sm:$0xff]
    %v6684 = vld [vmem:[#allocation16 + $0x8] sm:$0xff]
    %v6685 = vld [vmem:[#allocation16 + $0x10] sm:$0xff]
    %v6686 = vld [vmem:[#allocation16 + $0x18] sm:$0xff]
    %v6687 = vld [vmem:[#allocation16 + $0x20] sm:$0xff]
    %v6688 = vld [vmem:[#allocation16 + $0x28] sm:$0xff]
    %v6689 = vld [vmem:[#allocation16 + $0x30] sm:$0xff]
    %v6690 = vld [vmem:[#allocation16 + $0x38] sm:$0xff]
    %v6691 = vld [vmem:[#allocation16 + $0x40] sm:$0xff]
    %v6692 = vld [vmem:[#allocation16 + $0x48] sm:$0xff]
    %v6693 = vld [vmem:[#allocation16 + $0x50] sm:$0xff]
    %v6694 = vld [vmem:[#allocation16 + $0x58] sm:$0xff]
    %v6695 = vld [vmem:[#allocation16 + $0x60] sm:$0xff]
    %v6696 = vld [vmem:[#allocation16 + $0x68] sm:$0xff]
    %v6697 = vld [vmem:[#allocation16 + $0x70] sm:$0xff]
    %v6698 = vld [vmem:[#allocation16 + $0x78] sm:$0xff]
    %v6699 = vld [vmem:[#allocation16 + $0x80] sm:$0xff]
    %v6700 = vld [vmem:[#allocation16 + $0x88] sm:$0xff]
    %v6701 = vld [vmem:[#allocation16 + $0x90] sm:$0xff]
    %v6702 = vld [vmem:[#allocation16 + $0x98] sm:$0xff]
    %v6703 = vld [vmem:[#allocation16 + $0xa0] sm:$0xff]
    %v6704 = vld [vmem:[#allocation16 + $0xa8] sm:$0xff]
    %v6705 = vld [vmem:[#allocation16 + $0xb0] sm:$0xff]
    %v6706 = vld [vmem:[#allocation16 + $0xb8] sm:$0xff]
    %v6707 = vld [vmem:[#allocation16 + $0xc0] sm:$0xff]
    %v6708 = vld [vmem:[#allocation16 + $0xc8] sm:$0xff]
    %v6709 = vld [vmem:[#allocation16 + $0xd0] sm:$0xff]
    %v6710 = vld [vmem:[#allocation16 + $0xd8] sm:$0xff]
    %v6711 = vld [vmem:[#allocation16 + $0xe0] sm:$0xff]
    %v6712 = vld [vmem:[#allocation16 + $0xe8] sm:$0xff]
    %v6713 = vld [vmem:[#allocation16 + $0xf0] sm:$0xff]
    %v6714 = vld [vmem:[#allocation16 + $0xf8] sm:$0xff]
    %v6715 = vld [vmem:[#allocation16 + $0x100] sm:$0xff]
    %v6716 = vld [vmem:[#allocation16 + $0x108] sm:$0xff]
    %v6717 = vld [vmem:[#allocation16 + $0x110] sm:$0xff]
    %v6718 = vld [vmem:[#allocation16 + $0x118] sm:$0xff]
    %v6719 = vld [vmem:[#allocation16 + $0x120] sm:$0xff]
    %v6720 = vld [vmem:[#allocation16 + $0x128] sm:$0xff]
    %v6721 = vld [vmem:[#allocation16 + $0x130] sm:$0xff]
    %v6722 = vld [vmem:[#allocation16 + $0x138] sm:$0xff]
    %v6723 = vld [vmem:[#allocation16 + $0x140] sm:$0xff]
    %v6724 = vld [vmem:[#allocation16 + $0x148] sm:$0xff]
    %v6725 = vld [vmem:[#allocation16 + $0x150] sm:$0xff]
    %v6726 = vld [vmem:[#allocation16 + $0x158] sm:$0xff]
    %v6727 = vld [vmem:[#allocation16 + $0x160] sm:$0xff]
    %v6728 = vld [vmem:[#allocation16 + $0x168] sm:$0xff]
    %v6729 = vld [vmem:[#allocation16 + $0x170] sm:$0xff]
    %v6730 = vld [vmem:[#allocation16 + $0x178] sm:$0xff]
    %v6731 = vld [vmem:[#allocation16 + $0x180] sm:$0xff]
    %v6732 = vld [vmem:[#allocation16 + $0x188] sm:$0xff]
    %v6733 = vld [vmem:[#allocation16 + $0x190] sm:$0xff]
    %v6734 = vld [vmem:[#allocation16 + $0x198] sm:$0xff]
    %v6735 = vld [vmem:[#allocation16 + $0x1a0] sm:$0xff]
    %v6736 = vld [vmem:[#allocation16 + $0x1a8] sm:$0xff]
    %v6737 = vld [vmem:[#allocation16 + $0x1b0] sm:$0xff]
    %v6738 = vld [vmem:[#allocation16 + $0x1b8] sm:$0xff]
    %v6739 = vld [vmem:[#allocation16 + $0x1c0] sm:$0xff]
    %v6740 = vld [vmem:[#allocation16 + $0x1c8] sm:$0xff]
    %v6741 = vld [vmem:[#allocation16 + $0x1d0] sm:$0xff]
    %v6742 = vld [vmem:[#allocation16 + $0x1d8] sm:$0xff]
    %v6743 = vld [vmem:[#allocation16 + $0x1e0] sm:$0xff]
    %v6744 = vld [vmem:[#allocation16 + $0x1e8] sm:$0xff]
    %v6745 = vld [vmem:[#allocation16 + $0x1f0] sm:$0xff]
    %v6746 = vld [vmem:[#allocation16 + $0x1f8] sm:$0xff]
    %v6747 = vld [vmem:[#allocation16 + $0x200] sm:$0xff]
    %v6748 = vld [vmem:[#allocation16 + $0x208] sm:$0xff]
    %v6749 = vld [vmem:[#allocation16 + $0x210] sm:$0xff]
    %v6750 = vld [vmem:[#allocation16 + $0x218] sm:$0xff]
    %v6751 = vld [vmem:[#allocation16 + $0x220] sm:$0xff]
    %v6752 = vld [vmem:[#allocation16 + $0x228] sm:$0xff]
    %v6753 = vld [vmem:[#allocation16 + $0x230] sm:$0xff]
    %v6754 = vld [vmem:[#allocation16 + $0x238] sm:$0xff]
    %v6755 = vld [vmem:[#allocation16 + $0x240] sm:$0xff]
    %v6756 = vld [vmem:[#allocation16 + $0x248] sm:$0xff]
    %v6757 = vld [vmem:[#allocation16 + $0x250] sm:$0xff]
    %v6758 = vld [vmem:[#allocation16 + $0x258] sm:$0xff]
    %v6759 = vld [vmem:[#allocation16 + $0x260] sm:$0xff]
    %v6760 = vld [vmem:[#allocation16 + $0x268] sm:$0xff]
    %v6761 = vld [vmem:[#allocation16 + $0x270] sm:$0xff]
    %v6762 = vld [vmem:[#allocation16 + $0x278] sm:$0xff]
    %v6763 = vld [vmem:[#allocation16 + $0x280] sm:$0xff]
    %v6764 = vld [vmem:[#allocation16 + $0x288] sm:$0xff]
    %v6765 = vld [vmem:[#allocation16 + $0x290] sm:$0xff]
    %v6766 = vld [vmem:[#allocation16 + $0x298] sm:$0xff]
    %v6767 = vld [vmem:[#allocation16 + $0x2a0] sm:$0xff]
    %v6768 = vld [vmem:[#allocation16 + $0x2a8] sm:$0xff]
    %v6769 = vld [vmem:[#allocation16 + $0x2b0] sm:$0xff]
    %v6770 = vld [vmem:[#allocation16 + $0x2b8] sm:$0xff]
    %v6771 = vld [vmem:[#allocation16 + $0x2c0] sm:$0xff]
    %v6772 = vld [vmem:[#allocation16 + $0x2c8] sm:$0xff]
    %v6773 = vld [vmem:[#allocation16 + $0x2d0] sm:$0xff]
    %v6774 = vld [vmem:[#allocation16 + $0x2d8] sm:$0xff]
    %v6775 = vld [vmem:[#allocation16 + $0x2e0] sm:$0xff]
    %v6776 = vld [vmem:[#allocation16 + $0x2e8] sm:$0xff]
    %v6777 = vld [vmem:[#allocation16 + $0x2f0] sm:$0xff]
    %v6778 = vld [vmem:[#allocation16 + $0x2f8] sm:$0xff]
    %v6779 = vld [vmem:[#allocation16 + $0x300] sm:$0xff]
    %v6780 = vld [vmem:[#allocation16 + $0x308] sm:$0xff]
    %v6781 = vld [vmem:[#allocation16 + $0x310] sm:$0xff]
    %v6782 = vld [vmem:[#allocation16 + $0x318] sm:$0xff]
    %v6783 = vld [vmem:[#allocation16 + $0x320] sm:$0xff]
    %v6784 = vld [vmem:[#allocation16 + $0x328] sm:$0xff]
    %v6785 = vld [vmem:[#allocation16 + $0x330] sm:$0xff]
    %v6786 = vld [vmem:[#allocation16 + $0x338] sm:$0xff]
    %v6787 = vld [vmem:[#allocation16 + $0x340] sm:$0xff]
    %v6788 = vld [vmem:[#allocation16 + $0x348] sm:$0xff]
    %v6789 = vld [vmem:[#allocation16 + $0x350] sm:$0xff]
    %v6790 = vld [vmem:[#allocation16 + $0x358] sm:$0xff]
    %v6791 = vld [vmem:[#allocation16 + $0x360] sm:$0xff]
    %v6792 = vld [vmem:[#allocation16 + $0x368] sm:$0xff]
    %v6793 = vld [vmem:[#allocation16 + $0x370] sm:$0xff]
    %v6794 = vld [vmem:[#allocation16 + $0x378] sm:$0xff]
    %v6795 = vld [vmem:[#allocation16 + $0x380] sm:$0xff]
    %v6796 = vld [vmem:[#allocation16 + $0x388] sm:$0xff]
    %v6797 = vld [vmem:[#allocation16 + $0x390] sm:$0xff]
    %v6798 = vld [vmem:[#allocation16 + $0x398] sm:$0xff]
    %v6799 = vld [vmem:[#allocation16 + $0x3a0] sm:$0xff]
    %v6800 = vld [vmem:[#allocation16 + $0x3a8] sm:$0xff]
    %v6801 = vld [vmem:[#allocation16 + $0x3b0] sm:$0xff]
    %v6802 = vld [vmem:[#allocation16 + $0x3b8] sm:$0xff]
    %v6803 = vld [vmem:[#allocation16 + $0x3c0] sm:$0xff]
    %v6804 = vld [vmem:[#allocation16 + $0x3c8] sm:$0xff]
    %v6805 = vld [vmem:[#allocation16 + $0x3d0] sm:$0xff]
    %v6806 = vld [vmem:[#allocation16 + $0x3d8] sm:$0xff]
    %v6807 = vld [vmem:[#allocation16 + $0x3e0] sm:$0xff]
    %v6808 = vld [vmem:[#allocation16 + $0x3e8] sm:$0xff]
    %v6809 = vld [vmem:[#allocation16 + $0x3f0] sm:$0xff]
    %v6810 = vld [vmem:[#allocation16 + $0x3f8] sm:$0xff]
    %v6811 = vld [vmem:[#allocation16 + $0x400] sm:$0xff]
    %v6812 = vld [vmem:[#allocation16 + $0x408] sm:$0xff]
    %v6813 = vld [vmem:[#allocation16 + $0x410] sm:$0xff]
    %v6814 = vld [vmem:[#allocation16 + $0x418] sm:$0xff]
    %v6815 = vld [vmem:[#allocation16 + $0x420] sm:$0xff]
    %v6816 = vld [vmem:[#allocation16 + $0x428] sm:$0xff]
    %v6817 = vld [vmem:[#allocation16 + $0x430] sm:$0xff]
    %v6818 = vld [vmem:[#allocation16 + $0x438] sm:$0xff]
    %v6819 = vld [vmem:[#allocation16 + $0x440] sm:$0xff]
    %v6820 = vld [vmem:[#allocation16 + $0x448] sm:$0xff]
    %v6821 = vld [vmem:[#allocation16 + $0x450] sm:$0xff]
    %v6822 = vld [vmem:[#allocation16 + $0x458] sm:$0xff]
    %v6823 = vld [vmem:[#allocation16 + $0x460] sm:$0xff]
    %v6824 = vld [vmem:[#allocation16 + $0x468] sm:$0xff]
    %v6825 = vld [vmem:[#allocation16 + $0x470] sm:$0xff]
    %v6826 = vld [vmem:[#allocation16 + $0x478] sm:$0xff]
    %v6827 = vld [vmem:[#allocation16 + $0x480] sm:$0xff]
    %v6828 = vld [vmem:[#allocation16 + $0x488] sm:$0xff]
    %v6829 = vld [vmem:[#allocation16 + $0x490] sm:$0xff]
    %v6830 = vld [vmem:[#allocation16 + $0x498] sm:$0xff]
    %v6831 = vld [vmem:[#allocation16 + $0x4a0] sm:$0xff]
    %v6832 = vld [vmem:[#allocation16 + $0x4a8] sm:$0xff]
    %v6833 = vld [vmem:[#allocation16 + $0x4b0] sm:$0xff]
    %v6834 = vld [vmem:[#allocation16 + $0x4b8] sm:$0xff]
    %v6835 = vld [vmem:[#allocation16 + $0x4c0] sm:$0xff]
    %v6836 = vld [vmem:[#allocation16 + $0x4c8] sm:$0xff]
    %v6837 = vld [vmem:[#allocation16 + $0x4d0] sm:$0xff]
    %v6838 = vld [vmem:[#allocation16 + $0x4d8] sm:$0xff]
    %v6839 = vld [vmem:[#allocation16 + $0x4e0] sm:$0xff]
    %v6840 = vld [vmem:[#allocation16 + $0x4e8] sm:$0xff]
    %v6841 = vld [vmem:[#allocation16 + $0x4f0] sm:$0xff]
    %v6842 = vld [vmem:[#allocation16 + $0x4f8] sm:$0xff]
    %v6843 = vld [vmem:[#allocation16 + $0x500] sm:$0xff]
    %v6844 = vld [vmem:[#allocation16 + $0x508] sm:$0xff]
    %v6845 = vld [vmem:[#allocation16 + $0x510] sm:$0xff]
    %v6846 = vld [vmem:[#allocation16 + $0x518] sm:$0xff]
    %v6847 = vld [vmem:[#allocation16 + $0x520] sm:$0xff]
    %v6848 = vld [vmem:[#allocation16 + $0x528] sm:$0xff]
    %v6849 = vld [vmem:[#allocation16 + $0x530] sm:$0xff]
    %v6850 = vld [vmem:[#allocation16 + $0x538] sm:$0xff]
    %v6851 = vld [vmem:[#allocation16 + $0x540] sm:$0xff]
    %v6852 = vld [vmem:[#allocation16 + $0x548] sm:$0xff]
    %v6853 = vld [vmem:[#allocation16 + $0x550] sm:$0xff]
    %v6854 = vld [vmem:[#allocation16 + $0x558] sm:$0xff]
    %v6855 = vld [vmem:[#allocation16 + $0x560] sm:$0xff]
    %v6856 = vld [vmem:[#allocation16 + $0x568] sm:$0xff]
    %v6857 = vld [vmem:[#allocation16 + $0x570] sm:$0xff]
    %v6858 = vld [vmem:[#allocation16 + $0x578] sm:$0xff]
    %v6859 = vld [vmem:[#allocation16 + $0x580] sm:$0xff]
    %v6860 = vld [vmem:[#allocation16 + $0x588] sm:$0xff]
    %v6861 = vld [vmem:[#allocation16 + $0x590] sm:$0xff]
    %v6862 = vld [vmem:[#allocation16 + $0x598] sm:$0xff]
    %v6863 = vld [vmem:[#allocation16 + $0x5a0] sm:$0xff]
    %v6864 = vld [vmem:[#allocation16 + $0x5a8] sm:$0xff]
    %v6865 = vld [vmem:[#allocation16 + $0x5b0] sm:$0xff]
    %v6866 = vld [vmem:[#allocation16 + $0x5b8] sm:$0xff]
    %v6867 = vld [vmem:[#allocation16 + $0x5c0] sm:$0xff]
    %v6868 = vld [vmem:[#allocation16 + $0x5c8] sm:$0xff]
    %v6869 = vld [vmem:[#allocation16 + $0x5d0] sm:$0xff]
    %v6870 = vld [vmem:[#allocation16 + $0x5d8] sm:$0xff]
    %v6871 = vld [vmem:[#allocation16 + $0x5e0] sm:$0xff]
    %v6872 = vld [vmem:[#allocation16 + $0x5e8] sm:$0xff]
    %v6873 = vld [vmem:[#allocation16 + $0x5f0] sm:$0xff]
    %v6874 = vld [vmem:[#allocation16 + $0x5f8] sm:$0xff]
    %v6875 = vld [vmem:[#allocation16 + $0x600] sm:$0xff]
    %v6876 = vld [vmem:[#allocation16 + $0x608] sm:$0xff]
    %v6877 = vld [vmem:[#allocation16 + $0x610] sm:$0xff]
    %v6878 = vld [vmem:[#allocation16 + $0x618] sm:$0xff]
    %v6879 = vld [vmem:[#allocation16 + $0x620] sm:$0xff]
    %v6880 = vld [vmem:[#allocation16 + $0x628] sm:$0xff]
    %v6881 = vld [vmem:[#allocation16 + $0x630] sm:$0xff]
    %v6882 = vld [vmem:[#allocation16 + $0x638] sm:$0xff]
    %v6883 = vld [vmem:[#allocation16 + $0x640] sm:$0xff]
    %v6884 = vld [vmem:[#allocation16 + $0x648] sm:$0xff]
    %v6885 = vld [vmem:[#allocation16 + $0x650] sm:$0xff]
    %v6886 = vld [vmem:[#allocation16 + $0x658] sm:$0xff]
    %v6887 = vld [vmem:[#allocation16 + $0x660] sm:$0xff]
    %v6888 = vld [vmem:[#allocation16 + $0x668] sm:$0xff]
    %v6889 = vld [vmem:[#allocation16 + $0x670] sm:$0xff]
    %v6890 = vld [vmem:[#allocation16 + $0x678] sm:$0xff]
    %v6891 = vld [vmem:[#allocation16 + $0x680] sm:$0xff]
    %v6892 = vld [vmem:[#allocation16 + $0x688] sm:$0xff]
    %v6893 = vld [vmem:[#allocation16 + $0x690] sm:$0xff]
    %v6894 = vld [vmem:[#allocation16 + $0x698] sm:$0xff]
    %v6895 = vld [vmem:[#allocation16 + $0x6a0] sm:$0xff]
    %v6896 = vld [vmem:[#allocation16 + $0x6a8] sm:$0xff]
    %v6897 = vld [vmem:[#allocation16 + $0x6b0] sm:$0xff]
    %v6898 = vld [vmem:[#allocation16 + $0x6b8] sm:$0xff]
    %v6899 = vld [vmem:[#allocation16 + $0x6c0] sm:$0xff]
    %v6900 = vld [vmem:[#allocation16 + $0x6c8] sm:$0xff]
    %v6901 = vld [vmem:[#allocation16 + $0x6d0] sm:$0xff]
    %v6902 = vld [vmem:[#allocation16 + $0x6d8] sm:$0xff]
    %v6903 = vld [vmem:[#allocation16 + $0x6e0] sm:$0xff]
    %v6904 = vld [vmem:[#allocation16 + $0x6e8] sm:$0xff]
    %v6905 = vld [vmem:[#allocation16 + $0x6f0] sm:$0xff]
    %v6906 = vld [vmem:[#allocation16 + $0x6f8] sm:$0xff]
    %v6907 = vld [vmem:[#allocation16 + $0x700] sm:$0xff]
    %v6908 = vld [vmem:[#allocation16 + $0x708] sm:$0xff]
    %v6909 = vld [vmem:[#allocation16 + $0x710] sm:$0xff]
    %v6910 = vld [vmem:[#allocation16 + $0x718] sm:$0xff]
    %v6911 = vld [vmem:[#allocation16 + $0x720] sm:$0xff]
    %v6912 = vld [vmem:[#allocation16 + $0x728] sm:$0xff]
    %v6913 = vld [vmem:[#allocation16 + $0x730] sm:$0xff]
    %v6914 = vld [vmem:[#allocation16 + $0x738] sm:$0xff]
    %v6915 = vld [vmem:[#allocation16 + $0x740] sm:$0xff]
    %v6916 = vld [vmem:[#allocation16 + $0x748] sm:$0xff]
    %v6917 = vld [vmem:[#allocation16 + $0x750] sm:$0xff]
    %v6918 = vld [vmem:[#allocation16 + $0x758] sm:$0xff]
    %v6919 = vld [vmem:[#allocation16 + $0x760] sm:$0xff]
    %v6920 = vld [vmem:[#allocation16 + $0x768] sm:$0xff]
    %v6921 = vld [vmem:[#allocation16 + $0x770] sm:$0xff]
    %v6922 = vld [vmem:[#allocation16 + $0x778] sm:$0xff]
    %v6923 = vld [vmem:[#allocation16 + $0x780] sm:$0xff]
    %v6924 = vld [vmem:[#allocation16 + $0x788] sm:$0xff]
    %v6925 = vld [vmem:[#allocation16 + $0x790] sm:$0xff]
    %v6926 = vld [vmem:[#allocation16 + $0x798] sm:$0xff]
    %v6927 = vld [vmem:[#allocation16 + $0x7a0] sm:$0xff]
    %v6928 = vld [vmem:[#allocation16 + $0x7a8] sm:$0xff]
    %v6929 = vld [vmem:[#allocation16 + $0x7b0] sm:$0xff]
    %v6930 = vld [vmem:[#allocation16 + $0x7b8] sm:$0xff]
    %v6931 = vld [vmem:[#allocation16 + $0x7c0] sm:$0xff]
    %v6932 = vld [vmem:[#allocation16 + $0x7c8] sm:$0xff]
    %v6933 = vld [vmem:[#allocation16 + $0x7d0] sm:$0xff]
    %v6934 = vld [vmem:[#allocation16 + $0x7d8] sm:$0xff]
    %v6935 = vld [vmem:[#allocation16 + $0x7e0] sm:$0xff]
    %v6936 = vld [vmem:[#allocation16 + $0x7e8] sm:$0xff]
    %v6937 = vld [vmem:[#allocation16 + $0x7f0] sm:$0xff]
    %v6938 = vld [vmem:[#allocation16 + $0x7f8] sm:$0xff]
    %v6939 = vld [vmem:[#allocation16 + $0x800] sm:$0xff]
    %v6940 = vld [vmem:[#allocation16 + $0x808] sm:$0xff]
    %v6941 = vld [vmem:[#allocation16 + $0x810] sm:$0xff]
    %v6942 = vld [vmem:[#allocation16 + $0x818] sm:$0xff]
    %v6943 = vld [vmem:[#allocation16 + $0x820] sm:$0xff]
    %v6944 = vld [vmem:[#allocation16 + $0x828] sm:$0xff]
    %v6945 = vld [vmem:[#allocation16 + $0x830] sm:$0xff]
    %v6946 = vld [vmem:[#allocation16 + $0x838] sm:$0xff]
    %v6947 = vld [vmem:[#allocation16 + $0x840] sm:$0xff]
    %v6948 = vld [vmem:[#allocation16 + $0x848] sm:$0xff]
    %v6949 = vld [vmem:[#allocation16 + $0x850] sm:$0xff]
    %v6950 = vld [vmem:[#allocation16 + $0x858] sm:$0xff]
    %v6951 = vld [vmem:[#allocation16 + $0x860] sm:$0xff]
    %v6952 = vld [vmem:[#allocation16 + $0x868] sm:$0xff]
    %v6953 = vld [vmem:[#allocation16 + $0x870] sm:$0xff]
    %v6954 = vld [vmem:[#allocation16 + $0x878] sm:$0xff]
    %v6955 = vld [vmem:[#allocation16 + $0x880] sm:$0xff]
    %v6956 = vld [vmem:[#allocation16 + $0x888] sm:$0xff]
    %v6957 = vld [vmem:[#allocation16 + $0x890] sm:$0xff]
    %v6958 = vld [vmem:[#allocation16 + $0x898] sm:$0xff]
    %v6959 = vld [vmem:[#allocation16 + $0x8a0] sm:$0xff]
    %v6960 = vld [vmem:[#allocation16 + $0x8a8] sm:$0xff]
    %v6961 = vld [vmem:[#allocation16 + $0x8b0] sm:$0xff]
    %v6962 = vld [vmem:[#allocation16 + $0x8b8] sm:$0xff]
    %v6963 = vld [vmem:[#allocation16 + $0x8c0] sm:$0xff]
    %v6964 = vld [vmem:[#allocation16 + $0x8c8] sm:$0xff]
    %v6965 = vld [vmem:[#allocation16 + $0x8d0] sm:$0xff]
    %v6966 = vld [vmem:[#allocation16 + $0x8d8] sm:$0xff]
    %v6967 = vld [vmem:[#allocation16 + $0x8e0] sm:$0xff]
    %v6968 = vld [vmem:[#allocation16 + $0x8e8] sm:$0xff]
    %v6969 = vld [vmem:[#allocation16 + $0x8f0] sm:$0xff]
    %v6970 = vld [vmem:[#allocation16 + $0x8f8] sm:$0xff]
    %v6971 = vld [vmem:[#allocation16 + $0x900] sm:$0xff]
    %v6972 = vld [vmem:[#allocation16 + $0x908] sm:$0xff]
    %v6973 = vld [vmem:[#allocation16 + $0x910] sm:$0xff]
    %v6974 = vld [vmem:[#allocation16 + $0x918] sm:$0xff]
    %v6975 = vld [vmem:[#allocation16 + $0x920] sm:$0xff]
    %v6976 = vld [vmem:[#allocation16 + $0x928] sm:$0xff]
    %v6977 = vld [vmem:[#allocation16 + $0x930] sm:$0xff]
    %v6978 = vld [vmem:[#allocation16 + $0x938] sm:$0xff]
    %v6979 = vld [vmem:[#allocation16 + $0x940] sm:$0xff]
    %v6980 = vld [vmem:[#allocation16 + $0x948] sm:$0xff]
    %v6981 = vld [vmem:[#allocation16 + $0x950] sm:$0xff]
    %v6982 = vld [vmem:[#allocation16 + $0x958] sm:$0xff]
    %v6983 = vld [vmem:[#allocation16 + $0x960] sm:$0xff]
    %v6984 = vld [vmem:[#allocation16 + $0x968] sm:$0xff]
    %v6985 = vld [vmem:[#allocation16 + $0x970] sm:$0xff]
    %v6986 = vld [vmem:[#allocation16 + $0x978] sm:$0xff]
    %v6987 = vld [vmem:[#allocation16 + $0x980] sm:$0xff]
    %v6988 = vld [vmem:[#allocation16 + $0x988] sm:$0xff]
    %v6989 = vld [vmem:[#allocation16 + $0x990] sm:$0xff]
    %v6990 = vld [vmem:[#allocation16 + $0x998] sm:$0xff]
    %v6991 = vld [vmem:[#allocation16 + $0x9a0] sm:$0xff]
    %v6992 = vld [vmem:[#allocation16 + $0x9a8] sm:$0xff]
    %v6993 = vld [vmem:[#allocation16 + $0x9b0] sm:$0xff]
    %v6994 = vld [vmem:[#allocation16 + $0x9b8] sm:$0xff]
    %v6995 = vld [vmem:[#allocation16 + $0x9c0] sm:$0xff]
    %v6996 = vld [vmem:[#allocation16 + $0x9c8] sm:$0xff]
    %v6997 = vld [vmem:[#allocation16 + $0x9d0] sm:$0xff]
    %v6998 = vld [vmem:[#allocation16 + $0x9d8] sm:$0xff]
    %v6999 = vld [vmem:[#allocation16 + $0x9e0] sm:$0xff]
    %v7000 = vld [vmem:[#allocation16 + $0x9e8] sm:$0xff]
    %v7001 = vld [vmem:[#allocation16 + $0x9f0] sm:$0xff]
    %v7002 = vld [vmem:[#allocation16 + $0x9f8] sm:$0xff]
    %v7003 = vld [vmem:[#allocation16 + $0xa00] sm:$0xff]
    %v7004 = vld [vmem:[#allocation16 + $0xa08] sm:$0xff]
    %v7005 = vld [vmem:[#allocation16 + $0xa10] sm:$0xff]
    %v7006 = vld [vmem:[#allocation16 + $0xa18] sm:$0xff]
    %v7007 = vld [vmem:[#allocation16 + $0xa20] sm:$0xff]
    %v7008 = vld [vmem:[#allocation16 + $0xa28] sm:$0xff]
    %v7009 = vld [vmem:[#allocation16 + $0xa30] sm:$0xff]
    %v7010 = vld [vmem:[#allocation16 + $0xa38] sm:$0xff]
    %v7011 = vld [vmem:[#allocation16 + $0xa40] sm:$0xff]
    %v7012 = vld [vmem:[#allocation16 + $0xa48] sm:$0xff]
    %v7013 = vld [vmem:[#allocation16 + $0xa50] sm:$0xff]
    %v7014 = vld [vmem:[#allocation16 + $0xa58] sm:$0xff]
    %v7015 = vld [vmem:[#allocation16 + $0xa60] sm:$0xff]
    %v7016 = vld [vmem:[#allocation16 + $0xa68] sm:$0xff]
    %v7017 = vld [vmem:[#allocation16 + $0xa70] sm:$0xff]
    %v7018 = vld [vmem:[#allocation16 + $0xa78] sm:$0xff]
    %v7020 = vsel %vm443, %v6016, 0
    %v7023 = vsel %vm443, %v6022, 0
    %7025 = vmatprep.subr.mxu0 %v6684
    %7026 = vmatpush1.msra.mxu0 %v6683
    %7027 = vmatprep.subr.mxu0 %v6686
    %7028 = vmatpush1.msra.mxu0 %v6685
    %7029 = vmatprep.subr.mxu0 %v6688
    %7030 = vmatpush1.msra.mxu0 %v6687
    %7031 = vmatprep.subr.mxu0 %v6690
    %7032 = vmatpush1.msra.mxu0 %v6689
    %7033 = vmatprep.subr.mxu0 %v6692
    %7034 = vmatpush1.msra.mxu0 %v6691
    %7035 = vmatprep.subr.mxu0 %v6694
    %7036 = vmatpush1.msra.mxu0 %v6693
    %7037 = vmatprep.subr.mxu0 %v6696
    %7038 = vmatpush1.msra.mxu0 %v6695
    %7039 = vmatprep.subr.mxu0 %v6698
    %7040 = vmatpush1.msra.mxu0 %v6697
    %7041 = vmatprep.subr.mxu0 %v6700
    %7042 = vmatpush1.msra.mxu0 %v6699
    %7043 = vmatprep.subr.mxu0 %v6702
    %7044 = vmatpush1.msra.mxu0 %v6701
    %7045 = vmatprep.subr.mxu0 %v6704
    %7046 = vmatpush1.msra.mxu0 %v6703
    %7047 = vmatprep.subr.mxu0 %v6706
    %7048 = vmatpush1.msra.mxu0 %v6705
    %7049 = vmatprep.subr.mxu0 %v6708
    %7050 = vmatpush1.msra.mxu0 %v6707
    %7051 = vmatprep.subr.mxu0 %v6710
    %7052 = vmatpush1.msra.mxu0 %v6709
    %7053 = vmatprep.subr.mxu0 %v6712
    %7054 = vmatpush1.msra.mxu0 %v6711
    %7055 = vmatprep.subr.mxu0 %v6714
    %7056 = vmatpush1.msra.mxu0 %v6713
    %7057 = vmatprep.subr.mxu0 %v6716
    %7058 = vmatpush1.msra.mxu0 %v6715
    %7059 = vmatprep.subr.mxu0 %v6718
    %7060 = vmatpush1.msra.mxu0 %v6717
    %7061 = vmatprep.subr.mxu0 %v6720
    %7062 = vmatpush1.msra.mxu0 %v6719
    %7063 = vmatprep.subr.mxu0 %v6722
    %7064 = vmatpush1.msra.mxu0 %v6721
    %7065 = vmatprep.subr.mxu0 %v6724
    %7066 = vmatpush1.msra.mxu0 %v6723
    %7067 = vmatprep.subr.mxu0 %v6726
    %7068 = vmatpush1.msra.mxu0 %v6725
    %7069 = vmatprep.subr.mxu0 %v6728
    %7070 = vmatpush1.msra.mxu0 %v6727
    %7071 = vmatprep.subr.mxu0 %v6730
    %7072 = vmatpush1.msra.mxu0 %v6729
    %7073 = vmatprep.subr.mxu0 %v6732
    %7074 = vmatpush1.msra.mxu0 %v6731
    %7075 = vmatprep.subr.mxu0 %v6734
    %7076 = vmatpush1.msra.mxu0 %v6733
    %7077 = vmatprep.subr.mxu0 %v6736
    %7078 = vmatpush1.msra.mxu0 %v6735
    %7079 = vmatprep.subr.mxu0 %v6738
    %7080 = vmatpush1.msra.mxu0 %v6737
    %7081 = vmatprep.subr.mxu0 %v6740
    %7082 = vmatpush1.msra.mxu0 %v6739
    %7083 = vmatprep.subr.mxu0 %v6742
    %7084 = vmatpush1.msra.mxu0 %v6741
    %7085 = vmatprep.subr.mxu0 %v6744
    %7086 = vmatpush1.msra.mxu0 %v6743
    %7087 = vmatprep.subr.mxu0 %v6746
    %7088 = vmatpush1.msra.mxu0 %v6745
    %7089 = vmatprep.mubr.f32.mxu0 %v6078
    %7090 = vmatmul.mubr.f32.gmra.mrb[0].mxu0 %v5552
    %v7091 = vpop.f32.mrb[0].mxu0
    %v7092 = vadd.f32 0.0, %v7091
    %v7093 = vpop.f32.mrb[0].mxu0
    %v7094 = vadd.f32 0.0, %v7093
    %7095 = vmatprep.mubr.f32.mxu0 %v6079
    %7096 = vmatmul.mubr.f32.gmra.mrb[0].mxu0 %v5558
    %v7097 = vpop.f32.mrb[0].mxu0
    %v7098 = vadd.f32 0.0, %v7097
    %v7099 = vpop.f32.mrb[0].mxu0
    %v7100 = vadd.f32 0.0, %v7099
    %7101 = vdwg.mxu0
    %7102 = vmatprep.subr.mxu0 %v6748
    %7103 = vmatpush1.msra.mxu0 %v6747
    %7104 = vmatprep.subr.mxu0 %v6750
    %7105 = vmatpush1.msra.mxu0 %v6749
    %7106 = vmatprep.subr.mxu0 %v6752
    %7107 = vmatpush1.msra.mxu0 %v6751
    %7108 = vmatprep.subr.mxu0 %v6754
    %7109 = vmatpush1.msra.mxu0 %v6753
    %7110 = vmatprep.subr.mxu0 %v6756
    %7111 = vmatpush1.msra.mxu0 %v6755
    %7112 = vmatprep.subr.mxu0 %v6758
    %7113 = vmatpush1.msra.mxu0 %v6757
    %7114 = vmatprep.subr.mxu0 %v6760
    %7115 = vmatpush1.msra.mxu0 %v6759
    %7116 = vmatprep.subr.mxu0 %v6762
    %7117 = vmatpush1.msra.mxu0 %v6761
    %7118 = vmatprep.subr.mxu0 %v6764
    %7119 = vmatpush1.msra.mxu0 %v6763
    %7120 = vmatprep.subr.mxu0 %v6766
    %7121 = vmatpush1.msra.mxu0 %v6765
    %7122 = vmatprep.subr.mxu0 %v6768
    %7123 = vmatpush1.msra.mxu0 %v6767
    %7124 = vmatprep.subr.mxu0 %v6770
    %7125 = vmatpush1.msra.mxu0 %v6769
    %7126 = vmatprep.subr.mxu0 %v6772
    %7127 = vmatpush1.msra.mxu0 %v6771
    %7128 = vmatprep.subr.mxu0 %v6774
    %7129 = vmatpush1.msra.mxu0 %v6773
    %7130 = vmatprep.subr.mxu0 %v6776
    %7131 = vmatpush1.msra.mxu0 %v6775
    %7132 = vmatprep.subr.mxu0 %v6778
    %7133 = vmatpush1.msra.mxu0 %v6777
    %7134 = vmatprep.subr.mxu0 %v6780
    %7135 = vmatpush1.msra.mxu0 %v6779
    %7136 = vmatprep.subr.mxu0 %v6782
    %7137 = vmatpush1.msra.mxu0 %v6781
    %7138 = vmatprep.subr.mxu0 %v6784
    %7139 = vmatpush1.msra.mxu0 %v6783
    %7140 = vmatprep.subr.mxu0 %v6786
    %7141 = vmatpush1.msra.mxu0 %v6785
    %7142 = vmatprep.subr.mxu0 %v6788
    %7143 = vmatpush1.msra.mxu0 %v6787
    %7144 = vmatprep.subr.mxu0 %v6790
    %7145 = vmatpush1.msra.mxu0 %v6789
    %7146 = vmatprep.subr.mxu0 %v6792
    %7147 = vmatpush1.msra.mxu0 %v6791
    %7148 = vmatprep.subr.mxu0 %v6794
    %7149 = vmatpush1.msra.mxu0 %v6793
    %7150 = vmatprep.subr.mxu0 %v6796
    %7151 = vmatpush1.msra.mxu0 %v6795
    %7152 = vmatprep.subr.mxu0 %v6798
    %7153 = vmatpush1.msra.mxu0 %v6797
    %7154 = vmatprep.subr.mxu0 %v6800
    %7155 = vmatpush1.msra.mxu0 %v6799
    %7156 = vmatprep.subr.mxu0 %v6802
    %7157 = vmatpush1.msra.mxu0 %v6801
    %7158 = vmatprep.subr.mxu0 %v6804
    %7159 = vmatpush1.msra.mxu0 %v6803
    %7160 = vmatprep.subr.mxu0 %v6806
    %7161 = vmatpush1.msra.mxu0 %v6805
    %7162 = vmatprep.subr.mxu0 %v6808
    %7163 = vmatpush1.msra.mxu0 %v6807
    %7164 = vmatprep.subr.mxu0 %v6810
    %7165 = vmatpush1.msra.mxu0 %v6809
    %7166 = vmatprep.mubr.f32.mxu0 %v5706
    %7167 = vmatmul.mubr.f32.gmra.mrb[0].mxu0 %v6036
    %v7168 = vpop.f32.mrb[0].mxu0
    %v7169 = vadd.f32 %v7092, %v7168
    %v7170 = vpop.f32.mrb[0].mxu0
    %v7171 = vadd.f32 %v7094, %v7170
    %7172 = vmatprep.mubr.f32.mxu0 %v5712
    %7173 = vmatmul.mubr.f32.gmra.mrb[0].mxu0 %v6037
    %v7174 = vpop.f32.mrb[0].mxu0
    %v7175 = vadd.f32 %v7098, %v7174
    %v7176 = vpop.f32.mrb[0].mxu0
    %v7177 = vadd.f32 %v7100, %v7176
    %7178 = vdwg.mxu0
    %7179 = vmatprep.subr.mxu0 %v6812
    %7180 = vmatpush1.msra.mxu0 %v6811
    %7181 = vmatprep.subr.mxu0 %v6814
    %7182 = vmatpush1.msra.mxu0 %v6813
    %7183 = vmatprep.subr.mxu0 %v6816
    %7184 = vmatpush1.msra.mxu0 %v6815
    %7185 = vmatprep.subr.mxu0 %v6818
    %7186 = vmatpush1.msra.mxu0 %v6817
    %7187 = vmatprep.subr.mxu0 %v6820
    %7188 = vmatpush1.msra.mxu0 %v6819
    %7189 = vmatprep.subr.mxu0 %v6822
    %7190 = vmatpush1.msra.mxu0 %v6821
    %7191 = vmatprep.subr.mxu0 %v6824
    %7192 = vmatpush1.msra.mxu0 %v6823
    %7193 = vmatprep.subr.mxu0 %v6826
    %7194 = vmatpush1.msra.mxu0 %v6825
    %7195 = vmatprep.subr.mxu0 %v6828
    %7196 = vmatpush1.msra.mxu0 %v6827
    %7197 = vmatprep.subr.mxu0 %v6830
    %7198 = vmatpush1.msra.mxu0 %v6829
    %7199 = vmatprep.subr.mxu0 %v6832
    %7200 = vmatpush1.msra.mxu0 %v6831
    %7201 = vmatprep.subr.mxu0 %v6834
    %7202 = vmatpush1.msra.mxu0 %v6833
    %7203 = vmatprep.subr.mxu0 %v6836
    %7204 = vmatpush1.msra.mxu0 %v6835
    %7205 = vmatprep.subr.mxu0 %v6838
    %7206 = vmatpush1.msra.mxu0 %v6837
    %7207 = vmatprep.subr.mxu0 %v6840
    %7208 = vmatpush1.msra.mxu0 %v6839
    %7209 = vmatprep.subr.mxu0 %v6842
    %7210 = vmatpush1.msra.mxu0 %v6841
    %7211 = vmatprep.subr.mxu0 %v6844
    %7212 = vmatpush1.msra.mxu0 %v6843
    %7213 = vmatprep.subr.mxu0 %v6846
    %7214 = vmatpush1.msra.mxu0 %v6845
    %7215 = vmatprep.subr.mxu0 %v6848
    %7216 = vmatpush1.msra.mxu0 %v6847
    %7217 = vmatprep.subr.mxu0 %v6850
    %7218 = vmatpush1.msra.mxu0 %v6849
    %7219 = vmatprep.subr.mxu0 %v6852
    %7220 = vmatpush1.msra.mxu0 %v6851
    %7221 = vmatprep.subr.mxu0 %v6854
    %7222 = vmatpush1.msra.mxu0 %v6853
    %7223 = vmatprep.subr.mxu0 %v6856
    %7224 = vmatpush1.msra.mxu0 %v6855
    %7225 = vmatprep.subr.mxu0 %v6858
    %7226 = vmatpush1.msra.mxu0 %v6857
    %7227 = vmatprep.subr.mxu0 %v6860
    %7228 = vmatpush1.msra.mxu0 %v6859
    %7229 = vmatprep.subr.mxu0 %v6862
    %7230 = vmatpush1.msra.mxu0 %v6861
    %7231 = vmatprep.subr.mxu0 %v6864
    %7232 = vmatpush1.msra.mxu0 %v6863
    %7233 = vmatprep.subr.mxu0 %v6866
    %7234 = vmatpush1.msra.mxu0 %v6865
    %7235 = vmatprep.subr.mxu0 %v6868
    %7236 = vmatpush1.msra.mxu0 %v6867
    %7237 = vmatprep.subr.mxu0 %v6870
    %7238 = vmatpush1.msra.mxu0 %v6869
    %7239 = vmatprep.subr.mxu0 %v6872
    %7240 = vmatpush1.msra.mxu0 %v6871
    %7241 = vmatprep.subr.mxu0 %v6874
    %7242 = vmatpush1.msra.mxu0 %v6873
    %7243 = vmatprep.mubr.f32.mxu0 %v6054
    %7244 = vmatmul.mubr.f32.gmra.mrb[0].mxu0 %v6080
    %v7245 = vpop.f32.mrb[0].mxu0
    %v7246 = vadd.f32 %v7169, %v7245
    %v7247 = vpop.f32.mrb[0].mxu0
    %v7248 = vadd.f32 %v7171, %v7247
    %7249 = vmatprep.mubr.f32.mxu0 %v6055
    %7250 = vmatmul.mubr.f32.gmra.mrb[0].mxu0 %v6081
    %v7251 = vpop.f32.mrb[0].mxu0
    %v7252 = vadd.f32 %v7175, %v7251
    %v7253 = vpop.f32.mrb[0].mxu0
    %v7254 = vadd.f32 %v7177, %v7253
    %7255 = vdwg.mxu0
    %7256 = vmatprep.subr.mxu0 %v6876
    %7257 = vmatpush1.msra.mxu0 %v6875
    %7258 = vmatprep.subr.mxu0 %v6878
    %7259 = vmatpush1.msra.mxu0 %v6877
    %7260 = vmatprep.subr.mxu0 %v6880
    %7261 = vmatpush1.msra.mxu0 %v6879
    %7262 = vmatprep.subr.mxu0 %v6882
    %7263 = vmatpush1.msra.mxu0 %v6881
    %7264 = vmatprep.subr.mxu0 %v6884
    %7265 = vmatpush1.msra.mxu0 %v6883
    %7266 = vmatprep.subr.mxu0 %v6886
    %7267 = vmatpush1.msra.mxu0 %v6885
    %7268 = vmatprep.subr.mxu0 %v6888
    %7269 = vmatpush1.msra.mxu0 %v6887
    %7270 = vmatprep.subr.mxu0 %v6890
    %7271 = vmatpush1.msra.mxu0 %v6889
    %7272 = vmatprep.subr.mxu0 %v6892
    %7273 = vmatpush1.msra.mxu0 %v6891
    %7274 = vmatprep.subr.mxu0 %v6894
    %7275 = vmatpush1.msra.mxu0 %v6893
    %7276 = vmatprep.subr.mxu0 %v6896
    %7277 = vmatpush1.msra.mxu0 %v6895
    %7278 = vmatprep.subr.mxu0 %v6898
    %7279 = vmatpush1.msra.mxu0 %v6897
    %7280 = vmatprep.subr.mxu0 %v6900
    %7281 = vmatpush1.msra.mxu0 %v6899
    %7282 = vmatprep.subr.mxu0 %v6902
    %7283 = vmatpush1.msra.mxu0 %v6901
    %7284 = vmatprep.subr.mxu0 %v6904
    %7285 = vmatpush1.msra.mxu0 %v6903
    %7286 = vmatprep.subr.mxu0 %v6906
    %7287 = vmatpush1.msra.mxu0 %v6905
    %7288 = vmatprep.subr.mxu0 %v6908
    %7289 = vmatpush1.msra.mxu0 %v6907
    %7290 = vmatprep.subr.mxu0 %v6910
    %7291 = vmatpush1.msra.mxu0 %v6909
    %7292 = vmatprep.subr.mxu0 %v6912
    %7293 = vmatpush1.msra.mxu0 %v6911
    %7294 = vmatprep.subr.mxu0 %v6914
    %7295 = vmatpush1.msra.mxu0 %v6913
    %7296 = vmatprep.subr.mxu0 %v6916
    %7297 = vmatpush1.msra.mxu0 %v6915
    %7298 = vmatprep.subr.mxu0 %v6918
    %7299 = vmatpush1.msra.mxu0 %v6917
    %7300 = vmatprep.subr.mxu0 %v6920
    %7301 = vmatpush1.msra.mxu0 %v6919
    %7302 = vmatprep.subr.mxu0 %v6922
    %7303 = vmatpush1.msra.mxu0 %v6921
    %7304 = vmatprep.subr.mxu0 %v6924
    %7305 = vmatpush1.msra.mxu0 %v6923
    %7306 = vmatprep.subr.mxu0 %v6926
    %7307 = vmatpush1.msra.mxu0 %v6925
    %7308 = vmatprep.subr.mxu0 %v6928
    %7309 = vmatpush1.msra.mxu0 %v6927
    %7310 = vmatprep.subr.mxu0 %v6930
    %7311 = vmatpush1.msra.mxu0 %v6929
    %7312 = vmatprep.subr.mxu0 %v6932
    %7313 = vmatpush1.msra.mxu0 %v6931
    %7314 = vmatprep.subr.mxu0 %v6934
    %7315 = vmatpush1.msra.mxu0 %v6933
    %7316 = vmatprep.subr.mxu0 %v6936
    %7317 = vmatpush1.msra.mxu0 %v6935
    %7318 = vmatprep.subr.mxu0 %v6938
    %7319 = vmatpush1.msra.mxu0 %v6937
    %7320 = vmatprep.mubr.f32.mxu0 %v6082
    %7321 = vmatmul.mubr.f32.gmra.mrb[0].mxu0 %v5860
    %v7322 = vpop.f32.mrb[0].mxu0
    %v7323 = vadd.f32 %v7246, %v7322
    %v7324 = vpop.f32.mrb[0].mxu0
    %v7325 = vadd.f32 %v7248, %v7324
    %7326 = vmatprep.mubr.f32.mxu0 %v6083
    %7327 = vmatmul.mubr.f32.gmra.mrb[0].mxu0 %v5866
    %v7328 = vpop.f32.mrb[0].mxu0
    %v7329 = vadd.f32 %v7252, %v7328
    %v7330 = vpop.f32.mrb[0].mxu0
    %v7331 = vadd.f32 %v7254, %v7330
    %7332 = vdwg.mxu0
    %7333 = vmatprep.subr.mxu0 %v6940
    %7334 = vmatpush1.msra.mxu0 %v6939
    %7335 = vmatprep.subr.mxu0 %v6942
    %7336 = vmatpush1.msra.mxu0 %v6941
    %7337 = vmatprep.subr.mxu0 %v6944
    %7338 = vmatpush1.msra.mxu0 %v6943
    %7339 = vmatprep.subr.mxu0 %v6946
    %7340 = vmatpush1.msra.mxu0 %v6945
    %7341 = vmatprep.subr.mxu0 %v6948
    %7342 = vmatpush1.msra.mxu0 %v6947
    %7343 = vmatprep.subr.mxu0 %v6950
    %7344 = vmatpush1.msra.mxu0 %v6949
    %7345 = vmatprep.subr.mxu0 %v6952
    %7346 = vmatpush1.msra.mxu0 %v6951
    %7347 = vmatprep.subr.mxu0 %v6954
    %7348 = vmatpush1.msra.mxu0 %v6953
    %7349 = vmatprep.subr.mxu0 %v6956
    %7350 = vmatpush1.msra.mxu0 %v6955
    %7351 = vmatprep.subr.mxu0 %v6958
    %7352 = vmatpush1.msra.mxu0 %v6957
    %7353 = vmatprep.subr.mxu0 %v6960
    %7354 = vmatpush1.msra.mxu0 %v6959
    %7355 = vmatprep.subr.mxu0 %v6962
    %7356 = vmatpush1.msra.mxu0 %v6961
    %7357 = vmatprep.subr.mxu0 %v6964
    %7358 = vmatpush1.msra.mxu0 %v6963
    %7359 = vmatprep.subr.mxu0 %v6966
    %7360 = vmatpush1.msra.mxu0 %v6965
    %7361 = vmatprep.subr.mxu0 %v6968
    %7362 = vmatpush1.msra.mxu0 %v6967
    %7363 = vmatprep.subr.mxu0 %v6970
    %7364 = vmatpush1.msra.mxu0 %v6969
    %7365 = vmatprep.subr.mxu0 %v6972
    %7366 = vmatpush1.msra.mxu0 %v6971
    %7367 = vmatprep.subr.mxu0 %v6974
    %7368 = vmatpush1.msra.mxu0 %v6973
    %7369 = vmatprep.subr.mxu0 %v6976
    %7370 = vmatpush1.msra.mxu0 %v6975
    %7371 = vmatprep.subr.mxu0 %v6978
    %7372 = vmatpush1.msra.mxu0 %v6977
    %7373 = vmatprep.subr.mxu0 %v6980
    %7374 = vmatpush1.msra.mxu0 %v6979
    %7375 = vmatprep.subr.mxu0 %v6982
    %7376 = vmatpush1.msra.mxu0 %v6981
    %7377 = vmatprep.subr.mxu0 %v6984
    %7378 = vmatpush1.msra.mxu0 %v6983
    %7379 = vmatprep.subr.mxu0 %v6986
    %7380 = vmatpush1.msra.mxu0 %v6985
    %7381 = vmatprep.subr.mxu0 %v6988
    %7382 = vmatpush1.msra.mxu0 %v6987
    %7383 = vmatprep.subr.mxu0 %v6990
    %7384 = vmatpush1.msra.mxu0 %v6989
    %7385 = vmatprep.subr.mxu0 %v6992
    %7386 = vmatpush1.msra.mxu0 %v6991
    %7387 = vmatprep.subr.mxu0 %v6994
    %7388 = vmatpush1.msra.mxu0 %v6993
    %7389 = vmatprep.subr.mxu0 %v6996
    %7390 = vmatpush1.msra.mxu0 %v6995
    %7391 = vmatprep.subr.mxu0 %v6998
    %7392 = vmatpush1.msra.mxu0 %v6997
    %7393 = vmatprep.subr.mxu0 %v7000
    %7394 = vmatpush1.msra.mxu0 %v6999
    %7395 = vmatprep.subr.mxu0 %v7002
    %7396 = vmatpush1.msra.mxu0 %v7001
    %7397 = vmatprep.mubr.f32.mxu0 %v6014
    %7398 = vmatmul.mubr.f32.gmra.mrb[0].mxu0 %v6072
    %v7399 = vpop.f32.mrb[0].mxu0
    %v7400 = vadd.f32 %v7323, %v7399
    %v7401 = vpop.f32.mrb[0].mxu0
    %v7402 = vadd.f32 %v7325, %v7401
    %7403 = vmatprep.mubr.f32.mxu0 %v6020
    %7404 = vmatmul.mubr.f32.gmra.mrb[0].mxu0 %v6073
    %v7405 = vpop.f32.mrb[0].mxu0
    %v7406 = vadd.f32 %v7329, %v7405
    %v7407 = vpop.f32.mrb[0].mxu0
    %v7408 = vadd.f32 %v7331, %v7407
    %7409 = vdwg.mxu0
    %7410 = vmatprep.subr.mxu0 %v7004
    %7411 = vmatpush1.msra.mxu0 %v7003
    %7412 = vmatprep.subr.mxu0 %v7006
    %7413 = vmatpush1.msra.mxu0 %v7005
    %7414 = vmatprep.subr.mxu0 %v7008
    %7415 = vmatpush1.msra.mxu0 %v7007
    %7416 = vmatprep.subr.mxu0 %v7010
    %7417 = vmatpush1.msra.mxu0 %v7009
    %7418 = vmatprep.subr.mxu0 %v7012
    %7419 = vmatpush1.msra.mxu0 %v7011
    %7420 = vmatprep.subr.mxu0 %v7014
    %7421 = vmatpush1.msra.mxu0 %v7013
    %7422 = vmatprep.subr.mxu0 %v7016
    %7423 = vmatpush1.msra.mxu0 %v7015
    %7424 = vmatprep.subr.mxu0 %v7018
    %7425 = vmatpush1.msra.mxu0 %v7017
    %7426 = vmatprep.subr.mxu0 0.0
    %7427 = vmatpush1.msra.mxu0 0.0
    %7428 = vmatprep.subr.mxu0 0.0
    %7429 = vmatpush1.msra.mxu0 0.0
    %7430 = vmatprep.subr.mxu0 0.0
    %7431 = vmatpush1.msra.mxu0 0.0
    %7432 = vmatprep.subr.mxu0 0.0
    %7433 = vmatpush1.msra.mxu0 0.0
    %7434 = vmatprep.subr.mxu0 0.0
    %7435 = vmatpush1.msra.mxu0 0.0
    %7436 = vmatprep.subr.mxu0 0.0
    %7437 = vmatpush1.msra.mxu0 0.0
    %7438 = vmatprep.subr.mxu0 0.0
    %7439 = vmatpush1.msra.mxu0 0.0
    %7440 = vmatprep.subr.mxu0 0.0
    %7441 = vmatpush1.msra.mxu0 0.0
    %7442 = vmatprep.subr.mxu0 0.0
    %7443 = vmatpush1.msra.mxu0 0.0
    %7444 = vmatprep.subr.mxu0 0.0
    %7445 = vmatpush1.msra.mxu0 0.0
    %7446 = vmatprep.subr.mxu0 0.0
    %7447 = vmatpush1.msra.mxu0 0.0
    %7448 = vmatprep.subr.mxu0 0.0
    %7449 = vmatpush1.msra.mxu0 0.0
    %7450 = vmatprep.subr.mxu0 0.0
    %7451 = vmatpush1.msra.mxu0 0.0
    %7452 = vmatprep.subr.mxu0 0.0
    %7453 = vmatpush1.msra.mxu0 0.0
    %7454 = vmatprep.subr.mxu0 0.0
    %7455 = vmatpush1.msra.mxu0 0.0
    %7456 = vmatprep.subr.mxu0 0.0
    %7457 = vmatpush1.msra.mxu0 0.0
    %7458 = vmatprep.subr.mxu0 0.0
    %7459 = vmatpush1.msra.mxu0 0.0
    %7460 = vmatprep.subr.mxu0 0.0
    %7461 = vmatpush1.msra.mxu0 0.0
    %7462 = vmatprep.subr.mxu0 0.0
    %7463 = vmatpush1.msra.mxu0 0.0
    %7464 = vmatprep.subr.mxu0 0.0
    %7465 = vmatpush1.msra.mxu0 0.0
    %7466 = vmatprep.subr.mxu0 0.0
    %7467 = vmatpush1.msra.mxu0 0.0
    %7468 = vmatprep.subr.mxu0 0.0
    %7469 = vmatpush1.msra.mxu0 0.0
    %7470 = vmatprep.subr.mxu0 0.0
    %7471 = vmatpush1.msra.mxu0 0.0
    %7472 = vmatprep.subr.mxu0 0.0
    %7473 = vmatpush1.msra.mxu0 0.0
    %7474 = vmatprep.mubr.f32.mxu0 0.0
    %7475 = vmatmul.mubr.f32.gmra.mrb[0].mxu0 %v7020
    %v7476 = vpop.f32.mrb[0].mxu0
    %v7477 = vadd.f32 %v7400, %v7476
    %v7478 = vpop.f32.mrb[0].mxu0
    %v7479 = vadd.f32 %v7402, %v7478
    %7480 = vmatprep.mubr.f32.mxu0 0.0
    %7481 = vmatmul.mubr.f32.gmra.mrb[0].mxu0 %v7023
    %v7482 = vpop.f32.mrb[0].mxu0
    %v7483 = vadd.f32 %v7406, %v7482
    %v7484 = vpop.f32.mrb[0].mxu0
    %v7485 = vadd.f32 %v7408, %v7484
    %7486 = vdwg.mxu0
    %v7488 = vsel %vm443, %v6615, 0
    %v7491 = vsel %vm443, %v6621, 0
    %7493 = vmatprep.subr.mxu0 %v6684
    %7494 = vmatpush1.msra.mxu0 %v6683
    %7495 = vmatprep.subr.mxu0 %v6686
    %7496 = vmatpush1.msra.mxu0 %v6685
    %7497 = vmatprep.subr.mxu0 %v6688
    %7498 = vmatpush1.msra.mxu0 %v6687
    %7499 = vmatprep.subr.mxu0 %v6690
    %7500 = vmatpush1.msra.mxu0 %v6689
    %7501 = vmatprep.subr.mxu0 %v6692
    %7502 = vmatpush1.msra.mxu0 %v6691
    %7503 = vmatprep.subr.mxu0 %v6694
    %7504 = vmatpush1.msra.mxu0 %v6693
    %7505 = vmatprep.subr.mxu0 %v6696
    %7506 = vmatpush1.msra.mxu0 %v6695
    %7507 = vmatprep.subr.mxu0 %v6698
    %7508 = vmatpush1.msra.mxu0 %v6697
    %7509 = vmatprep.subr.mxu0 %v6700
    %7510 = vmatpush1.msra.mxu0 %v6699
    %7511 = vmatprep.subr.mxu0 %v6702
    %7512 = vmatpush1.msra.mxu0 %v6701
    %7513 = vmatprep.subr.mxu0 %v6704
    %7514 = vmatpush1.msra.mxu0 %v6703
    %7515 = vmatprep.subr.mxu0 %v6706
    %7516 = vmatpush1.msra.mxu0 %v6705
    %7517 = vmatprep.subr.mxu0 %v6708
    %7518 = vmatpush1.msra.mxu0 %v6707
    %7519 = vmatprep.subr.mxu0 %v6710
    %7520 = vmatpush1.msra.mxu0 %v6709
    %7521 = vmatprep.subr.mxu0 %v6712
    %7522 = vmatpush1.msra.mxu0 %v6711
    %7523 = vmatprep.subr.mxu0 %v6714
    %7524 = vmatpush1.msra.mxu0 %v6713
    %7525 = vmatprep.subr.mxu0 %v6716
    %7526 = vmatpush1.msra.mxu0 %v6715
    %7527 = vmatprep.subr.mxu0 %v6718
    %7528 = vmatpush1.msra.mxu0 %v6717
    %7529 = vmatprep.subr.mxu0 %v6720
    %7530 = vmatpush1.msra.mxu0 %v6719
    %7531 = vmatprep.subr.mxu0 %v6722
    %7532 = vmatpush1.msra.mxu0 %v6721
    %7533 = vmatprep.subr.mxu0 %v6724
    %7534 = vmatpush1.msra.mxu0 %v6723
    %7535 = vmatprep.subr.mxu0 %v6726
    %7536 = vmatpush1.msra.mxu0 %v6725
    %7537 = vmatprep.subr.mxu0 %v6728
    %7538 = vmatpush1.msra.mxu0 %v6727
    %7539 = vmatprep.subr.mxu0 %v6730
    %7540 = vmatpush1.msra.mxu0 %v6729
    %7541 = vmatprep.subr.mxu0 %v6732
    %7542 = vmatpush1.msra.mxu0 %v6731
    %7543 = vmatprep.subr.mxu0 %v6734
    %7544 = vmatpush1.msra.mxu0 %v6733
    %7545 = vmatprep.subr.mxu0 %v6736
    %7546 = vmatpush1.msra.mxu0 %v6735
    %7547 = vmatprep.subr.mxu0 %v6738
    %7548 = vmatpush1.msra.mxu0 %v6737
    %7549 = vmatprep.subr.mxu0 %v6740
    %7550 = vmatpush1.msra.mxu0 %v6739
    %7551 = vmatprep.subr.mxu0 %v6742
    %7552 = vmatpush1.msra.mxu0 %v6741
    %7553 = vmatprep.subr.mxu0 %v6744
    %7554 = vmatpush1.msra.mxu0 %v6743
    %7555 = vmatprep.subr.mxu0 %v6746
    %7556 = vmatpush1.msra.mxu0 %v6745
    %7557 = vmatprep.mubr.f32.mxu0 %v6677
    %7558 = vmatmul.mubr.f32.gmra.mrb[0].mxu0 %v6151
    %v7559 = vpop.f32.mrb[0].mxu0
    %v7560 = vadd.f32 0.0, %v7559
    %v7561 = vpop.f32.mrb[0].mxu0
    %v7562 = vadd.f32 0.0, %v7561
    %7563 = vmatprep.mubr.f32.mxu0 %v6678
    %7564 = vmatmul.mubr.f32.gmra.mrb[0].mxu0 %v6157
    %v7565 = vpop.f32.mrb[0].mxu0
    %v7566 = vadd.f32 0.0, %v7565
    %v7567 = vpop.f32.mrb[0].mxu0
    %v7568 = vadd.f32 0.0, %v7567
    %7569 = vdwg.mxu0
    %7570 = vmatprep.subr.mxu0 %v6748
    %7571 = vmatpush1.msra.mxu0 %v6747
    %7572 = vmatprep.subr.mxu0 %v6750
    %7573 = vmatpush1.msra.mxu0 %v6749
    %7574 = vmatprep.subr.mxu0 %v6752
    %7575 = vmatpush1.msra.mxu0 %v6751
    %7576 = vmatprep.subr.mxu0 %v6754
    %7577 = vmatpush1.msra.mxu0 %v6753
    %7578 = vmatprep.subr.mxu0 %v6756
    %7579 = vmatpush1.msra.mxu0 %v6755
    %7580 = vmatprep.subr.mxu0 %v6758
    %7581 = vmatpush1.msra.mxu0 %v6757
    %7582 = vmatprep.subr.mxu0 %v6760
    %7583 = vmatpush1.msra.mxu0 %v6759
    %7584 = vmatprep.subr.mxu0 %v6762
    %7585 = vmatpush1.msra.mxu0 %v6761
    %7586 = vmatprep.subr.mxu0 %v6764
    %7587 = vmatpush1.msra.mxu0 %v6763
    %7588 = vmatprep.subr.mxu0 %v6766
    %7589 = vmatpush1.msra.mxu0 %v6765
    %7590 = vmatprep.subr.mxu0 %v6768
    %7591 = vmatpush1.msra.mxu0 %v6767
    %7592 = vmatprep.subr.mxu0 %v6770
    %7593 = vmatpush1.msra.mxu0 %v6769
    %7594 = vmatprep.subr.mxu0 %v6772
    %7595 = vmatpush1.msra.mxu0 %v6771
    %7596 = vmatprep.subr.mxu0 %v6774
    %7597 = vmatpush1.msra.mxu0 %v6773
    %7598 = vmatprep.subr.mxu0 %v6776
    %7599 = vmatpush1.msra.mxu0 %v6775
    %7600 = vmatprep.subr.mxu0 %v6778
    %7601 = vmatpush1.msra.mxu0 %v6777
    %7602 = vmatprep.subr.mxu0 %v6780
    %7603 = vmatpush1.msra.mxu0 %v6779
    %7604 = vmatprep.subr.mxu0 %v6782
    %7605 = vmatpush1.msra.mxu0 %v6781
    %7606 = vmatprep.subr.mxu0 %v6784
    %7607 = vmatpush1.msra.mxu0 %v6783
    %7608 = vmatprep.subr.mxu0 %v6786
    %7609 = vmatpush1.msra.mxu0 %v6785
    %7610 = vmatprep.subr.mxu0 %v6788
    %7611 = vmatpush1.msra.mxu0 %v6787
    %7612 = vmatprep.subr.mxu0 %v6790
    %7613 = vmatpush1.msra.mxu0 %v6789
    %7614 = vmatprep.subr.mxu0 %v6792
    %7615 = vmatpush1.msra.mxu0 %v6791
    %7616 = vmatprep.subr.mxu0 %v6794
    %7617 = vmatpush1.msra.mxu0 %v6793
    %7618 = vmatprep.subr.mxu0 %v6796
    %7619 = vmatpush1.msra.mxu0 %v6795
    %7620 = vmatprep.subr.mxu0 %v6798
    %7621 = vmatpush1.msra.mxu0 %v6797
    %7622 = vmatprep.subr.mxu0 %v6800
    %7623 = vmatpush1.msra.mxu0 %v6799
    %7624 = vmatprep.subr.mxu0 %v6802
    %7625 = vmatpush1.msra.mxu0 %v6801
    %7626 = vmatprep.subr.mxu0 %v6804
    %7627 = vmatpush1.msra.mxu0 %v6803
    %7628 = vmatprep.subr.mxu0 %v6806
    %7629 = vmatpush1.msra.mxu0 %v6805
    %7630 = vmatprep.subr.mxu0 %v6808
    %7631 = vmatpush1.msra.mxu0 %v6807
    %7632 = vmatprep.subr.mxu0 %v6810
    %7633 = vmatpush1.msra.mxu0 %v6809
    %7634 = vmatprep.mubr.f32.mxu0 %v6305
    %7635 = vmatmul.mubr.f32.gmra.mrb[0].mxu0 %v6635
    %v7636 = vpop.f32.mrb[0].mxu0
    %v7637 = vadd.f32 %v7560, %v7636
    %v7638 = vpop.f32.mrb[0].mxu0
    %v7639 = vadd.f32 %v7562, %v7638
    %7640 = vmatprep.mubr.f32.mxu0 %v6311
    %7641 = vmatmul.mubr.f32.gmra.mrb[0].mxu0 %v6636
    %v7642 = vpop.f32.mrb[0].mxu0
    %v7643 = vadd.f32 %v7566, %v7642
    %v7644 = vpop.f32.mrb[0].mxu0
    %v7645 = vadd.f32 %v7568, %v7644
    %7646 = vdwg.mxu0
    %7647 = vmatprep.subr.mxu0 %v6812
    %7648 = vmatpush1.msra.mxu0 %v6811
    %7649 = vmatprep.subr.mxu0 %v6814
    %7650 = vmatpush1.msra.mxu0 %v6813
    %7651 = vmatprep.subr.mxu0 %v6816
    %7652 = vmatpush1.msra.mxu0 %v6815
    %7653 = vmatprep.subr.mxu0 %v6818
    %7654 = vmatpush1.msra.mxu0 %v6817
    %7655 = vmatprep.subr.mxu0 %v6820
    %7656 = vmatpush1.msra.mxu0 %v6819
    %7657 = vmatprep.subr.mxu0 %v6822
    %7658 = vmatpush1.msra.mxu0 %v6821
    %7659 = vmatprep.subr.mxu0 %v6824
    %7660 = vmatpush1.msra.mxu0 %v6823
    %7661 = vmatprep.subr.mxu0 %v6826
    %7662 = vmatpush1.msra.mxu0 %v6825
    %7663 = vmatprep.subr.mxu0 %v6828
    %7664 = vmatpush1.msra.mxu0 %v6827
    %7665 = vmatprep.subr.mxu0 %v6830
    %7666 = vmatpush1.msra.mxu0 %v6829
    %7667 = vmatprep.subr.mxu0 %v6832
    %7668 = vmatpush1.msra.mxu0 %v6831
    %7669 = vmatprep.subr.mxu0 %v6834
    %7670 = vmatpush1.msra.mxu0 %v6833
    %7671 = vmatprep.subr.mxu0 %v6836
    %7672 = vmatpush1.msra.mxu0 %v6835
    %7673 = vmatprep.subr.mxu0 %v6838
    %7674 = vmatpush1.msra.mxu0 %v6837
    %7675 = vmatprep.subr.mxu0 %v6840
    %7676 = vmatpush1.msra.mxu0 %v6839
    %7677 = vmatprep.subr.mxu0 %v6842
    %7678 = vmatpush1.msra.mxu0 %v6841
    %7679 = vmatprep.subr.mxu0 %v6844
    %7680 = vmatpush1.msra.mxu0 %v6843
    %7681 = vmatprep.subr.mxu0 %v6846
    %7682 = vmatpush1.msra.mxu0 %v6845
    %7683 = vmatprep.subr.mxu0 %v6848
    %7684 = vmatpush1.msra.mxu0 %v6847
    %7685 = vmatprep.subr.mxu0 %v6850
    %7686 = vmatpush1.msra.mxu0 %v6849
    %7687 = vmatprep.subr.mxu0 %v6852
    %7688 = vmatpush1.msra.mxu0 %v6851
    %7689 = vmatprep.subr.mxu0 %v6854
    %7690 = vmatpush1.msra.mxu0 %v6853
    %7691 = vmatprep.subr.mxu0 %v6856
    %7692 = vmatpush1.msra.mxu0 %v6855
    %7693 = vmatprep.subr.mxu0 %v6858
    %7694 = vmatpush1.msra.mxu0 %v6857
    %7695 = vmatprep.subr.mxu0 %v6860
    %7696 = vmatpush1.msra.mxu0 %v6859
    %7697 = vmatprep.subr.mxu0 %v6862
    %7698 = vmatpush1.msra.mxu0 %v6861
    %7699 = vmatprep.subr.mxu0 %v6864
    %7700 = vmatpush1.msra.mxu0 %v6863
    %7701 = vmatprep.subr.mxu0 %v6866
    %7702 = vmatpush1.msra.mxu0 %v6865
    %7703 = vmatprep.subr.mxu0 %v6868
    %7704 = vmatpush1.msra.mxu0 %v6867
    %7705 = vmatprep.subr.mxu0 %v6870
    %7706 = vmatpush1.msra.mxu0 %v6869
    %7707 = vmatprep.subr.mxu0 %v6872
    %7708 = vmatpush1.msra.mxu0 %v6871
    %7709 = vmatprep.subr.mxu0 %v6874
    %7710 = vmatpush1.msra.mxu0 %v6873
    %7711 = vmatprep.mubr.f32.mxu0 %v6653
    %7712 = vmatmul.mubr.f32.gmra.mrb[0].mxu0 %v6679
    %v7713 = vpop.f32.mrb[0].mxu0
    %v7714 = vadd.f32 %v7637, %v7713
    %v7715 = vpop.f32.mrb[0].mxu0
    %v7716 = vadd.f32 %v7639, %v7715
    %7717 = vmatprep.mubr.f32.mxu0 %v6654
    %7718 = vmatmul.mubr.f32.gmra.mrb[0].mxu0 %v6680
    %v7719 = vpop.f32.mrb[0].mxu0
    %v7720 = vadd.f32 %v7643, %v7719
    %v7721 = vpop.f32.mrb[0].mxu0
    %v7722 = vadd.f32 %v7645, %v7721
    %7723 = vdwg.mxu0
    %7724 = vmatprep.subr.mxu0 %v6876
    %7725 = vmatpush1.msra.mxu0 %v6875
    %7726 = vmatprep.subr.mxu0 %v6878
    %7727 = vmatpush1.msra.mxu0 %v6877
    %7728 = vmatprep.subr.mxu0 %v6880
    %7729 = vmatpush1.msra.mxu0 %v6879
    %7730 = vmatprep.subr.mxu0 %v6882
    %7731 = vmatpush1.msra.mxu0 %v6881
    %7732 = vmatprep.subr.mxu0 %v6884
    %7733 = vmatpush1.msra.mxu0 %v6883
    %7734 = vmatprep.subr.mxu0 %v6886
    %7735 = vmatpush1.msra.mxu0 %v6885
    %7736 = vmatprep.subr.mxu0 %v6888
    %7737 = vmatpush1.msra.mxu0 %v6887
    %7738 = vmatprep.subr.mxu0 %v6890
    %7739 = vmatpush1.msra.mxu0 %v6889
    %7740 = vmatprep.subr.mxu0 %v6892
    %7741 = vmatpush1.msra.mxu0 %v6891
    %7742 = vmatprep.subr.mxu0 %v6894
    %7743 = vmatpush1.msra.mxu0 %v6893
    %7744 = vmatprep.subr.mxu0 %v6896
    %7745 = vmatpush1.msra.mxu0 %v6895
    %7746 = vmatprep.subr.mxu0 %v6898
    %7747 = vmatpush1.msra.mxu0 %v6897
    %7748 = vmatprep.subr.mxu0 %v6900
    %7749 = vmatpush1.msra.mxu0 %v6899
    %7750 = vmatprep.subr.mxu0 %v6902
    %7751 = vmatpush1.msra.mxu0 %v6901
    %7752 = vmatprep.subr.mxu0 %v6904
    %7753 = vmatpush1.msra.mxu0 %v6903
    %7754 = vmatprep.subr.mxu0 %v6906
    %7755 = vmatpush1.msra.mxu0 %v6905
    %7756 = vmatprep.subr.mxu0 %v6908
    %7757 = vmatpush1.msra.mxu0 %v6907
    %7758 = vmatprep.subr.mxu0 %v6910
    %7759 = vmatpush1.msra.mxu0 %v6909
    %7760 = vmatprep.subr.mxu0 %v6912
    %7761 = vmatpush1.msra.mxu0 %v6911
    %7762 = vmatprep.subr.mxu0 %v6914
    %7763 = vmatpush1.msra.mxu0 %v6913
    %7764 = vmatprep.subr.mxu0 %v6916
    %7765 = vmatpush1.msra.mxu0 %v6915
    %7766 = vmatprep.subr.mxu0 %v6918
    %7767 = vmatpush1.msra.mxu0 %v6917
    %7768 = vmatprep.subr.mxu0 %v6920
    %7769 = vmatpush1.msra.mxu0 %v6919
    %7770 = vmatprep.subr.mxu0 %v6922
    %7771 = vmatpush1.msra.mxu0 %v6921
    %7772 = vmatprep.subr.mxu0 %v6924
    %7773 = vmatpush1.msra.mxu0 %v6923
    %7774 = vmatprep.subr.mxu0 %v6926
    %7775 = vmatpush1.msra.mxu0 %v6925
    %7776 = vmatprep.subr.mxu0 %v6928
    %7777 = vmatpush1.msra.mxu0 %v6927
    %7778 = vmatprep.subr.mxu0 %v6930
    %7779 = vmatpush1.msra.mxu0 %v6929
    %7780 = vmatprep.subr.mxu0 %v6932
    %7781 = vmatpush1.msra.mxu0 %v6931
    %7782 = vmatprep.subr.mxu0 %v6934
    %7783 = vmatpush1.msra.mxu0 %v6933
    %7784 = vmatprep.subr.mxu0 %v6936
    %7785 = vmatpush1.msra.mxu0 %v6935
    %7786 = vmatprep.subr.mxu0 %v6938
    %7787 = vmatpush1.msra.mxu0 %v6937
    %7788 = vmatprep.mubr.f32.mxu0 %v6681
    %7789 = vmatmul.mubr.f32.gmra.mrb[0].mxu0 %v6459
    %v7790 = vpop.f32.mrb[0].mxu0
    %v7791 = vadd.f32 %v7714, %v7790
    %v7792 = vpop.f32.mrb[0].mxu0
    %v7793 = vadd.f32 %v7716, %v7792
    %7794 = vmatprep.mubr.f32.mxu0 %v6682
    %7795 = vmatmul.mubr.f32.gmra.mrb[0].mxu0 %v6465
    %v7796 = vpop.f32.mrb[0].mxu0
    %v7797 = vadd.f32 %v7720, %v7796
    %v7798 = vpop.f32.mrb[0].mxu0
    %v7799 = vadd.f32 %v7722, %v7798
    %7800 = vdwg.mxu0
    %7801 = vmatprep.subr.mxu0 %v6940
    %7802 = vmatpush1.msra.mxu0 %v6939
    %7803 = vmatprep.subr.mxu0 %v6942
    %7804 = vmatpush1.msra.mxu0 %v6941
    %7805 = vmatprep.subr.mxu0 %v6944
    %7806 = vmatpush1.msra.mxu0 %v6943
    %7807 = vmatprep.subr.mxu0 %v6946
    %7808 = vmatpush1.msra.mxu0 %v6945
    %7809 = vmatprep.subr.mxu0 %v6948
    %7810 = vmatpush1.msra.mxu0 %v6947
    %7811 = vmatprep.subr.mxu0 %v6950
    %7812 = vmatpush1.msra.mxu0 %v6949
    %7813 = vmatprep.subr.mxu0 %v6952
    %7814 = vmatpush1.msra.mxu0 %v6951
    %7815 = vmatprep.subr.mxu0 %v6954
    %7816 = vmatpush1.msra.mxu0 %v6953
    %7817 = vmatprep.subr.mxu0 %v6956
    %7818 = vmatpush1.msra.mxu0 %v6955
    %7819 = vmatprep.subr.mxu0 %v6958
    %7820 = vmatpush1.msra.mxu0 %v6957
    %7821 = vmatprep.subr.mxu0 %v6960
    %7822 = vmatpush1.msra.mxu0 %v6959
    %7823 = vmatprep.subr.mxu0 %v6962
    %7824 = vmatpush1.msra.mxu0 %v6961
    %7825 = vmatprep.subr.mxu0 %v6964
    %7826 = vmatpush1.msra.mxu0 %v6963
    %7827 = vmatprep.subr.mxu0 %v6966
    %7828 = vmatpush1.msra.mxu0 %v6965
    %7829 = vmatprep.subr.mxu0 %v6968
    %7830 = vmatpush1.msra.mxu0 %v6967
    %7831 = vmatprep.subr.mxu0 %v6970
    %7832 = vmatpush1.msra.mxu0 %v6969
    %7833 = vmatprep.subr.mxu0 %v6972
    %7834 = vmatpush1.msra.mxu0 %v6971
    %7835 = vmatprep.subr.mxu0 %v6974
    %7836 = vmatpush1.msra.mxu0 %v6973
    %7837 = vmatprep.subr.mxu0 %v6976
    %7838 = vmatpush1.msra.mxu0 %v6975
    %7839 = vmatprep.subr.mxu0 %v6978
    %7840 = vmatpush1.msra.mxu0 %v6977
    %7841 = vmatprep.subr.mxu0 %v6980
    %7842 = vmatpush1.msra.mxu0 %v6979
    %7843 = vmatprep.subr.mxu0 %v6982
    %7844 = vmatpush1.msra.mxu0 %v6981
    %7845 = vmatprep.subr.mxu0 %v6984
    %7846 = vmatpush1.msra.mxu0 %v6983
    %7847 = vmatprep.subr.mxu0 %v6986
    %7848 = vmatpush1.msra.mxu0 %v6985
    %7849 = vmatprep.subr.mxu0 %v6988
    %7850 = vmatpush1.msra.mxu0 %v6987
    %7851 = vmatprep.subr.mxu0 %v6990
    %7852 = vmatpush1.msra.mxu0 %v6989
    %7853 = vmatprep.subr.mxu0 %v6992
    %7854 = vmatpush1.msra.mxu0 %v6991
    %7855 = vmatprep.subr.mxu0 %v6994
    %7856 = vmatpush1.msra.mxu0 %v6993
    %7857 = vmatprep.subr.mxu0 %v6996
    %7858 = vmatpush1.msra.mxu0 %v6995
    %7859 = vmatprep.subr.mxu0 %v6998
    %7860 = vmatpush1.msra.mxu0 %v6997
    %7861 = vmatprep.subr.mxu0 %v7000
    %7862 = vmatpush1.msra.mxu0 %v6999
    %7863 = vmatprep.subr.mxu0 %v7002
    %7864 = vmatpush1.msra.mxu0 %v7001
    %7865 = vmatprep.mubr.f32.mxu0 %v6613
    %7866 = vmatmul.mubr.f32.gmra.mrb[0].mxu0 %v6671
    %v7867 = vpop.f32.mrb[0].mxu0
    %v7868 = vadd.f32 %v7791, %v7867
    %v7869 = vpop.f32.mrb[0].mxu0
    %v7870 = vadd.f32 %v7793, %v7869
    %7871 = vmatprep.mubr.f32.mxu0 %v6619
    %7872 = vmatmul.mubr.f32.gmra.mrb[0].mxu0 %v6672
    %v7873 = vpop.f32.mrb[0].mxu0
    %v7874 = vadd.f32 %v7797, %v7873
    %v7875 = vpop.f32.mrb[0].mxu0
    %v7876 = vadd.f32 %v7799, %v7875
    %7877 = vdwg.mxu0
    %7878 = vmatprep.subr.mxu0 %v7004
    %7879 = vmatpush1.msra.mxu0 %v7003
    %7880 = vmatprep.subr.mxu0 %v7006
    %7881 = vmatpush1.msra.mxu0 %v7005
    %7882 = vmatprep.subr.mxu0 %v7008
    %7883 = vmatpush1.msra.mxu0 %v7007
    %7884 = vmatprep.subr.mxu0 %v7010
    %7885 = vmatpush1.msra.mxu0 %v7009
    %7886 = vmatprep.subr.mxu0 %v7012
    %7887 = vmatpush1.msra.mxu0 %v7011
    %7888 = vmatprep.subr.mxu0 %v7014
    %7889 = vmatpush1.msra.mxu0 %v7013
    %7890 = vmatprep.subr.mxu0 %v7016
    %7891 = vmatpush1.msra.mxu0 %v7015
    %7892 = vmatprep.subr.mxu0 %v7018
    %7893 = vmatpush1.msra.mxu0 %v7017
    %7894 = vmatprep.subr.mxu0 0.0
    %7895 = vmatpush1.msra.mxu0 0.0
    %7896 = vmatprep.subr.mxu0 0.0
    %7897 = vmatpush1.msra.mxu0 0.0
    %7898 = vmatprep.subr.mxu0 0.0
    %7899 = vmatpush1.msra.mxu0 0.0
    %7900 = vmatprep.subr.mxu0 0.0
    %7901 = vmatpush1.msra.mxu0 0.0
    %7902 = vmatprep.subr.mxu0 0.0
    %7903 = vmatpush1.msra.mxu0 0.0
    %7904 = vmatprep.subr.mxu0 0.0
    %7905 = vmatpush1.msra.mxu0 0.0
    %7906 = vmatprep.subr.mxu0 0.0
    %7907 = vmatpush1.msra.mxu0 0.0
    %7908 = vmatprep.subr.mxu0 0.0
    %7909 = vmatpush1.msra.mxu0 0.0
    %7910 = vmatprep.subr.mxu0 0.0
    %7911 = vmatpush1.msra.mxu0 0.0
    %7912 = vmatprep.subr.mxu0 0.0
    %7913 = vmatpush1.msra.mxu0 0.0
    %7914 = vmatprep.subr.mxu0 0.0
    %7915 = vmatpush1.msra.mxu0 0.0
    %7916 = vmatprep.subr.mxu0 0.0
    %7917 = vmatpush1.msra.mxu0 0.0
    %7918 = vmatprep.subr.mxu0 0.0
    %7919 = vmatpush1.msra.mxu0 0.0
    %7920 = vmatprep.subr.mxu0 0.0
    %7921 = vmatpush1.msra.mxu0 0.0
    %7922 = vmatprep.subr.mxu0 0.0
    %7923 = vmatpush1.msra.mxu0 0.0
    %7924 = vmatprep.subr.mxu0 0.0
    %7925 = vmatpush1.msra.mxu0 0.0
    %7926 = vmatprep.subr.mxu0 0.0
    %7927 = vmatpush1.msra.mxu0 0.0
    %7928 = vmatprep.subr.mxu0 0.0
    %7929 = vmatpush1.msra.mxu0 0.0
    %7930 = vmatprep.subr.mxu0 0.0
    %7931 = vmatpush1.msra.mxu0 0.0
    %7932 = vmatprep.subr.mxu0 0.0
    %7933 = vmatpush1.msra.mxu0 0.0
    %7934 = vmatprep.subr.mxu0 0.0
    %7935 = vmatpush1.msra.mxu0 0.0
    %7936 = vmatprep.subr.mxu0 0.0
    %7937 = vmatpush1.msra.mxu0 0.0
    %7938 = vmatprep.subr.mxu0 0.0
    %7939 = vmatpush1.msra.mxu0 0.0
    %7940 = vmatprep.subr.mxu0 0.0
    %7941 = vmatpush1.msra.mxu0 0.0
    %7942 = vmatprep.mubr.f32.mxu0 0.0
    %7943 = vmatmul.mubr.f32.gmra.mrb[0].mxu0 %v7488
    %v7944 = vpop.f32.mrb[0].mxu0
    %v7945 = vadd.f32 %v7868, %v7944
    %v7946 = vpop.f32.mrb[0].mxu0
    %v7947 = vadd.f32 %v7870, %v7946
    %7948 = vmatprep.mubr.f32.mxu0 0.0
    %7949 = vmatmul.mubr.f32.gmra.mrb[0].mxu0 %v7491
    %v7950 = vpop.f32.mrb[0].mxu0
    %v7951 = vadd.f32 %v7874, %v7950
    %v7952 = vpop.f32.mrb[0].mxu0
    %v7953 = vadd.f32 %v7876, %v7952
    %7954 = vdwg.mxu0
    %v7955 = vadd.f32 %v7477, %v7483
    %v7956 = vrot.slane %v7955, 4
    %v7957 = vadd.f32 %v7955, %v7956
    %v7958 = vrot.slane %v7957, 2
    %v7959 = vadd.f32 %v7957, %v7958
    %v7960 = vrot.slane %v7959, 1
    %v7961 = vadd.f32 %v7959, %v7960
    %v7962 = vsel %vm443, %v7479, 0.0
    %v7963 = vsel %vm443, %v7485, 0.0
    %v7964 = vadd.f32 %v7962, %v7963
    %v7965 = vrot.slane %v7964, 4
    %v7966 = vadd.f32 %v7964, %v7965
    %v7967 = vrot.slane %v7966, 2
    %v7968 = vadd.f32 %v7966, %v7967
    %v7969 = vrot.slane %v7968, 1
    %v7970 = vadd.f32 %v7968, %v7969
    %v7971 = vmul.f32 %v7477, %v7477
    %v7972 = vmul.f32 %v7479, %v7479
    %v7973 = vmul.f32 %v7483, %v7483
    %v7974 = vmul.f32 %v7485, %v7485
    %v7975 = vadd.f32 %v7971, %v7973
    %v7976 = vrot.slane %v7975, 4
    %v7977 = vadd.f32 %v7975, %v7976
    %v7978 = vrot.slane %v7977, 2
    %v7979 = vadd.f32 %v7977, %v7978
    %v7980 = vrot.slane %v7979, 1
    %v7981 = vadd.f32 %v7979, %v7980
    %v7982 = vsel %vm443, %v7972, 0.0
    %v7983 = vsel %vm443, %v7974, 0.0
    %v7984 = vadd.f32 %v7982, %v7983
    %v7985 = vrot.slane %v7984, 4
    %v7986 = vadd.f32 %v7984, %v7985
    %v7987 = vrot.slane %v7986, 2
    %v7988 = vadd.f32 %v7986, %v7987
    %v7989 = vrot.slane %v7988, 1
    %v7990 = vadd.f32 %v7988, %v7989
    %v7991 = vadd.f32 %v7945, %v7951
    %v7992 = vrot.slane %v7991, 4
    %v7993 = vadd.f32 %v7991, %v7992
    %v7994 = vrot.slane %v7993, 2
    %v7995 = vadd.f32 %v7993, %v7994
    %v7996 = vrot.slane %v7995, 1
    %v7997 = vadd.f32 %v7995, %v7996
    %v7998 = vsel %vm443, %v7947, 0.0
    %v7999 = vsel %vm443, %v7953, 0.0
    %v8000 = vadd.f32 %v7998, %v7999
    %v8001 = vrot.slane %v8000, 4
    %v8002 = vadd.f32 %v8000, %v8001
    %v8003 = vrot.slane %v8002, 2
    %v8004 = vadd.f32 %v8002, %v8003
    %v8005 = vrot.slane %v8004, 1
    %v8006 = vadd.f32 %v8004, %v8005
    %v8007 = vadd.f32 %v7961, %v7997
    %v8008 = vadd.f32 %v7970, %v8006
    %v8009 = vmul.f32 %v7945, %v7945
    %v8010 = vmul.f32 %v7947, %v7947
    %v8011 = vmul.f32 %v7951, %v7951
    %v8012 = vmul.f32 %v7953, %v7953
    %v8013 = vadd.f32 %v8009, %v8011
    %v8014 = vrot.slane %v8013, 4
    %v8015 = vadd.f32 %v8013, %v8014
    %v8016 = vrot.slane %v8015, 2
    %v8017 = vadd.f32 %v8015, %v8016
    %v8018 = vrot.slane %v8017, 1
    %v8019 = vadd.f32 %v8017, %v8018
    %v8020 = vsel %vm443, %v8010, 0.0
    %v8021 = vsel %vm443, %v8012, 0.0
    %v8022 = vadd.f32 %v8020, %v8021
    %v8023 = vrot.slane %v8022, 4
    %v8024 = vadd.f32 %v8022, %v8023
    %v8025 = vrot.slane %v8024, 2
    %v8026 = vadd.f32 %v8024, %v8025
    %v8027 = vrot.slane %v8026, 1
    %v8028 = vadd.f32 %v8026, %v8027
    %v8029 = vadd.f32 %v7981, %v8019
    %v8030 = vadd.f32 %v7990, %v8028
    %v8031 = vmul.f32 %v8007, 0.03125
    %v8032 = vmul.f32 %v8008, 0.03125
    %v8033 = vmul.f32 %v8029, 0.03125
    %v8034 = vmul.f32 %v8030, 0.03125
    %v8035 = vmul.f32 %v8031, %v8031
    %v8036 = vmul.f32 %v8032, %v8032
    %v8037 = vsub.f32 %v8033, %v8035
    %v8038 = vsub.f32 %v8034, %v8036
    %v8039 = vld [vmem:[#allocation18] sm:$0x3]
    %v8040 = vadd.f32 %v8037, 1e-05
    %v8041 = vadd.f32 %v8038, 1e-05
    %v8042 = vrsqrt.pop %v8040
    %v8043 = vrsqrt.pop %v8041
    %v8046 = vcombine.low %v8042, %v8043
    %v8048 = vunpack.c.l.s4 1966171168
    %v8049 = vunpack.c.0.s8 %v8048
    %v8050 = vlaneseq
    %v8051 = vshrl.u32 %v8050, 7
    %v8052 = vsub.s32 %v8049, %v8051
    %v8053 = vrot.slane %v8046, %v8052
    %v8055 = vunpack.c.l.s4 1966171168
    %v8056 = vunpack.c.0.s8 %v8055
    %v8057 = vlaneseq
    %v8058 = vshrl.u32 %v8057, 7
    %v8059 = vsub.s32 %v8056, %v8058
    %v8060 = vrot.slane %v8053, %v8059
    %v8062 = vmul.f32 %v8039, %v8060
    %v8063 = vld [vmem:[#allocation19] sm:$0x3]
    %v8065 = vlaneseq
    %v8066 = vshrl.u32 %v8065, 7
    %v8067 = vsub.s32 0, %v8066
    %v8068 = vrot.slane %v8062, %v8067
    %v8069 = vlaneseq
    %v8070 = vshrl.u32 %v8069, 7
    %v8071 = vsub.s32 1, %v8070
    %v8072 = vrot.slane %v8062, %v8071
    %v8075 = vmul.f32 %v8031, %v8068
    %v8076 = vmul.f32 %v8032, %v8072
    %v8079 = vcombine.low %v8075, %v8076
    %v8081 = vunpack.c.l.s4 1966171168
    %v8082 = vunpack.c.0.s8 %v8081
    %v8083 = vlaneseq
    %v8084 = vshrl.u32 %v8083, 7
    %v8085 = vsub.s32 %v8082, %v8084
    %v8086 = vrot.slane %v8079, %v8085
    %v8088 = vunpack.c.l.s4 1966171168
    %v8089 = vunpack.c.0.s8 %v8088
    %v8090 = vlaneseq
    %v8091 = vshrl.u32 %v8090, 7
    %v8092 = vsub.s32 %v8089, %v8091
    %v8093 = vrot.slane %v8086, %v8092
    %v8095 = vsub.f32 %v8063, %v8093
    %v8096 = vmul.f32 %v7477, %v8068
    %v8097 = vmul.f32 %v7479, %v8072
    %v8098 = vmul.f32 %v7483, %v8068
    %v8099 = vmul.f32 %v7485, %v8072
    %v8101 = vlaneseq
    %v8102 = vshrl.u32 %v8101, 7
    %v8103 = vsub.s32 0, %v8102
    %v8104 = vrot.slane %v8095, %v8103
    %v8105 = vlaneseq
    %v8106 = vshrl.u32 %v8105, 7
    %v8107 = vsub.s32 1, %v8106
    %v8108 = vrot.slane %v8095, %v8107
    %v8111 = vadd.f32 %v8096, %v8104
    %v8112 = vadd.f32 %v8097, %v8108
    %v8113 = vadd.f32 %v8098, %v8104
    %v8114 = vadd.f32 %v8099, %v8108
    %v8115 = vmax.f32 %v8111, 0.0
    %v8116 = vmax.f32 %v8112, 0.0
    %v8117 = vmax.f32 %v8113, 0.0
    %v8118 = vmax.f32 %v8114, 0.0
    %v8119 = vmul.f32 %v7945, %v8068
    %v8120 = vmul.f32 %v7947, %v8072
    %v8121 = vmul.f32 %v7951, %v8068
    %v8122 = vmul.f32 %v7953, %v8072
    %v8123 = vadd.f32 %v8119, %v8104
    %v8124 = vadd.f32 %v8120, %v8108
    %v8125 = vadd.f32 %v8121, %v8104
    %v8126 = vadd.f32 %v8122, %v8108
    %v8127 = vmax.f32 %v8123, 0.0
    %v8128 = vmax.f32 %v8124, 0.0
    %v8129 = vmax.f32 %v8125, 0.0
    %v8130 = vmax.f32 %v8126, 0.0
    %8131 = vmatprep.subr.mxu0 %v8116
    %8132 = vmatpush1.msra.mxu0 %v8115
    %8133 = vmatprep.subr.mxu0 %v8118
    %8134 = vmatpush1.msra.mxu0 %v8117
    %8135 = vmatprep.subr.mxu0 0.0
    %8136 = vmatpush1.msra.mxu0 0.0
    %8137 = vmatprep.subr.mxu0 0.0
    %8138 = vmatpush1.msra.mxu0 0.0
    %8139 = vmatprep.subr.mxu0 0.0
    %8140 = vmatpush1.msra.mxu0 0.0
    %8141 = vmatprep.subr.mxu0 0.0
    %8142 = vmatpush1.msra.mxu0 0.0
    %8143 = vmatprep.subr.mxu0 0.0
    %8144 = vmatpush1.msra.mxu0 0.0
    %8145 = vmatprep.subr.mxu0 0.0
    %8146 = vmatpush1.msra.mxu0 0.0
    %8147 = vmatprep.subr.mxu0 0.0
    %8148 = vmatpush1.msra.mxu0 0.0
    %8149 = vmatprep.subr.mxu0 0.0
    %8150 = vmatpush1.msra.mxu0 0.0
    %8151 = vmatprep.subr.mxu0 0.0
    %8152 = vmatpush1.msra.mxu0 0.0
    %8153 = vmatprep.subr.mxu0 0.0
    %8154 = vmatpush1.msra.mxu0 0.0
    %8155 = vmatprep.subr.mxu0 0.0
    %8156 = vmatpush1.msra.mxu0 0.0
    %8157 = vmatprep.subr.mxu0 0.0
    %8158 = vmatpush1.msra.mxu0 0.0
    %8159 = vmatprep.subr.mxu0 0.0
    %8160 = vmatpush1.msra.mxu0 0.0
    %8161 = vmatprep.subr.mxu0 0.0
    %8162 = vmatpush1.msra.mxu0 0.0
    %8163 = vmatprep.subr.mxu0 0.0
    %8164 = vmatpush1.msra.mxu0 0.0
    %8165 = vmatprep.subr.mxu0 0.0
    %8166 = vmatpush1.msra.mxu0 0.0
    %8167 = vmatprep.subr.mxu0 0.0
    %8168 = vmatpush1.msra.mxu0 0.0
    %8169 = vmatprep.subr.mxu0 0.0
    %8170 = vmatpush1.msra.mxu0 0.0
    %8171 = vmatprep.subr.mxu0 0.0
    %8172 = vmatpush1.msra.mxu0 0.0
    %8173 = vmatprep.subr.mxu0 0.0
    %8174 = vmatpush1.msra.mxu0 0.0
    %8175 = vmatprep.subr.mxu0 0.0
    %8176 = vmatpush1.msra.mxu0 0.0
    %8177 = vmatprep.subr.mxu0 0.0
    %8178 = vmatpush1.msra.mxu0 0.0
    %8179 = vmatprep.subr.mxu0 0.0
    %8180 = vmatpush1.msra.mxu0 0.0
    %8181 = vmatprep.subr.mxu0 0.0
    %8182 = vmatpush1.msra.mxu0 0.0
    %8183 = vmatprep.subr.mxu0 0.0
    %8184 = vmatpush1.msra.mxu0 0.0
    %8185 = vmatprep.subr.mxu0 0.0
    %8186 = vmatpush1.msra.mxu0 0.0
    %8187 = vmatprep.subr.mxu0 0.0
    %8188 = vmatpush1.msra.mxu0 0.0
    %8189 = vmatprep.subr.mxu0 0.0
    %8190 = vmatpush1.msra.mxu0 0.0
    %8191 = vmatprep.subr.mxu0 0.0
    %8192 = vmatpush1.msra.mxu0 0.0
    %8193 = vmatprep.subr.mxu0 0.0
    %8194 = vmatpush1.msra.mxu0 0.0
    %8195 = vmatprep.mubr.f32.mxu0 0.0
    %8196 = vmatmul.mubr.f32.gmra.mrb[0].mxu0 %v631
    %v8197 = vpop.f32.mrb[0].mxu0
    %v8198 = vadd.f32 0.0, %v8197
    %v8199 = vpop.f32.mrb[0].mxu0
    %v8200 = vadd.f32 0.0, %v8199
    %8201 = vdwg.mxu0
    %8202 = vmatprep.subr.mxu0 %v8116
    %8203 = vmatpush1.msra.mxu0 %v8115
    %8204 = vmatprep.subr.mxu0 %v8118
    %8205 = vmatpush1.msra.mxu0 %v8117
    %8206 = vmatprep.subr.mxu0 0.0
    %8207 = vmatpush1.msra.mxu0 0.0
    %8208 = vmatprep.subr.mxu0 0.0
    %8209 = vmatpush1.msra.mxu0 0.0
    %8210 = vmatprep.subr.mxu0 0.0
    %8211 = vmatpush1.msra.mxu0 0.0
    %8212 = vmatprep.subr.mxu0 0.0
    %8213 = vmatpush1.msra.mxu0 0.0
    %8214 = vmatprep.subr.mxu0 0.0
    %8215 = vmatpush1.msra.mxu0 0.0
    %8216 = vmatprep.subr.mxu0 0.0
    %8217 = vmatpush1.msra.mxu0 0.0
    %8218 = vmatprep.subr.mxu0 0.0
    %8219 = vmatpush1.msra.mxu0 0.0
    %8220 = vmatprep.subr.mxu0 0.0
    %8221 = vmatpush1.msra.mxu0 0.0
    %8222 = vmatprep.subr.mxu0 0.0
    %8223 = vmatpush1.msra.mxu0 0.0
    %8224 = vmatprep.subr.mxu0 0.0
    %8225 = vmatpush1.msra.mxu0 0.0
    %8226 = vmatprep.subr.mxu0 0.0
    %8227 = vmatpush1.msra.mxu0 0.0
    %8228 = vmatprep.subr.mxu0 0.0
    %8229 = vmatpush1.msra.mxu0 0.0
    %8230 = vmatprep.subr.mxu0 0.0
    %8231 = vmatpush1.msra.mxu0 0.0
    %8232 = vmatprep.subr.mxu0 0.0
    %8233 = vmatpush1.msra.mxu0 0.0
    %8234 = vmatprep.subr.mxu0 0.0
    %8235 = vmatpush1.msra.mxu0 0.0
    %8236 = vmatprep.subr.mxu0 0.0
    %8237 = vmatpush1.msra.mxu0 0.0
    %8238 = vmatprep.subr.mxu0 0.0
    %8239 = vmatpush1.msra.mxu0 0.0
    %8240 = vmatprep.subr.mxu0 0.0
    %8241 = vmatpush1.msra.mxu0 0.0
    %8242 = vmatprep.subr.mxu0 0.0
    %8243 = vmatpush1.msra.mxu0 0.0
    %8244 = vmatprep.subr.mxu0 0.0
    %8245 = vmatpush1.msra.mxu0 0.0
    %8246 = vmatprep.subr.mxu0 0.0
    %8247 = vmatpush1.msra.mxu0 0.0
    %8248 = vmatprep.subr.mxu0 0.0
    %8249 = vmatpush1.msra.mxu0 0.0
    %8250 = vmatprep.subr.mxu0 0.0
    %8251 = vmatpush1.msra.mxu0 0.0
    %8252 = vmatprep.subr.mxu0 0.0
    %8253 = vmatpush1.msra.mxu0 0.0
    %8254 = vmatprep.subr.mxu0 0.0
    %8255 = vmatpush1.msra.mxu0 0.0
    %8256 = vmatprep.subr.mxu0 0.0
    %8257 = vmatpush1.msra.mxu0 0.0
    %8258 = vmatprep.subr.mxu0 0.0
    %8259 = vmatpush1.msra.mxu0 0.0
    %8260 = vmatprep.subr.mxu0 0.0
    %8261 = vmatpush1.msra.mxu0 0.0
    %8262 = vmatprep.subr.mxu0 0.0
    %8263 = vmatpush1.msra.mxu0 0.0
    %8264 = vmatprep.subr.mxu0 0.0
    %8265 = vmatpush1.msra.mxu0 0.0
    %8266 = vmatprep.mubr.f32.mxu0 0.0
    %8267 = vmatmul.mubr.f32.gmra.mrb[0].mxu0 %v705
    %v8268 = vpop.f32.mrb[0].mxu0
    %v8269 = vadd.f32 0.0, %v8268
    %v8270 = vpop.f32.mrb[0].mxu0
    %v8271 = vadd.f32 0.0, %v8270
    %8272 = vdwg.mxu0
    %8273 = vmatprep.subr.mxu0 %v8116
    %8274 = vmatpush1.msra.mxu0 %v8115
    %8275 = vmatprep.subr.mxu0 %v8118
    %8276 = vmatpush1.msra.mxu0 %v8117
    %8277 = vmatprep.subr.mxu0 0.0
    %8278 = vmatpush1.msra.mxu0 0.0
    %8279 = vmatprep.subr.mxu0 0.0
    %8280 = vmatpush1.msra.mxu0 0.0
    %8281 = vmatprep.subr.mxu0 0.0
    %8282 = vmatpush1.msra.mxu0 0.0
    %8283 = vmatprep.subr.mxu0 0.0
    %8284 = vmatpush1.msra.mxu0 0.0
    %8285 = vmatprep.subr.mxu0 0.0
    %8286 = vmatpush1.msra.mxu0 0.0
    %8287 = vmatprep.subr.mxu0 0.0
    %8288 = vmatpush1.msra.mxu0 0.0
    %8289 = vmatprep.subr.mxu0 0.0
    %8290 = vmatpush1.msra.mxu0 0.0
    %8291 = vmatprep.subr.mxu0 0.0
    %8292 = vmatpush1.msra.mxu0 0.0
    %8293 = vmatprep.subr.mxu0 0.0
    %8294 = vmatpush1.msra.mxu0 0.0
    %8295 = vmatprep.subr.mxu0 0.0
    %8296 = vmatpush1.msra.mxu0 0.0
    %8297 = vmatprep.subr.mxu0 0.0
    %8298 = vmatpush1.msra.mxu0 0.0
    %8299 = vmatprep.subr.mxu0 0.0
    %8300 = vmatpush1.msra.mxu0 0.0
    %8301 = vmatprep.subr.mxu0 0.0
    %8302 = vmatpush1.msra.mxu0 0.0
    %8303 = vmatprep.subr.mxu0 0.0
    %8304 = vmatpush1.msra.mxu0 0.0
    %8305 = vmatprep.subr.mxu0 0.0
    %8306 = vmatpush1.msra.mxu0 0.0
    %8307 = vmatprep.subr.mxu0 0.0
    %8308 = vmatpush1.msra.mxu0 0.0
    %8309 = vmatprep.subr.mxu0 0.0
    %8310 = vmatpush1.msra.mxu0 0.0
    %8311 = vmatprep.subr.mxu0 0.0
    %8312 = vmatpush1.msra.mxu0 0.0
    %8313 = vmatprep.subr.mxu0 0.0
    %8314 = vmatpush1.msra.mxu0 0.0
    %8315 = vmatprep.subr.mxu0 0.0
    %8316 = vmatpush1.msra.mxu0 0.0
    %8317 = vmatprep.subr.mxu0 0.0
    %8318 = vmatpush1.msra.mxu0 0.0
    %8319 = vmatprep.subr.mxu0 0.0
    %8320 = vmatpush1.msra.mxu0 0.0
    %8321 = vmatprep.subr.mxu0 0.0
    %8322 = vmatpush1.msra.mxu0 0.0
    %8323 = vmatprep.subr.mxu0 0.0
    %8324 = vmatpush1.msra.mxu0 0.0
    %8325 = vmatprep.subr.mxu0 0.0
    %8326 = vmatpush1.msra.mxu0 0.0
    %8327 = vmatprep.subr.mxu0 0.0
    %8328 = vmatpush1.msra.mxu0 0.0
    %8329 = vmatprep.subr.mxu0 0.0
    %8330 = vmatpush1.msra.mxu0 0.0
    %8331 = vmatprep.subr.mxu0 0.0
    %8332 = vmatpush1.msra.mxu0 0.0
    %8333 = vmatprep.subr.mxu0 0.0
    %8334 = vmatpush1.msra.mxu0 0.0
    %8335 = vmatprep.subr.mxu0 0.0
    %8336 = vmatpush1.msra.mxu0 0.0
    %8337 = vmatprep.mubr.f32.mxu0 0.0
    %8338 = vmatmul.mubr.f32.gmra.mrb[0].mxu0 %v779
    %v8339 = vpop.f32.mrb[0].mxu0
    %v8340 = vadd.f32 0.0, %v8339
    %v8341 = vpop.f32.mrb[0].mxu0
    %v8342 = vadd.f32 0.0, %v8341
    %8343 = vdwg.mxu0
    %8346 = vrot.lane.b32.xlu0 %v8269, 64
    %v8347 = vpop.permute.xlu0 %8346
    %8348 = vrot.lane.b32.xlu0 %v8271, 64
    %v8349 = vpop.permute.xlu0 %8348
    %v8350 = vsel %vm443, %v8347, %v8349
    %v8353 = vsel %vm443, %v8200, %v8347
    %8354 = vmatprep.subr.mxu0 %v8128
    %8355 = vmatpush1.msra.mxu0 %v8127
    %8356 = vmatprep.subr.mxu0 %v8130
    %8357 = vmatpush1.msra.mxu0 %v8129
    %8358 = vmatprep.subr.mxu0 0.0
    %8359 = vmatpush1.msra.mxu0 0.0
    %8360 = vmatprep.subr.mxu0 0.0
    %8361 = vmatpush1.msra.mxu0 0.0
    %8362 = vmatprep.subr.mxu0 0.0
    %8363 = vmatpush1.msra.mxu0 0.0
    %8364 = vmatprep.subr.mxu0 0.0
    %8365 = vmatpush1.msra.mxu0 0.0
    %8366 = vmatprep.subr.mxu0 0.0
    %8367 = vmatpush1.msra.mxu0 0.0
    %8368 = vmatprep.subr.mxu0 0.0
    %8369 = vmatpush1.msra.mxu0 0.0
    %8370 = vmatprep.subr.mxu0 0.0
    %8371 = vmatpush1.msra.mxu0 0.0
    %8372 = vmatprep.subr.mxu0 0.0
    %8373 = vmatpush1.msra.mxu0 0.0
    %8374 = vmatprep.subr.mxu0 0.0
    %8375 = vmatpush1.msra.mxu0 0.0
    %8376 = vmatprep.subr.mxu0 0.0
    %8377 = vmatpush1.msra.mxu0 0.0
    %8378 = vmatprep.subr.mxu0 0.0
    %8379 = vmatpush1.msra.mxu0 0.0
    %8380 = vmatprep.subr.mxu0 0.0
    %8381 = vmatpush1.msra.mxu0 0.0
    %8382 = vmatprep.subr.mxu0 0.0
    %8383 = vmatpush1.msra.mxu0 0.0
    %8384 = vmatprep.subr.mxu0 0.0
    %8385 = vmatpush1.msra.mxu0 0.0
    %8386 = vmatprep.subr.mxu0 0.0
    %8387 = vmatpush1.msra.mxu0 0.0
    %8388 = vmatprep.subr.mxu0 0.0
    %8389 = vmatpush1.msra.mxu0 0.0
    %8390 = vmatprep.subr.mxu0 0.0
    %8391 = vmatpush1.msra.mxu0 0.0
    %8392 = vmatprep.subr.mxu0 0.0
    %8393 = vmatpush1.msra.mxu0 0.0
    %8394 = vmatprep.subr.mxu0 0.0
    %8395 = vmatpush1.msra.mxu0 0.0
    %8396 = vmatprep.subr.mxu0 0.0
    %8397 = vmatpush1.msra.mxu0 0.0
    %8398 = vmatprep.subr.mxu0 0.0
    %8399 = vmatpush1.msra.mxu0 0.0
    %8400 = vmatprep.subr.mxu0 0.0
    %8401 = vmatpush1.msra.mxu0 0.0
    %8402 = vmatprep.subr.mxu0 0.0
    %8403 = vmatpush1.msra.mxu0 0.0
    %8404 = vmatprep.subr.mxu0 0.0
    %8405 = vmatpush1.msra.mxu0 0.0
    %8406 = vmatprep.subr.mxu0 0.0
    %8407 = vmatpush1.msra.mxu0 0.0
    %8408 = vmatprep.subr.mxu0 0.0
    %8409 = vmatpush1.msra.mxu0 0.0
    %8410 = vmatprep.subr.mxu0 0.0
    %8411 = vmatpush1.msra.mxu0 0.0
    %8412 = vmatprep.subr.mxu0 0.0
    %8413 = vmatpush1.msra.mxu0 0.0
    %8414 = vmatprep.subr.mxu0 0.0
    %8415 = vmatpush1.msra.mxu0 0.0
    %8416 = vmatprep.subr.mxu0 0.0
    %8417 = vmatpush1.msra.mxu0 0.0
    %8418 = vmatprep.mubr.f32.mxu0 0.0
    %8419 = vmatmul.mubr.f32.gmra.mrb[0].mxu0 %v631
    %v8420 = vpop.f32.mrb[0].mxu0
    %v8421 = vadd.f32 0.0, %v8420
    %v8422 = vpop.f32.mrb[0].mxu0
    %v8423 = vadd.f32 0.0, %v8422
    %8424 = vdwg.mxu0
    %8425 = vmatprep.subr.mxu0 %v8128
    %8426 = vmatpush1.msra.mxu0 %v8127
    %8427 = vmatprep.subr.mxu0 %v8130
    %8428 = vmatpush1.msra.mxu0 %v8129
    %8429 = vmatprep.subr.mxu0 0.0
    %8430 = vmatpush1.msra.mxu0 0.0
    %8431 = vmatprep.subr.mxu0 0.0
    %8432 = vmatpush1.msra.mxu0 0.0
    %8433 = vmatprep.subr.mxu0 0.0
    %8434 = vmatpush1.msra.mxu0 0.0
    %8435 = vmatprep.subr.mxu0 0.0
    %8436 = vmatpush1.msra.mxu0 0.0
    %8437 = vmatprep.subr.mxu0 0.0
    %8438 = vmatpush1.msra.mxu0 0.0
    %8439 = vmatprep.subr.mxu0 0.0
    %8440 = vmatpush1.msra.mxu0 0.0
    %8441 = vmatprep.subr.mxu0 0.0
    %8442 = vmatpush1.msra.mxu0 0.0
    %8443 = vmatprep.subr.mxu0 0.0
    %8444 = vmatpush1.msra.mxu0 0.0
    %8445 = vmatprep.subr.mxu0 0.0
    %8446 = vmatpush1.msra.mxu0 0.0
    %8447 = vmatprep.subr.mxu0 0.0
    %8448 = vmatpush1.msra.mxu0 0.0
    %8449 = vmatprep.subr.mxu0 0.0
    %8450 = vmatpush1.msra.mxu0 0.0
    %8451 = vmatprep.subr.mxu0 0.0
    %8452 = vmatpush1.msra.mxu0 0.0
    %8453 = vmatprep.subr.mxu0 0.0
    %8454 = vmatpush1.msra.mxu0 0.0
    %8455 = vmatprep.subr.mxu0 0.0
    %8456 = vmatpush1.msra.mxu0 0.0
    %8457 = vmatprep.subr.mxu0 0.0
    %8458 = vmatpush1.msra.mxu0 0.0
    %8459 = vmatprep.subr.mxu0 0.0
    %8460 = vmatpush1.msra.mxu0 0.0
    %8461 = vmatprep.subr.mxu0 0.0
    %8462 = vmatpush1.msra.mxu0 0.0
    %8463 = vmatprep.subr.mxu0 0.0
    %8464 = vmatpush1.msra.mxu0 0.0
    %8465 = vmatprep.subr.mxu0 0.0
    %8466 = vmatpush1.msra.mxu0 0.0
    %8467 = vmatprep.subr.mxu0 0.0
    %8468 = vmatpush1.msra.mxu0 0.0
    %8469 = vmatprep.subr.mxu0 0.0
    %8470 = vmatpush1.msra.mxu0 0.0
    %8471 = vmatprep.subr.mxu0 0.0
    %8472 = vmatpush1.msra.mxu0 0.0
    %8473 = vmatprep.subr.mxu0 0.0
    %8474 = vmatpush1.msra.mxu0 0.0
    %8475 = vmatprep.subr.mxu0 0.0
    %8476 = vmatpush1.msra.mxu0 0.0
    %8477 = vmatprep.subr.mxu0 0.0
    %8478 = vmatpush1.msra.mxu0 0.0
    %8479 = vmatprep.subr.mxu0 0.0
    %8480 = vmatpush1.msra.mxu0 0.0
    %8481 = vmatprep.subr.mxu0 0.0
    %8482 = vmatpush1.msra.mxu0 0.0
    %8483 = vmatprep.subr.mxu0 0.0
    %8484 = vmatpush1.msra.mxu0 0.0
    %8485 = vmatprep.subr.mxu0 0.0
    %8486 = vmatpush1.msra.mxu0 0.0
    %8487 = vmatprep.subr.mxu0 0.0
    %8488 = vmatpush1.msra.mxu0 0.0
    %8489 = vmatprep.mubr.f32.mxu0 0.0
    %8490 = vmatmul.mubr.f32.gmra.mrb[0].mxu0 %v705
    %v8491 = vpop.f32.mrb[0].mxu0
    %v8492 = vadd.f32 0.0, %v8491
    %v8493 = vpop.f32.mrb[0].mxu0
    %v8494 = vadd.f32 0.0, %v8493
    %8495 = vdwg.mxu0
    %8496 = vmatprep.subr.mxu0 %v8128
    %8497 = vmatpush1.msra.mxu0 %v8127
    %8498 = vmatprep.subr.mxu0 %v8130
    %8499 = vmatpush1.msra.mxu0 %v8129
    %8500 = vmatprep.subr.mxu0 0.0
    %8501 = vmatpush1.msra.mxu0 0.0
    %8502 = vmatprep.subr.mxu0 0.0
    %8503 = vmatpush1.msra.mxu0 0.0
    %8504 = vmatprep.subr.mxu0 0.0
    %8505 = vmatpush1.msra.mxu0 0.0
    %8506 = vmatprep.subr.mxu0 0.0
    %8507 = vmatpush1.msra.mxu0 0.0
    %8508 = vmatprep.subr.mxu0 0.0
    %8509 = vmatpush1.msra.mxu0 0.0
    %8510 = vmatprep.subr.mxu0 0.0
    %8511 = vmatpush1.msra.mxu0 0.0
    %8512 = vmatprep.subr.mxu0 0.0
    %8513 = vmatpush1.msra.mxu0 0.0
    %8514 = vmatprep.subr.mxu0 0.0
    %8515 = vmatpush1.msra.mxu0 0.0
    %8516 = vmatprep.subr.mxu0 0.0
    %8517 = vmatpush1.msra.mxu0 0.0
    %8518 = vmatprep.subr.mxu0 0.0
    %8519 = vmatpush1.msra.mxu0 0.0
    %8520 = vmatprep.subr.mxu0 0.0
    %8521 = vmatpush1.msra.mxu0 0.0
    %8522 = vmatprep.subr.mxu0 0.0
    %8523 = vmatpush1.msra.mxu0 0.0
    %8524 = vmatprep.subr.mxu0 0.0
    %8525 = vmatpush1.msra.mxu0 0.0
    %8526 = vmatprep.subr.mxu0 0.0
    %8527 = vmatpush1.msra.mxu0 0.0
    %8528 = vmatprep.subr.mxu0 0.0
    %8529 = vmatpush1.msra.mxu0 0.0
    %8530 = vmatprep.subr.mxu0 0.0
    %8531 = vmatpush1.msra.mxu0 0.0
    %8532 = vmatprep.subr.mxu0 0.0
    %8533 = vmatpush1.msra.mxu0 0.0
    %8534 = vmatprep.subr.mxu0 0.0
    %8535 = vmatpush1.msra.mxu0 0.0
    %8536 = vmatprep.subr.mxu0 0.0
    %8537 = vmatpush1.msra.mxu0 0.0
    %8538 = vmatprep.subr.mxu0 0.0
    %8539 = vmatpush1.msra.mxu0 0.0
    %8540 = vmatprep.subr.mxu0 0.0
    %8541 = vmatpush1.msra.mxu0 0.0
    %8542 = vmatprep.subr.mxu0 0.0
    %8543 = vmatpush1.msra.mxu0 0.0
    %8544 = vmatprep.subr.mxu0 0.0
    %8545 = vmatpush1.msra.mxu0 0.0
    %8546 = vmatprep.subr.mxu0 0.0
    %8547 = vmatpush1.msra.mxu0 0.0
    %8548 = vmatprep.subr.mxu0 0.0
    %8549 = vmatpush1.msra.mxu0 0.0
    %8550 = vmatprep.subr.mxu0 0.0
    %8551 = vmatpush1.msra.mxu0 0.0
    %8552 = vmatprep.subr.mxu0 0.0
    %8553 = vmatpush1.msra.mxu0 0.0
    %8554 = vmatprep.subr.mxu0 0.0
    %8555 = vmatpush1.msra.mxu0 0.0
    %8556 = vmatprep.subr.mxu0 0.0
    %8557 = vmatpush1.msra.mxu0 0.0
    %8558 = vmatprep.subr.mxu0 0.0
    %8559 = vmatpush1.msra.mxu0 0.0
    %8560 = vmatprep.mubr.f32.mxu0 0.0
    %8561 = vmatmul.mubr.f32.gmra.mrb[0].mxu0 %v779
    %v8562 = vpop.f32.mrb[0].mxu0
    %v8563 = vadd.f32 0.0, %v8562
    %v8564 = vpop.f32.mrb[0].mxu0
    %v8565 = vadd.f32 0.0, %v8564
    %8566 = vdwg.mxu0
    %8569 = vrot.lane.b32.xlu0 %v8492, 64
    %v8570 = vpop.permute.xlu0 %8569
    %8571 = vrot.lane.b32.xlu0 %v8494, 64
    %v8572 = vpop.permute.xlu0 %8571
    %v8573 = vsel %vm443, %v8570, %v8572
    %v8576 = vsel %vm443, %v8423, %v8570
    %v8577 = vld [vmem:[#allocation21] sm:$0xff]
    %v8578 = vld [vmem:[#allocation21 + $0x8] sm:$0xff]
    %v8579 = vld [vmem:[#allocation21 + $0x10] sm:$0xff]
    %v8580 = vld [vmem:[#allocation21 + $0x18] sm:$0xff]
    %v8581 = vld [vmem:[#allocation21 + $0x20] sm:$0xff]
    %v8582 = vld [vmem:[#allocation21 + $0x28] sm:$0xff]
    %v8583 = vld [vmem:[#allocation21 + $0x30] sm:$0xff]
    %v8584 = vld [vmem:[#allocation21 + $0x38] sm:$0xff]
    %v8585 = vld [vmem:[#allocation21 + $0x40] sm:$0xff]
    %v8586 = vld [vmem:[#allocation21 + $0x48] sm:$0xff]
    %v8587 = vld [vmem:[#allocation21 + $0x50] sm:$0xff]
    %v8588 = vld [vmem:[#allocation21 + $0x58] sm:$0xff]
    %v8589 = vld [vmem:[#allocation21 + $0x60] sm:$0xff]
    %v8590 = vld [vmem:[#allocation21 + $0x68] sm:$0xff]
    %v8591 = vld [vmem:[#allocation21 + $0x70] sm:$0xff]
    %v8592 = vld [vmem:[#allocation21 + $0x78] sm:$0xff]
    %v8593 = vld [vmem:[#allocation21 + $0x80] sm:$0xff]
    %v8594 = vld [vmem:[#allocation21 + $0x88] sm:$0xff]
    %v8595 = vld [vmem:[#allocation21 + $0x90] sm:$0xff]
    %v8596 = vld [vmem:[#allocation21 + $0x98] sm:$0xff]
    %v8597 = vld [vmem:[#allocation21 + $0xa0] sm:$0xff]
    %v8598 = vld [vmem:[#allocation21 + $0xa8] sm:$0xff]
    %v8599 = vld [vmem:[#allocation21 + $0xb0] sm:$0xff]
    %v8600 = vld [vmem:[#allocation21 + $0xb8] sm:$0xff]
    %v8601 = vld [vmem:[#allocation21 + $0xc0] sm:$0xff]
    %v8602 = vld [vmem:[#allocation21 + $0xc8] sm:$0xff]
    %v8603 = vld [vmem:[#allocation21 + $0xd0] sm:$0xff]
    %v8604 = vld [vmem:[#allocation21 + $0xd8] sm:$0xff]
    %v8605 = vld [vmem:[#allocation21 + $0xe0] sm:$0xff]
    %v8606 = vld [vmem:[#allocation21 + $0xe8] sm:$0xff]
    %v8607 = vld [vmem:[#allocation21 + $0xf0] sm:$0xff]
    %v8608 = vld [vmem:[#allocation21 + $0xf8] sm:$0xff]
    %v8609 = vld [vmem:[#allocation21 + $0x100] sm:$0xff]
    %v8610 = vld [vmem:[#allocation21 + $0x108] sm:$0xff]
    %v8611 = vld [vmem:[#allocation21 + $0x110] sm:$0xff]
    %v8612 = vld [vmem:[#allocation21 + $0x118] sm:$0xff]
    %v8613 = vld [vmem:[#allocation21 + $0x120] sm:$0xff]
    %v8614 = vld [vmem:[#allocation21 + $0x128] sm:$0xff]
    %v8615 = vld [vmem:[#allocation21 + $0x130] sm:$0xff]
    %v8616 = vld [vmem:[#allocation21 + $0x138] sm:$0xff]
    %v8617 = vld [vmem:[#allocation21 + $0x140] sm:$0xff]
    %v8618 = vld [vmem:[#allocation21 + $0x148] sm:$0xff]
    %v8619 = vld [vmem:[#allocation21 + $0x150] sm:$0xff]
    %v8620 = vld [vmem:[#allocation21 + $0x158] sm:$0xff]
    %v8621 = vld [vmem:[#allocation21 + $0x160] sm:$0xff]
    %v8622 = vld [vmem:[#allocation21 + $0x168] sm:$0xff]
    %v8623 = vld [vmem:[#allocation21 + $0x170] sm:$0xff]
    %v8624 = vld [vmem:[#allocation21 + $0x178] sm:$0xff]
    %v8625 = vld [vmem:[#allocation21 + $0x180] sm:$0xff]
    %v8626 = vld [vmem:[#allocation21 + $0x188] sm:$0xff]
    %v8627 = vld [vmem:[#allocation21 + $0x190] sm:$0xff]
    %v8628 = vld [vmem:[#allocation21 + $0x198] sm:$0xff]
    %v8629 = vld [vmem:[#allocation21 + $0x1a0] sm:$0xff]
    %v8630 = vld [vmem:[#allocation21 + $0x1a8] sm:$0xff]
    %v8631 = vld [vmem:[#allocation21 + $0x1b0] sm:$0xff]
    %v8632 = vld [vmem:[#allocation21 + $0x1b8] sm:$0xff]
    %v8633 = vld [vmem:[#allocation21 + $0x1c0] sm:$0xff]
    %v8634 = vld [vmem:[#allocation21 + $0x1c8] sm:$0xff]
    %v8635 = vld [vmem:[#allocation21 + $0x1d0] sm:$0xff]
    %v8636 = vld [vmem:[#allocation21 + $0x1d8] sm:$0xff]
    %v8637 = vld [vmem:[#allocation21 + $0x1e0] sm:$0xff]
    %v8638 = vld [vmem:[#allocation21 + $0x1e8] sm:$0xff]
    %v8639 = vld [vmem:[#allocation21 + $0x1f0] sm:$0xff]
    %v8640 = vld [vmem:[#allocation21 + $0x1f8] sm:$0xff]
    %v8641 = vld [vmem:[#allocation21 + $0x200] sm:$0xff]
    %v8642 = vld [vmem:[#allocation21 + $0x208] sm:$0xff]
    %v8643 = vld [vmem:[#allocation21 + $0x210] sm:$0xff]
    %v8644 = vld [vmem:[#allocation21 + $0x218] sm:$0xff]
    %v8645 = vld [vmem:[#allocation21 + $0x220] sm:$0xff]
    %v8646 = vld [vmem:[#allocation21 + $0x228] sm:$0xff]
    %v8647 = vld [vmem:[#allocation21 + $0x230] sm:$0xff]
    %v8648 = vld [vmem:[#allocation21 + $0x238] sm:$0xff]
    %v8649 = vld [vmem:[#allocation21 + $0x240] sm:$0xff]
    %v8650 = vld [vmem:[#allocation21 + $0x248] sm:$0xff]
    %v8651 = vld [vmem:[#allocation21 + $0x250] sm:$0xff]
    %v8652 = vld [vmem:[#allocation21 + $0x258] sm:$0xff]
    %v8653 = vld [vmem:[#allocation21 + $0x260] sm:$0xff]
    %v8654 = vld [vmem:[#allocation21 + $0x268] sm:$0xff]
    %v8655 = vld [vmem:[#allocation21 + $0x270] sm:$0xff]
    %v8656 = vld [vmem:[#allocation21 + $0x278] sm:$0xff]
    %v8657 = vld [vmem:[#allocation21 + $0x280] sm:$0xff]
    %v8658 = vld [vmem:[#allocation21 + $0x288] sm:$0xff]
    %v8659 = vld [vmem:[#allocation21 + $0x290] sm:$0xff]
    %v8660 = vld [vmem:[#allocation21 + $0x298] sm:$0xff]
    %v8661 = vld [vmem:[#allocation21 + $0x2a0] sm:$0xff]
    %v8662 = vld [vmem:[#allocation21 + $0x2a8] sm:$0xff]
    %v8663 = vld [vmem:[#allocation21 + $0x2b0] sm:$0xff]
    %v8664 = vld [vmem:[#allocation21 + $0x2b8] sm:$0xff]
    %v8665 = vld [vmem:[#allocation21 + $0x2c0] sm:$0xff]
    %v8666 = vld [vmem:[#allocation21 + $0x2c8] sm:$0xff]
    %v8667 = vld [vmem:[#allocation21 + $0x2d0] sm:$0xff]
    %v8668 = vld [vmem:[#allocation21 + $0x2d8] sm:$0xff]
    %v8669 = vld [vmem:[#allocation21 + $0x2e0] sm:$0xff]
    %v8670 = vld [vmem:[#allocation21 + $0x2e8] sm:$0xff]
    %v8671 = vld [vmem:[#allocation21 + $0x2f0] sm:$0xff]
    %v8672 = vld [vmem:[#allocation21 + $0x2f8] sm:$0xff]
    %v8673 = vld [vmem:[#allocation21 + $0x300] sm:$0xff]
    %v8674 = vld [vmem:[#allocation21 + $0x308] sm:$0xff]
    %v8675 = vld [vmem:[#allocation21 + $0x310] sm:$0xff]
    %v8676 = vld [vmem:[#allocation21 + $0x318] sm:$0xff]
    %v8677 = vld [vmem:[#allocation21 + $0x320] sm:$0xff]
    %v8678 = vld [vmem:[#allocation21 + $0x328] sm:$0xff]
    %v8679 = vld [vmem:[#allocation21 + $0x330] sm:$0xff]
    %v8680 = vld [vmem:[#allocation21 + $0x338] sm:$0xff]
    %v8681 = vld [vmem:[#allocation21 + $0x340] sm:$0xff]
    %v8682 = vld [vmem:[#allocation21 + $0x348] sm:$0xff]
    %v8683 = vld [vmem:[#allocation21 + $0x350] sm:$0xff]
    %v8684 = vld [vmem:[#allocation21 + $0x358] sm:$0xff]
    %v8685 = vld [vmem:[#allocation21 + $0x360] sm:$0xff]
    %v8686 = vld [vmem:[#allocation21 + $0x368] sm:$0xff]
    %v8687 = vld [vmem:[#allocation21 + $0x370] sm:$0xff]
    %v8688 = vld [vmem:[#allocation21 + $0x378] sm:$0xff]
    %v8689 = vld [vmem:[#allocation21 + $0x380] sm:$0xff]
    %v8690 = vld [vmem:[#allocation21 + $0x388] sm:$0xff]
    %v8691 = vld [vmem:[#allocation21 + $0x390] sm:$0xff]
    %v8692 = vld [vmem:[#allocation21 + $0x398] sm:$0xff]
    %v8693 = vld [vmem:[#allocation21 + $0x3a0] sm:$0xff]
    %v8694 = vld [vmem:[#allocation21 + $0x3a8] sm:$0xff]
    %v8695 = vld [vmem:[#allocation21 + $0x3b0] sm:$0xff]
    %v8696 = vld [vmem:[#allocation21 + $0x3b8] sm:$0xff]
    %v8697 = vld [vmem:[#allocation21 + $0x3c0] sm:$0xff]
    %v8698 = vld [vmem:[#allocation21 + $0x3c8] sm:$0xff]
    %v8699 = vld [vmem:[#allocation21 + $0x3d0] sm:$0xff]
    %v8700 = vld [vmem:[#allocation21 + $0x3d8] sm:$0xff]
    %v8701 = vld [vmem:[#allocation21 + $0x3e0] sm:$0xff]
    %v8702 = vld [vmem:[#allocation21 + $0x3e8] sm:$0xff]
    %v8703 = vld [vmem:[#allocation21 + $0x3f0] sm:$0xff]
    %v8704 = vld [vmem:[#allocation21 + $0x3f8] sm:$0xff]
    %v8705 = vld [vmem:[#allocation21 + $0x400] sm:$0xff]
    %v8706 = vld [vmem:[#allocation21 + $0x408] sm:$0xff]
    %v8707 = vld [vmem:[#allocation21 + $0x410] sm:$0xff]
    %v8708 = vld [vmem:[#allocation21 + $0x418] sm:$0xff]
    %v8709 = vld [vmem:[#allocation21 + $0x420] sm:$0xff]
    %v8710 = vld [vmem:[#allocation21 + $0x428] sm:$0xff]
    %v8711 = vld [vmem:[#allocation21 + $0x430] sm:$0xff]
    %v8712 = vld [vmem:[#allocation21 + $0x438] sm:$0xff]
    %v8713 = vld [vmem:[#allocation21 + $0x440] sm:$0xff]
    %v8714 = vld [vmem:[#allocation21 + $0x448] sm:$0xff]
    %v8715 = vld [vmem:[#allocation21 + $0x450] sm:$0xff]
    %v8716 = vld [vmem:[#allocation21 + $0x458] sm:$0xff]
    %v8717 = vld [vmem:[#allocation21 + $0x460] sm:$0xff]
    %v8718 = vld [vmem:[#allocation21 + $0x468] sm:$0xff]
    %v8719 = vld [vmem:[#allocation21 + $0x470] sm:$0xff]
    %v8720 = vld [vmem:[#allocation21 + $0x478] sm:$0xff]
    %v8722 = vsel %vm443, %v8342, 0
    %8724 = vmatprep.subr.mxu0 %v8578
    %8725 = vmatpush1.msra.mxu0 %v8577
    %8726 = vmatprep.subr.mxu0 %v8580
    %8727 = vmatpush1.msra.mxu0 %v8579
    %8728 = vmatprep.subr.mxu0 %v8582
    %8729 = vmatpush1.msra.mxu0 %v8581
    %8730 = vmatprep.subr.mxu0 %v8584
    %8731 = vmatpush1.msra.mxu0 %v8583
    %8732 = vmatprep.subr.mxu0 %v8586
    %8733 = vmatpush1.msra.mxu0 %v8585
    %8734 = vmatprep.subr.mxu0 %v8588
    %8735 = vmatpush1.msra.mxu0 %v8587
    %8736 = vmatprep.subr.mxu0 %v8590
    %8737 = vmatpush1.msra.mxu0 %v8589
    %8738 = vmatprep.subr.mxu0 %v8592
    %8739 = vmatpush1.msra.mxu0 %v8591
    %8740 = vmatprep.subr.mxu0 %v8594
    %8741 = vmatpush1.msra.mxu0 %v8593
    %8742 = vmatprep.subr.mxu0 %v8596
    %8743 = vmatpush1.msra.mxu0 %v8595
    %8744 = vmatprep.subr.mxu0 %v8598
    %8745 = vmatpush1.msra.mxu0 %v8597
    %8746 = vmatprep.subr.mxu0 %v8600
    %8747 = vmatpush1.msra.mxu0 %v8599
    %8748 = vmatprep.subr.mxu0 %v8602
    %8749 = vmatpush1.msra.mxu0 %v8601
    %8750 = vmatprep.subr.mxu0 %v8604
    %8751 = vmatpush1.msra.mxu0 %v8603
    %8752 = vmatprep.subr.mxu0 %v8606
    %8753 = vmatpush1.msra.mxu0 %v8605
    %8754 = vmatprep.subr.mxu0 %v8608
    %8755 = vmatpush1.msra.mxu0 %v8607
    %8756 = vmatprep.subr.mxu0 %v8610
    %8757 = vmatpush1.msra.mxu0 %v8609
    %8758 = vmatprep.subr.mxu0 %v8612
    %8759 = vmatpush1.msra.mxu0 %v8611
    %8760 = vmatprep.subr.mxu0 %v8614
    %8761 = vmatpush1.msra.mxu0 %v8613
    %8762 = vmatprep.subr.mxu0 %v8616
    %8763 = vmatpush1.msra.mxu0 %v8615
    %8764 = vmatprep.subr.mxu0 %v8618
    %8765 = vmatpush1.msra.mxu0 %v8617
    %8766 = vmatprep.subr.mxu0 %v8620
    %8767 = vmatpush1.msra.mxu0 %v8619
    %8768 = vmatprep.subr.mxu0 %v8622
    %8769 = vmatpush1.msra.mxu0 %v8621
    %8770 = vmatprep.subr.mxu0 %v8624
    %8771 = vmatpush1.msra.mxu0 %v8623
    %8772 = vmatprep.subr.mxu0 %v8626
    %8773 = vmatpush1.msra.mxu0 %v8625
    %8774 = vmatprep.subr.mxu0 %v8628
    %8775 = vmatpush1.msra.mxu0 %v8627
    %8776 = vmatprep.subr.mxu0 %v8630
    %8777 = vmatpush1.msra.mxu0 %v8629
    %8778 = vmatprep.subr.mxu0 %v8632
    %8779 = vmatpush1.msra.mxu0 %v8631
    %8780 = vmatprep.subr.mxu0 %v8634
    %8781 = vmatpush1.msra.mxu0 %v8633
    %8782 = vmatprep.subr.mxu0 %v8636
    %8783 = vmatpush1.msra.mxu0 %v8635
    %8784 = vmatprep.subr.mxu0 %v8638
    %8785 = vmatpush1.msra.mxu0 %v8637
    %8786 = vmatprep.subr.mxu0 %v8640
    %8787 = vmatpush1.msra.mxu0 %v8639
    %8788 = vmatprep.mubr.f32.mxu0 %v8353
    %8789 = vmatmul.mubr.f32.gmra.mrb[0].mxu0 %v8198
    %v8790 = vpop.f32.mrb[0].mxu0
    %v8791 = vadd.f32 0.0, %v8790
    %v8792 = vpop.f32.mrb[0].mxu0
    %v8793 = vadd.f32 0.0, %v8792
    %8794 = vdwg.mxu0
    %8795 = vmatprep.subr.mxu0 %v8642
    %8796 = vmatpush1.msra.mxu0 %v8641
    %8797 = vmatprep.subr.mxu0 %v8644
    %8798 = vmatpush1.msra.mxu0 %v8643
    %8799 = vmatprep.subr.mxu0 %v8646
    %8800 = vmatpush1.msra.mxu0 %v8645
    %8801 = vmatprep.subr.mxu0 %v8648
    %8802 = vmatpush1.msra.mxu0 %v8647
    %8803 = vmatprep.subr.mxu0 %v8650
    %8804 = vmatpush1.msra.mxu0 %v8649
    %8805 = vmatprep.subr.mxu0 %v8652
    %8806 = vmatpush1.msra.mxu0 %v8651
    %8807 = vmatprep.subr.mxu0 %v8654
    %8808 = vmatpush1.msra.mxu0 %v8653
    %8809 = vmatprep.subr.mxu0 %v8656
    %8810 = vmatpush1.msra.mxu0 %v8655
    %8811 = vmatprep.subr.mxu0 %v8658
    %8812 = vmatpush1.msra.mxu0 %v8657
    %8813 = vmatprep.subr.mxu0 %v8660
    %8814 = vmatpush1.msra.mxu0 %v8659
    %8815 = vmatprep.subr.mxu0 %v8662
    %8816 = vmatpush1.msra.mxu0 %v8661
    %8817 = vmatprep.subr.mxu0 %v8664
    %8818 = vmatpush1.msra.mxu0 %v8663
    %8819 = vmatprep.subr.mxu0 %v8666
    %8820 = vmatpush1.msra.mxu0 %v8665
    %8821 = vmatprep.subr.mxu0 %v8668
    %8822 = vmatpush1.msra.mxu0 %v8667
    %8823 = vmatprep.subr.mxu0 %v8670
    %8824 = vmatpush1.msra.mxu0 %v8669
    %8825 = vmatprep.subr.mxu0 %v8672
    %8826 = vmatpush1.msra.mxu0 %v8671
    %8827 = vmatprep.subr.mxu0 %v8674
    %8828 = vmatpush1.msra.mxu0 %v8673
    %8829 = vmatprep.subr.mxu0 %v8676
    %8830 = vmatpush1.msra.mxu0 %v8675
    %8831 = vmatprep.subr.mxu0 %v8678
    %8832 = vmatpush1.msra.mxu0 %v8677
    %8833 = vmatprep.subr.mxu0 %v8680
    %8834 = vmatpush1.msra.mxu0 %v8679
    %8835 = vmatprep.subr.mxu0 %v8682
    %8836 = vmatpush1.msra.mxu0 %v8681
    %8837 = vmatprep.subr.mxu0 %v8684
    %8838 = vmatpush1.msra.mxu0 %v8683
    %8839 = vmatprep.subr.mxu0 %v8686
    %8840 = vmatpush1.msra.mxu0 %v8685
    %8841 = vmatprep.subr.mxu0 %v8688
    %8842 = vmatpush1.msra.mxu0 %v8687
    %8843 = vmatprep.subr.mxu0 %v8690
    %8844 = vmatpush1.msra.mxu0 %v8689
    %8845 = vmatprep.subr.mxu0 %v8692
    %8846 = vmatpush1.msra.mxu0 %v8691
    %8847 = vmatprep.subr.mxu0 %v8694
    %8848 = vmatpush1.msra.mxu0 %v8693
    %8849 = vmatprep.subr.mxu0 %v8696
    %8850 = vmatpush1.msra.mxu0 %v8695
    %8851 = vmatprep.subr.mxu0 %v8698
    %8852 = vmatpush1.msra.mxu0 %v8697
    %8853 = vmatprep.subr.mxu0 %v8700
    %8854 = vmatpush1.msra.mxu0 %v8699
    %8855 = vmatprep.subr.mxu0 %v8702
    %8856 = vmatpush1.msra.mxu0 %v8701
    %8857 = vmatprep.subr.mxu0 %v8704
    %8858 = vmatpush1.msra.mxu0 %v8703
    %8859 = vmatprep.mubr.f32.mxu0 %v8340
    %8860 = vmatmul.mubr.f32.gmra.mrb[0].mxu0 %v8350
    %v8861 = vpop.f32.mrb[0].mxu0
    %v8862 = vadd.f32 %v8791, %v8861
    %v8863 = vpop.f32.mrb[0].mxu0
    %v8864 = vadd.f32 %v8793, %v8863
    %8865 = vdwg.mxu0
    %8866 = vmatprep.subr.mxu0 %v8706
    %8867 = vmatpush1.msra.mxu0 %v8705
    %8868 = vmatprep.subr.mxu0 %v8708
    %8869 = vmatpush1.msra.mxu0 %v8707
    %8870 = vmatprep.subr.mxu0 %v8710
    %8871 = vmatpush1.msra.mxu0 %v8709
    %8872 = vmatprep.subr.mxu0 %v8712
    %8873 = vmatpush1.msra.mxu0 %v8711
    %8874 = vmatprep.subr.mxu0 %v8714
    %8875 = vmatpush1.msra.mxu0 %v8713
    %8876 = vmatprep.subr.mxu0 %v8716
    %8877 = vmatpush1.msra.mxu0 %v8715
    %8878 = vmatprep.subr.mxu0 %v8718
    %8879 = vmatpush1.msra.mxu0 %v8717
    %8880 = vmatprep.subr.mxu0 %v8720
    %8881 = vmatpush1.msra.mxu0 %v8719
    %8882 = vmatprep.subr.mxu0 0.0
    %8883 = vmatpush1.msra.mxu0 0.0
    %8884 = vmatprep.subr.mxu0 0.0
    %8885 = vmatpush1.msra.mxu0 0.0
    %8886 = vmatprep.subr.mxu0 0.0
    %8887 = vmatpush1.msra.mxu0 0.0
    %8888 = vmatprep.subr.mxu0 0.0
    %8889 = vmatpush1.msra.mxu0 0.0
    %8890 = vmatprep.subr.mxu0 0.0
    %8891 = vmatpush1.msra.mxu0 0.0
    %8892 = vmatprep.subr.mxu0 0.0
    %8893 = vmatpush1.msra.mxu0 0.0
    %8894 = vmatprep.subr.mxu0 0.0
    %8895 = vmatpush1.msra.mxu0 0.0
    %8896 = vmatprep.subr.mxu0 0.0
    %8897 = vmatpush1.msra.mxu0 0.0
    %8898 = vmatprep.subr.mxu0 0.0
    %8899 = vmatpush1.msra.mxu0 0.0
    %8900 = vmatprep.subr.mxu0 0.0
    %8901 = vmatpush1.msra.mxu0 0.0
    %8902 = vmatprep.subr.mxu0 0.0
    %8903 = vmatpush1.msra.mxu0 0.0
    %8904 = vmatprep.subr.mxu0 0.0
    %8905 = vmatpush1.msra.mxu0 0.0
    %8906 = vmatprep.subr.mxu0 0.0
    %8907 = vmatpush1.msra.mxu0 0.0
    %8908 = vmatprep.subr.mxu0 0.0
    %8909 = vmatpush1.msra.mxu0 0.0
    %8910 = vmatprep.subr.mxu0 0.0
    %8911 = vmatpush1.msra.mxu0 0.0
    %8912 = vmatprep.subr.mxu0 0.0
    %8913 = vmatpush1.msra.mxu0 0.0
    %8914 = vmatprep.subr.mxu0 0.0
    %8915 = vmatpush1.msra.mxu0 0.0
    %8916 = vmatprep.subr.mxu0 0.0
    %8917 = vmatpush1.msra.mxu0 0.0
    %8918 = vmatprep.subr.mxu0 0.0
    %8919 = vmatpush1.msra.mxu0 0.0
    %8920 = vmatprep.subr.mxu0 0.0
    %8921 = vmatpush1.msra.mxu0 0.0
    %8922 = vmatprep.subr.mxu0 0.0
    %8923 = vmatpush1.msra.mxu0 0.0
    %8924 = vmatprep.subr.mxu0 0.0
    %8925 = vmatpush1.msra.mxu0 0.0
    %8926 = vmatprep.subr.mxu0 0.0
    %8927 = vmatpush1.msra.mxu0 0.0
    %8928 = vmatprep.subr.mxu0 0.0
    %8929 = vmatpush1.msra.mxu0 0.0
    %8930 = vmatprep.mubr.f32.mxu0 0.0
    %8931 = vmatmul.mubr.f32.gmra.mrb[0].mxu0 %v8722
    %v8932 = vpop.f32.mrb[0].mxu0
    %v8933 = vadd.f32 %v8862, %v8932
    %v8934 = vpop.f32.mrb[0].mxu0
    %v8935 = vadd.f32 %v8864, %v8934
    %8936 = vdwg.mxu0
    %v8938 = vsel %vm443, %v8565, 0
    %8940 = vmatprep.subr.mxu0 %v8578
    %8941 = vmatpush1.msra.mxu0 %v8577
    %8942 = vmatprep.subr.mxu0 %v8580
    %8943 = vmatpush1.msra.mxu0 %v8579
    %8944 = vmatprep.subr.mxu0 %v8582
    %8945 = vmatpush1.msra.mxu0 %v8581
    %8946 = vmatprep.subr.mxu0 %v8584
    %8947 = vmatpush1.msra.mxu0 %v8583
    %8948 = vmatprep.subr.mxu0 %v8586
    %8949 = vmatpush1.msra.mxu0 %v8585
    %8950 = vmatprep.subr.mxu0 %v8588
    %8951 = vmatpush1.msra.mxu0 %v8587
    %8952 = vmatprep.subr.mxu0 %v8590
    %8953 = vmatpush1.msra.mxu0 %v8589
    %8954 = vmatprep.subr.mxu0 %v8592
    %8955 = vmatpush1.msra.mxu0 %v8591
    %8956 = vmatprep.subr.mxu0 %v8594
    %8957 = vmatpush1.msra.mxu0 %v8593
    %8958 = vmatprep.subr.mxu0 %v8596
    %8959 = vmatpush1.msra.mxu0 %v8595
    %8960 = vmatprep.subr.mxu0 %v8598
    %8961 = vmatpush1.msra.mxu0 %v8597
    %8962 = vmatprep.subr.mxu0 %v8600
    %8963 = vmatpush1.msra.mxu0 %v8599
    %8964 = vmatprep.subr.mxu0 %v8602
    %8965 = vmatpush1.msra.mxu0 %v8601
    %8966 = vmatprep.subr.mxu0 %v8604
    %8967 = vmatpush1.msra.mxu0 %v8603
    %8968 = vmatprep.subr.mxu0 %v8606
    %8969 = vmatpush1.msra.mxu0 %v8605
    %8970 = vmatprep.subr.mxu0 %v8608
    %8971 = vmatpush1.msra.mxu0 %v8607
    %8972 = vmatprep.subr.mxu0 %v8610
    %8973 = vmatpush1.msra.mxu0 %v8609
    %8974 = vmatprep.subr.mxu0 %v8612
    %8975 = vmatpush1.msra.mxu0 %v8611
    %8976 = vmatprep.subr.mxu0 %v8614
    %8977 = vmatpush1.msra.mxu0 %v8613
    %8978 = vmatprep.subr.mxu0 %v8616
    %8979 = vmatpush1.msra.mxu0 %v8615
    %8980 = vmatprep.subr.mxu0 %v8618
    %8981 = vmatpush1.msra.mxu0 %v8617
    %8982 = vmatprep.subr.mxu0 %v8620
    %8983 = vmatpush1.msra.mxu0 %v8619
    %8984 = vmatprep.subr.mxu0 %v8622
    %8985 = vmatpush1.msra.mxu0 %v8621
    %8986 = vmatprep.subr.mxu0 %v8624
    %8987 = vmatpush1.msra.mxu0 %v8623
    %8988 = vmatprep.subr.mxu0 %v8626
    %8989 = vmatpush1.msra.mxu0 %v8625
    %8990 = vmatprep.subr.mxu0 %v8628
    %8991 = vmatpush1.msra.mxu0 %v8627
    %8992 = vmatprep.subr.mxu0 %v8630
    %8993 = vmatpush1.msra.mxu0 %v8629
    %8994 = vmatprep.subr.mxu0 %v8632
    %8995 = vmatpush1.msra.mxu0 %v8631
    %8996 = vmatprep.subr.mxu0 %v8634
    %8997 = vmatpush1.msra.mxu0 %v8633
    %8998 = vmatprep.subr.mxu0 %v8636
    %8999 = vmatpush1.msra.mxu0 %v8635
    %9000 = vmatprep.subr.mxu0 %v8638
    %9001 = vmatpush1.msra.mxu0 %v8637
    %9002 = vmatprep.subr.mxu0 %v8640
    %9003 = vmatpush1.msra.mxu0 %v8639
    %9004 = vmatprep.mubr.f32.mxu0 %v8576
    %9005 = vmatmul.mubr.f32.gmra.mrb[0].mxu0 %v8421
    %v9006 = vpop.f32.mrb[0].mxu0
    %v9007 = vadd.f32 0.0, %v9006
    %v9008 = vpop.f32.mrb[0].mxu0
    %v9009 = vadd.f32 0.0, %v9008
    %9010 = vdwg.mxu0
    %9011 = vmatprep.subr.mxu0 %v8642
    %9012 = vmatpush1.msra.mxu0 %v8641
    %9013 = vmatprep.subr.mxu0 %v8644
    %9014 = vmatpush1.msra.mxu0 %v8643
    %9015 = vmatprep.subr.mxu0 %v8646
    %9016 = vmatpush1.msra.mxu0 %v8645
    %9017 = vmatprep.subr.mxu0 %v8648
    %9018 = vmatpush1.msra.mxu0 %v8647
    %9019 = vmatprep.subr.mxu0 %v8650
    %9020 = vmatpush1.msra.mxu0 %v8649
    %9021 = vmatprep.subr.mxu0 %v8652
    %9022 = vmatpush1.msra.mxu0 %v8651
    %9023 = vmatprep.subr.mxu0 %v8654
    %9024 = vmatpush1.msra.mxu0 %v8653
    %9025 = vmatprep.subr.mxu0 %v8656
    %9026 = vmatpush1.msra.mxu0 %v8655
    %9027 = vmatprep.subr.mxu0 %v8658
    %9028 = vmatpush1.msra.mxu0 %v8657
    %9029 = vmatprep.subr.mxu0 %v8660
    %9030 = vmatpush1.msra.mxu0 %v8659
    %9031 = vmatprep.subr.mxu0 %v8662
    %9032 = vmatpush1.msra.mxu0 %v8661
    %9033 = vmatprep.subr.mxu0 %v8664
    %9034 = vmatpush1.msra.mxu0 %v8663
    %9035 = vmatprep.subr.mxu0 %v8666
    %9036 = vmatpush1.msra.mxu0 %v8665
    %9037 = vmatprep.subr.mxu0 %v8668
    %9038 = vmatpush1.msra.mxu0 %v8667
    %9039 = vmatprep.subr.mxu0 %v8670
    %9040 = vmatpush1.msra.mxu0 %v8669
    %9041 = vmatprep.subr.mxu0 %v8672
    %9042 = vmatpush1.msra.mxu0 %v8671
    %9043 = vmatprep.subr.mxu0 %v8674
    %9044 = vmatpush1.msra.mxu0 %v8673
    %9045 = vmatprep.subr.mxu0 %v8676
    %9046 = vmatpush1.msra.mxu0 %v8675
    %9047 = vmatprep.subr.mxu0 %v8678
    %9048 = vmatpush1.msra.mxu0 %v8677
    %9049 = vmatprep.subr.mxu0 %v8680
    %9050 = vmatpush1.msra.mxu0 %v8679
    %9051 = vmatprep.subr.mxu0 %v8682
    %9052 = vmatpush1.msra.mxu0 %v8681
    %9053 = vmatprep.subr.mxu0 %v8684
    %9054 = vmatpush1.msra.mxu0 %v8683
    %9055 = vmatprep.subr.mxu0 %v8686
    %9056 = vmatpush1.msra.mxu0 %v8685
    %9057 = vmatprep.subr.mxu0 %v8688
    %9058 = vmatpush1.msra.mxu0 %v8687
    %9059 = vmatprep.subr.mxu0 %v8690
    %9060 = vmatpush1.msra.mxu0 %v8689
    %9061 = vmatprep.subr.mxu0 %v8692
    %9062 = vmatpush1.msra.mxu0 %v8691
    %9063 = vmatprep.subr.mxu0 %v8694
    %9064 = vmatpush1.msra.mxu0 %v8693
    %9065 = vmatprep.subr.mxu0 %v8696
    %9066 = vmatpush1.msra.mxu0 %v8695
    %9067 = vmatprep.subr.mxu0 %v8698
    %9068 = vmatpush1.msra.mxu0 %v8697
    %9069 = vmatprep.subr.mxu0 %v8700
    %9070 = vmatpush1.msra.mxu0 %v8699
    %9071 = vmatprep.subr.mxu0 %v8702
    %9072 = vmatpush1.msra.mxu0 %v8701
    %9073 = vmatprep.subr.mxu0 %v8704
    %9074 = vmatpush1.msra.mxu0 %v8703
    %9075 = vmatprep.mubr.f32.mxu0 %v8563
    %9076 = vmatmul.mubr.f32.gmra.mrb[0].mxu0 %v8573
    %v9077 = vpop.f32.mrb[0].mxu0
    %v9078 = vadd.f32 %v9007, %v9077
    %v9079 = vpop.f32.mrb[0].mxu0
    %v9080 = vadd.f32 %v9009, %v9079
    %9081 = vdwg.mxu0
    %9082 = vmatprep.subr.mxu0 %v8706
    %9083 = vmatpush1.msra.mxu0 %v8705
    %9084 = vmatprep.subr.mxu0 %v8708
    %9085 = vmatpush1.msra.mxu0 %v8707
    %9086 = vmatprep.subr.mxu0 %v8710
    %9087 = vmatpush1.msra.mxu0 %v8709
    %9088 = vmatprep.subr.mxu0 %v8712
    %9089 = vmatpush1.msra.mxu0 %v8711
    %9090 = vmatprep.subr.mxu0 %v8714
    %9091 = vmatpush1.msra.mxu0 %v8713
    %9092 = vmatprep.subr.mxu0 %v8716
    %9093 = vmatpush1.msra.mxu0 %v8715
    %9094 = vmatprep.subr.mxu0 %v8718
    %9095 = vmatpush1.msra.mxu0 %v8717
    %9096 = vmatprep.subr.mxu0 %v8720
    %9097 = vmatpush1.msra.mxu0 %v8719
    %9098 = vmatprep.subr.mxu0 0.0
    %9099 = vmatpush1.msra.mxu0 0.0
    %9100 = vmatprep.subr.mxu0 0.0
    %9101 = vmatpush1.msra.mxu0 0.0
    %9102 = vmatprep.subr.mxu0 0.0
    %9103 = vmatpush1.msra.mxu0 0.0
    %9104 = vmatprep.subr.mxu0 0.0
    %9105 = vmatpush1.msra.mxu0 0.0
    %9106 = vmatprep.subr.mxu0 0.0
    %9107 = vmatpush1.msra.mxu0 0.0
    %9108 = vmatprep.subr.mxu0 0.0
    %9109 = vmatpush1.msra.mxu0 0.0
    %9110 = vmatprep.subr.mxu0 0.0
    %9111 = vmatpush1.msra.mxu0 0.0
    %9112 = vmatprep.subr.mxu0 0.0
    %9113 = vmatpush1.msra.mxu0 0.0
    %9114 = vmatprep.subr.mxu0 0.0
    %9115 = vmatpush1.msra.mxu0 0.0
    %9116 = vmatprep.subr.mxu0 0.0
    %9117 = vmatpush1.msra.mxu0 0.0
    %9118 = vmatprep.subr.mxu0 0.0
    %9119 = vmatpush1.msra.mxu0 0.0
    %9120 = vmatprep.subr.mxu0 0.0
    %9121 = vmatpush1.msra.mxu0 0.0
    %9122 = vmatprep.subr.mxu0 0.0
    %9123 = vmatpush1.msra.mxu0 0.0
    %9124 = vmatprep.subr.mxu0 0.0
    %9125 = vmatpush1.msra.mxu0 0.0
    %9126 = vmatprep.subr.mxu0 0.0
    %9127 = vmatpush1.msra.mxu0 0.0
    %9128 = vmatprep.subr.mxu0 0.0
    %9129 = vmatpush1.msra.mxu0 0.0
    %9130 = vmatprep.subr.mxu0 0.0
    %9131 = vmatpush1.msra.mxu0 0.0
    %9132 = vmatprep.subr.mxu0 0.0
    %9133 = vmatpush1.msra.mxu0 0.0
    %9134 = vmatprep.subr.mxu0 0.0
    %9135 = vmatpush1.msra.mxu0 0.0
    %9136 = vmatprep.subr.mxu0 0.0
    %9137 = vmatpush1.msra.mxu0 0.0
    %9138 = vmatprep.subr.mxu0 0.0
    %9139 = vmatpush1.msra.mxu0 0.0
    %9140 = vmatprep.subr.mxu0 0.0
    %9141 = vmatpush1.msra.mxu0 0.0
    %9142 = vmatprep.subr.mxu0 0.0
    %9143 = vmatpush1.msra.mxu0 0.0
    %9144 = vmatprep.subr.mxu0 0.0
    %9145 = vmatpush1.msra.mxu0 0.0
    %9146 = vmatprep.mubr.f32.mxu0 0.0
    %9147 = vmatmul.mubr.f32.gmra.mrb[0].mxu0 %v8938
    %v9148 = vpop.f32.mrb[0].mxu0
    %v9149 = vadd.f32 %v9078, %v9148
    %v9150 = vpop.f32.mrb[0].mxu0
    %v9151 = vadd.f32 %v9080, %v9150
    %9152 = vdwg.mxu0
    %v9153 = vsel %vm2153, %v8933, 0.0
    %v9154 = vrot.slane %v9153, 4
    %v9155 = vadd.f32 %v9153, %v9154
    %v9156 = vrot.slane %v9155, 2
    %v9157 = vadd.f32 %v9155, %v9156
    %v9158 = vrot.slane %v9157, 1
    %v9159 = vadd.f32 %v9157, %v9158
    %v9160 = vsel %vm2168, %v8935, 0.0
    %v9161 = vrot.slane %v9160, 4
    %v9162 = vadd.f32 %v9160, %v9161
    %v9163 = vrot.slane %v9162, 2
    %v9164 = vadd.f32 %v9162, %v9163
    %v9165 = vrot.slane %v9164, 1
    %v9166 = vadd.f32 %v9164, %v9165
    %v9167 = vmul.f32 %v8933, %v8933
    %v9168 = vmul.f32 %v8935, %v8935
    %v9169 = vsel %vm2153, %v9167, 0.0
    %v9170 = vrot.slane %v9169, 4
    %v9171 = vadd.f32 %v9169, %v9170
    %v9172 = vrot.slane %v9171, 2
    %v9173 = vadd.f32 %v9171, %v9172
    %v9174 = vrot.slane %v9173, 1
    %v9175 = vadd.f32 %v9173, %v9174
    %v9176 = vsel %vm2168, %v9168, 0.0
    %v9177 = vrot.slane %v9176, 4
    %v9178 = vadd.f32 %v9176, %v9177
    %v9179 = vrot.slane %v9178, 2
    %v9180 = vadd.f32 %v9178, %v9179
    %v9181 = vrot.slane %v9180, 1
    %v9182 = vadd.f32 %v9180, %v9181
    %v9183 = vsel %vm2153, %v9149, 0.0
    %v9184 = vrot.slane %v9183, 4
    %v9185 = vadd.f32 %v9183, %v9184
    %v9186 = vrot.slane %v9185, 2
    %v9187 = vadd.f32 %v9185, %v9186
    %v9188 = vrot.slane %v9187, 1
    %v9189 = vadd.f32 %v9187, %v9188
    %v9190 = vsel %vm2168, %v9151, 0.0
    %v9191 = vrot.slane %v9190, 4
    %v9192 = vadd.f32 %v9190, %v9191
    %v9193 = vrot.slane %v9192, 2
    %v9194 = vadd.f32 %v9192, %v9193
    %v9195 = vrot.slane %v9194, 1
    %v9196 = vadd.f32 %v9194, %v9195
    %v9197 = vadd.f32 %v9159, %v9189
    %v9198 = vadd.f32 %v9166, %v9196
    %v9199 = vmul.f32 %v9149, %v9149
    %v9200 = vmul.f32 %v9151, %v9151
    %v9201 = vsel %vm2153, %v9199, 0.0
    %v9202 = vrot.slane %v9201, 4
    %v9203 = vadd.f32 %v9201, %v9202
    %v9204 = vrot.slane %v9203, 2
    %v9205 = vadd.f32 %v9203, %v9204
    %v9206 = vrot.slane %v9205, 1
    %v9207 = vadd.f32 %v9205, %v9206
    %v9208 = vsel %vm2168, %v9200, 0.0
    %v9209 = vrot.slane %v9208, 4
    %v9210 = vadd.f32 %v9208, %v9209
    %v9211 = vrot.slane %v9210, 2
    %v9212 = vadd.f32 %v9210, %v9211
    %v9213 = vrot.slane %v9212, 1
    %v9214 = vadd.f32 %v9212, %v9213
    %v9215 = vadd.f32 %v9175, %v9207
    %v9216 = vadd.f32 %v9182, %v9214
    %v9217 = vmul.f32 %v9197, 0.071428575
    %v9218 = vmul.f32 %v9198, 0.071428575
    %v9219 = vmul.f32 %v9215, 0.071428575
    %v9220 = vmul.f32 %v9216, 0.071428575
    %v9221 = vmul.f32 %v9217, %v9217
    %v9222 = vmul.f32 %v9218, %v9218
    %v9223 = vsub.f32 %v9219, %v9221
    %v9224 = vsub.f32 %v9220, %v9222
    %v9225 = vld [vmem:[#allocation22] sm:$0x3]
    %v9226 = vadd.f32 %v9223, 1e-05
    %v9227 = vadd.f32 %v9224, 1e-05
    %v9228 = vrsqrt.pop %v9226
    %v9229 = vrsqrt.pop %v9227
    %v9232 = vcombine.low %v9228, %v9229
    %v9234 = vunpack.c.l.s4 1966171168
    %v9235 = vunpack.c.0.s8 %v9234
    %v9236 = vlaneseq
    %v9237 = vshrl.u32 %v9236, 7
    %v9238 = vsub.s32 %v9235, %v9237
    %v9239 = vrot.slane %v9232, %v9238
    %v9241 = vunpack.c.l.s4 1966171168
    %v9242 = vunpack.c.0.s8 %v9241
    %v9243 = vlaneseq
    %v9244 = vshrl.u32 %v9243, 7
    %v9245 = vsub.s32 %v9242, %v9244
    %v9246 = vrot.slane %v9239, %v9245
    %v9248 = vmul.f32 %v9225, %v9246
    %v9249 = vld [vmem:[#allocation24] sm:$0x3]
    %v9251 = vlaneseq
    %v9252 = vshrl.u32 %v9251, 7
    %v9253 = vsub.s32 0, %v9252
    %v9254 = vrot.slane %v9248, %v9253
    %v9255 = vlaneseq
    %v9256 = vshrl.u32 %v9255, 7
    %v9257 = vsub.s32 1, %v9256
    %v9258 = vrot.slane %v9248, %v9257
    %v9261 = vmul.f32 %v9217, %v9254
    %v9262 = vmul.f32 %v9218, %v9258
    %v9265 = vcombine.low %v9261, %v9262
    %v9267 = vunpack.c.l.s4 1966171168
    %v9268 = vunpack.c.0.s8 %v9267
    %v9269 = vlaneseq
    %v9270 = vshrl.u32 %v9269, 7
    %v9271 = vsub.s32 %v9268, %v9270
    %v9272 = vrot.slane %v9265, %v9271
    %v9274 = vunpack.c.l.s4 1966171168
    %v9275 = vunpack.c.0.s8 %v9274
    %v9276 = vlaneseq
    %v9277 = vshrl.u32 %v9276, 7
    %v9278 = vsub.s32 %v9275, %v9277
    %v9279 = vrot.slane %v9272, %v9278
    %v9281 = vsub.f32 %v9249, %v9279
    %v9282 = vmul.f32 %v8933, %v9254
    %v9283 = vmul.f32 %v8935, %v9258
    %v9285 = vlaneseq
    %v9286 = vshrl.u32 %v9285, 7
    %v9287 = vsub.s32 0, %v9286
    %v9288 = vrot.slane %v9281, %v9287
    %v9289 = vlaneseq
    %v9290 = vshrl.u32 %v9289, 7
    %v9291 = vsub.s32 1, %v9290
    %v9292 = vrot.slane %v9281, %v9291
    %v9295 = vadd.f32 %v9282, %v9288
    %v9296 = vadd.f32 %v9283, %v9292
    %v9297 = vmax.f32 %v9295, 0.0
    %v9298 = vmax.f32 %v9296, 0.0
    %v9299 = vmul.f32 %v9149, %v9254
    %v9300 = vmul.f32 %v9151, %v9258
    %v9301 = vadd.f32 %v9299, %v9288
    %v9302 = vadd.f32 %v9300, %v9292
    %v9303 = vmax.f32 %v9301, 0.0
    %v9304 = vmax.f32 %v9302, 0.0
    %v9305 = vadd.f32 %v620, %v624
    %v9306 = vadd.f32 %v9305, %v628
    %v9307 = vmul.f32 %v9306, 0.33333334
    %v9309 = vsel %vm629, %v9307, 0
    %9311 = vmatprep.subr.mxu0 0.0
    %9312 = vmatpush1.msra.mxu0 %v245
    %9313 = vmatprep.subr.mxu0 0.0
    %9314 = vmatpush1.msra.mxu0 %v246
    %9315 = vmatprep.subr.mxu0 0.0
    %9316 = vmatpush1.msra.mxu0 0.0
    %9317 = vmatprep.subr.mxu0 0.0
    %9318 = vmatpush1.msra.mxu0 0.0
    %9319 = vmatprep.subr.mxu0 0.0
    %9320 = vmatpush1.msra.mxu0 0.0
    %9321 = vmatprep.subr.mxu0 0.0
    %9322 = vmatpush1.msra.mxu0 0.0
    %9323 = vmatprep.subr.mxu0 0.0
    %9324 = vmatpush1.msra.mxu0 0.0
    %9325 = vmatprep.subr.mxu0 0.0
    %9326 = vmatpush1.msra.mxu0 0.0
    %9327 = vmatprep.subr.mxu0 0.0
    %9328 = vmatpush1.msra.mxu0 0.0
    %9329 = vmatprep.subr.mxu0 0.0
    %9330 = vmatpush1.msra.mxu0 0.0
    %9331 = vmatprep.subr.mxu0 0.0
    %9332 = vmatpush1.msra.mxu0 0.0
    %9333 = vmatprep.subr.mxu0 0.0
    %9334 = vmatpush1.msra.mxu0 0.0
    %9335 = vmatprep.subr.mxu0 0.0
    %9336 = vmatpush1.msra.mxu0 0.0
    %9337 = vmatprep.subr.mxu0 0.0
    %9338 = vmatpush1.msra.mxu0 0.0
    %9339 = vmatprep.subr.mxu0 0.0
    %9340 = vmatpush1.msra.mxu0 0.0
    %9341 = vmatprep.subr.mxu0 0.0
    %9342 = vmatpush1.msra.mxu0 0.0
    %9343 = vmatprep.subr.mxu0 0.0
    %9344 = vmatpush1.msra.mxu0 0.0
    %9345 = vmatprep.subr.mxu0 0.0
    %9346 = vmatpush1.msra.mxu0 0.0
    %9347 = vmatprep.subr.mxu0 0.0
    %9348 = vmatpush1.msra.mxu0 0.0
    %9349 = vmatprep.subr.mxu0 0.0
    %9350 = vmatpush1.msra.mxu0 0.0
    %9351 = vmatprep.subr.mxu0 0.0
    %9352 = vmatpush1.msra.mxu0 0.0
    %9353 = vmatprep.subr.mxu0 0.0
    %9354 = vmatpush1.msra.mxu0 0.0
    %9355 = vmatprep.subr.mxu0 0.0
    %9356 = vmatpush1.msra.mxu0 0.0
    %9357 = vmatprep.subr.mxu0 0.0
    %9358 = vmatpush1.msra.mxu0 0.0
    %9359 = vmatprep.subr.mxu0 0.0
    %9360 = vmatpush1.msra.mxu0 0.0
    %9361 = vmatprep.subr.mxu0 0.0
    %9362 = vmatpush1.msra.mxu0 0.0
    %9363 = vmatprep.subr.mxu0 0.0
    %9364 = vmatpush1.msra.mxu0 0.0
    %9365 = vmatprep.subr.mxu0 0.0
    %9366 = vmatpush1.msra.mxu0 0.0
    %9367 = vmatprep.subr.mxu0 0.0
    %9368 = vmatpush1.msra.mxu0 0.0
    %9369 = vmatprep.subr.mxu0 0.0
    %9370 = vmatpush1.msra.mxu0 0.0
    %9371 = vmatprep.subr.mxu0 0.0
    %9372 = vmatpush1.msra.mxu0 0.0
    %9373 = vmatprep.subr.mxu0 0.0
    %9374 = vmatpush1.msra.mxu0 0.0
    %9375 = vmatprep.mubr.f32.mxu0 0.0
    %9376 = vmatmul.mubr.f32.gmra.mrb[0].mxu0 %v9309
    %v9377 = vpop.f32.mrb[0].mxu0
    %v9378 = vadd.f32 0.0, %v9377
    %v9379 = vpop.f32.mrb[0].mxu0
    %9380 = vdwg.mxu0
    %9381 = vmatprep.subr.mxu0 0.0
    %9382 = vmatpush1.msra.mxu0 %v248
    %9383 = vmatprep.subr.mxu0 0.0
    %9384 = vmatpush1.msra.mxu0 %v249
    %9385 = vmatprep.subr.mxu0 0.0
    %9386 = vmatpush1.msra.mxu0 0.0
    %9387 = vmatprep.subr.mxu0 0.0
    %9388 = vmatpush1.msra.mxu0 0.0
    %9389 = vmatprep.subr.mxu0 0.0
    %9390 = vmatpush1.msra.mxu0 0.0
    %9391 = vmatprep.subr.mxu0 0.0
    %9392 = vmatpush1.msra.mxu0 0.0
    %9393 = vmatprep.subr.mxu0 0.0
    %9394 = vmatpush1.msra.mxu0 0.0
    %9395 = vmatprep.subr.mxu0 0.0
    %9396 = vmatpush1.msra.mxu0 0.0
    %9397 = vmatprep.subr.mxu0 0.0
    %9398 = vmatpush1.msra.mxu0 0.0
    %9399 = vmatprep.subr.mxu0 0.0
    %9400 = vmatpush1.msra.mxu0 0.0
    %9401 = vmatprep.subr.mxu0 0.0
    %9402 = vmatpush1.msra.mxu0 0.0
    %9403 = vmatprep.subr.mxu0 0.0
    %9404 = vmatpush1.msra.mxu0 0.0
    %9405 = vmatprep.subr.mxu0 0.0
    %9406 = vmatpush1.msra.mxu0 0.0
    %9407 = vmatprep.subr.mxu0 0.0
    %9408 = vmatpush1.msra.mxu0 0.0
    %9409 = vmatprep.subr.mxu0 0.0
    %9410 = vmatpush1.msra.mxu0 0.0
    %9411 = vmatprep.subr.mxu0 0.0
    %9412 = vmatpush1.msra.mxu0 0.0
    %9413 = vmatprep.subr.mxu0 0.0
    %9414 = vmatpush1.msra.mxu0 0.0
    %9415 = vmatprep.subr.mxu0 0.0
    %9416 = vmatpush1.msra.mxu0 0.0
    %9417 = vmatprep.subr.mxu0 0.0
    %9418 = vmatpush1.msra.mxu0 0.0
    %9419 = vmatprep.subr.mxu0 0.0
    %9420 = vmatpush1.msra.mxu0 0.0
    %9421 = vmatprep.subr.mxu0 0.0
    %9422 = vmatpush1.msra.mxu0 0.0
    %9423 = vmatprep.subr.mxu0 0.0
    %9424 = vmatpush1.msra.mxu0 0.0
    %9425 = vmatprep.subr.mxu0 0.0
    %9426 = vmatpush1.msra.mxu0 0.0
    %9427 = vmatprep.subr.mxu0 0.0
    %9428 = vmatpush1.msra.mxu0 0.0
    %9429 = vmatprep.subr.mxu0 0.0
    %9430 = vmatpush1.msra.mxu0 0.0
    %9431 = vmatprep.subr.mxu0 0.0
    %9432 = vmatpush1.msra.mxu0 0.0
    %9433 = vmatprep.subr.mxu0 0.0
    %9434 = vmatpush1.msra.mxu0 0.0
    %9435 = vmatprep.subr.mxu0 0.0
    %9436 = vmatpush1.msra.mxu0 0.0
    %9437 = vmatprep.subr.mxu0 0.0
    %9438 = vmatpush1.msra.mxu0 0.0
    %9439 = vmatprep.subr.mxu0 0.0
    %9440 = vmatpush1.msra.mxu0 0.0
    %9441 = vmatprep.subr.mxu0 0.0
    %9442 = vmatpush1.msra.mxu0 0.0
    %9443 = vmatprep.subr.mxu0 0.0
    %9444 = vmatpush1.msra.mxu0 0.0
    %9445 = vmatprep.mubr.f32.mxu0 0.0
    %9446 = vmatmul.mubr.f32.gmra.mrb[0].mxu0 %v9309
    %v9447 = vpop.f32.mrb[0].mxu0
    %v9448 = vadd.f32 0.0, %v9447
    %v9449 = vpop.f32.mrb[0].mxu0
    %9450 = vdwg.mxu0
    %9453 = vrot.lane.b32.xlu0 %v9297, 64
    %v9454 = vpop.permute.xlu0 %9453
    %9455 = vrot.lane.b32.xlu0 %v9298, 64
    %v9456 = vpop.permute.xlu0 %9455
    %v9457 = vsel %vm443, %v9454, %v9456
    %v9460 = vsel %vm443, %v2370, %v9454
    %9461 = vst [vmem:[%s19] sm:$0x7f] %v2368
    %9462 = vst [vmem:[%s19 + $0x8] sm:$0x7f] %v2369
    %9463 = vst [vmem:[%s19 + $0x10] sm:$0x7f] %v9460
    %9464 = vst [vmem:[%s19 + $0x18] sm:$0x7f] %v9457
    %9465 = vst [vmem:[%s19 + $0x20] sm:$0x7f] %v9378
    %9468 = vrot.lane.b32.xlu0 %v9303, 64
    %v9469 = vpop.permute.xlu0 %9468
    %9470 = vrot.lane.b32.xlu0 %v9304, 64
    %v9471 = vpop.permute.xlu0 %9470
    %v9472 = vsel %vm443, %v9469, %v9471
    %v9475 = vsel %vm443, %v2379, %v9469
    %s9476 = scalar_lea.vmem %s19, 40
    %9477 = vst [vmem:[%s9476] sm:$0x7f] %v2377
    %9478 = vst [vmem:[%s9476 + $0x8] sm:$0x7f] %v2378
    %9479 = vst [vmem:[%s9476 + $0x10] sm:$0x7f] %v9475
    %9480 = vst [vmem:[%s9476 + $0x18] sm:$0x7f] %v9472
    %9481 = vst [vmem:[%s9476 + $0x20] sm:$0x7f] %v9448
    // Predicated region
    $region138: #{inception_d_forward.1} parent=1 // pred_check
      _
    $region139: #{inception_d_forward.1} parent=1 // pred_check_branch
      %9483 = sbr.rel (0) target = $region141
    $region140: #{inception_d_forward.1} parent=1 // pred_region
      _
    $region141: #{inception_d_forward.1} parent=1 // pred_fallthru
      _
    // Predicated region
    $region142: #{inception_d_forward.1} parent=1 // pred_check
      _
    $region143: #{inception_d_forward.1} parent=1 // pred_check_branch
      %9485 = sbr.rel (0) target = $region145
    $region144: #{inception_d_forward.1} parent=1 // pred_region
      _
    $region145: #{inception_d_forward.1} parent=1 // pred_fallthru
      _
    %9486 = vsyncpa [#allocation3], 1
    %9487 = vsyncpa [#allocation5], 1
    %9488 = vsyncpa [#allocation8], 1
    %9489 = vsyncpa [#allocation11], 1
    %9490 = vsyncpa [#allocation14], 1
    %9491 = vsyncpa [#allocation17], 1
    %9492 = vsyncpa [#allocation20], 1
    %9493 = vsyncpa [#allocation23], 1

</llo_original>
